<compile_context>
chip_gen: v5e
topology: v5e:2x2
jax: 0.10.0
libtpu: 0.0.40
codegen_flags: <defaults>
</compile_context>

<pallas_src>
import numpy as np
import jax
import jax.numpy as jnp
from jax import lax
from jax.experimental import pallas as pl
from jax.experimental.pallas import tpu as pltpu

# ---------------- problem sizes (small, consistent with the module) ----------------
B = 2          # batch
N = 16         # spatial grid size s
IN_C = 2       # input channels (a(x), x)
WIDTH = 32     # self.width
MODES = 4      # self.modes1
HID = 128      # fc1 hidden
NLAYERS = 4

_INV_SQRT2 = 0.7071067811865476

# row layout of the packed 512-lane constant slab
ROW_WLIFT = 0                              # rows [0, 32): kron(I_N, fc0.W)  (N*IN_C, N*WIDTH)
ROW_BLIFT = N * IN_C                       # row 32      : fc0 bias tiled over spatial
ROW_BLAYER = ROW_BLIFT + 1                 # rows 33..35 : layer 0..2 biases (tiled)
ROW_BFC2 = ROW_BLAYER + (NLAYERS - 1)      # row 36      : fc2 bias broadcast into lanes [0, N)
S512_ROWS = 40


def _gelu_exact(x):
    # F.gelu default (erf-based, exact)
    return 0.5 * x * (1.0 + lax.erf(x * _INV_SQRT2))


# ---------------------------- the Pallas kernel ------------------------------------
def fno_kernel(x_ref, mops_ref, m3fc1_ref, fc2_ref, s512_ref, o_ref):
    # lift: fc0 applied at every spatial point == x_flat @ kron(I_N, wfc0)
    h = (jnp.dot(x_ref[...], s512_ref[ROW_WLIFT:ROW_WLIFT + N * IN_C, :],
                 preferred_element_type=jnp.float32)
         + s512_ref[ROW_BLIFT:ROW_BLIFT + 1, :])                         # (B, N*WIDTH)

    # Fourier layers 0..2: fused (spectral conv + 1x1 conv) operator, then GELU.
    for l in range(NLAYERS - 1):
        h = _gelu_exact(
            jnp.dot(h, mops_ref[l], preferred_element_type=jnp.float32)
            + s512_ref[ROW_BLAYER + l:ROW_BLAYER + l + 1, :])            # (B, N*WIDTH)

    # Fourier layer 3 (no activation after it) fused with fc1, then GELU.
    h = _gelu_exact(
        jnp.dot(h, m3fc1_ref[0:N * WIDTH, :], preferred_element_type=jnp.float32)
        + m3fc1_ref[N * WIDTH:N * WIDTH + 1, :])                         # (B, N*HID)

    # fc2 (block-diagonal over the N spatial points) + bias.
    o_ref[...] = (jnp.dot(h, fc2_ref[...], preferred_element_type=jnp.float32)
                  + s512_ref[ROW_BFC2:ROW_BFC2 + 1, 0:N])                # (B, N)


def fno_forward(x, operands):
    """x: (B, N, IN_C) float32 -> (B, N, 1) float32."""
    mops, m3fc1b, fc2big, s512 = operands
    Bb, Nn, Ci = x.shape
    x_big = x.reshape(Bb, Nn * Ci)         # batch folded into the matmul M dimension

    out = pl.pallas_call(
        fno_kernel,
        out_shape=jax.ShapeDtypeStruct((Bb, Nn), jnp.float32),
        grid_spec=pltpu.PrefetchScalarGridSpec(
            num_scalar_prefetch=0,
            grid=(1,),
            in_specs=[
                pl.BlockSpec(x_big.shape, lambda i: (0, 0)),
                pl.BlockSpec(mops.shape, lambda i: (0, 0, 0)),
                pl.BlockSpec(m3fc1b.shape, lambda i: (0, 0)),
                pl.BlockSpec(fc2big.shape, lambda i: (0, 0)),
                pl.BlockSpec(s512.shape, lambda i: (0, 0)),
            ],
            out_specs=pl.BlockSpec((Bb, Nn), lambda i: (0, 0)),
        ),
        compiler_params=pltpu.CompilerParams(
            dimension_semantics=("arbitrary",),
            vmem_limit_bytes=32 * 1024 * 1024,
        ),
    )(x_big, mops, m3fc1b, fc2big, s512)
    return out[:, :, None]


# ---------------------- raw module parameters (PyTorch-equivalent) ------------------
def make_params():
    keys = jax.random.split(jax.random.PRNGKey(0), 10)
    u = jax.random.uniform

    b_fc0 = 1.0 / np.sqrt(IN_C)
    wfc0 = u(keys[0], (IN_C, WIDTH), jnp.float32, -b_fc0, b_fc0)          # fc0.weight^T
    bfc0 = u(keys[1], (1, WIDTH), jnp.float32, -b_fc0, b_fc0)

    scale = 1.0 / (WIDTH * WIDTH)
    wre = scale * u(keys[2], (NLAYERS, MODES, WIDTH, WIDTH), jnp.float32)  # Re(weights1) (l,m,cin,cout)
    wim = scale * u(keys[3], (NLAYERS, MODES, WIDTH, WIDTH), jnp.float32)  # Im(weights1)

    b_w = 1.0 / np.sqrt(WIDTH)
    wc = u(keys[4], (NLAYERS, WIDTH, WIDTH), jnp.float32, -b_w, b_w)       # 1x1 conv (l,cin,cout)
    bc = u(keys[5], (NLAYERS, WIDTH), jnp.float32, -b_w, b_w)

    wfc1 = u(keys[6], (WIDTH, HID), jnp.float32, -b_w, b_w)                # fc1.weight^T
    bfc1 = u(keys[7], (1, HID), jnp.float32, -b_w, b_w)
    b_h = 1.0 / np.sqrt(HID)
    wfc2 = u(keys[8], (HID, 1), jnp.float32, -b_h, b_h)                    # fc2.weight^T
    bfc2 = u(keys[9], (1, 1), jnp.float32, -b_h, b_h)

    return (wfc0, bfc0, wre, wim, wc, bc, wfc1, bfc1, wfc2, bfc2)


# ------------------- host-side operator precompute (float64, exact) -----------------
def build_operands(params):
    wfc0, bfc0, wre, wim, wc, bc, wfc1, bfc1, wfc2, bfc2 = [
        np.asarray(p, np.float64) for p in params]

    # real DFT matrices for rfft/irfft with norm='forward' (first MODES bins only)
    n = np.arange(N)
    m = np.arange(MODES)
    ang = 2.0 * np.pi * np.outer(m, n) / N
    fcm = np.cos(ang) / N                                  # (MODES, N)  Re(rfft)
    fsm = -np.sin(ang) / N                                 # (MODES, N)  Im(rfft)
    herm = np.where((m == 0) | (m == N // 2), 1.0, 2.0)    # hermitian doubling
    ang_t = 2.0 * np.pi * np.outer(n, m) / N
    gcm = np.cos(ang_t) * herm[None, :]                    # (N, MODES)  irfft cos
    gsm = -np.sin(ang_t) * herm[None, :]                   # (N, MODES)  irfft -sin

    eye_n = np.eye(N)

    def layer_op(l):
        # spectral conv as a dense (N*C, N*C) map on the per-sample flattened (n, c) vector
        s4 = (np.einsum('km,mn,mio->niko', gcm, fcm, wre[l])
              - np.einsum('km,mn,mio->niko', gcm, fsm, wim[l])
              + np.einsum('km,mn,mio->niko', gsm, fcm, wim[l])
              + np.einsum('km,mn,mio->niko', gsm, fsm, wre[l]))
        return s4.reshape(N * WIDTH, N * WIDTH) + np.kron(eye_n, wc[l])

    # layers 0..2 keep their own operator (GELU follows each)
    mops = np.stack([layer_op(l) for l in range(NLAYERS - 1)]).astype(np.float32)

    # layer 3 (linear into fc1) fused with fc1: (N*C, N*HID), bias appended as last row
    k1 = np.kron(eye_n, wfc1)                              # (N*C, N*HID)
    b1 = np.tile(bfc1[0], N)                               # (N*HID,)
    m3 = layer_op(NLAYERS - 1)
    b3 = np.tile(bc[NLAYERS - 1], N)
    m3fc1 = m3 @ k1
    b3fc1 = b3 @ k1 + b1
    m3fc1b = np.concatenate([m3fc1, b3fc1[None, :]], axis=0).astype(np.float32)  # (513, 2048)

    # fc2 block-diagonal over spatial points: (N*HID, N)
    fc2big = np.kron(eye_n, wfc2).astype(np.float32)       # (2048, 16)

    # packed slab of small 512-wide constants: lift operator + all biases
    s512 = np.zeros((S512_ROWS, N * WIDTH), np.float32)
    s512[ROW_WLIFT:ROW_WLIFT + N * IN_C, :] = np.kron(eye_n, wfc0)     # lift = kron(I_N, fc0.W)
    s512[ROW_BLIFT, :] = np.tile(bfc0[0], N)
    for l in range(NLAYERS - 1):
        s512[ROW_BLAYER + l, :] = np.tile(bc[l], N)
    s512[ROW_BFC2, :N] = bfc2[0, 0]

    return (jnp.asarray(mops), jnp.asarray(m3fc1b),
            jnp.asarray(fc2big), jnp.asarray(s512))


# --------------------------- pure-JAX reference (uses real FFT) ---------------------
def reference_forward(x, params):
    (wfc0, bfc0, wre, wim, wc, bc, wfc1, bfc1, wfc2, bfc2) = params
    h = x @ wfc0 + bfc0[0]                       # (B, N, C)
    h = jnp.transpose(h, (0, 2, 1))              # (B, C, N)
    for l in range(NLAYERS):
        xft = jnp.fft.rfft(h, norm='forward')    # (B, C, N//2+1)
        wcplx = (jnp.transpose(wre[l], (1, 2, 0)) +
                 1j * jnp.transpose(wim[l], (1, 2, 0))).astype(jnp.complex64)  # (cin, cout, m)
        low = jnp.einsum('abc,bdc->adc', xft[:, :, :MODES], wcplx)
        oft = jnp.zeros((x.shape[0], WIDTH, N // 2 + 1), jnp.complex64).at[:, :, :MODES].set(low)
        x1 = jnp.fft.irfft(oft, n=N, norm='forward')
        x2 = jnp.einsum('bcn,co->bon', h, wc[l]) + bc[l][None, :, None]
        h = x1 + x2
        if l < NLAYERS - 1:
            h = _gelu_exact(h)
    h = jnp.transpose(h, (0, 2, 1))              # (B, N, C)
    h = _gelu_exact(h @ wfc1 + bfc1[0])
    return h @ wfc2 + bfc2[0]                    # (B, N, 1)


if __name__ == "__main__":
    params = make_params()
    operands = build_operands(params)
    x = jax.random.normal(jax.random.PRNGKey(0), (B, N, IN_C), dtype=jnp.float32)

    out = jax.block_until_ready(fno_forward(x, operands))
    assert out.shape == (B, N, 1) and out.dtype == jnp.float32

    with jax.default_matmul_precision("highest"):
        ref = jax.block_until_ready(reference_forward(x, params))
    np.testing.assert_allclose(np.asarray(out), np.asarray(ref), rtol=3e-2, atol=3e-3)

    print("KERNEL_OK")
</pallas_src>

<mosaic_0001>
module attributes {stable_mosaic.version = 11 : i64} {
  func.func @fno_kernel(%arg0: i32, %arg1: memref<2x32xf32, #tpu.memory_space<vmem>>, %arg2: memref<3x512x512xf32, #tpu.memory_space<vmem>>, %arg3: memref<513x2048xf32, #tpu.memory_space<vmem>>, %arg4: memref<2048x16xf32, #tpu.memory_space<vmem>>, %arg5: memref<40x512xf32, #tpu.memory_space<vmem>>, %arg6: memref<2x16xf32, #tpu.memory_space<vmem>>) attributes {dimension_semantics = [#tpu.dimension_semantics<arbitrary>], iteration_bounds = array<i64: 1>, scalar_prefetch = 0 : i64, scratch_operands = 0 : i64, tpu.core_type = #tpu.core_type<tc>, window_params = [{pipeline_mode = #tpu.pipeline_mode<synchronous>, transform_indices = @transform_0, window_bounds = array<i64: 2, 32>}, {pipeline_mode = #tpu.pipeline_mode<synchronous>, transform_indices = @transform_1, window_bounds = array<i64: 3, 512, 512>}, {pipeline_mode = #tpu.pipeline_mode<synchronous>, transform_indices = @transform_2, window_bounds = array<i64: 513, 2048>}, {pipeline_mode = #tpu.pipeline_mode<synchronous>, transform_indices = @transform_3, window_bounds = array<i64: 2048, 16>}, {pipeline_mode = #tpu.pipeline_mode<synchronous>, transform_indices = @transform_4, window_bounds = array<i64: 40, 512>}, {pipeline_mode = #tpu.pipeline_mode<synchronous>, transform_indices = @transform_5, window_bounds = array<i64: 2, 16>}]} {
    %c0 = arith.constant 0 : index
    %c0_0 = arith.constant 0 : index
    %0 = vector.load %arg1[%c0, %c0_0] : memref<2x32xf32, #tpu.memory_space<vmem>>, vector<2x32xf32>
    %c0_1 = arith.constant 0 : index
    %c0_2 = arith.constant 0 : index
    %1 = vector.load %arg5[%c0_1, %c0_2] : memref<40x512xf32, #tpu.memory_space<vmem>>, vector<32x512xf32>
    %cst = arith.constant dense<0.000000e+00> : vector<2x512xf32>
    %2 = tpu.matmul %0, %1, %cst {dimension_numbers = #tpu.dot_dimension_numbers<[1], [0], [0], [1], [0, 0, 1, 1], [], []>} : vector<2x32xf32>, vector<32x512xf32>, vector<2x512xf32> -> vector<2x512xf32>
    %c32 = arith.constant 32 : index
    %c0_3 = arith.constant 0 : index
    %3 = vector.load %arg5[%c32, %c0_3] : memref<40x512xf32, #tpu.memory_space<vmem>>, vector<1x512xf32>
    %4 = vector.broadcast %3 : vector<1x512xf32> to vector<2x512xf32>
    %5 = arith.addf %2, %4 : vector<2x512xf32>
    %c0_4 = arith.constant 0 : index
    %c0_5 = arith.constant 0 : index
    %c0_6 = arith.constant 0 : index
    %6 = vector.load %arg2[%c0_4, %c0_5, %c0_6] : memref<3x512x512xf32, #tpu.memory_space<vmem>>, vector<1x512x512xf32>
    %7 = vector.shape_cast %6 : vector<1x512x512xf32> to vector<512x512xf32>
    %cst_7 = arith.constant dense<0.000000e+00> : vector<2x512xf32>
    %8 = tpu.matmul %5, %7, %cst_7 {dimension_numbers = #tpu.dot_dimension_numbers<[1], [0], [0], [1], [0, 0, 1, 1], [], []>} : vector<2x512xf32>, vector<512x512xf32>, vector<2x512xf32> -> vector<2x512xf32>
    %c33 = arith.constant 33 : index
    %c0_8 = arith.constant 0 : index
    %9 = vector.load %arg5[%c33, %c0_8] : memref<40x512xf32, #tpu.memory_space<vmem>>, vector<1x512xf32>
    %10 = vector.broadcast %9 : vector<1x512xf32> to vector<2x512xf32>
    %11 = arith.addf %8, %10 : vector<2x512xf32>
    %cst_9 = arith.constant 5.000000e-01 : f32
    %12 = vector.broadcast %cst_9 : f32 to vector<2x512xf32>
    %13 = arith.mulf %12, %11 : vector<2x512xf32>
    %cst_10 = arith.constant 0.707106769 : f32
    %14 = vector.broadcast %cst_10 : f32 to vector<2x512xf32>
    %15 = arith.mulf %11, %14 : vector<2x512xf32>
    %16 = math.erf %15 : vector<2x512xf32>
    %cst_11 = arith.constant 1.000000e+00 : f32
    %17 = vector.broadcast %cst_11 : f32 to vector<2x512xf32>
    %18 = arith.addf %17, %16 : vector<2x512xf32>
    %19 = arith.mulf %13, %18 : vector<2x512xf32>
    %c1 = arith.constant 1 : index
    %c0_12 = arith.constant 0 : index
    %c0_13 = arith.constant 0 : index
    %20 = vector.load %arg2[%c1, %c0_12, %c0_13] : memref<3x512x512xf32, #tpu.memory_space<vmem>>, vector<1x512x512xf32>
    %21 = vector.shape_cast %20 : vector<1x512x512xf32> to vector<512x512xf32>
    %cst_14 = arith.constant dense<0.000000e+00> : vector<2x512xf32>
    %22 = tpu.matmul %19, %21, %cst_14 {dimension_numbers = #tpu.dot_dimension_numbers<[1], [0], [0], [1], [0, 0, 1, 1], [], []>} : vector<2x512xf32>, vector<512x512xf32>, vector<2x512xf32> -> vector<2x512xf32>
    %c34 = arith.constant 34 : index
    %c0_15 = arith.constant 0 : index
    %23 = vector.load %arg5[%c34, %c0_15] : memref<40x512xf32, #tpu.memory_space<vmem>>, vector<1x512xf32>
    %24 = vector.broadcast %23 : vector<1x512xf32> to vector<2x512xf32>
    %25 = arith.addf %22, %24 : vector<2x512xf32>
    %cst_16 = arith.constant 5.000000e-01 : f32
    %26 = vector.broadcast %cst_16 : f32 to vector<2x512xf32>
    %27 = arith.mulf %26, %25 : vector<2x512xf32>
    %cst_17 = arith.constant 0.707106769 : f32
    %28 = vector.broadcast %cst_17 : f32 to vector<2x512xf32>
    %29 = arith.mulf %25, %28 : vector<2x512xf32>
    %30 = math.erf %29 : vector<2x512xf32>
    %cst_18 = arith.constant 1.000000e+00 : f32
    %31 = vector.broadcast %cst_18 : f32 to vector<2x512xf32>
    %32 = arith.addf %31, %30 : vector<2x512xf32>
    %33 = arith.mulf %27, %32 : vector<2x512xf32>
    %c2 = arith.constant 2 : index
    %c0_19 = arith.constant 0 : index
    %c0_20 = arith.constant 0 : index
    %34 = vector.load %arg2[%c2, %c0_19, %c0_20] : memref<3x512x512xf32, #tpu.memory_space<vmem>>, vector<1x512x512xf32>
    %35 = vector.shape_cast %34 : vector<1x512x512xf32> to vector<512x512xf32>
    %cst_21 = arith.constant dense<0.000000e+00> : vector<2x512xf32>
    %36 = tpu.matmul %33, %35, %cst_21 {dimension_numbers = #tpu.dot_dimension_numbers<[1], [0], [0], [1], [0, 0, 1, 1], [], []>} : vector<2x512xf32>, vector<512x512xf32>, vector<2x512xf32> -> vector<2x512xf32>
    %c35 = arith.constant 35 : index
    %c0_22 = arith.constant 0 : index
    %37 = vector.load %arg5[%c35, %c0_22] : memref<40x512xf32, #tpu.memory_space<vmem>>, vector<1x512xf32>
    %38 = vector.broadcast %37 : vector<1x512xf32> to vector<2x512xf32>
    %39 = arith.addf %36, %38 : vector<2x512xf32>
    %cst_23 = arith.constant 5.000000e-01 : f32
    %40 = vector.broadcast %cst_23 : f32 to vector<2x512xf32>
    %41 = arith.mulf %40, %39 : vector<2x512xf32>
    %cst_24 = arith.constant 0.707106769 : f32
    %42 = vector.broadcast %cst_24 : f32 to vector<2x512xf32>
    %43 = arith.mulf %39, %42 : vector<2x512xf32>
    %44 = math.erf %43 : vector<2x512xf32>
    %cst_25 = arith.constant 1.000000e+00 : f32
    %45 = vector.broadcast %cst_25 : f32 to vector<2x512xf32>
    %46 = arith.addf %45, %44 : vector<2x512xf32>
    %47 = arith.mulf %41, %46 : vector<2x512xf32>
    %c0_26 = arith.constant 0 : index
    %c0_27 = arith.constant 0 : index
    %48 = vector.load %arg3[%c0_26, %c0_27] : memref<513x2048xf32, #tpu.memory_space<vmem>>, vector<512x2048xf32>
    %cst_28 = arith.constant dense<0.000000e+00> : vector<2x2048xf32>
    %49 = tpu.matmul %47, %48, %cst_28 {dimension_numbers = #tpu.dot_dimension_numbers<[1], [0], [0], [1], [0, 0, 1, 1], [], []>} : vector<2x512xf32>, vector<512x2048xf32>, vector<2x2048xf32> -> vector<2x2048xf32>
    %c512 = arith.constant 512 : index
    %c0_29 = arith.constant 0 : index
    %50 = vector.load %arg3[%c512, %c0_29] : memref<513x2048xf32, #tpu.memory_space<vmem>>, vector<1x2048xf32>
    %51 = vector.broadcast %50 : vector<1x2048xf32> to vector<2x2048xf32>
    %52 = arith.addf %49, %51 : vector<2x2048xf32>
    %cst_30 = arith.constant 5.000000e-01 : f32
    %53 = vector.broadcast %cst_30 : f32 to vector<2x2048xf32>
    %54 = arith.mulf %53, %52 : vector<2x2048xf32>
    %cst_31 = arith.constant 0.707106769 : f32
    %55 = vector.broadcast %cst_31 : f32 to vector<2x2048xf32>
    %56 = arith.mulf %52, %55 : vector<2x2048xf32>
    %57 = math.erf %56 : vector<2x2048xf32>
    %cst_32 = arith.constant 1.000000e+00 : f32
    %58 = vector.broadcast %cst_32 : f32 to vector<2x2048xf32>
    %59 = arith.addf %58, %57 : vector<2x2048xf32>
    %60 = arith.mulf %54, %59 : vector<2x2048xf32>
    %c0_33 = arith.constant 0 : index
    %c0_34 = arith.constant 0 : index
    %61 = vector.load %arg4[%c0_33, %c0_34] : memref<2048x16xf32, #tpu.memory_space<vmem>>, vector<2048x16xf32>
    %cst_35 = arith.constant dense<0.000000e+00> : vector<2x16xf32>
    %62 = tpu.matmul %60, %61, %cst_35 {dimension_numbers = #tpu.dot_dimension_numbers<[1], [0], [0], [1], [0, 0, 1, 1], [], []>} : vector<2x2048xf32>, vector<2048x16xf32>, vector<2x16xf32> -> vector<2x16xf32>
    %c36 = arith.constant 36 : index
    %c0_36 = arith.constant 0 : index
    %63 = vector.load %arg5[%c36, %c0_36] : memref<40x512xf32, #tpu.memory_space<vmem>>, vector<1x16xf32>
    %64 = vector.broadcast %63 : vector<1x16xf32> to vector<2x16xf32>
    %65 = arith.addf %62, %64 : vector<2x16xf32>
    %c0_37 = arith.constant 0 : index
    %c0_38 = arith.constant 0 : index
    %66 = vector.load %arg6[%c0_37, %c0_38] : memref<2x16xf32, #tpu.memory_space<vmem>>, vector<2x16xf32>
    tpu.vector_store %arg6[%c0_37, %c0_38], %65 {strides = array<i32>} : memref<2x16xf32, #tpu.memory_space<vmem>>, vector<2x16xf32>,
    return
  }
  func.func @transform_0(%arg0: i32) -> (i32, i32) {
    %c0_i32 = arith.constant 0 : i32
    %c0_i32_0 = arith.constant 0 : i32
    %c0_i32_1 = arith.constant 0 : i32
    return %c0_i32, %c0_i32_0 : i32, i32
  }
  func.func @transform_1(%arg0: i32) -> (i32, i32, i32) {
    %c0_i32 = arith.constant 0 : i32
    %c0_i32_0 = arith.constant 0 : i32
    %c0_i32_1 = arith.constant 0 : i32
    %c0_i32_2 = arith.constant 0 : i32
    return %c0_i32, %c0_i32_0, %c0_i32_1 : i32, i32, i32
  }
  func.func @transform_2(%arg0: i32) -> (i32, i32) {
    %c0_i32 = arith.constant 0 : i32
    %c0_i32_0 = arith.constant 0 : i32
    %c0_i32_1 = arith.constant 0 : i32
    return %c0_i32, %c0_i32_0 : i32, i32
  }
  func.func @transform_3(%arg0: i32) -> (i32, i32) {
    %c0_i32 = arith.constant 0 : i32
    %c0_i32_0 = arith.constant 0 : i32
    %c0_i32_1 = arith.constant 0 : i32
    return %c0_i32, %c0_i32_0 : i32, i32
  }
  func.func @transform_4(%arg0: i32) -> (i32, i32) {
    %c0_i32 = arith.constant 0 : i32
    %c0_i32_0 = arith.constant 0 : i32
    %c0_i32_1 = arith.constant 0 : i32
    return %c0_i32, %c0_i32_0 : i32, i32
  }
  func.func @transform_5(%arg0: i32) -> (i32, i32) {
    %c0_i32 = arith.constant 0 : i32
    %c0_i32_0 = arith.constant 0 : i32
    %c0_i32_1 = arith.constant 0 : i32
    return %c0_i32, %c0_i32_0 : i32, i32
  }
}

</mosaic_0001>

<llo_original>
// kernel: tpu_custom_call.1
$region0: #{tpu_custom_call.1}
  #allocation0 [shape = 'u32[]', space=smem, size = 0x4, offset = 0x4, fixed_abs, tag = 'smem constant byte address 0x4 - core index']
  #allocation1 [shape = 'u32[72,128]{1,0:T(1,128)}', space=vmem, size = 0x9000, scoped, tag = 'internal scratch']
  %s0 = inlined_call_operand.hbm [shape: f32[2,32], index: 0, kind: input, shape index: {}]
  %s1 = inlined_call_operand.hbm [shape: f32[3,512,512], index: 1, kind: input, shape index: {}]
  %s2 = inlined_call_operand.hbm [shape: f32[513,2048], index: 2, kind: input, shape index: {}]
  %s3 = inlined_call_operand.vmem [shape: f32[2048,16], index: 3, kind: input, shape index: {}]
  %s4 = inlined_call_operand.hbm [shape: f32[40,512], index: 4, kind: input, shape index: {}]
  %s5 = inlined_call_operand.hbm [shape: f32[2,16], index: 5, kind: output, shape index: {}]
  %s6 = sld [smem:[#allocation0]]
  $region46: #{tpu_custom_call.1} parent=0
    _
  %s8 = ssub.s32 1, %s6
  %s9 = scalar_select 0, %s8, %s6
  $region1: #{tpu_custom_call.1} parent=0
    #allocation2 [shape = 'u8[1024]{0}', space=vmem, size = 0x400, scoped, tag = 'input window, operand 0, single buffered']
    #allocation3 [shape = 's32[1]{0}', space=sflag, size = 0x4, scoped, tag = 'scoped memory for tpu_custom_call.1']
    #allocation4 [shape = 's32[1]{0}', space=sflag, size = 0x4, scoped, tag = 'scoped memory for tpu_custom_call.1']
    #allocation5 [shape = 'u8[3145728]{0}', space=vmem, size = 0x300000, scoped, tag = 'input window, operand 1, single buffered']
    #allocation6 [shape = 's32[1]{0}', space=sflag, size = 0x4, scoped, tag = 'scoped memory for tpu_custom_call.1']
    #allocation7 [shape = 'u8[4259840]{0}', space=vmem, size = 0x410000, scoped, tag = 'input window, operand 2, single buffered']
    #allocation8 [shape = 'u8[81920]{0}', space=vmem, size = 0x14000, scoped, tag = 'input window, operand 4, single buffered']
    #allocation9 [shape = 's32[1]{0}', space=sflag, size = 0x4, scoped, tag = 'scoped memory for tpu_custom_call.1']
    #allocation10 [shape = 'u8[1024]{0}', space=vmem, size = 0x400, scoped, tag = 'output window, operand 0, single buffered']
    %10 = vsyncpa [#allocation3], 0
    %11 = vsyncpa [#allocation6], 0
    %12 = vsyncpa [#allocation9], 0
    %13 = vsyncpa [#allocation4], 0
    // Predicated region
    $region2: #{tpu_custom_call.1} parent=1 // pred_check
      _
    $region3: #{tpu_custom_call.1} parent=1 // pred_check_branch
      %15 = sbr.rel (0) target = $region5
    $region4: #{tpu_custom_call.1} parent=1 // pred_region
      %17 = vsyncadd [#allocation3], 0
      %s19 = sshll.u32 %s0, 4
      %s20 = int_to_ptr.hbm [resolvable:$true] %s19
      %s21 = sshll.u32 [#allocation2], 4
      %s22 = int_to_ptr.vmem [resolvable:$true] %s21
      %24 = dma.hbm_to_vmem [thread:$0]  %s20, 32, %s22, [#allocation3]
    $region5: #{tpu_custom_call.1} parent=1 // pred_fallthru
      _
    // Predicated region
    $region6: #{tpu_custom_call.1} parent=1 // pred_check
      _
    $region7: #{tpu_custom_call.1} parent=1 // pred_check_branch
      %26 = sbr.rel (0) target = $region9
    $region8: #{tpu_custom_call.1} parent=1 // pred_region
      %28 = vsyncadd [#allocation6], 0
      %s29 = sshll.u32 %s1, 4
      %s30 = int_to_ptr.hbm [resolvable:$true] %s29
      %s31 = sshll.u32 [#allocation5], 4
      %s32 = int_to_ptr.vmem [resolvable:$true] %s31
      %37 = dma.hbm_to_vmem [thread:$0]  %s30, 98304, %s32, [#allocation6], 512, 512, 32
    $region9: #{tpu_custom_call.1} parent=1 // pred_fallthru
      _
    // Predicated region
    $region10: #{tpu_custom_call.1} parent=1 // pred_check
      _
    $region11: #{tpu_custom_call.1} parent=1 // pred_check_branch
      %39 = sbr.rel (0) target = $region13
    $region12: #{tpu_custom_call.1} parent=1 // pred_region
      %41 = vsyncadd [#allocation6], 0
      %s42 = sshll.u32 %s2, 4
      %s43 = int_to_ptr.hbm [resolvable:$true] %s42
      %s44 = sshll.u32 [#allocation7], 4
      %s45 = int_to_ptr.vmem [resolvable:$true] %s44
      %50 = dma.hbm_to_vmem [thread:$0]  %s43, 133120, %s45, [#allocation6], 2048, 2048, 128
    $region13: #{tpu_custom_call.1} parent=1 // pred_fallthru
      _
    // Predicated region
    $region14: #{tpu_custom_call.1} parent=1 // pred_check
      _
    $region15: #{tpu_custom_call.1} parent=1 // pred_check_branch
      %52 = sbr.rel (0) target = $region17
    $region16: #{tpu_custom_call.1} parent=1 // pred_region
      _
    $region17: #{tpu_custom_call.1} parent=1 // pred_fallthru
      _
    // Predicated region
    $region18: #{tpu_custom_call.1} parent=1 // pred_check
      _
    $region19: #{tpu_custom_call.1} parent=1 // pred_check_branch
      %54 = sbr.rel (0) target = $region21
    $region20: #{tpu_custom_call.1} parent=1 // pred_region
      %56 = vsyncadd [#allocation9], 0
      %s57 = sshll.u32 %s4, 4
      %s58 = int_to_ptr.hbm [resolvable:$true] %s57
      %s59 = sshll.u32 [#allocation8], 4
      %s60 = int_to_ptr.vmem [resolvable:$true] %s59
      %65 = dma.hbm_to_vmem [thread:$0]  %s58, 2560, %s60, [#allocation9], 512, 512, 32
    $region21: #{tpu_custom_call.1} parent=1 // pred_fallthru
      _
    // Predicated region
    $region22: #{tpu_custom_call.1} parent=1 // pred_check
      _
    $region23: #{tpu_custom_call.1} parent=1 // pred_check_branch
      %67 = sbr.rel (0) target = $region25
    $region24: #{tpu_custom_call.1} parent=1 // pred_region
      %69 = dma.done [#allocation3], 32
    $region25: #{tpu_custom_call.1} parent=1 // pred_fallthru
      _
    // Predicated region
    $region26: #{tpu_custom_call.1} parent=1 // pred_check
      _
    $region27: #{tpu_custom_call.1} parent=1 // pred_check_branch
      %71 = sbr.rel (0) target = $region29
    $region28: #{tpu_custom_call.1} parent=1 // pred_region
      %73 = dma.done [#allocation6], 98304
    $region29: #{tpu_custom_call.1} parent=1 // pred_fallthru
      _
    // Predicated region
    $region30: #{tpu_custom_call.1} parent=1 // pred_check
      _
    $region31: #{tpu_custom_call.1} parent=1 // pred_check_branch
      %75 = sbr.rel (0) target = $region33
    $region32: #{tpu_custom_call.1} parent=1 // pred_region
      %77 = dma.done [#allocation6], 133120
    $region33: #{tpu_custom_call.1} parent=1 // pred_fallthru
      _
    // Predicated region
    $region34: #{tpu_custom_call.1} parent=1 // pred_check
      _
    $region35: #{tpu_custom_call.1} parent=1 // pred_check_branch
      %79 = sbr.rel (0) target = $region37
    $region36: #{tpu_custom_call.1} parent=1 // pred_region
      %81 = dma.done [#allocation9], 2560
    $region37: #{tpu_custom_call.1} parent=1 // pred_fallthru
      _
    %v82 = vld [vmem:[#allocation2] sm:$0x3]
    %v83 = vld [vmem:[#allocation8] sm:$0xff]
    %v84 = vld [vmem:[#allocation8 + $0x8] sm:$0xff]
    %v85 = vld [vmem:[#allocation8 + $0x10] sm:$0xff]
    %v86 = vld [vmem:[#allocation8 + $0x18] sm:$0xff]
    %v87 = vld [vmem:[#allocation8 + $0x20] sm:$0xff]
    %v88 = vld [vmem:[#allocation8 + $0x28] sm:$0xff]
    %v89 = vld [vmem:[#allocation8 + $0x30] sm:$0xff]
    %v90 = vld [vmem:[#allocation8 + $0x38] sm:$0xff]
    %v91 = vld [vmem:[#allocation8 + $0x40] sm:$0xff]
    %v92 = vld [vmem:[#allocation8 + $0x48] sm:$0xff]
    %v93 = vld [vmem:[#allocation8 + $0x50] sm:$0xff]
    %v94 = vld [vmem:[#allocation8 + $0x58] sm:$0xff]
    %v95 = vld [vmem:[#allocation8 + $0x60] sm:$0xff]
    %v96 = vld [vmem:[#allocation8 + $0x68] sm:$0xff]
    %v97 = vld [vmem:[#allocation8 + $0x70] sm:$0xff]
    %v98 = vld [vmem:[#allocation8 + $0x78] sm:$0xff]
    %s99 = scalar_lea.vmem [#allocation8], 128
    %v100 = vld [vmem:[%s99] ss:$8 sm:$0xf]
    %v102 = vperm.slane %v100, 0
    %v103 = vperm.slane %v100, 1
    %v104 = vperm.slane %v100, 2
    %v105 = vperm.slane %v100, 3
    %vm110 = vcmask 261120
    %v112 = vsel %vm110, %v82, 0
    %114 = vmatpush.msra.mxu0 0.0
    %115 = vmatpush.msra.mxu0 0.0
    %116 = vmatpush.msra.mxu0 0.0
    %117 = vmatpush.msra.mxu0 0.0
    %118 = vmatpush.msra.mxu0 0.0
    %119 = vmatpush.msra.mxu0 0.0
    %120 = vmatpush.msra.mxu0 0.0
    %121 = vmatpush.msra.mxu0 0.0
    %122 = vmatpush.msra.mxu0 0.0
    %123 = vmatpush.msra.mxu0 0.0
    %124 = vmatpush.msra.mxu0 0.0
    %125 = vmatpush.msra.mxu0 0.0
    %126 = vmatpush.msra.mxu0 %v95
    %127 = vmatpush.msra.mxu0 %v91
    %128 = vmatpush.msra.mxu0 %v87
    %129 = vmatpush.msra.mxu0 %v83
    %130 = vmatmul.f32.gmra.mxu0 %v112
    %v131 = vpop.f32.mrf.mxu0
    %v132 = vadd.f32 %v102, %v131
    %133 = vdwg.mxu0
    %134 = vmatpush.msra.mxu0 0.0
    %135 = vmatpush.msra.mxu0 0.0
    %136 = vmatpush.msra.mxu0 0.0
    %137 = vmatpush.msra.mxu0 0.0
    %138 = vmatpush.msra.mxu0 0.0
    %139 = vmatpush.msra.mxu0 0.0
    %140 = vmatpush.msra.mxu0 0.0
    %141 = vmatpush.msra.mxu0 0.0
    %142 = vmatpush.msra.mxu0 0.0
    %143 = vmatpush.msra.mxu0 0.0
    %144 = vmatpush.msra.mxu0 0.0
    %145 = vmatpush.msra.mxu0 0.0
    %146 = vmatpush.msra.mxu0 %v96
    %147 = vmatpush.msra.mxu0 %v92
    %148 = vmatpush.msra.mxu0 %v88
    %149 = vmatpush.msra.mxu0 %v84
    %150 = vmatmul.f32.gmra.mxu0 %v112
    %v151 = vpop.f32.mrf.mxu0
    %v152 = vadd.f32 %v103, %v151
    %153 = vdwg.mxu0
    %154 = vmatpush.msra.mxu0 0.0
    %155 = vmatpush.msra.mxu0 0.0
    %156 = vmatpush.msra.mxu0 0.0
    %157 = vmatpush.msra.mxu0 0.0
    %158 = vmatpush.msra.mxu0 0.0
    %159 = vmatpush.msra.mxu0 0.0
    %160 = vmatpush.msra.mxu0 0.0
    %161 = vmatpush.msra.mxu0 0.0
    %162 = vmatpush.msra.mxu0 0.0
    %163 = vmatpush.msra.mxu0 0.0
    %164 = vmatpush.msra.mxu0 0.0
    %165 = vmatpush.msra.mxu0 0.0
    %166 = vmatpush.msra.mxu0 %v97
    %167 = vmatpush.msra.mxu0 %v93
    %168 = vmatpush.msra.mxu0 %v89
    %169 = vmatpush.msra.mxu0 %v85
    %170 = vmatmul.f32.gmra.mxu0 %v112
    %v171 = vpop.f32.mrf.mxu0
    %v172 = vadd.f32 %v104, %v171
    %173 = vdwg.mxu0
    %174 = vmatpush.msra.mxu0 0.0
    %175 = vmatpush.msra.mxu0 0.0
    %176 = vmatpush.msra.mxu0 0.0
    %177 = vmatpush.msra.mxu0 0.0
    %178 = vmatpush.msra.mxu0 0.0
    %179 = vmatpush.msra.mxu0 0.0
    %180 = vmatpush.msra.mxu0 0.0
    %181 = vmatpush.msra.mxu0 0.0
    %182 = vmatpush.msra.mxu0 0.0
    %183 = vmatpush.msra.mxu0 0.0
    %184 = vmatpush.msra.mxu0 0.0
    %185 = vmatpush.msra.mxu0 0.0
    %186 = vmatpush.msra.mxu0 %v98
    %187 = vmatpush.msra.mxu0 %v94
    %188 = vmatpush.msra.mxu0 %v90
    %189 = vmatpush.msra.mxu0 %v86
    %190 = vmatmul.f32.gmra.mxu0 %v112
    %v191 = vpop.f32.mrf.mxu0
    %v192 = vadd.f32 %v105, %v191
    %193 = vdwg.mxu0
    %v194 = vld [vmem:[#allocation5] sm:$0xff]
    %v195 = vld [vmem:[#allocation5 + $0x8] sm:$0xff]
    %v196 = vld [vmem:[#allocation5 + $0x10] sm:$0xff]
    %v197 = vld [vmem:[#allocation5 + $0x18] sm:$0xff]
    %v198 = vld [vmem:[#allocation5 + $0x20] sm:$0xff]
    %v199 = vld [vmem:[#allocation5 + $0x28] sm:$0xff]
    %v200 = vld [vmem:[#allocation5 + $0x30] sm:$0xff]
    %v201 = vld [vmem:[#allocation5 + $0x38] sm:$0xff]
    %v202 = vld [vmem:[#allocation5 + $0x40] sm:$0xff]
    %v203 = vld [vmem:[#allocation5 + $0x48] sm:$0xff]
    %v204 = vld [vmem:[#allocation5 + $0x50] sm:$0xff]
    %v205 = vld [vmem:[#allocation5 + $0x58] sm:$0xff]
    %v206 = vld [vmem:[#allocation5 + $0x60] sm:$0xff]
    %v207 = vld [vmem:[#allocation5 + $0x68] sm:$0xff]
    %v208 = vld [vmem:[#allocation5 + $0x70] sm:$0xff]
    %v209 = vld [vmem:[#allocation5 + $0x78] sm:$0xff]
    %v210 = vld [vmem:[#allocation5 + $0x80] sm:$0xff]
    %v211 = vld [vmem:[#allocation5 + $0x88] sm:$0xff]
    %v212 = vld [vmem:[#allocation5 + $0x90] sm:$0xff]
    %v213 = vld [vmem:[#allocation5 + $0x98] sm:$0xff]
    %v214 = vld [vmem:[#allocation5 + $0xa0] sm:$0xff]
    %v215 = vld [vmem:[#allocation5 + $0xa8] sm:$0xff]
    %v216 = vld [vmem:[#allocation5 + $0xb0] sm:$0xff]
    %v217 = vld [vmem:[#allocation5 + $0xb8] sm:$0xff]
    %v218 = vld [vmem:[#allocation5 + $0xc0] sm:$0xff]
    %v219 = vld [vmem:[#allocation5 + $0xc8] sm:$0xff]
    %v220 = vld [vmem:[#allocation5 + $0xd0] sm:$0xff]
    %v221 = vld [vmem:[#allocation5 + $0xd8] sm:$0xff]
    %v222 = vld [vmem:[#allocation5 + $0xe0] sm:$0xff]
    %v223 = vld [vmem:[#allocation5 + $0xe8] sm:$0xff]
    %v224 = vld [vmem:[#allocation5 + $0xf0] sm:$0xff]
    %v225 = vld [vmem:[#allocation5 + $0xf8] sm:$0xff]
    %v226 = vld [vmem:[#allocation5 + $0x100] sm:$0xff]
    %v227 = vld [vmem:[#allocation5 + $0x108] sm:$0xff]
    %v228 = vld [vmem:[#allocation5 + $0x110] sm:$0xff]
    %v229 = vld [vmem:[#allocation5 + $0x118] sm:$0xff]
    %v230 = vld [vmem:[#allocation5 + $0x120] sm:$0xff]
    %v231 = vld [vmem:[#allocation5 + $0x128] sm:$0xff]
    %v232 = vld [vmem:[#allocation5 + $0x130] sm:$0xff]
    %v233 = vld [vmem:[#allocation5 + $0x138] sm:$0xff]
    %v234 = vld [vmem:[#allocation5 + $0x140] sm:$0xff]
    %v235 = vld [vmem:[#allocation5 + $0x148] sm:$0xff]
    %v236 = vld [vmem:[#allocation5 + $0x150] sm:$0xff]
    %v237 = vld [vmem:[#allocation5 + $0x158] sm:$0xff]
    %v238 = vld [vmem:[#allocation5 + $0x160] sm:$0xff]
    %v239 = vld [vmem:[#allocation5 + $0x168] sm:$0xff]
    %v240 = vld [vmem:[#allocation5 + $0x170] sm:$0xff]
    %v241 = vld [vmem:[#allocation5 + $0x178] sm:$0xff]
    %v242 = vld [vmem:[#allocation5 + $0x180] sm:$0xff]
    %v243 = vld [vmem:[#allocation5 + $0x188] sm:$0xff]
    %v244 = vld [vmem:[#allocation5 + $0x190] sm:$0xff]
    %v245 = vld [vmem:[#allocation5 + $0x198] sm:$0xff]
    %v246 = vld [vmem:[#allocation5 + $0x1a0] sm:$0xff]
    %v247 = vld [vmem:[#allocation5 + $0x1a8] sm:$0xff]
    %v248 = vld [vmem:[#allocation5 + $0x1b0] sm:$0xff]
    %v249 = vld [vmem:[#allocation5 + $0x1b8] sm:$0xff]
    %v250 = vld [vmem:[#allocation5 + $0x1c0] sm:$0xff]
    %v251 = vld [vmem:[#allocation5 + $0x1c8] sm:$0xff]
    %v252 = vld [vmem:[#allocation5 + $0x1d0] sm:$0xff]
    %v253 = vld [vmem:[#allocation5 + $0x1d8] sm:$0xff]
    %v254 = vld [vmem:[#allocation5 + $0x1e0] sm:$0xff]
    %v255 = vld [vmem:[#allocation5 + $0x1e8] sm:$0xff]
    %v256 = vld [vmem:[#allocation5 + $0x1f0] sm:$0xff]
    %v257 = vld [vmem:[#allocation5 + $0x1f8] sm:$0xff]
    %v258 = vld [vmem:[#allocation5 + $0x200] sm:$0xff]
    %v259 = vld [vmem:[#allocation5 + $0x208] sm:$0xff]
    %v260 = vld [vmem:[#allocation5 + $0x210] sm:$0xff]
    %v261 = vld [vmem:[#allocation5 + $0x218] sm:$0xff]
    %v262 = vld [vmem:[#allocation5 + $0x220] sm:$0xff]
    %v263 = vld [vmem:[#allocation5 + $0x228] sm:$0xff]
    %v264 = vld [vmem:[#allocation5 + $0x230] sm:$0xff]
    %v265 = vld [vmem:[#allocation5 + $0x238] sm:$0xff]
    %v266 = vld [vmem:[#allocation5 + $0x240] sm:$0xff]
    %v267 = vld [vmem:[#allocation5 + $0x248] sm:$0xff]
    %v268 = vld [vmem:[#allocation5 + $0x250] sm:$0xff]
    %v269 = vld [vmem:[#allocation5 + $0x258] sm:$0xff]
    %v270 = vld [vmem:[#allocation5 + $0x260] sm:$0xff]
    %v271 = vld [vmem:[#allocation5 + $0x268] sm:$0xff]
    %v272 = vld [vmem:[#allocation5 + $0x270] sm:$0xff]
    %v273 = vld [vmem:[#allocation5 + $0x278] sm:$0xff]
    %v274 = vld [vmem:[#allocation5 + $0x280] sm:$0xff]
    %v275 = vld [vmem:[#allocation5 + $0x288] sm:$0xff]
    %v276 = vld [vmem:[#allocation5 + $0x290] sm:$0xff]
    %v277 = vld [vmem:[#allocation5 + $0x298] sm:$0xff]
    %v278 = vld [vmem:[#allocation5 + $0x2a0] sm:$0xff]
    %v279 = vld [vmem:[#allocation5 + $0x2a8] sm:$0xff]
    %v280 = vld [vmem:[#allocation5 + $0x2b0] sm:$0xff]
    %v281 = vld [vmem:[#allocation5 + $0x2b8] sm:$0xff]
    %v282 = vld [vmem:[#allocation5 + $0x2c0] sm:$0xff]
    %v283 = vld [vmem:[#allocation5 + $0x2c8] sm:$0xff]
    %v284 = vld [vmem:[#allocation5 + $0x2d0] sm:$0xff]
    %v285 = vld [vmem:[#allocation5 + $0x2d8] sm:$0xff]
    %v286 = vld [vmem:[#allocation5 + $0x2e0] sm:$0xff]
    %v287 = vld [vmem:[#allocation5 + $0x2e8] sm:$0xff]
    %v288 = vld [vmem:[#allocation5 + $0x2f0] sm:$0xff]
    %v289 = vld [vmem:[#allocation5 + $0x2f8] sm:$0xff]
    %v290 = vld [vmem:[#allocation5 + $0x300] sm:$0xff]
    %v291 = vld [vmem:[#allocation5 + $0x308] sm:$0xff]
    %v292 = vld [vmem:[#allocation5 + $0x310] sm:$0xff]
    %v293 = vld [vmem:[#allocation5 + $0x318] sm:$0xff]
    %v294 = vld [vmem:[#allocation5 + $0x320] sm:$0xff]
    %v295 = vld [vmem:[#allocation5 + $0x328] sm:$0xff]
    %v296 = vld [vmem:[#allocation5 + $0x330] sm:$0xff]
    %v297 = vld [vmem:[#allocation5 + $0x338] sm:$0xff]
    %v298 = vld [vmem:[#allocation5 + $0x340] sm:$0xff]
    %v299 = vld [vmem:[#allocation5 + $0x348] sm:$0xff]
    %v300 = vld [vmem:[#allocation5 + $0x350] sm:$0xff]
    %v301 = vld [vmem:[#allocation5 + $0x358] sm:$0xff]
    %v302 = vld [vmem:[#allocation5 + $0x360] sm:$0xff]
    %v303 = vld [vmem:[#allocation5 + $0x368] sm:$0xff]
    %v304 = vld [vmem:[#allocation5 + $0x370] sm:$0xff]
    %v305 = vld [vmem:[#allocation5 + $0x378] sm:$0xff]
    %v306 = vld [vmem:[#allocation5 + $0x380] sm:$0xff]
    %v307 = vld [vmem:[#allocation5 + $0x388] sm:$0xff]
    %v308 = vld [vmem:[#allocation5 + $0x390] sm:$0xff]
    %v309 = vld [vmem:[#allocation5 + $0x398] sm:$0xff]
    %v310 = vld [vmem:[#allocation5 + $0x3a0] sm:$0xff]
    %v311 = vld [vmem:[#allocation5 + $0x3a8] sm:$0xff]
    %v312 = vld [vmem:[#allocation5 + $0x3b0] sm:$0xff]
    %v313 = vld [vmem:[#allocation5 + $0x3b8] sm:$0xff]
    %v314 = vld [vmem:[#allocation5 + $0x3c0] sm:$0xff]
    %v315 = vld [vmem:[#allocation5 + $0x3c8] sm:$0xff]
    %v316 = vld [vmem:[#allocation5 + $0x3d0] sm:$0xff]
    %v317 = vld [vmem:[#allocation5 + $0x3d8] sm:$0xff]
    %v318 = vld [vmem:[#allocation5 + $0x3e0] sm:$0xff]
    %v319 = vld [vmem:[#allocation5 + $0x3e8] sm:$0xff]
    %v320 = vld [vmem:[#allocation5 + $0x3f0] sm:$0xff]
    %v321 = vld [vmem:[#allocation5 + $0x3f8] sm:$0xff]
    %v322 = vld [vmem:[#allocation5 + $0x400] sm:$0xff]
    %v323 = vld [vmem:[#allocation5 + $0x408] sm:$0xff]
    %v324 = vld [vmem:[#allocation5 + $0x410] sm:$0xff]
    %v325 = vld [vmem:[#allocation5 + $0x418] sm:$0xff]
    %v326 = vld [vmem:[#allocation5 + $0x420] sm:$0xff]
    %v327 = vld [vmem:[#allocation5 + $0x428] sm:$0xff]
    %v328 = vld [vmem:[#allocation5 + $0x430] sm:$0xff]
    %v329 = vld [vmem:[#allocation5 + $0x438] sm:$0xff]
    %v330 = vld [vmem:[#allocation5 + $0x440] sm:$0xff]
    %v331 = vld [vmem:[#allocation5 + $0x448] sm:$0xff]
    %v332 = vld [vmem:[#allocation5 + $0x450] sm:$0xff]
    %v333 = vld [vmem:[#allocation5 + $0x458] sm:$0xff]
    %v334 = vld [vmem:[#allocation5 + $0x460] sm:$0xff]
    %v335 = vld [vmem:[#allocation5 + $0x468] sm:$0xff]
    %v336 = vld [vmem:[#allocation5 + $0x470] sm:$0xff]
    %v337 = vld [vmem:[#allocation5 + $0x478] sm:$0xff]
    %v338 = vld [vmem:[#allocation5 + $0x480] sm:$0xff]
    %v339 = vld [vmem:[#allocation5 + $0x488] sm:$0xff]
    %v340 = vld [vmem:[#allocation5 + $0x490] sm:$0xff]
    %v341 = vld [vmem:[#allocation5 + $0x498] sm:$0xff]
    %v342 = vld [vmem:[#allocation5 + $0x4a0] sm:$0xff]
    %v343 = vld [vmem:[#allocation5 + $0x4a8] sm:$0xff]
    %v344 = vld [vmem:[#allocation5 + $0x4b0] sm:$0xff]
    %v345 = vld [vmem:[#allocation5 + $0x4b8] sm:$0xff]
    %v346 = vld [vmem:[#allocation5 + $0x4c0] sm:$0xff]
    %v347 = vld [vmem:[#allocation5 + $0x4c8] sm:$0xff]
    %v348 = vld [vmem:[#allocation5 + $0x4d0] sm:$0xff]
    %v349 = vld [vmem:[#allocation5 + $0x4d8] sm:$0xff]
    %v350 = vld [vmem:[#allocation5 + $0x4e0] sm:$0xff]
    %v351 = vld [vmem:[#allocation5 + $0x4e8] sm:$0xff]
    %v352 = vld [vmem:[#allocation5 + $0x4f0] sm:$0xff]
    %v353 = vld [vmem:[#allocation5 + $0x4f8] sm:$0xff]
    %v354 = vld [vmem:[#allocation5 + $0x500] sm:$0xff]
    %v355 = vld [vmem:[#allocation5 + $0x508] sm:$0xff]
    %v356 = vld [vmem:[#allocation5 + $0x510] sm:$0xff]
    %v357 = vld [vmem:[#allocation5 + $0x518] sm:$0xff]
    %v358 = vld [vmem:[#allocation5 + $0x520] sm:$0xff]
    %v359 = vld [vmem:[#allocation5 + $0x528] sm:$0xff]
    %v360 = vld [vmem:[#allocation5 + $0x530] sm:$0xff]
    %v361 = vld [vmem:[#allocation5 + $0x538] sm:$0xff]
    %v362 = vld [vmem:[#allocation5 + $0x540] sm:$0xff]
    %v363 = vld [vmem:[#allocation5 + $0x548] sm:$0xff]
    %v364 = vld [vmem:[#allocation5 + $0x550] sm:$0xff]
    %v365 = vld [vmem:[#allocation5 + $0x558] sm:$0xff]
    %v366 = vld [vmem:[#allocation5 + $0x560] sm:$0xff]
    %v367 = vld [vmem:[#allocation5 + $0x568] sm:$0xff]
    %v368 = vld [vmem:[#allocation5 + $0x570] sm:$0xff]
    %v369 = vld [vmem:[#allocation5 + $0x578] sm:$0xff]
    %v370 = vld [vmem:[#allocation5 + $0x580] sm:$0xff]
    %v371 = vld [vmem:[#allocation5 + $0x588] sm:$0xff]
    %v372 = vld [vmem:[#allocation5 + $0x590] sm:$0xff]
    %v373 = vld [vmem:[#allocation5 + $0x598] sm:$0xff]
    %v374 = vld [vmem:[#allocation5 + $0x5a0] sm:$0xff]
    %v375 = vld [vmem:[#allocation5 + $0x5a8] sm:$0xff]
    %v376 = vld [vmem:[#allocation5 + $0x5b0] sm:$0xff]
    %v377 = vld [vmem:[#allocation5 + $0x5b8] sm:$0xff]
    %v378 = vld [vmem:[#allocation5 + $0x5c0] sm:$0xff]
    %v379 = vld [vmem:[#allocation5 + $0x5c8] sm:$0xff]
    %v380 = vld [vmem:[#allocation5 + $0x5d0] sm:$0xff]
    %v381 = vld [vmem:[#allocation5 + $0x5d8] sm:$0xff]
    %v382 = vld [vmem:[#allocation5 + $0x5e0] sm:$0xff]
    %v383 = vld [vmem:[#allocation5 + $0x5e8] sm:$0xff]
    %v384 = vld [vmem:[#allocation5 + $0x5f0] sm:$0xff]
    %v385 = vld [vmem:[#allocation5 + $0x5f8] sm:$0xff]
    %v386 = vld [vmem:[#allocation5 + $0x600] sm:$0xff]
    %v387 = vld [vmem:[#allocation5 + $0x608] sm:$0xff]
    %v388 = vld [vmem:[#allocation5 + $0x610] sm:$0xff]
    %v389 = vld [vmem:[#allocation5 + $0x618] sm:$0xff]
    %v390 = vld [vmem:[#allocation5 + $0x620] sm:$0xff]
    %v391 = vld [vmem:[#allocation5 + $0x628] sm:$0xff]
    %v392 = vld [vmem:[#allocation5 + $0x630] sm:$0xff]
    %v393 = vld [vmem:[#allocation5 + $0x638] sm:$0xff]
    %v394 = vld [vmem:[#allocation5 + $0x640] sm:$0xff]
    %v395 = vld [vmem:[#allocation5 + $0x648] sm:$0xff]
    %v396 = vld [vmem:[#allocation5 + $0x650] sm:$0xff]
    %v397 = vld [vmem:[#allocation5 + $0x658] sm:$0xff]
    %v398 = vld [vmem:[#allocation5 + $0x660] sm:$0xff]
    %v399 = vld [vmem:[#allocation5 + $0x668] sm:$0xff]
    %v400 = vld [vmem:[#allocation5 + $0x670] sm:$0xff]
    %v401 = vld [vmem:[#allocation5 + $0x678] sm:$0xff]
    %v402 = vld [vmem:[#allocation5 + $0x680] sm:$0xff]
    %v403 = vld [vmem:[#allocation5 + $0x688] sm:$0xff]
    %v404 = vld [vmem:[#allocation5 + $0x690] sm:$0xff]
    %v405 = vld [vmem:[#allocation5 + $0x698] sm:$0xff]
    %v406 = vld [vmem:[#allocation5 + $0x6a0] sm:$0xff]
    %v407 = vld [vmem:[#allocation5 + $0x6a8] sm:$0xff]
    %v408 = vld [vmem:[#allocation5 + $0x6b0] sm:$0xff]
    %v409 = vld [vmem:[#allocation5 + $0x6b8] sm:$0xff]
    %v410 = vld [vmem:[#allocation5 + $0x6c0] sm:$0xff]
    %v411 = vld [vmem:[#allocation5 + $0x6c8] sm:$0xff]
    %v412 = vld [vmem:[#allocation5 + $0x6d0] sm:$0xff]
    %v413 = vld [vmem:[#allocation5 + $0x6d8] sm:$0xff]
    %v414 = vld [vmem:[#allocation5 + $0x6e0] sm:$0xff]
    %v415 = vld [vmem:[#allocation5 + $0x6e8] sm:$0xff]
    %v416 = vld [vmem:[#allocation5 + $0x6f0] sm:$0xff]
    %v417 = vld [vmem:[#allocation5 + $0x6f8] sm:$0xff]
    %v418 = vld [vmem:[#allocation5 + $0x700] sm:$0xff]
    %v419 = vld [vmem:[#allocation5 + $0x708] sm:$0xff]
    %v420 = vld [vmem:[#allocation5 + $0x710] sm:$0xff]
    %v421 = vld [vmem:[#allocation5 + $0x718] sm:$0xff]
    %v422 = vld [vmem:[#allocation5 + $0x720] sm:$0xff]
    %v423 = vld [vmem:[#allocation5 + $0x728] sm:$0xff]
    %v424 = vld [vmem:[#allocation5 + $0x730] sm:$0xff]
    %v425 = vld [vmem:[#allocation5 + $0x738] sm:$0xff]
    %v426 = vld [vmem:[#allocation5 + $0x740] sm:$0xff]
    %v427 = vld [vmem:[#allocation5 + $0x748] sm:$0xff]
    %v428 = vld [vmem:[#allocation5 + $0x750] sm:$0xff]
    %v429 = vld [vmem:[#allocation5 + $0x758] sm:$0xff]
    %v430 = vld [vmem:[#allocation5 + $0x760] sm:$0xff]
    %v431 = vld [vmem:[#allocation5 + $0x768] sm:$0xff]
    %v432 = vld [vmem:[#allocation5 + $0x770] sm:$0xff]
    %v433 = vld [vmem:[#allocation5 + $0x778] sm:$0xff]
    %v434 = vld [vmem:[#allocation5 + $0x780] sm:$0xff]
    %v435 = vld [vmem:[#allocation5 + $0x788] sm:$0xff]
    %v436 = vld [vmem:[#allocation5 + $0x790] sm:$0xff]
    %v437 = vld [vmem:[#allocation5 + $0x798] sm:$0xff]
    %v438 = vld [vmem:[#allocation5 + $0x7a0] sm:$0xff]
    %v439 = vld [vmem:[#allocation5 + $0x7a8] sm:$0xff]
    %v440 = vld [vmem:[#allocation5 + $0x7b0] sm:$0xff]
    %v441 = vld [vmem:[#allocation5 + $0x7b8] sm:$0xff]
    %v442 = vld [vmem:[#allocation5 + $0x7c0] sm:$0xff]
    %v443 = vld [vmem:[#allocation5 + $0x7c8] sm:$0xff]
    %v444 = vld [vmem:[#allocation5 + $0x7d0] sm:$0xff]
    %v445 = vld [vmem:[#allocation5 + $0x7d8] sm:$0xff]
    %v446 = vld [vmem:[#allocation5 + $0x7e0] sm:$0xff]
    %v447 = vld [vmem:[#allocation5 + $0x7e8] sm:$0xff]
    %v448 = vld [vmem:[#allocation5 + $0x7f0] sm:$0xff]
    %v449 = vld [vmem:[#allocation5 + $0x7f8] sm:$0xff]
    %s450 = scalar_lea.vmem [#allocation8], 129
    %v451 = vld [vmem:[%s450] ss:$8 sm:$0xf]
    %v453 = vperm.slane %v451, 0
    %v454 = vperm.slane %v451, 1
    %v455 = vperm.slane %v451, 2
    %v456 = vperm.slane %v451, 3
    %461 = vmatpush.msra.mxu0 %v254
    %462 = vmatpush.msra.mxu0 %v250
    %463 = vmatpush.msra.mxu0 %v246
    %464 = vmatpush.msra.mxu0 %v242
    %465 = vmatpush.msra.mxu0 %v238
    %466 = vmatpush.msra.mxu0 %v234
    %467 = vmatpush.msra.mxu0 %v230
    %468 = vmatpush.msra.mxu0 %v226
    %469 = vmatpush.msra.mxu0 %v222
    %470 = vmatpush.msra.mxu0 %v218
    %471 = vmatpush.msra.mxu0 %v214
    %472 = vmatpush.msra.mxu0 %v210
    %473 = vmatpush.msra.mxu0 %v206
    %474 = vmatpush.msra.mxu0 %v202
    %475 = vmatpush.msra.mxu0 %v198
    %476 = vmatpush.msra.mxu0 %v194
    %477 = vmatmul.f32.gmra.mxu0 %v132
    %v478 = vpop.f32.mrf.mxu0
    %v479 = vadd.f32 %v453, %v478
    %480 = vdwg.mxu0
    %481 = vmatpush.msra.mxu0 %v318
    %482 = vmatpush.msra.mxu0 %v314
    %483 = vmatpush.msra.mxu0 %v310
    %484 = vmatpush.msra.mxu0 %v306
    %485 = vmatpush.msra.mxu0 %v302
    %486 = vmatpush.msra.mxu0 %v298
    %487 = vmatpush.msra.mxu0 %v294
    %488 = vmatpush.msra.mxu0 %v290
    %489 = vmatpush.msra.mxu0 %v286
    %490 = vmatpush.msra.mxu0 %v282
    %491 = vmatpush.msra.mxu0 %v278
    %492 = vmatpush.msra.mxu0 %v274
    %493 = vmatpush.msra.mxu0 %v270
    %494 = vmatpush.msra.mxu0 %v266
    %495 = vmatpush.msra.mxu0 %v262
    %496 = vmatpush.msra.mxu0 %v258
    %497 = vmatmul.f32.gmra.mxu0 %v152
    %v498 = vpop.f32.mrf.mxu0
    %v499 = vadd.f32 %v479, %v498
    %500 = vdwg.mxu0
    %501 = vmatpush.msra.mxu0 %v382
    %502 = vmatpush.msra.mxu0 %v378
    %503 = vmatpush.msra.mxu0 %v374
    %504 = vmatpush.msra.mxu0 %v370
    %505 = vmatpush.msra.mxu0 %v366
    %506 = vmatpush.msra.mxu0 %v362
    %507 = vmatpush.msra.mxu0 %v358
    %508 = vmatpush.msra.mxu0 %v354
    %509 = vmatpush.msra.mxu0 %v350
    %510 = vmatpush.msra.mxu0 %v346
    %511 = vmatpush.msra.mxu0 %v342
    %512 = vmatpush.msra.mxu0 %v338
    %513 = vmatpush.msra.mxu0 %v334
    %514 = vmatpush.msra.mxu0 %v330
    %515 = vmatpush.msra.mxu0 %v326
    %516 = vmatpush.msra.mxu0 %v322
    %517 = vmatmul.f32.gmra.mxu0 %v172
    %v518 = vpop.f32.mrf.mxu0
    %v519 = vadd.f32 %v499, %v518
    %520 = vdwg.mxu0
    %521 = vmatpush.msra.mxu0 %v446
    %522 = vmatpush.msra.mxu0 %v442
    %523 = vmatpush.msra.mxu0 %v438
    %524 = vmatpush.msra.mxu0 %v434
    %525 = vmatpush.msra.mxu0 %v430
    %526 = vmatpush.msra.mxu0 %v426
    %527 = vmatpush.msra.mxu0 %v422
    %528 = vmatpush.msra.mxu0 %v418
    %529 = vmatpush.msra.mxu0 %v414
    %530 = vmatpush.msra.mxu0 %v410
    %531 = vmatpush.msra.mxu0 %v406
    %532 = vmatpush.msra.mxu0 %v402
    %533 = vmatpush.msra.mxu0 %v398
    %534 = vmatpush.msra.mxu0 %v394
    %535 = vmatpush.msra.mxu0 %v390
    %536 = vmatpush.msra.mxu0 %v386
    %537 = vmatmul.f32.gmra.mxu0 %v192
    %v538 = vpop.f32.mrf.mxu0
    %v539 = vadd.f32 %v519, %v538
    %540 = vdwg.mxu0
    %541 = vmatpush.msra.mxu0 %v255
    %542 = vmatpush.msra.mxu0 %v251
    %543 = vmatpush.msra.mxu0 %v247
    %544 = vmatpush.msra.mxu0 %v243
    %545 = vmatpush.msra.mxu0 %v239
    %546 = vmatpush.msra.mxu0 %v235
    %547 = vmatpush.msra.mxu0 %v231
    %548 = vmatpush.msra.mxu0 %v227
    %549 = vmatpush.msra.mxu0 %v223
    %550 = vmatpush.msra.mxu0 %v219
    %551 = vmatpush.msra.mxu0 %v215
    %552 = vmatpush.msra.mxu0 %v211
    %553 = vmatpush.msra.mxu0 %v207
    %554 = vmatpush.msra.mxu0 %v203
    %555 = vmatpush.msra.mxu0 %v199
    %556 = vmatpush.msra.mxu0 %v195
    %557 = vmatmul.f32.gmra.mxu0 %v132
    %v558 = vpop.f32.mrf.mxu0
    %v559 = vadd.f32 %v454, %v558
    %560 = vdwg.mxu0
    %561 = vmatpush.msra.mxu0 %v319
    %562 = vmatpush.msra.mxu0 %v315
    %563 = vmatpush.msra.mxu0 %v311
    %564 = vmatpush.msra.mxu0 %v307
    %565 = vmatpush.msra.mxu0 %v303
    %566 = vmatpush.msra.mxu0 %v299
    %567 = vmatpush.msra.mxu0 %v295
    %568 = vmatpush.msra.mxu0 %v291
    %569 = vmatpush.msra.mxu0 %v287
    %570 = vmatpush.msra.mxu0 %v283
    %571 = vmatpush.msra.mxu0 %v279
    %572 = vmatpush.msra.mxu0 %v275
    %573 = vmatpush.msra.mxu0 %v271
    %574 = vmatpush.msra.mxu0 %v267
    %575 = vmatpush.msra.mxu0 %v263
    %576 = vmatpush.msra.mxu0 %v259
    %577 = vmatmul.f32.gmra.mxu0 %v152
    %v578 = vpop.f32.mrf.mxu0
    %v579 = vadd.f32 %v559, %v578
    %580 = vdwg.mxu0
    %581 = vmatpush.msra.mxu0 %v383
    %582 = vmatpush.msra.mxu0 %v379
    %583 = vmatpush.msra.mxu0 %v375
    %584 = vmatpush.msra.mxu0 %v371
    %585 = vmatpush.msra.mxu0 %v367
    %586 = vmatpush.msra.mxu0 %v363
    %587 = vmatpush.msra.mxu0 %v359
    %588 = vmatpush.msra.mxu0 %v355
    %589 = vmatpush.msra.mxu0 %v351
    %590 = vmatpush.msra.mxu0 %v347
    %591 = vmatpush.msra.mxu0 %v343
    %592 = vmatpush.msra.mxu0 %v339
    %593 = vmatpush.msra.mxu0 %v335
    %594 = vmatpush.msra.mxu0 %v331
    %595 = vmatpush.msra.mxu0 %v327
    %596 = vmatpush.msra.mxu0 %v323
    %597 = vmatmul.f32.gmra.mxu0 %v172
    %v598 = vpop.f32.mrf.mxu0
    %v599 = vadd.f32 %v579, %v598
    %600 = vdwg.mxu0
    %601 = vmatpush.msra.mxu0 %v447
    %602 = vmatpush.msra.mxu0 %v443
    %603 = vmatpush.msra.mxu0 %v439
    %604 = vmatpush.msra.mxu0 %v435
    %605 = vmatpush.msra.mxu0 %v431
    %606 = vmatpush.msra.mxu0 %v427
    %607 = vmatpush.msra.mxu0 %v423
    %608 = vmatpush.msra.mxu0 %v419
    %609 = vmatpush.msra.mxu0 %v415
    %610 = vmatpush.msra.mxu0 %v411
    %611 = vmatpush.msra.mxu0 %v407
    %612 = vmatpush.msra.mxu0 %v403
    %613 = vmatpush.msra.mxu0 %v399
    %614 = vmatpush.msra.mxu0 %v395
    %615 = vmatpush.msra.mxu0 %v391
    %616 = vmatpush.msra.mxu0 %v387
    %617 = vmatmul.f32.gmra.mxu0 %v192
    %v618 = vpop.f32.mrf.mxu0
    %v619 = vadd.f32 %v599, %v618
    %620 = vdwg.mxu0
    %621 = vmatpush.msra.mxu0 %v256
    %622 = vmatpush.msra.mxu0 %v252
    %623 = vmatpush.msra.mxu0 %v248
    %624 = vmatpush.msra.mxu0 %v244
    %625 = vmatpush.msra.mxu0 %v240
    %626 = vmatpush.msra.mxu0 %v236
    %627 = vmatpush.msra.mxu0 %v232
    %628 = vmatpush.msra.mxu0 %v228
    %629 = vmatpush.msra.mxu0 %v224
    %630 = vmatpush.msra.mxu0 %v220
    %631 = vmatpush.msra.mxu0 %v216
    %632 = vmatpush.msra.mxu0 %v212
    %633 = vmatpush.msra.mxu0 %v208
    %634 = vmatpush.msra.mxu0 %v204
    %635 = vmatpush.msra.mxu0 %v200
    %636 = vmatpush.msra.mxu0 %v196
    %637 = vmatmul.f32.gmra.mxu0 %v132
    %v638 = vpop.f32.mrf.mxu0
    %v639 = vadd.f32 %v455, %v638
    %640 = vdwg.mxu0
    %641 = vmatpush.msra.mxu0 %v320
    %642 = vmatpush.msra.mxu0 %v316
    %643 = vmatpush.msra.mxu0 %v312
    %644 = vmatpush.msra.mxu0 %v308
    %645 = vmatpush.msra.mxu0 %v304
    %646 = vmatpush.msra.mxu0 %v300
    %647 = vmatpush.msra.mxu0 %v296
    %648 = vmatpush.msra.mxu0 %v292
    %649 = vmatpush.msra.mxu0 %v288
    %650 = vmatpush.msra.mxu0 %v284
    %651 = vmatpush.msra.mxu0 %v280
    %652 = vmatpush.msra.mxu0 %v276
    %653 = vmatpush.msra.mxu0 %v272
    %654 = vmatpush.msra.mxu0 %v268
    %655 = vmatpush.msra.mxu0 %v264
    %656 = vmatpush.msra.mxu0 %v260
    %657 = vmatmul.f32.gmra.mxu0 %v152
    %v658 = vpop.f32.mrf.mxu0
    %v659 = vadd.f32 %v639, %v658
    %660 = vdwg.mxu0
    %661 = vmatpush.msra.mxu0 %v384
    %662 = vmatpush.msra.mxu0 %v380
    %663 = vmatpush.msra.mxu0 %v376
    %664 = vmatpush.msra.mxu0 %v372
    %665 = vmatpush.msra.mxu0 %v368
    %666 = vmatpush.msra.mxu0 %v364
    %667 = vmatpush.msra.mxu0 %v360
    %668 = vmatpush.msra.mxu0 %v356
    %669 = vmatpush.msra.mxu0 %v352
    %670 = vmatpush.msra.mxu0 %v348
    %671 = vmatpush.msra.mxu0 %v344
    %672 = vmatpush.msra.mxu0 %v340
    %673 = vmatpush.msra.mxu0 %v336
    %674 = vmatpush.msra.mxu0 %v332
    %675 = vmatpush.msra.mxu0 %v328
    %676 = vmatpush.msra.mxu0 %v324
    %677 = vmatmul.f32.gmra.mxu0 %v172
    %v678 = vpop.f32.mrf.mxu0
    %v679 = vadd.f32 %v659, %v678
    %680 = vdwg.mxu0
    %681 = vmatpush.msra.mxu0 %v448
    %682 = vmatpush.msra.mxu0 %v444
    %683 = vmatpush.msra.mxu0 %v440
    %684 = vmatpush.msra.mxu0 %v436
    %685 = vmatpush.msra.mxu0 %v432
    %686 = vmatpush.msra.mxu0 %v428
    %687 = vmatpush.msra.mxu0 %v424
    %688 = vmatpush.msra.mxu0 %v420
    %689 = vmatpush.msra.mxu0 %v416
    %690 = vmatpush.msra.mxu0 %v412
    %691 = vmatpush.msra.mxu0 %v408
    %692 = vmatpush.msra.mxu0 %v404
    %693 = vmatpush.msra.mxu0 %v400
    %694 = vmatpush.msra.mxu0 %v396
    %695 = vmatpush.msra.mxu0 %v392
    %696 = vmatpush.msra.mxu0 %v388
    %697 = vmatmul.f32.gmra.mxu0 %v192
    %v698 = vpop.f32.mrf.mxu0
    %v699 = vadd.f32 %v679, %v698
    %700 = vdwg.mxu0
    %701 = vmatpush.msra.mxu0 %v257
    %702 = vmatpush.msra.mxu0 %v253
    %703 = vmatpush.msra.mxu0 %v249
    %704 = vmatpush.msra.mxu0 %v245
    %705 = vmatpush.msra.mxu0 %v241
    %706 = vmatpush.msra.mxu0 %v237
    %707 = vmatpush.msra.mxu0 %v233
    %708 = vmatpush.msra.mxu0 %v229
    %709 = vmatpush.msra.mxu0 %v225
    %710 = vmatpush.msra.mxu0 %v221
    %711 = vmatpush.msra.mxu0 %v217
    %712 = vmatpush.msra.mxu0 %v213
    %713 = vmatpush.msra.mxu0 %v209
    %714 = vmatpush.msra.mxu0 %v205
    %715 = vmatpush.msra.mxu0 %v201
    %716 = vmatpush.msra.mxu0 %v197
    %717 = vmatmul.f32.gmra.mxu0 %v132
    %v718 = vpop.f32.mrf.mxu0
    %v719 = vadd.f32 %v456, %v718
    %720 = vdwg.mxu0
    %721 = vmatpush.msra.mxu0 %v321
    %722 = vmatpush.msra.mxu0 %v317
    %723 = vmatpush.msra.mxu0 %v313
    %724 = vmatpush.msra.mxu0 %v309
    %725 = vmatpush.msra.mxu0 %v305
    %726 = vmatpush.msra.mxu0 %v301
    %727 = vmatpush.msra.mxu0 %v297
    %728 = vmatpush.msra.mxu0 %v293
    %729 = vmatpush.msra.mxu0 %v289
    %730 = vmatpush.msra.mxu0 %v285
    %731 = vmatpush.msra.mxu0 %v281
    %732 = vmatpush.msra.mxu0 %v277
    %733 = vmatpush.msra.mxu0 %v273
    %734 = vmatpush.msra.mxu0 %v269
    %735 = vmatpush.msra.mxu0 %v265
    %736 = vmatpush.msra.mxu0 %v261
    %737 = vmatmul.f32.gmra.mxu0 %v152
    %v738 = vpop.f32.mrf.mxu0
    %v739 = vadd.f32 %v719, %v738
    %740 = vdwg.mxu0
    %741 = vmatpush.msra.mxu0 %v385
    %742 = vmatpush.msra.mxu0 %v381
    %743 = vmatpush.msra.mxu0 %v377
    %744 = vmatpush.msra.mxu0 %v373
    %745 = vmatpush.msra.mxu0 %v369
    %746 = vmatpush.msra.mxu0 %v365
    %747 = vmatpush.msra.mxu0 %v361
    %748 = vmatpush.msra.mxu0 %v357
    %749 = vmatpush.msra.mxu0 %v353
    %750 = vmatpush.msra.mxu0 %v349
    %751 = vmatpush.msra.mxu0 %v345
    %752 = vmatpush.msra.mxu0 %v341
    %753 = vmatpush.msra.mxu0 %v337
    %754 = vmatpush.msra.mxu0 %v333
    %755 = vmatpush.msra.mxu0 %v329
    %756 = vmatpush.msra.mxu0 %v325
    %757 = vmatmul.f32.gmra.mxu0 %v172
    %v758 = vpop.f32.mrf.mxu0
    %v759 = vadd.f32 %v739, %v758
    %760 = vdwg.mxu0
    %761 = vmatpush.msra.mxu0 %v449
    %762 = vmatpush.msra.mxu0 %v445
    %763 = vmatpush.msra.mxu0 %v441
    %764 = vmatpush.msra.mxu0 %v437
    %765 = vmatpush.msra.mxu0 %v433
    %766 = vmatpush.msra.mxu0 %v429
    %767 = vmatpush.msra.mxu0 %v425
    %768 = vmatpush.msra.mxu0 %v421
    %769 = vmatpush.msra.mxu0 %v417
    %770 = vmatpush.msra.mxu0 %v413
    %771 = vmatpush.msra.mxu0 %v409
    %772 = vmatpush.msra.mxu0 %v405
    %773 = vmatpush.msra.mxu0 %v401
    %774 = vmatpush.msra.mxu0 %v397
    %775 = vmatpush.msra.mxu0 %v393
    %776 = vmatpush.msra.mxu0 %v389
    %777 = vmatmul.f32.gmra.mxu0 %v192
    %v778 = vpop.f32.mrf.mxu0
    %v779 = vadd.f32 %v759, %v778
    %780 = vdwg.mxu0
    %v781 = vmul.f32 %v539, 0.5
    %v782 = vmul.f32 %v619, 0.5
    %v783 = vmul.f32 %v699, 0.5
    %v784 = vmul.f32 %v779, 0.5
    %v785 = vmul.f32 %v539, 0.70710677
    %v786 = vmul.f32 %v619, 0.70710677
    %v787 = vmul.f32 %v699, 0.70710677
    %v788 = vmul.f32 %v779, 0.70710677
    %v789 = vmul.f32 %v785, %v785
    %v790 = vmin.f32 16.0, %v789
    %v791 = vmul.f32 %v790, 2.1237322e-06
    %v792 = vadd.f32 %v791, 0.00028619796
    %v793 = vmul.f32 %v790, %v792
    %v794 = vadd.f32 %v793, 0.0036580483
    %v795 = vmul.f32 %v790, %v794
    %v796 = vadd.f32 %v795, 0.05243302
    %v797 = vmul.f32 %v790, %v796
    %v798 = vadd.f32 %v797, 0.18741608
    %v799 = vmul.f32 %v790, %v798
    %v800 = vadd.f32 %v799, 1.1283791
    %v801 = vmul.f32 %v785, %v800
    %v802 = vmul.f32 %v790, 3.8918573e-05
    %v803 = vadd.f32 %v802, 0.001143296
    %v804 = vmul.f32 %v790, %v803
    %v805 = vadd.f32 %v804, 0.014752088
    %v806 = vmul.f32 %v790, %v805
    %v807 = vadd.f32 %v806, 0.112945676
    %v808 = vmul.f32 %v790, %v807
    %v809 = vadd.f32 %v808, 0.4994258
    %v810 = vmul.f32 %v790, %v809
    %v811 = vadd.f32 %v810, 1.0
    %v812 = vrcp.pop %v811
    %v813 = vmul.f32 %v811, %v812
    %v814 = vsub.f32 1.0, %v813
    %v815 = vmul.f32 %v812, %v814
    %v816 = vadd.f32 %v812, %v815
    %vm817 = vweird.f32 %v811
    %vm818 = vweird.f32 %v812
    %vm819 = vmor %vm817, %vm818
    %v820 = vsel %vm819, %v812, %v816
    %v821 = vand.u32 2147483647, %v811
    %vm822 = vcmp.eq.f32.partialorder %v821, 8.507059e+37
    %v823 = vand.u32 %v811, 2147483648
    %v824 = vor.u32 1.1754944e-38, %v823
    %v825 = vsel %vm822, %v824, %v820
    %v826 = vmul.f32 %v801, %v825
    %v827 = vmin.f32 %v826, 1.0
    %v828 = vmax.f32 %v827, -1.0
    %v829 = vmul.f32 %v786, %v786
    %v830 = vmin.f32 16.0, %v829
    %v831 = vmul.f32 %v830, 2.1237322e-06
    %v832 = vadd.f32 %v831, 0.00028619796
    %v833 = vmul.f32 %v830, %v832
    %v834 = vadd.f32 %v833, 0.0036580483
    %v835 = vmul.f32 %v830, %v834
    %v836 = vadd.f32 %v835, 0.05243302
    %v837 = vmul.f32 %v830, %v836
    %v838 = vadd.f32 %v837, 0.18741608
    %v839 = vmul.f32 %v830, %v838
    %v840 = vadd.f32 %v839, 1.1283791
    %v841 = vmul.f32 %v786, %v840
    %v842 = vmul.f32 %v830, 3.8918573e-05
    %v843 = vadd.f32 %v842, 0.001143296
    %v844 = vmul.f32 %v830, %v843
    %v845 = vadd.f32 %v844, 0.014752088
    %v846 = vmul.f32 %v830, %v845
    %v847 = vadd.f32 %v846, 0.112945676
    %v848 = vmul.f32 %v830, %v847
    %v849 = vadd.f32 %v848, 0.4994258
    %v850 = vmul.f32 %v830, %v849
    %v851 = vadd.f32 %v850, 1.0
    %v852 = vrcp.pop %v851
    %v853 = vmul.f32 %v851, %v852
    %v854 = vsub.f32 1.0, %v853
    %v855 = vmul.f32 %v852, %v854
    %v856 = vadd.f32 %v852, %v855
    %vm857 = vweird.f32 %v851
    %vm858 = vweird.f32 %v852
    %vm859 = vmor %vm857, %vm858
    %v860 = vsel %vm859, %v852, %v856
    %v861 = vand.u32 2147483647, %v851
    %vm862 = vcmp.eq.f32.partialorder %v861, 8.507059e+37
    %v863 = vand.u32 %v851, 2147483648
    %v864 = vor.u32 1.1754944e-38, %v863
    %v865 = vsel %vm862, %v864, %v860
    %v866 = vmul.f32 %v841, %v865
    %v867 = vmin.f32 %v866, 1.0
    %v868 = vmax.f32 %v867, -1.0
    %v869 = vmul.f32 %v787, %v787
    %v870 = vmin.f32 16.0, %v869
    %v871 = vmul.f32 %v870, 2.1237322e-06
    %v872 = vadd.f32 %v871, 0.00028619796
    %v873 = vmul.f32 %v870, %v872
    %v874 = vadd.f32 %v873, 0.0036580483
    %v875 = vmul.f32 %v870, %v874
    %v876 = vadd.f32 %v875, 0.05243302
    %v877 = vmul.f32 %v870, %v876
    %v878 = vadd.f32 %v877, 0.18741608
    %v879 = vmul.f32 %v870, %v878
    %v880 = vadd.f32 %v879, 1.1283791
    %v881 = vmul.f32 %v787, %v880
    %v882 = vmul.f32 %v870, 3.8918573e-05
    %v883 = vadd.f32 %v882, 0.001143296
    %v884 = vmul.f32 %v870, %v883
    %v885 = vadd.f32 %v884, 0.014752088
    %v886 = vmul.f32 %v870, %v885
    %v887 = vadd.f32 %v886, 0.112945676
    %v888 = vmul.f32 %v870, %v887
    %v889 = vadd.f32 %v888, 0.4994258
    %v890 = vmul.f32 %v870, %v889
    %v891 = vadd.f32 %v890, 1.0
    %v892 = vrcp.pop %v891
    %v893 = vmul.f32 %v891, %v892
    %v894 = vsub.f32 1.0, %v893
    %v895 = vmul.f32 %v892, %v894
    %v896 = vadd.f32 %v892, %v895
    %vm897 = vweird.f32 %v891
    %vm898 = vweird.f32 %v892
    %vm899 = vmor %vm897, %vm898
    %v900 = vsel %vm899, %v892, %v896
    %v901 = vand.u32 2147483647, %v891
    %vm902 = vcmp.eq.f32.partialorder %v901, 8.507059e+37
    %v903 = vand.u32 %v891, 2147483648
    %v904 = vor.u32 1.1754944e-38, %v903
    %v905 = vsel %vm902, %v904, %v900
    %v906 = vmul.f32 %v881, %v905
    %v907 = vmin.f32 %v906, 1.0
    %v908 = vmax.f32 %v907, -1.0
    %v909 = vmul.f32 %v788, %v788
    %v910 = vmin.f32 16.0, %v909
    %v911 = vmul.f32 %v910, 2.1237322e-06
    %v912 = vadd.f32 %v911, 0.00028619796
    %v913 = vmul.f32 %v910, %v912
    %v914 = vadd.f32 %v913, 0.0036580483
    %v915 = vmul.f32 %v910, %v914
    %v916 = vadd.f32 %v915, 0.05243302
    %v917 = vmul.f32 %v910, %v916
    %v918 = vadd.f32 %v917, 0.18741608
    %v919 = vmul.f32 %v910, %v918
    %v920 = vadd.f32 %v919, 1.1283791
    %v921 = vmul.f32 %v788, %v920
    %v922 = vmul.f32 %v910, 3.8918573e-05
    %v923 = vadd.f32 %v922, 0.001143296
    %v924 = vmul.f32 %v910, %v923
    %v925 = vadd.f32 %v924, 0.014752088
    %v926 = vmul.f32 %v910, %v925
    %v927 = vadd.f32 %v926, 0.112945676
    %v928 = vmul.f32 %v910, %v927
    %v929 = vadd.f32 %v928, 0.4994258
    %v930 = vmul.f32 %v910, %v929
    %v931 = vadd.f32 %v930, 1.0
    %v932 = vrcp.pop %v931
    %v933 = vmul.f32 %v931, %v932
    %v934 = vsub.f32 1.0, %v933
    %v935 = vmul.f32 %v932, %v934
    %v936 = vadd.f32 %v932, %v935
    %vm937 = vweird.f32 %v931
    %vm938 = vweird.f32 %v932
    %vm939 = vmor %vm937, %vm938
    %v940 = vsel %vm939, %v932, %v936
    %v941 = vand.u32 2147483647, %v931
    %vm942 = vcmp.eq.f32.partialorder %v941, 8.507059e+37
    %v943 = vand.u32 %v931, 2147483648
    %v944 = vor.u32 1.1754944e-38, %v943
    %v945 = vsel %vm942, %v944, %v940
    %v946 = vmul.f32 %v921, %v945
    %v947 = vmin.f32 %v946, 1.0
    %v948 = vmax.f32 %v947, -1.0
    %v949 = vadd.f32 %v828, 1.0
    %v950 = vadd.f32 %v868, 1.0
    %v951 = vadd.f32 %v908, 1.0
    %v952 = vadd.f32 %v948, 1.0
    %v953 = vmul.f32 %v781, %v949
    %v954 = vmul.f32 %v782, %v950
    %v955 = vmul.f32 %v783, %v951
    %v956 = vmul.f32 %v784, %v952
    %s957 = scalar_lea.vmem [#allocation5], 2048
    %v958 = vld [vmem:[%s957] sm:$0xff]
    %v959 = vld [vmem:[%s957 + $0x8] sm:$0xff]
    %v960 = vld [vmem:[%s957 + $0x10] sm:$0xff]
    %v961 = vld [vmem:[%s957 + $0x18] sm:$0xff]
    %v962 = vld [vmem:[%s957 + $0x20] sm:$0xff]
    %v963 = vld [vmem:[%s957 + $0x28] sm:$0xff]
    %v964 = vld [vmem:[%s957 + $0x30] sm:$0xff]
    %v965 = vld [vmem:[%s957 + $0x38] sm:$0xff]
    %v966 = vld [vmem:[%s957 + $0x40] sm:$0xff]
    %v967 = vld [vmem:[%s957 + $0x48] sm:$0xff]
    %v968 = vld [vmem:[%s957 + $0x50] sm:$0xff]
    %v969 = vld [vmem:[%s957 + $0x58] sm:$0xff]
    %v970 = vld [vmem:[%s957 + $0x60] sm:$0xff]
    %v971 = vld [vmem:[%s957 + $0x68] sm:$0xff]
    %v972 = vld [vmem:[%s957 + $0x70] sm:$0xff]
    %v973 = vld [vmem:[%s957 + $0x78] sm:$0xff]
    %v974 = vld [vmem:[%s957 + $0x80] sm:$0xff]
    %v975 = vld [vmem:[%s957 + $0x88] sm:$0xff]
    %v976 = vld [vmem:[%s957 + $0x90] sm:$0xff]
    %v977 = vld [vmem:[%s957 + $0x98] sm:$0xff]
    %v978 = vld [vmem:[%s957 + $0xa0] sm:$0xff]
    %v979 = vld [vmem:[%s957 + $0xa8] sm:$0xff]
    %v980 = vld [vmem:[%s957 + $0xb0] sm:$0xff]
    %v981 = vld [vmem:[%s957 + $0xb8] sm:$0xff]
    %v982 = vld [vmem:[%s957 + $0xc0] sm:$0xff]
    %v983 = vld [vmem:[%s957 + $0xc8] sm:$0xff]
    %v984 = vld [vmem:[%s957 + $0xd0] sm:$0xff]
    %v985 = vld [vmem:[%s957 + $0xd8] sm:$0xff]
    %v986 = vld [vmem:[%s957 + $0xe0] sm:$0xff]
    %v987 = vld [vmem:[%s957 + $0xe8] sm:$0xff]
    %v988 = vld [vmem:[%s957 + $0xf0] sm:$0xff]
    %v989 = vld [vmem:[%s957 + $0xf8] sm:$0xff]
    %v990 = vld [vmem:[%s957 + $0x100] sm:$0xff]
    %v991 = vld [vmem:[%s957 + $0x108] sm:$0xff]
    %v992 = vld [vmem:[%s957 + $0x110] sm:$0xff]
    %v993 = vld [vmem:[%s957 + $0x118] sm:$0xff]
    %v994 = vld [vmem:[%s957 + $0x120] sm:$0xff]
    %v995 = vld [vmem:[%s957 + $0x128] sm:$0xff]
    %v996 = vld [vmem:[%s957 + $0x130] sm:$0xff]
    %v997 = vld [vmem:[%s957 + $0x138] sm:$0xff]
    %v998 = vld [vmem:[%s957 + $0x140] sm:$0xff]
    %v999 = vld [vmem:[%s957 + $0x148] sm:$0xff]
    %v1000 = vld [vmem:[%s957 + $0x150] sm:$0xff]
    %v1001 = vld [vmem:[%s957 + $0x158] sm:$0xff]
    %v1002 = vld [vmem:[%s957 + $0x160] sm:$0xff]
    %v1003 = vld [vmem:[%s957 + $0x168] sm:$0xff]
    %v1004 = vld [vmem:[%s957 + $0x170] sm:$0xff]
    %v1005 = vld [vmem:[%s957 + $0x178] sm:$0xff]
    %v1006 = vld [vmem:[%s957 + $0x180] sm:$0xff]
    %v1007 = vld [vmem:[%s957 + $0x188] sm:$0xff]
    %v1008 = vld [vmem:[%s957 + $0x190] sm:$0xff]
    %v1009 = vld [vmem:[%s957 + $0x198] sm:$0xff]
    %v1010 = vld [vmem:[%s957 + $0x1a0] sm:$0xff]
    %v1011 = vld [vmem:[%s957 + $0x1a8] sm:$0xff]
    %v1012 = vld [vmem:[%s957 + $0x1b0] sm:$0xff]
    %v1013 = vld [vmem:[%s957 + $0x1b8] sm:$0xff]
    %v1014 = vld [vmem:[%s957 + $0x1c0] sm:$0xff]
    %v1015 = vld [vmem:[%s957 + $0x1c8] sm:$0xff]
    %v1016 = vld [vmem:[%s957 + $0x1d0] sm:$0xff]
    %v1017 = vld [vmem:[%s957 + $0x1d8] sm:$0xff]
    %v1018 = vld [vmem:[%s957 + $0x1e0] sm:$0xff]
    %v1019 = vld [vmem:[%s957 + $0x1e8] sm:$0xff]
    %v1020 = vld [vmem:[%s957 + $0x1f0] sm:$0xff]
    %v1021 = vld [vmem:[%s957 + $0x1f8] sm:$0xff]
    %v1022 = vld [vmem:[%s957 + $0x200] sm:$0xff]
    %v1023 = vld [vmem:[%s957 + $0x208] sm:$0xff]
    %v1024 = vld [vmem:[%s957 + $0x210] sm:$0xff]
    %v1025 = vld [vmem:[%s957 + $0x218] sm:$0xff]
    %v1026 = vld [vmem:[%s957 + $0x220] sm:$0xff]
    %v1027 = vld [vmem:[%s957 + $0x228] sm:$0xff]
    %v1028 = vld [vmem:[%s957 + $0x230] sm:$0xff]
    %v1029 = vld [vmem:[%s957 + $0x238] sm:$0xff]
    %v1030 = vld [vmem:[%s957 + $0x240] sm:$0xff]
    %v1031 = vld [vmem:[%s957 + $0x248] sm:$0xff]
    %v1032 = vld [vmem:[%s957 + $0x250] sm:$0xff]
    %v1033 = vld [vmem:[%s957 + $0x258] sm:$0xff]
    %v1034 = vld [vmem:[%s957 + $0x260] sm:$0xff]
    %v1035 = vld [vmem:[%s957 + $0x268] sm:$0xff]
    %v1036 = vld [vmem:[%s957 + $0x270] sm:$0xff]
    %v1037 = vld [vmem:[%s957 + $0x278] sm:$0xff]
    %v1038 = vld [vmem:[%s957 + $0x280] sm:$0xff]
    %v1039 = vld [vmem:[%s957 + $0x288] sm:$0xff]
    %v1040 = vld [vmem:[%s957 + $0x290] sm:$0xff]
    %v1041 = vld [vmem:[%s957 + $0x298] sm:$0xff]
    %v1042 = vld [vmem:[%s957 + $0x2a0] sm:$0xff]
    %v1043 = vld [vmem:[%s957 + $0x2a8] sm:$0xff]
    %v1044 = vld [vmem:[%s957 + $0x2b0] sm:$0xff]
    %v1045 = vld [vmem:[%s957 + $0x2b8] sm:$0xff]
    %v1046 = vld [vmem:[%s957 + $0x2c0] sm:$0xff]
    %v1047 = vld [vmem:[%s957 + $0x2c8] sm:$0xff]
    %v1048 = vld [vmem:[%s957 + $0x2d0] sm:$0xff]
    %v1049 = vld [vmem:[%s957 + $0x2d8] sm:$0xff]
    %v1050 = vld [vmem:[%s957 + $0x2e0] sm:$0xff]
    %v1051 = vld [vmem:[%s957 + $0x2e8] sm:$0xff]
    %v1052 = vld [vmem:[%s957 + $0x2f0] sm:$0xff]
    %v1053 = vld [vmem:[%s957 + $0x2f8] sm:$0xff]
    %v1054 = vld [vmem:[%s957 + $0x300] sm:$0xff]
    %v1055 = vld [vmem:[%s957 + $0x308] sm:$0xff]
    %v1056 = vld [vmem:[%s957 + $0x310] sm:$0xff]
    %v1057 = vld [vmem:[%s957 + $0x318] sm:$0xff]
    %v1058 = vld [vmem:[%s957 + $0x320] sm:$0xff]
    %v1059 = vld [vmem:[%s957 + $0x328] sm:$0xff]
    %v1060 = vld [vmem:[%s957 + $0x330] sm:$0xff]
    %v1061 = vld [vmem:[%s957 + $0x338] sm:$0xff]
    %v1062 = vld [vmem:[%s957 + $0x340] sm:$0xff]
    %v1063 = vld [vmem:[%s957 + $0x348] sm:$0xff]
    %v1064 = vld [vmem:[%s957 + $0x350] sm:$0xff]
    %v1065 = vld [vmem:[%s957 + $0x358] sm:$0xff]
    %v1066 = vld [vmem:[%s957 + $0x360] sm:$0xff]
    %v1067 = vld [vmem:[%s957 + $0x368] sm:$0xff]
    %v1068 = vld [vmem:[%s957 + $0x370] sm:$0xff]
    %v1069 = vld [vmem:[%s957 + $0x378] sm:$0xff]
    %v1070 = vld [vmem:[%s957 + $0x380] sm:$0xff]
    %v1071 = vld [vmem:[%s957 + $0x388] sm:$0xff]
    %v1072 = vld [vmem:[%s957 + $0x390] sm:$0xff]
    %v1073 = vld [vmem:[%s957 + $0x398] sm:$0xff]
    %v1074 = vld [vmem:[%s957 + $0x3a0] sm:$0xff]
    %v1075 = vld [vmem:[%s957 + $0x3a8] sm:$0xff]
    %v1076 = vld [vmem:[%s957 + $0x3b0] sm:$0xff]
    %v1077 = vld [vmem:[%s957 + $0x3b8] sm:$0xff]
    %v1078 = vld [vmem:[%s957 + $0x3c0] sm:$0xff]
    %v1079 = vld [vmem:[%s957 + $0x3c8] sm:$0xff]
    %v1080 = vld [vmem:[%s957 + $0x3d0] sm:$0xff]
    %v1081 = vld [vmem:[%s957 + $0x3d8] sm:$0xff]
    %v1082 = vld [vmem:[%s957 + $0x3e0] sm:$0xff]
    %v1083 = vld [vmem:[%s957 + $0x3e8] sm:$0xff]
    %v1084 = vld [vmem:[%s957 + $0x3f0] sm:$0xff]
    %v1085 = vld [vmem:[%s957 + $0x3f8] sm:$0xff]
    %v1086 = vld [vmem:[%s957 + $0x400] sm:$0xff]
    %v1087 = vld [vmem:[%s957 + $0x408] sm:$0xff]
    %v1088 = vld [vmem:[%s957 + $0x410] sm:$0xff]
    %v1089 = vld [vmem:[%s957 + $0x418] sm:$0xff]
    %v1090 = vld [vmem:[%s957 + $0x420] sm:$0xff]
    %v1091 = vld [vmem:[%s957 + $0x428] sm:$0xff]
    %v1092 = vld [vmem:[%s957 + $0x430] sm:$0xff]
    %v1093 = vld [vmem:[%s957 + $0x438] sm:$0xff]
    %v1094 = vld [vmem:[%s957 + $0x440] sm:$0xff]
    %v1095 = vld [vmem:[%s957 + $0x448] sm:$0xff]
    %v1096 = vld [vmem:[%s957 + $0x450] sm:$0xff]
    %v1097 = vld [vmem:[%s957 + $0x458] sm:$0xff]
    %v1098 = vld [vmem:[%s957 + $0x460] sm:$0xff]
    %v1099 = vld [vmem:[%s957 + $0x468] sm:$0xff]
    %v1100 = vld [vmem:[%s957 + $0x470] sm:$0xff]
    %v1101 = vld [vmem:[%s957 + $0x478] sm:$0xff]
    %v1102 = vld [vmem:[%s957 + $0x480] sm:$0xff]
    %v1103 = vld [vmem:[%s957 + $0x488] sm:$0xff]
    %v1104 = vld [vmem:[%s957 + $0x490] sm:$0xff]
    %v1105 = vld [vmem:[%s957 + $0x498] sm:$0xff]
    %v1106 = vld [vmem:[%s957 + $0x4a0] sm:$0xff]
    %v1107 = vld [vmem:[%s957 + $0x4a8] sm:$0xff]
    %v1108 = vld [vmem:[%s957 + $0x4b0] sm:$0xff]
    %v1109 = vld [vmem:[%s957 + $0x4b8] sm:$0xff]
    %v1110 = vld [vmem:[%s957 + $0x4c0] sm:$0xff]
    %v1111 = vld [vmem:[%s957 + $0x4c8] sm:$0xff]
    %v1112 = vld [vmem:[%s957 + $0x4d0] sm:$0xff]
    %v1113 = vld [vmem:[%s957 + $0x4d8] sm:$0xff]
    %v1114 = vld [vmem:[%s957 + $0x4e0] sm:$0xff]
    %v1115 = vld [vmem:[%s957 + $0x4e8] sm:$0xff]
    %v1116 = vld [vmem:[%s957 + $0x4f0] sm:$0xff]
    %v1117 = vld [vmem:[%s957 + $0x4f8] sm:$0xff]
    %v1118 = vld [vmem:[%s957 + $0x500] sm:$0xff]
    %v1119 = vld [vmem:[%s957 + $0x508] sm:$0xff]
    %v1120 = vld [vmem:[%s957 + $0x510] sm:$0xff]
    %v1121 = vld [vmem:[%s957 + $0x518] sm:$0xff]
    %v1122 = vld [vmem:[%s957 + $0x520] sm:$0xff]
    %v1123 = vld [vmem:[%s957 + $0x528] sm:$0xff]
    %v1124 = vld [vmem:[%s957 + $0x530] sm:$0xff]
    %v1125 = vld [vmem:[%s957 + $0x538] sm:$0xff]
    %v1126 = vld [vmem:[%s957 + $0x540] sm:$0xff]
    %v1127 = vld [vmem:[%s957 + $0x548] sm:$0xff]
    %v1128 = vld [vmem:[%s957 + $0x550] sm:$0xff]
    %v1129 = vld [vmem:[%s957 + $0x558] sm:$0xff]
    %v1130 = vld [vmem:[%s957 + $0x560] sm:$0xff]
    %v1131 = vld [vmem:[%s957 + $0x568] sm:$0xff]
    %v1132 = vld [vmem:[%s957 + $0x570] sm:$0xff]
    %v1133 = vld [vmem:[%s957 + $0x578] sm:$0xff]
    %v1134 = vld [vmem:[%s957 + $0x580] sm:$0xff]
    %v1135 = vld [vmem:[%s957 + $0x588] sm:$0xff]
    %v1136 = vld [vmem:[%s957 + $0x590] sm:$0xff]
    %v1137 = vld [vmem:[%s957 + $0x598] sm:$0xff]
    %v1138 = vld [vmem:[%s957 + $0x5a0] sm:$0xff]
    %v1139 = vld [vmem:[%s957 + $0x5a8] sm:$0xff]
    %v1140 = vld [vmem:[%s957 + $0x5b0] sm:$0xff]
    %v1141 = vld [vmem:[%s957 + $0x5b8] sm:$0xff]
    %v1142 = vld [vmem:[%s957 + $0x5c0] sm:$0xff]
    %v1143 = vld [vmem:[%s957 + $0x5c8] sm:$0xff]
    %v1144 = vld [vmem:[%s957 + $0x5d0] sm:$0xff]
    %v1145 = vld [vmem:[%s957 + $0x5d8] sm:$0xff]
    %v1146 = vld [vmem:[%s957 + $0x5e0] sm:$0xff]
    %v1147 = vld [vmem:[%s957 + $0x5e8] sm:$0xff]
    %v1148 = vld [vmem:[%s957 + $0x5f0] sm:$0xff]
    %v1149 = vld [vmem:[%s957 + $0x5f8] sm:$0xff]
    %v1150 = vld [vmem:[%s957 + $0x600] sm:$0xff]
    %v1151 = vld [vmem:[%s957 + $0x608] sm:$0xff]
    %v1152 = vld [vmem:[%s957 + $0x610] sm:$0xff]
    %v1153 = vld [vmem:[%s957 + $0x618] sm:$0xff]
    %v1154 = vld [vmem:[%s957 + $0x620] sm:$0xff]
    %v1155 = vld [vmem:[%s957 + $0x628] sm:$0xff]
    %v1156 = vld [vmem:[%s957 + $0x630] sm:$0xff]
    %v1157 = vld [vmem:[%s957 + $0x638] sm:$0xff]
    %v1158 = vld [vmem:[%s957 + $0x640] sm:$0xff]
    %v1159 = vld [vmem:[%s957 + $0x648] sm:$0xff]
    %v1160 = vld [vmem:[%s957 + $0x650] sm:$0xff]
    %v1161 = vld [vmem:[%s957 + $0x658] sm:$0xff]
    %v1162 = vld [vmem:[%s957 + $0x660] sm:$0xff]
    %v1163 = vld [vmem:[%s957 + $0x668] sm:$0xff]
    %v1164 = vld [vmem:[%s957 + $0x670] sm:$0xff]
    %v1165 = vld [vmem:[%s957 + $0x678] sm:$0xff]
    %v1166 = vld [vmem:[%s957 + $0x680] sm:$0xff]
    %v1167 = vld [vmem:[%s957 + $0x688] sm:$0xff]
    %v1168 = vld [vmem:[%s957 + $0x690] sm:$0xff]
    %v1169 = vld [vmem:[%s957 + $0x698] sm:$0xff]
    %v1170 = vld [vmem:[%s957 + $0x6a0] sm:$0xff]
    %v1171 = vld [vmem:[%s957 + $0x6a8] sm:$0xff]
    %v1172 = vld [vmem:[%s957 + $0x6b0] sm:$0xff]
    %v1173 = vld [vmem:[%s957 + $0x6b8] sm:$0xff]
    %v1174 = vld [vmem:[%s957 + $0x6c0] sm:$0xff]
    %v1175 = vld [vmem:[%s957 + $0x6c8] sm:$0xff]
    %v1176 = vld [vmem:[%s957 + $0x6d0] sm:$0xff]
    %v1177 = vld [vmem:[%s957 + $0x6d8] sm:$0xff]
    %v1178 = vld [vmem:[%s957 + $0x6e0] sm:$0xff]
    %v1179 = vld [vmem:[%s957 + $0x6e8] sm:$0xff]
    %v1180 = vld [vmem:[%s957 + $0x6f0] sm:$0xff]
    %v1181 = vld [vmem:[%s957 + $0x6f8] sm:$0xff]
    %v1182 = vld [vmem:[%s957 + $0x700] sm:$0xff]
    %v1183 = vld [vmem:[%s957 + $0x708] sm:$0xff]
    %v1184 = vld [vmem:[%s957 + $0x710] sm:$0xff]
    %v1185 = vld [vmem:[%s957 + $0x718] sm:$0xff]
    %v1186 = vld [vmem:[%s957 + $0x720] sm:$0xff]
    %v1187 = vld [vmem:[%s957 + $0x728] sm:$0xff]
    %v1188 = vld [vmem:[%s957 + $0x730] sm:$0xff]
    %v1189 = vld [vmem:[%s957 + $0x738] sm:$0xff]
    %v1190 = vld [vmem:[%s957 + $0x740] sm:$0xff]
    %v1191 = vld [vmem:[%s957 + $0x748] sm:$0xff]
    %v1192 = vld [vmem:[%s957 + $0x750] sm:$0xff]
    %v1193 = vld [vmem:[%s957 + $0x758] sm:$0xff]
    %v1194 = vld [vmem:[%s957 + $0x760] sm:$0xff]
    %v1195 = vld [vmem:[%s957 + $0x768] sm:$0xff]
    %v1196 = vld [vmem:[%s957 + $0x770] sm:$0xff]
    %v1197 = vld [vmem:[%s957 + $0x778] sm:$0xff]
    %v1198 = vld [vmem:[%s957 + $0x780] sm:$0xff]
    %v1199 = vld [vmem:[%s957 + $0x788] sm:$0xff]
    %v1200 = vld [vmem:[%s957 + $0x790] sm:$0xff]
    %v1201 = vld [vmem:[%s957 + $0x798] sm:$0xff]
    %v1202 = vld [vmem:[%s957 + $0x7a0] sm:$0xff]
    %v1203 = vld [vmem:[%s957 + $0x7a8] sm:$0xff]
    %v1204 = vld [vmem:[%s957 + $0x7b0] sm:$0xff]
    %v1205 = vld [vmem:[%s957 + $0x7b8] sm:$0xff]
    %v1206 = vld [vmem:[%s957 + $0x7c0] sm:$0xff]
    %v1207 = vld [vmem:[%s957 + $0x7c8] sm:$0xff]
    %v1208 = vld [vmem:[%s957 + $0x7d0] sm:$0xff]
    %v1209 = vld [vmem:[%s957 + $0x7d8] sm:$0xff]
    %v1210 = vld [vmem:[%s957 + $0x7e0] sm:$0xff]
    %v1211 = vld [vmem:[%s957 + $0x7e8] sm:$0xff]
    %v1212 = vld [vmem:[%s957 + $0x7f0] sm:$0xff]
    %v1213 = vld [vmem:[%s957 + $0x7f8] sm:$0xff]
    %s1214 = scalar_lea.vmem [#allocation8], 130
    %v1215 = vld [vmem:[%s1214] ss:$8 sm:$0xf]
    %v1217 = vperm.slane %v1215, 0
    %v1218 = vperm.slane %v1215, 1
    %v1219 = vperm.slane %v1215, 2
    %v1220 = vperm.slane %v1215, 3
    %1225 = vmatpush.msra.mxu0 %v1018
    %1226 = vmatpush.msra.mxu0 %v1014
    %1227 = vmatpush.msra.mxu0 %v1010
    %1228 = vmatpush.msra.mxu0 %v1006
    %1229 = vmatpush.msra.mxu0 %v1002
    %1230 = vmatpush.msra.mxu0 %v998
    %1231 = vmatpush.msra.mxu0 %v994
    %1232 = vmatpush.msra.mxu0 %v990
    %1233 = vmatpush.msra.mxu0 %v986
    %1234 = vmatpush.msra.mxu0 %v982
    %1235 = vmatpush.msra.mxu0 %v978
    %1236 = vmatpush.msra.mxu0 %v974
    %1237 = vmatpush.msra.mxu0 %v970
    %1238 = vmatpush.msra.mxu0 %v966
    %1239 = vmatpush.msra.mxu0 %v962
    %1240 = vmatpush.msra.mxu0 %v958
    %1241 = vmatmul.f32.gmra.mxu0 %v953
    %v1242 = vpop.f32.mrf.mxu0
    %v1243 = vadd.f32 %v1217, %v1242
    %1244 = vdwg.mxu0
    %1245 = vmatpush.msra.mxu0 %v1082
    %1246 = vmatpush.msra.mxu0 %v1078
    %1247 = vmatpush.msra.mxu0 %v1074
    %1248 = vmatpush.msra.mxu0 %v1070
    %1249 = vmatpush.msra.mxu0 %v1066
    %1250 = vmatpush.msra.mxu0 %v1062
    %1251 = vmatpush.msra.mxu0 %v1058
    %1252 = vmatpush.msra.mxu0 %v1054
    %1253 = vmatpush.msra.mxu0 %v1050
    %1254 = vmatpush.msra.mxu0 %v1046
    %1255 = vmatpush.msra.mxu0 %v1042
    %1256 = vmatpush.msra.mxu0 %v1038
    %1257 = vmatpush.msra.mxu0 %v1034
    %1258 = vmatpush.msra.mxu0 %v1030
    %1259 = vmatpush.msra.mxu0 %v1026
    %1260 = vmatpush.msra.mxu0 %v1022
    %1261 = vmatmul.f32.gmra.mxu0 %v954
    %v1262 = vpop.f32.mrf.mxu0
    %v1263 = vadd.f32 %v1243, %v1262
    %1264 = vdwg.mxu0
    %1265 = vmatpush.msra.mxu0 %v1146
    %1266 = vmatpush.msra.mxu0 %v1142
    %1267 = vmatpush.msra.mxu0 %v1138
    %1268 = vmatpush.msra.mxu0 %v1134
    %1269 = vmatpush.msra.mxu0 %v1130
    %1270 = vmatpush.msra.mxu0 %v1126
    %1271 = vmatpush.msra.mxu0 %v1122
    %1272 = vmatpush.msra.mxu0 %v1118
    %1273 = vmatpush.msra.mxu0 %v1114
    %1274 = vmatpush.msra.mxu0 %v1110
    %1275 = vmatpush.msra.mxu0 %v1106
    %1276 = vmatpush.msra.mxu0 %v1102
    %1277 = vmatpush.msra.mxu0 %v1098
    %1278 = vmatpush.msra.mxu0 %v1094
    %1279 = vmatpush.msra.mxu0 %v1090
    %1280 = vmatpush.msra.mxu0 %v1086
    %1281 = vmatmul.f32.gmra.mxu0 %v955
    %v1282 = vpop.f32.mrf.mxu0
    %v1283 = vadd.f32 %v1263, %v1282
    %1284 = vdwg.mxu0
    %1285 = vmatpush.msra.mxu0 %v1210
    %1286 = vmatpush.msra.mxu0 %v1206
    %1287 = vmatpush.msra.mxu0 %v1202
    %1288 = vmatpush.msra.mxu0 %v1198
    %1289 = vmatpush.msra.mxu0 %v1194
    %1290 = vmatpush.msra.mxu0 %v1190
    %1291 = vmatpush.msra.mxu0 %v1186
    %1292 = vmatpush.msra.mxu0 %v1182
    %1293 = vmatpush.msra.mxu0 %v1178
    %1294 = vmatpush.msra.mxu0 %v1174
    %1295 = vmatpush.msra.mxu0 %v1170
    %1296 = vmatpush.msra.mxu0 %v1166
    %1297 = vmatpush.msra.mxu0 %v1162
    %1298 = vmatpush.msra.mxu0 %v1158
    %1299 = vmatpush.msra.mxu0 %v1154
    %1300 = vmatpush.msra.mxu0 %v1150
    %1301 = vmatmul.f32.gmra.mxu0 %v956
    %v1302 = vpop.f32.mrf.mxu0
    %v1303 = vadd.f32 %v1283, %v1302
    %1304 = vdwg.mxu0
    %1305 = vmatpush.msra.mxu0 %v1019
    %1306 = vmatpush.msra.mxu0 %v1015
    %1307 = vmatpush.msra.mxu0 %v1011
    %1308 = vmatpush.msra.mxu0 %v1007
    %1309 = vmatpush.msra.mxu0 %v1003
    %1310 = vmatpush.msra.mxu0 %v999
    %1311 = vmatpush.msra.mxu0 %v995
    %1312 = vmatpush.msra.mxu0 %v991
    %1313 = vmatpush.msra.mxu0 %v987
    %1314 = vmatpush.msra.mxu0 %v983
    %1315 = vmatpush.msra.mxu0 %v979
    %1316 = vmatpush.msra.mxu0 %v975
    %1317 = vmatpush.msra.mxu0 %v971
    %1318 = vmatpush.msra.mxu0 %v967
    %1319 = vmatpush.msra.mxu0 %v963
    %1320 = vmatpush.msra.mxu0 %v959
    %1321 = vmatmul.f32.gmra.mxu0 %v953
    %v1322 = vpop.f32.mrf.mxu0
    %v1323 = vadd.f32 %v1218, %v1322
    %1324 = vdwg.mxu0
    %1325 = vmatpush.msra.mxu0 %v1083
    %1326 = vmatpush.msra.mxu0 %v1079
    %1327 = vmatpush.msra.mxu0 %v1075
    %1328 = vmatpush.msra.mxu0 %v1071
    %1329 = vmatpush.msra.mxu0 %v1067
    %1330 = vmatpush.msra.mxu0 %v1063
    %1331 = vmatpush.msra.mxu0 %v1059
    %1332 = vmatpush.msra.mxu0 %v1055
    %1333 = vmatpush.msra.mxu0 %v1051
    %1334 = vmatpush.msra.mxu0 %v1047
    %1335 = vmatpush.msra.mxu0 %v1043
    %1336 = vmatpush.msra.mxu0 %v1039
    %1337 = vmatpush.msra.mxu0 %v1035
    %1338 = vmatpush.msra.mxu0 %v1031
    %1339 = vmatpush.msra.mxu0 %v1027
    %1340 = vmatpush.msra.mxu0 %v1023
    %1341 = vmatmul.f32.gmra.mxu0 %v954
    %v1342 = vpop.f32.mrf.mxu0
    %v1343 = vadd.f32 %v1323, %v1342
    %1344 = vdwg.mxu0
    %1345 = vmatpush.msra.mxu0 %v1147
    %1346 = vmatpush.msra.mxu0 %v1143
    %1347 = vmatpush.msra.mxu0 %v1139
    %1348 = vmatpush.msra.mxu0 %v1135
    %1349 = vmatpush.msra.mxu0 %v1131
    %1350 = vmatpush.msra.mxu0 %v1127
    %1351 = vmatpush.msra.mxu0 %v1123
    %1352 = vmatpush.msra.mxu0 %v1119
    %1353 = vmatpush.msra.mxu0 %v1115
    %1354 = vmatpush.msra.mxu0 %v1111
    %1355 = vmatpush.msra.mxu0 %v1107
    %1356 = vmatpush.msra.mxu0 %v1103
    %1357 = vmatpush.msra.mxu0 %v1099
    %1358 = vmatpush.msra.mxu0 %v1095
    %1359 = vmatpush.msra.mxu0 %v1091
    %1360 = vmatpush.msra.mxu0 %v1087
    %1361 = vmatmul.f32.gmra.mxu0 %v955
    %v1362 = vpop.f32.mrf.mxu0
    %v1363 = vadd.f32 %v1343, %v1362
    %1364 = vdwg.mxu0
    %1365 = vmatpush.msra.mxu0 %v1211
    %1366 = vmatpush.msra.mxu0 %v1207
    %1367 = vmatpush.msra.mxu0 %v1203
    %1368 = vmatpush.msra.mxu0 %v1199
    %1369 = vmatpush.msra.mxu0 %v1195
    %1370 = vmatpush.msra.mxu0 %v1191
    %1371 = vmatpush.msra.mxu0 %v1187
    %1372 = vmatpush.msra.mxu0 %v1183
    %1373 = vmatpush.msra.mxu0 %v1179
    %1374 = vmatpush.msra.mxu0 %v1175
    %1375 = vmatpush.msra.mxu0 %v1171
    %1376 = vmatpush.msra.mxu0 %v1167
    %1377 = vmatpush.msra.mxu0 %v1163
    %1378 = vmatpush.msra.mxu0 %v1159
    %1379 = vmatpush.msra.mxu0 %v1155
    %1380 = vmatpush.msra.mxu0 %v1151
    %1381 = vmatmul.f32.gmra.mxu0 %v956
    %v1382 = vpop.f32.mrf.mxu0
    %v1383 = vadd.f32 %v1363, %v1382
    %1384 = vdwg.mxu0
    %1385 = vmatpush.msra.mxu0 %v1020
    %1386 = vmatpush.msra.mxu0 %v1016
    %1387 = vmatpush.msra.mxu0 %v1012
    %1388 = vmatpush.msra.mxu0 %v1008
    %1389 = vmatpush.msra.mxu0 %v1004
    %1390 = vmatpush.msra.mxu0 %v1000
    %1391 = vmatpush.msra.mxu0 %v996
    %1392 = vmatpush.msra.mxu0 %v992
    %1393 = vmatpush.msra.mxu0 %v988
    %1394 = vmatpush.msra.mxu0 %v984
    %1395 = vmatpush.msra.mxu0 %v980
    %1396 = vmatpush.msra.mxu0 %v976
    %1397 = vmatpush.msra.mxu0 %v972
    %1398 = vmatpush.msra.mxu0 %v968
    %1399 = vmatpush.msra.mxu0 %v964
    %1400 = vmatpush.msra.mxu0 %v960
    %1401 = vmatmul.f32.gmra.mxu0 %v953
    %v1402 = vpop.f32.mrf.mxu0
    %v1403 = vadd.f32 %v1219, %v1402
    %1404 = vdwg.mxu0
    %1405 = vmatpush.msra.mxu0 %v1084
    %1406 = vmatpush.msra.mxu0 %v1080
    %1407 = vmatpush.msra.mxu0 %v1076
    %1408 = vmatpush.msra.mxu0 %v1072
    %1409 = vmatpush.msra.mxu0 %v1068
    %1410 = vmatpush.msra.mxu0 %v1064
    %1411 = vmatpush.msra.mxu0 %v1060
    %1412 = vmatpush.msra.mxu0 %v1056
    %1413 = vmatpush.msra.mxu0 %v1052
    %1414 = vmatpush.msra.mxu0 %v1048
    %1415 = vmatpush.msra.mxu0 %v1044
    %1416 = vmatpush.msra.mxu0 %v1040
    %1417 = vmatpush.msra.mxu0 %v1036
    %1418 = vmatpush.msra.mxu0 %v1032
    %1419 = vmatpush.msra.mxu0 %v1028
    %1420 = vmatpush.msra.mxu0 %v1024
    %1421 = vmatmul.f32.gmra.mxu0 %v954
    %v1422 = vpop.f32.mrf.mxu0
    %v1423 = vadd.f32 %v1403, %v1422
    %1424 = vdwg.mxu0
    %1425 = vmatpush.msra.mxu0 %v1148
    %1426 = vmatpush.msra.mxu0 %v1144
    %1427 = vmatpush.msra.mxu0 %v1140
    %1428 = vmatpush.msra.mxu0 %v1136
    %1429 = vmatpush.msra.mxu0 %v1132
    %1430 = vmatpush.msra.mxu0 %v1128
    %1431 = vmatpush.msra.mxu0 %v1124
    %1432 = vmatpush.msra.mxu0 %v1120
    %1433 = vmatpush.msra.mxu0 %v1116
    %1434 = vmatpush.msra.mxu0 %v1112
    %1435 = vmatpush.msra.mxu0 %v1108
    %1436 = vmatpush.msra.mxu0 %v1104
    %1437 = vmatpush.msra.mxu0 %v1100
    %1438 = vmatpush.msra.mxu0 %v1096
    %1439 = vmatpush.msra.mxu0 %v1092
    %1440 = vmatpush.msra.mxu0 %v1088
    %1441 = vmatmul.f32.gmra.mxu0 %v955
    %v1442 = vpop.f32.mrf.mxu0
    %v1443 = vadd.f32 %v1423, %v1442
    %1444 = vdwg.mxu0
    %1445 = vmatpush.msra.mxu0 %v1212
    %1446 = vmatpush.msra.mxu0 %v1208
    %1447 = vmatpush.msra.mxu0 %v1204
    %1448 = vmatpush.msra.mxu0 %v1200
    %1449 = vmatpush.msra.mxu0 %v1196
    %1450 = vmatpush.msra.mxu0 %v1192
    %1451 = vmatpush.msra.mxu0 %v1188
    %1452 = vmatpush.msra.mxu0 %v1184
    %1453 = vmatpush.msra.mxu0 %v1180
    %1454 = vmatpush.msra.mxu0 %v1176
    %1455 = vmatpush.msra.mxu0 %v1172
    %1456 = vmatpush.msra.mxu0 %v1168
    %1457 = vmatpush.msra.mxu0 %v1164
    %1458 = vmatpush.msra.mxu0 %v1160
    %1459 = vmatpush.msra.mxu0 %v1156
    %1460 = vmatpush.msra.mxu0 %v1152
    %1461 = vmatmul.f32.gmra.mxu0 %v956
    %v1462 = vpop.f32.mrf.mxu0
    %v1463 = vadd.f32 %v1443, %v1462
    %1464 = vdwg.mxu0
    %1465 = vmatpush.msra.mxu0 %v1021
    %1466 = vmatpush.msra.mxu0 %v1017
    %1467 = vmatpush.msra.mxu0 %v1013
    %1468 = vmatpush.msra.mxu0 %v1009
    %1469 = vmatpush.msra.mxu0 %v1005
    %1470 = vmatpush.msra.mxu0 %v1001
    %1471 = vmatpush.msra.mxu0 %v997
    %1472 = vmatpush.msra.mxu0 %v993
    %1473 = vmatpush.msra.mxu0 %v989
    %1474 = vmatpush.msra.mxu0 %v985
    %1475 = vmatpush.msra.mxu0 %v981
    %1476 = vmatpush.msra.mxu0 %v977
    %1477 = vmatpush.msra.mxu0 %v973
    %1478 = vmatpush.msra.mxu0 %v969
    %1479 = vmatpush.msra.mxu0 %v965
    %1480 = vmatpush.msra.mxu0 %v961
    %1481 = vmatmul.f32.gmra.mxu0 %v953
    %v1482 = vpop.f32.mrf.mxu0
    %v1483 = vadd.f32 %v1220, %v1482
    %1484 = vdwg.mxu0
    %1485 = vmatpush.msra.mxu0 %v1085
    %1486 = vmatpush.msra.mxu0 %v1081
    %1487 = vmatpush.msra.mxu0 %v1077
    %1488 = vmatpush.msra.mxu0 %v1073
    %1489 = vmatpush.msra.mxu0 %v1069
    %1490 = vmatpush.msra.mxu0 %v1065
    %1491 = vmatpush.msra.mxu0 %v1061
    %1492 = vmatpush.msra.mxu0 %v1057
    %1493 = vmatpush.msra.mxu0 %v1053
    %1494 = vmatpush.msra.mxu0 %v1049
    %1495 = vmatpush.msra.mxu0 %v1045
    %1496 = vmatpush.msra.mxu0 %v1041
    %1497 = vmatpush.msra.mxu0 %v1037
    %1498 = vmatpush.msra.mxu0 %v1033
    %1499 = vmatpush.msra.mxu0 %v1029
    %1500 = vmatpush.msra.mxu0 %v1025
    %1501 = vmatmul.f32.gmra.mxu0 %v954
    %v1502 = vpop.f32.mrf.mxu0
    %v1503 = vadd.f32 %v1483, %v1502
    %1504 = vdwg.mxu0
    %1505 = vmatpush.msra.mxu0 %v1149
    %1506 = vmatpush.msra.mxu0 %v1145
    %1507 = vmatpush.msra.mxu0 %v1141
    %1508 = vmatpush.msra.mxu0 %v1137
    %1509 = vmatpush.msra.mxu0 %v1133
    %1510 = vmatpush.msra.mxu0 %v1129
    %1511 = vmatpush.msra.mxu0 %v1125
    %1512 = vmatpush.msra.mxu0 %v1121
    %1513 = vmatpush.msra.mxu0 %v1117
    %1514 = vmatpush.msra.mxu0 %v1113
    %1515 = vmatpush.msra.mxu0 %v1109
    %1516 = vmatpush.msra.mxu0 %v1105
    %1517 = vmatpush.msra.mxu0 %v1101
    %1518 = vmatpush.msra.mxu0 %v1097
    %1519 = vmatpush.msra.mxu0 %v1093
    %1520 = vmatpush.msra.mxu0 %v1089
    %1521 = vmatmul.f32.gmra.mxu0 %v955
    %v1522 = vpop.f32.mrf.mxu0
    %v1523 = vadd.f32 %v1503, %v1522
    %1524 = vdwg.mxu0
    %1525 = vmatpush.msra.mxu0 %v1213
    %1526 = vmatpush.msra.mxu0 %v1209
    %1527 = vmatpush.msra.mxu0 %v1205
    %1528 = vmatpush.msra.mxu0 %v1201
    %1529 = vmatpush.msra.mxu0 %v1197
    %1530 = vmatpush.msra.mxu0 %v1193
    %1531 = vmatpush.msra.mxu0 %v1189
    %1532 = vmatpush.msra.mxu0 %v1185
    %1533 = vmatpush.msra.mxu0 %v1181
    %1534 = vmatpush.msra.mxu0 %v1177
    %1535 = vmatpush.msra.mxu0 %v1173
    %1536 = vmatpush.msra.mxu0 %v1169
    %1537 = vmatpush.msra.mxu0 %v1165
    %1538 = vmatpush.msra.mxu0 %v1161
    %1539 = vmatpush.msra.mxu0 %v1157
    %1540 = vmatpush.msra.mxu0 %v1153
    %1541 = vmatmul.f32.gmra.mxu0 %v956
    %v1542 = vpop.f32.mrf.mxu0
    %v1543 = vadd.f32 %v1523, %v1542
    %1544 = vdwg.mxu0
    %v1545 = vmul.f32 %v1303, 0.5
    %v1546 = vmul.f32 %v1383, 0.5
    %v1547 = vmul.f32 %v1463, 0.5
    %v1548 = vmul.f32 %v1543, 0.5
    %v1549 = vmul.f32 %v1303, 0.70710677
    %v1550 = vmul.f32 %v1383, 0.70710677
    %v1551 = vmul.f32 %v1463, 0.70710677
    %v1552 = vmul.f32 %v1543, 0.70710677
    %v1553 = vmul.f32 %v1549, %v1549
    %v1554 = vmin.f32 16.0, %v1553
    %v1555 = vmul.f32 %v1554, 2.1237322e-06
    %v1556 = vadd.f32 %v1555, 0.00028619796
    %v1557 = vmul.f32 %v1554, %v1556
    %v1558 = vadd.f32 %v1557, 0.0036580483
    %v1559 = vmul.f32 %v1554, %v1558
    %v1560 = vadd.f32 %v1559, 0.05243302
    %v1561 = vmul.f32 %v1554, %v1560
    %v1562 = vadd.f32 %v1561, 0.18741608
    %v1563 = vmul.f32 %v1554, %v1562
    %v1564 = vadd.f32 %v1563, 1.1283791
    %v1565 = vmul.f32 %v1549, %v1564
    %v1566 = vmul.f32 %v1554, 3.8918573e-05
    %v1567 = vadd.f32 %v1566, 0.001143296
    %v1568 = vmul.f32 %v1554, %v1567
    %v1569 = vadd.f32 %v1568, 0.014752088
    %v1570 = vmul.f32 %v1554, %v1569
    %v1571 = vadd.f32 %v1570, 0.112945676
    %v1572 = vmul.f32 %v1554, %v1571
    %v1573 = vadd.f32 %v1572, 0.4994258
    %v1574 = vmul.f32 %v1554, %v1573
    %v1575 = vadd.f32 %v1574, 1.0
    %v1576 = vrcp.pop %v1575
    %v1577 = vmul.f32 %v1575, %v1576
    %v1578 = vsub.f32 1.0, %v1577
    %v1579 = vmul.f32 %v1576, %v1578
    %v1580 = vadd.f32 %v1576, %v1579
    %vm1581 = vweird.f32 %v1575
    %vm1582 = vweird.f32 %v1576
    %vm1583 = vmor %vm1581, %vm1582
    %v1584 = vsel %vm1583, %v1576, %v1580
    %v1585 = vand.u32 2147483647, %v1575
    %vm1586 = vcmp.eq.f32.partialorder %v1585, 8.507059e+37
    %v1587 = vand.u32 %v1575, 2147483648
    %v1588 = vor.u32 1.1754944e-38, %v1587
    %v1589 = vsel %vm1586, %v1588, %v1584
    %v1590 = vmul.f32 %v1565, %v1589
    %v1591 = vmin.f32 %v1590, 1.0
    %v1592 = vmax.f32 %v1591, -1.0
    %v1593 = vmul.f32 %v1550, %v1550
    %v1594 = vmin.f32 16.0, %v1593
    %v1595 = vmul.f32 %v1594, 2.1237322e-06
    %v1596 = vadd.f32 %v1595, 0.00028619796
    %v1597 = vmul.f32 %v1594, %v1596
    %v1598 = vadd.f32 %v1597, 0.0036580483
    %v1599 = vmul.f32 %v1594, %v1598
    %v1600 = vadd.f32 %v1599, 0.05243302
    %v1601 = vmul.f32 %v1594, %v1600
    %v1602 = vadd.f32 %v1601, 0.18741608
    %v1603 = vmul.f32 %v1594, %v1602
    %v1604 = vadd.f32 %v1603, 1.1283791
    %v1605 = vmul.f32 %v1550, %v1604
    %v1606 = vmul.f32 %v1594, 3.8918573e-05
    %v1607 = vadd.f32 %v1606, 0.001143296
    %v1608 = vmul.f32 %v1594, %v1607
    %v1609 = vadd.f32 %v1608, 0.014752088
    %v1610 = vmul.f32 %v1594, %v1609
    %v1611 = vadd.f32 %v1610, 0.112945676
    %v1612 = vmul.f32 %v1594, %v1611
    %v1613 = vadd.f32 %v1612, 0.4994258
    %v1614 = vmul.f32 %v1594, %v1613
    %v1615 = vadd.f32 %v1614, 1.0
    %v1616 = vrcp.pop %v1615
    %v1617 = vmul.f32 %v1615, %v1616
    %v1618 = vsub.f32 1.0, %v1617
    %v1619 = vmul.f32 %v1616, %v1618
    %v1620 = vadd.f32 %v1616, %v1619
    %vm1621 = vweird.f32 %v1615
    %vm1622 = vweird.f32 %v1616
    %vm1623 = vmor %vm1621, %vm1622
    %v1624 = vsel %vm1623, %v1616, %v1620
    %v1625 = vand.u32 2147483647, %v1615
    %vm1626 = vcmp.eq.f32.partialorder %v1625, 8.507059e+37
    %v1627 = vand.u32 %v1615, 2147483648
    %v1628 = vor.u32 1.1754944e-38, %v1627
    %v1629 = vsel %vm1626, %v1628, %v1624
    %v1630 = vmul.f32 %v1605, %v1629
    %v1631 = vmin.f32 %v1630, 1.0
    %v1632 = vmax.f32 %v1631, -1.0
    %v1633 = vmul.f32 %v1551, %v1551
    %v1634 = vmin.f32 16.0, %v1633
    %v1635 = vmul.f32 %v1634, 2.1237322e-06
    %v1636 = vadd.f32 %v1635, 0.00028619796
    %v1637 = vmul.f32 %v1634, %v1636
    %v1638 = vadd.f32 %v1637, 0.0036580483
    %v1639 = vmul.f32 %v1634, %v1638
    %v1640 = vadd.f32 %v1639, 0.05243302
    %v1641 = vmul.f32 %v1634, %v1640
    %v1642 = vadd.f32 %v1641, 0.18741608
    %v1643 = vmul.f32 %v1634, %v1642
    %v1644 = vadd.f32 %v1643, 1.1283791
    %v1645 = vmul.f32 %v1551, %v1644
    %v1646 = vmul.f32 %v1634, 3.8918573e-05
    %v1647 = vadd.f32 %v1646, 0.001143296
    %v1648 = vmul.f32 %v1634, %v1647
    %v1649 = vadd.f32 %v1648, 0.014752088
    %v1650 = vmul.f32 %v1634, %v1649
    %v1651 = vadd.f32 %v1650, 0.112945676
    %v1652 = vmul.f32 %v1634, %v1651
    %v1653 = vadd.f32 %v1652, 0.4994258
    %v1654 = vmul.f32 %v1634, %v1653
    %v1655 = vadd.f32 %v1654, 1.0
    %v1656 = vrcp.pop %v1655
    %v1657 = vmul.f32 %v1655, %v1656
    %v1658 = vsub.f32 1.0, %v1657
    %v1659 = vmul.f32 %v1656, %v1658
    %v1660 = vadd.f32 %v1656, %v1659
    %vm1661 = vweird.f32 %v1655
    %vm1662 = vweird.f32 %v1656
    %vm1663 = vmor %vm1661, %vm1662
    %v1664 = vsel %vm1663, %v1656, %v1660
    %v1665 = vand.u32 2147483647, %v1655
    %vm1666 = vcmp.eq.f32.partialorder %v1665, 8.507059e+37
    %v1667 = vand.u32 %v1655, 2147483648
    %v1668 = vor.u32 1.1754944e-38, %v1667
    %v1669 = vsel %vm1666, %v1668, %v1664
    %v1670 = vmul.f32 %v1645, %v1669
    %v1671 = vmin.f32 %v1670, 1.0
    %v1672 = vmax.f32 %v1671, -1.0
    %v1673 = vmul.f32 %v1552, %v1552
    %v1674 = vmin.f32 16.0, %v1673
    %v1675 = vmul.f32 %v1674, 2.1237322e-06
    %v1676 = vadd.f32 %v1675, 0.00028619796
    %v1677 = vmul.f32 %v1674, %v1676
    %v1678 = vadd.f32 %v1677, 0.0036580483
    %v1679 = vmul.f32 %v1674, %v1678
    %v1680 = vadd.f32 %v1679, 0.05243302
    %v1681 = vmul.f32 %v1674, %v1680
    %v1682 = vadd.f32 %v1681, 0.18741608
    %v1683 = vmul.f32 %v1674, %v1682
    %v1684 = vadd.f32 %v1683, 1.1283791
    %v1685 = vmul.f32 %v1552, %v1684
    %v1686 = vmul.f32 %v1674, 3.8918573e-05
    %v1687 = vadd.f32 %v1686, 0.001143296
    %v1688 = vmul.f32 %v1674, %v1687
    %v1689 = vadd.f32 %v1688, 0.014752088
    %v1690 = vmul.f32 %v1674, %v1689
    %v1691 = vadd.f32 %v1690, 0.112945676
    %v1692 = vmul.f32 %v1674, %v1691
    %v1693 = vadd.f32 %v1692, 0.4994258
    %v1694 = vmul.f32 %v1674, %v1693
    %v1695 = vadd.f32 %v1694, 1.0
    %v1696 = vrcp.pop %v1695
    %v1697 = vmul.f32 %v1695, %v1696
    %v1698 = vsub.f32 1.0, %v1697
    %v1699 = vmul.f32 %v1696, %v1698
    %v1700 = vadd.f32 %v1696, %v1699
    %vm1701 = vweird.f32 %v1695
    %vm1702 = vweird.f32 %v1696
    %vm1703 = vmor %vm1701, %vm1702
    %v1704 = vsel %vm1703, %v1696, %v1700
    %v1705 = vand.u32 2147483647, %v1695
    %vm1706 = vcmp.eq.f32.partialorder %v1705, 8.507059e+37
    %v1707 = vand.u32 %v1695, 2147483648
    %v1708 = vor.u32 1.1754944e-38, %v1707
    %v1709 = vsel %vm1706, %v1708, %v1704
    %v1710 = vmul.f32 %v1685, %v1709
    %v1711 = vmin.f32 %v1710, 1.0
    %v1712 = vmax.f32 %v1711, -1.0
    %v1713 = vadd.f32 %v1592, 1.0
    %v1714 = vadd.f32 %v1632, 1.0
    %v1715 = vadd.f32 %v1672, 1.0
    %v1716 = vadd.f32 %v1712, 1.0
    %v1717 = vmul.f32 %v1545, %v1713
    %v1718 = vmul.f32 %v1546, %v1714
    %v1719 = vmul.f32 %v1547, %v1715
    %v1720 = vmul.f32 %v1548, %v1716
    %s1721 = scalar_lea.vmem [#allocation5], 4096
    %v1722 = vld [vmem:[%s1721] sm:$0xff]
    %v1723 = vld [vmem:[%s1721 + $0x8] sm:$0xff]
    %v1724 = vld [vmem:[%s1721 + $0x10] sm:$0xff]
    %v1725 = vld [vmem:[%s1721 + $0x18] sm:$0xff]
    %v1726 = vld [vmem:[%s1721 + $0x20] sm:$0xff]
    %v1727 = vld [vmem:[%s1721 + $0x28] sm:$0xff]
    %v1728 = vld [vmem:[%s1721 + $0x30] sm:$0xff]
    %v1729 = vld [vmem:[%s1721 + $0x38] sm:$0xff]
    %v1730 = vld [vmem:[%s1721 + $0x40] sm:$0xff]
    %v1731 = vld [vmem:[%s1721 + $0x48] sm:$0xff]
    %v1732 = vld [vmem:[%s1721 + $0x50] sm:$0xff]
    %v1733 = vld [vmem:[%s1721 + $0x58] sm:$0xff]
    %v1734 = vld [vmem:[%s1721 + $0x60] sm:$0xff]
    %v1735 = vld [vmem:[%s1721 + $0x68] sm:$0xff]
    %v1736 = vld [vmem:[%s1721 + $0x70] sm:$0xff]
    %v1737 = vld [vmem:[%s1721 + $0x78] sm:$0xff]
    %v1738 = vld [vmem:[%s1721 + $0x80] sm:$0xff]
    %v1739 = vld [vmem:[%s1721 + $0x88] sm:$0xff]
    %v1740 = vld [vmem:[%s1721 + $0x90] sm:$0xff]
    %v1741 = vld [vmem:[%s1721 + $0x98] sm:$0xff]
    %v1742 = vld [vmem:[%s1721 + $0xa0] sm:$0xff]
    %v1743 = vld [vmem:[%s1721 + $0xa8] sm:$0xff]
    %v1744 = vld [vmem:[%s1721 + $0xb0] sm:$0xff]
    %v1745 = vld [vmem:[%s1721 + $0xb8] sm:$0xff]
    %v1746 = vld [vmem:[%s1721 + $0xc0] sm:$0xff]
    %v1747 = vld [vmem:[%s1721 + $0xc8] sm:$0xff]
    %v1748 = vld [vmem:[%s1721 + $0xd0] sm:$0xff]
    %v1749 = vld [vmem:[%s1721 + $0xd8] sm:$0xff]
    %v1750 = vld [vmem:[%s1721 + $0xe0] sm:$0xff]
    %v1751 = vld [vmem:[%s1721 + $0xe8] sm:$0xff]
    %v1752 = vld [vmem:[%s1721 + $0xf0] sm:$0xff]
    %v1753 = vld [vmem:[%s1721 + $0xf8] sm:$0xff]
    %v1754 = vld [vmem:[%s1721 + $0x100] sm:$0xff]
    %v1755 = vld [vmem:[%s1721 + $0x108] sm:$0xff]
    %v1756 = vld [vmem:[%s1721 + $0x110] sm:$0xff]
    %v1757 = vld [vmem:[%s1721 + $0x118] sm:$0xff]
    %v1758 = vld [vmem:[%s1721 + $0x120] sm:$0xff]
    %v1759 = vld [vmem:[%s1721 + $0x128] sm:$0xff]
    %v1760 = vld [vmem:[%s1721 + $0x130] sm:$0xff]
    %v1761 = vld [vmem:[%s1721 + $0x138] sm:$0xff]
    %v1762 = vld [vmem:[%s1721 + $0x140] sm:$0xff]
    %v1763 = vld [vmem:[%s1721 + $0x148] sm:$0xff]
    %v1764 = vld [vmem:[%s1721 + $0x150] sm:$0xff]
    %v1765 = vld [vmem:[%s1721 + $0x158] sm:$0xff]
    %v1766 = vld [vmem:[%s1721 + $0x160] sm:$0xff]
    %v1767 = vld [vmem:[%s1721 + $0x168] sm:$0xff]
    %v1768 = vld [vmem:[%s1721 + $0x170] sm:$0xff]
    %v1769 = vld [vmem:[%s1721 + $0x178] sm:$0xff]
    %v1770 = vld [vmem:[%s1721 + $0x180] sm:$0xff]
    %v1771 = vld [vmem:[%s1721 + $0x188] sm:$0xff]
    %v1772 = vld [vmem:[%s1721 + $0x190] sm:$0xff]
    %v1773 = vld [vmem:[%s1721 + $0x198] sm:$0xff]
    %v1774 = vld [vmem:[%s1721 + $0x1a0] sm:$0xff]
    %v1775 = vld [vmem:[%s1721 + $0x1a8] sm:$0xff]
    %v1776 = vld [vmem:[%s1721 + $0x1b0] sm:$0xff]
    %v1777 = vld [vmem:[%s1721 + $0x1b8] sm:$0xff]
    %v1778 = vld [vmem:[%s1721 + $0x1c0] sm:$0xff]
    %v1779 = vld [vmem:[%s1721 + $0x1c8] sm:$0xff]
    %v1780 = vld [vmem:[%s1721 + $0x1d0] sm:$0xff]
    %v1781 = vld [vmem:[%s1721 + $0x1d8] sm:$0xff]
    %v1782 = vld [vmem:[%s1721 + $0x1e0] sm:$0xff]
    %v1783 = vld [vmem:[%s1721 + $0x1e8] sm:$0xff]
    %v1784 = vld [vmem:[%s1721 + $0x1f0] sm:$0xff]
    %v1785 = vld [vmem:[%s1721 + $0x1f8] sm:$0xff]
    %v1786 = vld [vmem:[%s1721 + $0x200] sm:$0xff]
    %v1787 = vld [vmem:[%s1721 + $0x208] sm:$0xff]
    %v1788 = vld [vmem:[%s1721 + $0x210] sm:$0xff]
    %v1789 = vld [vmem:[%s1721 + $0x218] sm:$0xff]
    %v1790 = vld [vmem:[%s1721 + $0x220] sm:$0xff]
    %v1791 = vld [vmem:[%s1721 + $0x228] sm:$0xff]
    %v1792 = vld [vmem:[%s1721 + $0x230] sm:$0xff]
    %v1793 = vld [vmem:[%s1721 + $0x238] sm:$0xff]
    %v1794 = vld [vmem:[%s1721 + $0x240] sm:$0xff]
    %v1795 = vld [vmem:[%s1721 + $0x248] sm:$0xff]
    %v1796 = vld [vmem:[%s1721 + $0x250] sm:$0xff]
    %v1797 = vld [vmem:[%s1721 + $0x258] sm:$0xff]
    %v1798 = vld [vmem:[%s1721 + $0x260] sm:$0xff]
    %v1799 = vld [vmem:[%s1721 + $0x268] sm:$0xff]
    %v1800 = vld [vmem:[%s1721 + $0x270] sm:$0xff]
    %v1801 = vld [vmem:[%s1721 + $0x278] sm:$0xff]
    %v1802 = vld [vmem:[%s1721 + $0x280] sm:$0xff]
    %v1803 = vld [vmem:[%s1721 + $0x288] sm:$0xff]
    %v1804 = vld [vmem:[%s1721 + $0x290] sm:$0xff]
    %v1805 = vld [vmem:[%s1721 + $0x298] sm:$0xff]
    %v1806 = vld [vmem:[%s1721 + $0x2a0] sm:$0xff]
    %v1807 = vld [vmem:[%s1721 + $0x2a8] sm:$0xff]
    %v1808 = vld [vmem:[%s1721 + $0x2b0] sm:$0xff]
    %v1809 = vld [vmem:[%s1721 + $0x2b8] sm:$0xff]
    %v1810 = vld [vmem:[%s1721 + $0x2c0] sm:$0xff]
    %v1811 = vld [vmem:[%s1721 + $0x2c8] sm:$0xff]
    %v1812 = vld [vmem:[%s1721 + $0x2d0] sm:$0xff]
    %v1813 = vld [vmem:[%s1721 + $0x2d8] sm:$0xff]
    %v1814 = vld [vmem:[%s1721 + $0x2e0] sm:$0xff]
    %v1815 = vld [vmem:[%s1721 + $0x2e8] sm:$0xff]
    %v1816 = vld [vmem:[%s1721 + $0x2f0] sm:$0xff]
    %v1817 = vld [vmem:[%s1721 + $0x2f8] sm:$0xff]
    %v1818 = vld [vmem:[%s1721 + $0x300] sm:$0xff]
    %v1819 = vld [vmem:[%s1721 + $0x308] sm:$0xff]
    %v1820 = vld [vmem:[%s1721 + $0x310] sm:$0xff]
    %v1821 = vld [vmem:[%s1721 + $0x318] sm:$0xff]
    %v1822 = vld [vmem:[%s1721 + $0x320] sm:$0xff]
    %v1823 = vld [vmem:[%s1721 + $0x328] sm:$0xff]
    %v1824 = vld [vmem:[%s1721 + $0x330] sm:$0xff]
    %v1825 = vld [vmem:[%s1721 + $0x338] sm:$0xff]
    %v1826 = vld [vmem:[%s1721 + $0x340] sm:$0xff]
    %v1827 = vld [vmem:[%s1721 + $0x348] sm:$0xff]
    %v1828 = vld [vmem:[%s1721 + $0x350] sm:$0xff]
    %v1829 = vld [vmem:[%s1721 + $0x358] sm:$0xff]
    %v1830 = vld [vmem:[%s1721 + $0x360] sm:$0xff]
    %v1831 = vld [vmem:[%s1721 + $0x368] sm:$0xff]
    %v1832 = vld [vmem:[%s1721 + $0x370] sm:$0xff]
    %v1833 = vld [vmem:[%s1721 + $0x378] sm:$0xff]
    %v1834 = vld [vmem:[%s1721 + $0x380] sm:$0xff]
    %v1835 = vld [vmem:[%s1721 + $0x388] sm:$0xff]
    %v1836 = vld [vmem:[%s1721 + $0x390] sm:$0xff]
    %v1837 = vld [vmem:[%s1721 + $0x398] sm:$0xff]
    %v1838 = vld [vmem:[%s1721 + $0x3a0] sm:$0xff]
    %v1839 = vld [vmem:[%s1721 + $0x3a8] sm:$0xff]
    %v1840 = vld [vmem:[%s1721 + $0x3b0] sm:$0xff]
    %v1841 = vld [vmem:[%s1721 + $0x3b8] sm:$0xff]
    %v1842 = vld [vmem:[%s1721 + $0x3c0] sm:$0xff]
    %v1843 = vld [vmem:[%s1721 + $0x3c8] sm:$0xff]
    %v1844 = vld [vmem:[%s1721 + $0x3d0] sm:$0xff]
    %v1845 = vld [vmem:[%s1721 + $0x3d8] sm:$0xff]
    %v1846 = vld [vmem:[%s1721 + $0x3e0] sm:$0xff]
    %v1847 = vld [vmem:[%s1721 + $0x3e8] sm:$0xff]
    %v1848 = vld [vmem:[%s1721 + $0x3f0] sm:$0xff]
    %v1849 = vld [vmem:[%s1721 + $0x3f8] sm:$0xff]
    %v1850 = vld [vmem:[%s1721 + $0x400] sm:$0xff]
    %v1851 = vld [vmem:[%s1721 + $0x408] sm:$0xff]
    %v1852 = vld [vmem:[%s1721 + $0x410] sm:$0xff]
    %v1853 = vld [vmem:[%s1721 + $0x418] sm:$0xff]
    %v1854 = vld [vmem:[%s1721 + $0x420] sm:$0xff]
    %v1855 = vld [vmem:[%s1721 + $0x428] sm:$0xff]
    %v1856 = vld [vmem:[%s1721 + $0x430] sm:$0xff]
    %v1857 = vld [vmem:[%s1721 + $0x438] sm:$0xff]
    %v1858 = vld [vmem:[%s1721 + $0x440] sm:$0xff]
    %v1859 = vld [vmem:[%s1721 + $0x448] sm:$0xff]
    %v1860 = vld [vmem:[%s1721 + $0x450] sm:$0xff]
    %v1861 = vld [vmem:[%s1721 + $0x458] sm:$0xff]
    %v1862 = vld [vmem:[%s1721 + $0x460] sm:$0xff]
    %v1863 = vld [vmem:[%s1721 + $0x468] sm:$0xff]
    %v1864 = vld [vmem:[%s1721 + $0x470] sm:$0xff]
    %v1865 = vld [vmem:[%s1721 + $0x478] sm:$0xff]
    %v1866 = vld [vmem:[%s1721 + $0x480] sm:$0xff]
    %v1867 = vld [vmem:[%s1721 + $0x488] sm:$0xff]
    %v1868 = vld [vmem:[%s1721 + $0x490] sm:$0xff]
    %v1869 = vld [vmem:[%s1721 + $0x498] sm:$0xff]
    %v1870 = vld [vmem:[%s1721 + $0x4a0] sm:$0xff]
    %v1871 = vld [vmem:[%s1721 + $0x4a8] sm:$0xff]
    %v1872 = vld [vmem:[%s1721 + $0x4b0] sm:$0xff]
    %v1873 = vld [vmem:[%s1721 + $0x4b8] sm:$0xff]
    %v1874 = vld [vmem:[%s1721 + $0x4c0] sm:$0xff]
    %v1875 = vld [vmem:[%s1721 + $0x4c8] sm:$0xff]
    %v1876 = vld [vmem:[%s1721 + $0x4d0] sm:$0xff]
    %v1877 = vld [vmem:[%s1721 + $0x4d8] sm:$0xff]
    %v1878 = vld [vmem:[%s1721 + $0x4e0] sm:$0xff]
    %v1879 = vld [vmem:[%s1721 + $0x4e8] sm:$0xff]
    %v1880 = vld [vmem:[%s1721 + $0x4f0] sm:$0xff]
    %v1881 = vld [vmem:[%s1721 + $0x4f8] sm:$0xff]
    %v1882 = vld [vmem:[%s1721 + $0x500] sm:$0xff]
    %v1883 = vld [vmem:[%s1721 + $0x508] sm:$0xff]
    %v1884 = vld [vmem:[%s1721 + $0x510] sm:$0xff]
    %v1885 = vld [vmem:[%s1721 + $0x518] sm:$0xff]
    %v1886 = vld [vmem:[%s1721 + $0x520] sm:$0xff]
    %v1887 = vld [vmem:[%s1721 + $0x528] sm:$0xff]
    %v1888 = vld [vmem:[%s1721 + $0x530] sm:$0xff]
    %v1889 = vld [vmem:[%s1721 + $0x538] sm:$0xff]
    %v1890 = vld [vmem:[%s1721 + $0x540] sm:$0xff]
    %v1891 = vld [vmem:[%s1721 + $0x548] sm:$0xff]
    %v1892 = vld [vmem:[%s1721 + $0x550] sm:$0xff]
    %v1893 = vld [vmem:[%s1721 + $0x558] sm:$0xff]
    %v1894 = vld [vmem:[%s1721 + $0x560] sm:$0xff]
    %v1895 = vld [vmem:[%s1721 + $0x568] sm:$0xff]
    %v1896 = vld [vmem:[%s1721 + $0x570] sm:$0xff]
    %v1897 = vld [vmem:[%s1721 + $0x578] sm:$0xff]
    %v1898 = vld [vmem:[%s1721 + $0x580] sm:$0xff]
    %v1899 = vld [vmem:[%s1721 + $0x588] sm:$0xff]
    %v1900 = vld [vmem:[%s1721 + $0x590] sm:$0xff]
    %v1901 = vld [vmem:[%s1721 + $0x598] sm:$0xff]
    %v1902 = vld [vmem:[%s1721 + $0x5a0] sm:$0xff]
    %v1903 = vld [vmem:[%s1721 + $0x5a8] sm:$0xff]
    %v1904 = vld [vmem:[%s1721 + $0x5b0] sm:$0xff]
    %v1905 = vld [vmem:[%s1721 + $0x5b8] sm:$0xff]
    %v1906 = vld [vmem:[%s1721 + $0x5c0] sm:$0xff]
    %v1907 = vld [vmem:[%s1721 + $0x5c8] sm:$0xff]
    %v1908 = vld [vmem:[%s1721 + $0x5d0] sm:$0xff]
    %v1909 = vld [vmem:[%s1721 + $0x5d8] sm:$0xff]
    %v1910 = vld [vmem:[%s1721 + $0x5e0] sm:$0xff]
    %v1911 = vld [vmem:[%s1721 + $0x5e8] sm:$0xff]
    %v1912 = vld [vmem:[%s1721 + $0x5f0] sm:$0xff]
    %v1913 = vld [vmem:[%s1721 + $0x5f8] sm:$0xff]
    %v1914 = vld [vmem:[%s1721 + $0x600] sm:$0xff]
    %v1915 = vld [vmem:[%s1721 + $0x608] sm:$0xff]
    %v1916 = vld [vmem:[%s1721 + $0x610] sm:$0xff]
    %v1917 = vld [vmem:[%s1721 + $0x618] sm:$0xff]
    %v1918 = vld [vmem:[%s1721 + $0x620] sm:$0xff]
    %v1919 = vld [vmem:[%s1721 + $0x628] sm:$0xff]
    %v1920 = vld [vmem:[%s1721 + $0x630] sm:$0xff]
    %v1921 = vld [vmem:[%s1721 + $0x638] sm:$0xff]
    %v1922 = vld [vmem:[%s1721 + $0x640] sm:$0xff]
    %v1923 = vld [vmem:[%s1721 + $0x648] sm:$0xff]
    %v1924 = vld [vmem:[%s1721 + $0x650] sm:$0xff]
    %v1925 = vld [vmem:[%s1721 + $0x658] sm:$0xff]
    %v1926 = vld [vmem:[%s1721 + $0x660] sm:$0xff]
    %v1927 = vld [vmem:[%s1721 + $0x668] sm:$0xff]
    %v1928 = vld [vmem:[%s1721 + $0x670] sm:$0xff]
    %v1929 = vld [vmem:[%s1721 + $0x678] sm:$0xff]
    %v1930 = vld [vmem:[%s1721 + $0x680] sm:$0xff]
    %v1931 = vld [vmem:[%s1721 + $0x688] sm:$0xff]
    %v1932 = vld [vmem:[%s1721 + $0x690] sm:$0xff]
    %v1933 = vld [vmem:[%s1721 + $0x698] sm:$0xff]
    %v1934 = vld [vmem:[%s1721 + $0x6a0] sm:$0xff]
    %v1935 = vld [vmem:[%s1721 + $0x6a8] sm:$0xff]
    %v1936 = vld [vmem:[%s1721 + $0x6b0] sm:$0xff]
    %v1937 = vld [vmem:[%s1721 + $0x6b8] sm:$0xff]
    %v1938 = vld [vmem:[%s1721 + $0x6c0] sm:$0xff]
    %v1939 = vld [vmem:[%s1721 + $0x6c8] sm:$0xff]
    %v1940 = vld [vmem:[%s1721 + $0x6d0] sm:$0xff]
    %v1941 = vld [vmem:[%s1721 + $0x6d8] sm:$0xff]
    %v1942 = vld [vmem:[%s1721 + $0x6e0] sm:$0xff]
    %v1943 = vld [vmem:[%s1721 + $0x6e8] sm:$0xff]
    %v1944 = vld [vmem:[%s1721 + $0x6f0] sm:$0xff]
    %v1945 = vld [vmem:[%s1721 + $0x6f8] sm:$0xff]
    %v1946 = vld [vmem:[%s1721 + $0x700] sm:$0xff]
    %v1947 = vld [vmem:[%s1721 + $0x708] sm:$0xff]
    %v1948 = vld [vmem:[%s1721 + $0x710] sm:$0xff]
    %v1949 = vld [vmem:[%s1721 + $0x718] sm:$0xff]
    %v1950 = vld [vmem:[%s1721 + $0x720] sm:$0xff]
    %v1951 = vld [vmem:[%s1721 + $0x728] sm:$0xff]
    %v1952 = vld [vmem:[%s1721 + $0x730] sm:$0xff]
    %v1953 = vld [vmem:[%s1721 + $0x738] sm:$0xff]
    %v1954 = vld [vmem:[%s1721 + $0x740] sm:$0xff]
    %v1955 = vld [vmem:[%s1721 + $0x748] sm:$0xff]
    %v1956 = vld [vmem:[%s1721 + $0x750] sm:$0xff]
    %v1957 = vld [vmem:[%s1721 + $0x758] sm:$0xff]
    %v1958 = vld [vmem:[%s1721 + $0x760] sm:$0xff]
    %v1959 = vld [vmem:[%s1721 + $0x768] sm:$0xff]
    %v1960 = vld [vmem:[%s1721 + $0x770] sm:$0xff]
    %v1961 = vld [vmem:[%s1721 + $0x778] sm:$0xff]
    %v1962 = vld [vmem:[%s1721 + $0x780] sm:$0xff]
    %v1963 = vld [vmem:[%s1721 + $0x788] sm:$0xff]
    %v1964 = vld [vmem:[%s1721 + $0x790] sm:$0xff]
    %v1965 = vld [vmem:[%s1721 + $0x798] sm:$0xff]
    %v1966 = vld [vmem:[%s1721 + $0x7a0] sm:$0xff]
    %v1967 = vld [vmem:[%s1721 + $0x7a8] sm:$0xff]
    %v1968 = vld [vmem:[%s1721 + $0x7b0] sm:$0xff]
    %v1969 = vld [vmem:[%s1721 + $0x7b8] sm:$0xff]
    %v1970 = vld [vmem:[%s1721 + $0x7c0] sm:$0xff]
    %v1971 = vld [vmem:[%s1721 + $0x7c8] sm:$0xff]
    %v1972 = vld [vmem:[%s1721 + $0x7d0] sm:$0xff]
    %v1973 = vld [vmem:[%s1721 + $0x7d8] sm:$0xff]
    %v1974 = vld [vmem:[%s1721 + $0x7e0] sm:$0xff]
    %v1975 = vld [vmem:[%s1721 + $0x7e8] sm:$0xff]
    %v1976 = vld [vmem:[%s1721 + $0x7f0] sm:$0xff]
    %v1977 = vld [vmem:[%s1721 + $0x7f8] sm:$0xff]
    %s1978 = scalar_lea.vmem [#allocation8], 131
    %v1979 = vld [vmem:[%s1978] ss:$8 sm:$0xf]
    %v1981 = vperm.slane %v1979, 0
    %v1982 = vperm.slane %v1979, 1
    %v1983 = vperm.slane %v1979, 2
    %v1984 = vperm.slane %v1979, 3
    %1989 = vmatpush.msra.mxu0 %v1782
    %1990 = vmatpush.msra.mxu0 %v1778
    %1991 = vmatpush.msra.mxu0 %v1774
    %1992 = vmatpush.msra.mxu0 %v1770
    %1993 = vmatpush.msra.mxu0 %v1766
    %1994 = vmatpush.msra.mxu0 %v1762
    %1995 = vmatpush.msra.mxu0 %v1758
    %1996 = vmatpush.msra.mxu0 %v1754
    %1997 = vmatpush.msra.mxu0 %v1750
    %1998 = vmatpush.msra.mxu0 %v1746
    %1999 = vmatpush.msra.mxu0 %v1742
    %2000 = vmatpush.msra.mxu0 %v1738
    %2001 = vmatpush.msra.mxu0 %v1734
    %2002 = vmatpush.msra.mxu0 %v1730
    %2003 = vmatpush.msra.mxu0 %v1726
    %2004 = vmatpush.msra.mxu0 %v1722
    %2005 = vmatmul.f32.gmra.mxu0 %v1717
    %v2006 = vpop.f32.mrf.mxu0
    %v2007 = vadd.f32 %v1981, %v2006
    %2008 = vdwg.mxu0
    %2009 = vmatpush.msra.mxu0 %v1846
    %2010 = vmatpush.msra.mxu0 %v1842
    %2011 = vmatpush.msra.mxu0 %v1838
    %2012 = vmatpush.msra.mxu0 %v1834
    %2013 = vmatpush.msra.mxu0 %v1830
    %2014 = vmatpush.msra.mxu0 %v1826
    %2015 = vmatpush.msra.mxu0 %v1822
    %2016 = vmatpush.msra.mxu0 %v1818
    %2017 = vmatpush.msra.mxu0 %v1814
    %2018 = vmatpush.msra.mxu0 %v1810
    %2019 = vmatpush.msra.mxu0 %v1806
    %2020 = vmatpush.msra.mxu0 %v1802
    %2021 = vmatpush.msra.mxu0 %v1798
    %2022 = vmatpush.msra.mxu0 %v1794
    %2023 = vmatpush.msra.mxu0 %v1790
    %2024 = vmatpush.msra.mxu0 %v1786
    %2025 = vmatmul.f32.gmra.mxu0 %v1718
    %v2026 = vpop.f32.mrf.mxu0
    %v2027 = vadd.f32 %v2007, %v2026
    %2028 = vdwg.mxu0
    %2029 = vmatpush.msra.mxu0 %v1910
    %2030 = vmatpush.msra.mxu0 %v1906
    %2031 = vmatpush.msra.mxu0 %v1902
    %2032 = vmatpush.msra.mxu0 %v1898
    %2033 = vmatpush.msra.mxu0 %v1894
    %2034 = vmatpush.msra.mxu0 %v1890
    %2035 = vmatpush.msra.mxu0 %v1886
    %2036 = vmatpush.msra.mxu0 %v1882
    %2037 = vmatpush.msra.mxu0 %v1878
    %2038 = vmatpush.msra.mxu0 %v1874
    %2039 = vmatpush.msra.mxu0 %v1870
    %2040 = vmatpush.msra.mxu0 %v1866
    %2041 = vmatpush.msra.mxu0 %v1862
    %2042 = vmatpush.msra.mxu0 %v1858
    %2043 = vmatpush.msra.mxu0 %v1854
    %2044 = vmatpush.msra.mxu0 %v1850
    %2045 = vmatmul.f32.gmra.mxu0 %v1719
    %v2046 = vpop.f32.mrf.mxu0
    %v2047 = vadd.f32 %v2027, %v2046
    %2048 = vdwg.mxu0
    %2049 = vmatpush.msra.mxu0 %v1974
    %2050 = vmatpush.msra.mxu0 %v1970
    %2051 = vmatpush.msra.mxu0 %v1966
    %2052 = vmatpush.msra.mxu0 %v1962
    %2053 = vmatpush.msra.mxu0 %v1958
    %2054 = vmatpush.msra.mxu0 %v1954
    %2055 = vmatpush.msra.mxu0 %v1950
    %2056 = vmatpush.msra.mxu0 %v1946
    %2057 = vmatpush.msra.mxu0 %v1942
    %2058 = vmatpush.msra.mxu0 %v1938
    %2059 = vmatpush.msra.mxu0 %v1934
    %2060 = vmatpush.msra.mxu0 %v1930
    %2061 = vmatpush.msra.mxu0 %v1926
    %2062 = vmatpush.msra.mxu0 %v1922
    %2063 = vmatpush.msra.mxu0 %v1918
    %2064 = vmatpush.msra.mxu0 %v1914
    %2065 = vmatmul.f32.gmra.mxu0 %v1720
    %v2066 = vpop.f32.mrf.mxu0
    %v2067 = vadd.f32 %v2047, %v2066
    %2068 = vdwg.mxu0
    %2069 = vmatpush.msra.mxu0 %v1783
    %2070 = vmatpush.msra.mxu0 %v1779
    %2071 = vmatpush.msra.mxu0 %v1775
    %2072 = vmatpush.msra.mxu0 %v1771
    %2073 = vmatpush.msra.mxu0 %v1767
    %2074 = vmatpush.msra.mxu0 %v1763
    %2075 = vmatpush.msra.mxu0 %v1759
    %2076 = vmatpush.msra.mxu0 %v1755
    %2077 = vmatpush.msra.mxu0 %v1751
    %2078 = vmatpush.msra.mxu0 %v1747
    %2079 = vmatpush.msra.mxu0 %v1743
    %2080 = vmatpush.msra.mxu0 %v1739
    %2081 = vmatpush.msra.mxu0 %v1735
    %2082 = vmatpush.msra.mxu0 %v1731
    %2083 = vmatpush.msra.mxu0 %v1727
    %2084 = vmatpush.msra.mxu0 %v1723
    %2085 = vmatmul.f32.gmra.mxu0 %v1717
    %v2086 = vpop.f32.mrf.mxu0
    %v2087 = vadd.f32 %v1982, %v2086
    %2088 = vdwg.mxu0
    %2089 = vmatpush.msra.mxu0 %v1847
    %2090 = vmatpush.msra.mxu0 %v1843
    %2091 = vmatpush.msra.mxu0 %v1839
    %2092 = vmatpush.msra.mxu0 %v1835
    %2093 = vmatpush.msra.mxu0 %v1831
    %2094 = vmatpush.msra.mxu0 %v1827
    %2095 = vmatpush.msra.mxu0 %v1823
    %2096 = vmatpush.msra.mxu0 %v1819
    %2097 = vmatpush.msra.mxu0 %v1815
    %2098 = vmatpush.msra.mxu0 %v1811
    %2099 = vmatpush.msra.mxu0 %v1807
    %2100 = vmatpush.msra.mxu0 %v1803
    %2101 = vmatpush.msra.mxu0 %v1799
    %2102 = vmatpush.msra.mxu0 %v1795
    %2103 = vmatpush.msra.mxu0 %v1791
    %2104 = vmatpush.msra.mxu0 %v1787
    %2105 = vmatmul.f32.gmra.mxu0 %v1718
    %v2106 = vpop.f32.mrf.mxu0
    %v2107 = vadd.f32 %v2087, %v2106
    %2108 = vdwg.mxu0
    %2109 = vmatpush.msra.mxu0 %v1911
    %2110 = vmatpush.msra.mxu0 %v1907
    %2111 = vmatpush.msra.mxu0 %v1903
    %2112 = vmatpush.msra.mxu0 %v1899
    %2113 = vmatpush.msra.mxu0 %v1895
    %2114 = vmatpush.msra.mxu0 %v1891
    %2115 = vmatpush.msra.mxu0 %v1887
    %2116 = vmatpush.msra.mxu0 %v1883
    %2117 = vmatpush.msra.mxu0 %v1879
    %2118 = vmatpush.msra.mxu0 %v1875
    %2119 = vmatpush.msra.mxu0 %v1871
    %2120 = vmatpush.msra.mxu0 %v1867
    %2121 = vmatpush.msra.mxu0 %v1863
    %2122 = vmatpush.msra.mxu0 %v1859
    %2123 = vmatpush.msra.mxu0 %v1855
    %2124 = vmatpush.msra.mxu0 %v1851
    %2125 = vmatmul.f32.gmra.mxu0 %v1719
    %v2126 = vpop.f32.mrf.mxu0
    %v2127 = vadd.f32 %v2107, %v2126
    %2128 = vdwg.mxu0
    %2129 = vmatpush.msra.mxu0 %v1975
    %2130 = vmatpush.msra.mxu0 %v1971
    %2131 = vmatpush.msra.mxu0 %v1967
    %2132 = vmatpush.msra.mxu0 %v1963
    %2133 = vmatpush.msra.mxu0 %v1959
    %2134 = vmatpush.msra.mxu0 %v1955
    %2135 = vmatpush.msra.mxu0 %v1951
    %2136 = vmatpush.msra.mxu0 %v1947
    %2137 = vmatpush.msra.mxu0 %v1943
    %2138 = vmatpush.msra.mxu0 %v1939
    %2139 = vmatpush.msra.mxu0 %v1935
    %2140 = vmatpush.msra.mxu0 %v1931
    %2141 = vmatpush.msra.mxu0 %v1927
    %2142 = vmatpush.msra.mxu0 %v1923
    %2143 = vmatpush.msra.mxu0 %v1919
    %2144 = vmatpush.msra.mxu0 %v1915
    %2145 = vmatmul.f32.gmra.mxu0 %v1720
    %v2146 = vpop.f32.mrf.mxu0
    %v2147 = vadd.f32 %v2127, %v2146
    %2148 = vdwg.mxu0
    %2149 = vmatpush.msra.mxu0 %v1784
    %2150 = vmatpush.msra.mxu0 %v1780
    %2151 = vmatpush.msra.mxu0 %v1776
    %2152 = vmatpush.msra.mxu0 %v1772
    %2153 = vmatpush.msra.mxu0 %v1768
    %2154 = vmatpush.msra.mxu0 %v1764
    %2155 = vmatpush.msra.mxu0 %v1760
    %2156 = vmatpush.msra.mxu0 %v1756
    %2157 = vmatpush.msra.mxu0 %v1752
    %2158 = vmatpush.msra.mxu0 %v1748
    %2159 = vmatpush.msra.mxu0 %v1744
    %2160 = vmatpush.msra.mxu0 %v1740
    %2161 = vmatpush.msra.mxu0 %v1736
    %2162 = vmatpush.msra.mxu0 %v1732
    %2163 = vmatpush.msra.mxu0 %v1728
    %2164 = vmatpush.msra.mxu0 %v1724
    %2165 = vmatmul.f32.gmra.mxu0 %v1717
    %v2166 = vpop.f32.mrf.mxu0
    %v2167 = vadd.f32 %v1983, %v2166
    %2168 = vdwg.mxu0
    %2169 = vmatpush.msra.mxu0 %v1848
    %2170 = vmatpush.msra.mxu0 %v1844
    %2171 = vmatpush.msra.mxu0 %v1840
    %2172 = vmatpush.msra.mxu0 %v1836
    %2173 = vmatpush.msra.mxu0 %v1832
    %2174 = vmatpush.msra.mxu0 %v1828
    %2175 = vmatpush.msra.mxu0 %v1824
    %2176 = vmatpush.msra.mxu0 %v1820
    %2177 = vmatpush.msra.mxu0 %v1816
    %2178 = vmatpush.msra.mxu0 %v1812
    %2179 = vmatpush.msra.mxu0 %v1808
    %2180 = vmatpush.msra.mxu0 %v1804
    %2181 = vmatpush.msra.mxu0 %v1800
    %2182 = vmatpush.msra.mxu0 %v1796
    %2183 = vmatpush.msra.mxu0 %v1792
    %2184 = vmatpush.msra.mxu0 %v1788
    %2185 = vmatmul.f32.gmra.mxu0 %v1718
    %v2186 = vpop.f32.mrf.mxu0
    %v2187 = vadd.f32 %v2167, %v2186
    %2188 = vdwg.mxu0
    %2189 = vmatpush.msra.mxu0 %v1912
    %2190 = vmatpush.msra.mxu0 %v1908
    %2191 = vmatpush.msra.mxu0 %v1904
    %2192 = vmatpush.msra.mxu0 %v1900
    %2193 = vmatpush.msra.mxu0 %v1896
    %2194 = vmatpush.msra.mxu0 %v1892
    %2195 = vmatpush.msra.mxu0 %v1888
    %2196 = vmatpush.msra.mxu0 %v1884
    %2197 = vmatpush.msra.mxu0 %v1880
    %2198 = vmatpush.msra.mxu0 %v1876
    %2199 = vmatpush.msra.mxu0 %v1872
    %2200 = vmatpush.msra.mxu0 %v1868
    %2201 = vmatpush.msra.mxu0 %v1864
    %2202 = vmatpush.msra.mxu0 %v1860
    %2203 = vmatpush.msra.mxu0 %v1856
    %2204 = vmatpush.msra.mxu0 %v1852
    %2205 = vmatmul.f32.gmra.mxu0 %v1719
    %v2206 = vpop.f32.mrf.mxu0
    %v2207 = vadd.f32 %v2187, %v2206
    %2208 = vdwg.mxu0
    %2209 = vmatpush.msra.mxu0 %v1976
    %2210 = vmatpush.msra.mxu0 %v1972
    %2211 = vmatpush.msra.mxu0 %v1968
    %2212 = vmatpush.msra.mxu0 %v1964
    %2213 = vmatpush.msra.mxu0 %v1960
    %2214 = vmatpush.msra.mxu0 %v1956
    %2215 = vmatpush.msra.mxu0 %v1952
    %2216 = vmatpush.msra.mxu0 %v1948
    %2217 = vmatpush.msra.mxu0 %v1944
    %2218 = vmatpush.msra.mxu0 %v1940
    %2219 = vmatpush.msra.mxu0 %v1936
    %2220 = vmatpush.msra.mxu0 %v1932
    %2221 = vmatpush.msra.mxu0 %v1928
    %2222 = vmatpush.msra.mxu0 %v1924
    %2223 = vmatpush.msra.mxu0 %v1920
    %2224 = vmatpush.msra.mxu0 %v1916
    %2225 = vmatmul.f32.gmra.mxu0 %v1720
    %v2226 = vpop.f32.mrf.mxu0
    %v2227 = vadd.f32 %v2207, %v2226
    %2228 = vdwg.mxu0
    %2229 = vmatpush.msra.mxu0 %v1785
    %2230 = vmatpush.msra.mxu0 %v1781
    %2231 = vmatpush.msra.mxu0 %v1777
    %2232 = vmatpush.msra.mxu0 %v1773
    %2233 = vmatpush.msra.mxu0 %v1769
    %2234 = vmatpush.msra.mxu0 %v1765
    %2235 = vmatpush.msra.mxu0 %v1761
    %2236 = vmatpush.msra.mxu0 %v1757
    %2237 = vmatpush.msra.mxu0 %v1753
    %2238 = vmatpush.msra.mxu0 %v1749
    %2239 = vmatpush.msra.mxu0 %v1745
    %2240 = vmatpush.msra.mxu0 %v1741
    %2241 = vmatpush.msra.mxu0 %v1737
    %2242 = vmatpush.msra.mxu0 %v1733
    %2243 = vmatpush.msra.mxu0 %v1729
    %2244 = vmatpush.msra.mxu0 %v1725
    %2245 = vmatmul.f32.gmra.mxu0 %v1717
    %v2246 = vpop.f32.mrf.mxu0
    %v2247 = vadd.f32 %v1984, %v2246
    %2248 = vdwg.mxu0
    %2249 = vmatpush.msra.mxu0 %v1849
    %2250 = vmatpush.msra.mxu0 %v1845
    %2251 = vmatpush.msra.mxu0 %v1841
    %2252 = vmatpush.msra.mxu0 %v1837
    %2253 = vmatpush.msra.mxu0 %v1833
    %2254 = vmatpush.msra.mxu0 %v1829
    %2255 = vmatpush.msra.mxu0 %v1825
    %2256 = vmatpush.msra.mxu0 %v1821
    %2257 = vmatpush.msra.mxu0 %v1817
    %2258 = vmatpush.msra.mxu0 %v1813
    %2259 = vmatpush.msra.mxu0 %v1809
    %2260 = vmatpush.msra.mxu0 %v1805
    %2261 = vmatpush.msra.mxu0 %v1801
    %2262 = vmatpush.msra.mxu0 %v1797
    %2263 = vmatpush.msra.mxu0 %v1793
    %2264 = vmatpush.msra.mxu0 %v1789
    %2265 = vmatmul.f32.gmra.mxu0 %v1718
    %v2266 = vpop.f32.mrf.mxu0
    %v2267 = vadd.f32 %v2247, %v2266
    %2268 = vdwg.mxu0
    %2269 = vmatpush.msra.mxu0 %v1913
    %2270 = vmatpush.msra.mxu0 %v1909
    %2271 = vmatpush.msra.mxu0 %v1905
    %2272 = vmatpush.msra.mxu0 %v1901
    %2273 = vmatpush.msra.mxu0 %v1897
    %2274 = vmatpush.msra.mxu0 %v1893
    %2275 = vmatpush.msra.mxu0 %v1889
    %2276 = vmatpush.msra.mxu0 %v1885
    %2277 = vmatpush.msra.mxu0 %v1881
    %2278 = vmatpush.msra.mxu0 %v1877
    %2279 = vmatpush.msra.mxu0 %v1873
    %2280 = vmatpush.msra.mxu0 %v1869
    %2281 = vmatpush.msra.mxu0 %v1865
    %2282 = vmatpush.msra.mxu0 %v1861
    %2283 = vmatpush.msra.mxu0 %v1857
    %2284 = vmatpush.msra.mxu0 %v1853
    %2285 = vmatmul.f32.gmra.mxu0 %v1719
    %v2286 = vpop.f32.mrf.mxu0
    %v2287 = vadd.f32 %v2267, %v2286
    %2288 = vdwg.mxu0
    %2289 = vmatpush.msra.mxu0 %v1977
    %2290 = vmatpush.msra.mxu0 %v1973
    %2291 = vmatpush.msra.mxu0 %v1969
    %2292 = vmatpush.msra.mxu0 %v1965
    %2293 = vmatpush.msra.mxu0 %v1961
    %2294 = vmatpush.msra.mxu0 %v1957
    %2295 = vmatpush.msra.mxu0 %v1953
    %2296 = vmatpush.msra.mxu0 %v1949
    %2297 = vmatpush.msra.mxu0 %v1945
    %2298 = vmatpush.msra.mxu0 %v1941
    %2299 = vmatpush.msra.mxu0 %v1937
    %2300 = vmatpush.msra.mxu0 %v1933
    %2301 = vmatpush.msra.mxu0 %v1929
    %2302 = vmatpush.msra.mxu0 %v1925
    %2303 = vmatpush.msra.mxu0 %v1921
    %2304 = vmatpush.msra.mxu0 %v1917
    %2305 = vmatmul.f32.gmra.mxu0 %v1720
    %v2306 = vpop.f32.mrf.mxu0
    %v2307 = vadd.f32 %v2287, %v2306
    %2308 = vdwg.mxu0
    %v2309 = vmul.f32 %v2067, 0.5
    %v2310 = vmul.f32 %v2147, 0.5
    %v2311 = vmul.f32 %v2227, 0.5
    %v2312 = vmul.f32 %v2307, 0.5
    %v2313 = vmul.f32 %v2067, 0.70710677
    %v2314 = vmul.f32 %v2147, 0.70710677
    %v2315 = vmul.f32 %v2227, 0.70710677
    %v2316 = vmul.f32 %v2307, 0.70710677
    %v2317 = vmul.f32 %v2313, %v2313
    %v2318 = vmin.f32 16.0, %v2317
    %v2319 = vmul.f32 %v2318, 2.1237322e-06
    %v2320 = vadd.f32 %v2319, 0.00028619796
    %v2321 = vmul.f32 %v2318, %v2320
    %v2322 = vadd.f32 %v2321, 0.0036580483
    %v2323 = vmul.f32 %v2318, %v2322
    %v2324 = vadd.f32 %v2323, 0.05243302
    %v2325 = vmul.f32 %v2318, %v2324
    %v2326 = vadd.f32 %v2325, 0.18741608
    %v2327 = vmul.f32 %v2318, %v2326
    %v2328 = vadd.f32 %v2327, 1.1283791
    %v2329 = vmul.f32 %v2313, %v2328
    %v2330 = vmul.f32 %v2318, 3.8918573e-05
    %v2331 = vadd.f32 %v2330, 0.001143296
    %v2332 = vmul.f32 %v2318, %v2331
    %v2333 = vadd.f32 %v2332, 0.014752088
    %v2334 = vmul.f32 %v2318, %v2333
    %v2335 = vadd.f32 %v2334, 0.112945676
    %v2336 = vmul.f32 %v2318, %v2335
    %v2337 = vadd.f32 %v2336, 0.4994258
    %v2338 = vmul.f32 %v2318, %v2337
    %v2339 = vadd.f32 %v2338, 1.0
    %v2340 = vrcp.pop %v2339
    %v2341 = vmul.f32 %v2339, %v2340
    %v2342 = vsub.f32 1.0, %v2341
    %v2343 = vmul.f32 %v2340, %v2342
    %v2344 = vadd.f32 %v2340, %v2343
    %vm2345 = vweird.f32 %v2339
    %vm2346 = vweird.f32 %v2340
    %vm2347 = vmor %vm2345, %vm2346
    %v2348 = vsel %vm2347, %v2340, %v2344
    %v2349 = vand.u32 2147483647, %v2339
    %vm2350 = vcmp.eq.f32.partialorder %v2349, 8.507059e+37
    %v2351 = vand.u32 %v2339, 2147483648
    %v2352 = vor.u32 1.1754944e-38, %v2351
    %v2353 = vsel %vm2350, %v2352, %v2348
    %v2354 = vmul.f32 %v2329, %v2353
    %v2355 = vmin.f32 %v2354, 1.0
    %v2356 = vmax.f32 %v2355, -1.0
    %v2357 = vmul.f32 %v2314, %v2314
    %v2358 = vmin.f32 16.0, %v2357
    %v2359 = vmul.f32 %v2358, 2.1237322e-06
    %v2360 = vadd.f32 %v2359, 0.00028619796
    %v2361 = vmul.f32 %v2358, %v2360
    %v2362 = vadd.f32 %v2361, 0.0036580483
    %v2363 = vmul.f32 %v2358, %v2362
    %v2364 = vadd.f32 %v2363, 0.05243302
    %v2365 = vmul.f32 %v2358, %v2364
    %v2366 = vadd.f32 %v2365, 0.18741608
    %v2367 = vmul.f32 %v2358, %v2366
    %v2368 = vadd.f32 %v2367, 1.1283791
    %v2369 = vmul.f32 %v2314, %v2368
    %v2370 = vmul.f32 %v2358, 3.8918573e-05
    %v2371 = vadd.f32 %v2370, 0.001143296
    %v2372 = vmul.f32 %v2358, %v2371
    %v2373 = vadd.f32 %v2372, 0.014752088
    %v2374 = vmul.f32 %v2358, %v2373
    %v2375 = vadd.f32 %v2374, 0.112945676
    %v2376 = vmul.f32 %v2358, %v2375
    %v2377 = vadd.f32 %v2376, 0.4994258
    %v2378 = vmul.f32 %v2358, %v2377
    %v2379 = vadd.f32 %v2378, 1.0
    %v2380 = vrcp.pop %v2379
    %v2381 = vmul.f32 %v2379, %v2380
    %v2382 = vsub.f32 1.0, %v2381
    %v2383 = vmul.f32 %v2380, %v2382
    %v2384 = vadd.f32 %v2380, %v2383
    %vm2385 = vweird.f32 %v2379
    %vm2386 = vweird.f32 %v2380
    %vm2387 = vmor %vm2385, %vm2386
    %v2388 = vsel %vm2387, %v2380, %v2384
    %v2389 = vand.u32 2147483647, %v2379
    %vm2390 = vcmp.eq.f32.partialorder %v2389, 8.507059e+37
    %v2391 = vand.u32 %v2379, 2147483648
    %v2392 = vor.u32 1.1754944e-38, %v2391
    %v2393 = vsel %vm2390, %v2392, %v2388
    %v2394 = vmul.f32 %v2369, %v2393
    %v2395 = vmin.f32 %v2394, 1.0
    %v2396 = vmax.f32 %v2395, -1.0
    %v2397 = vmul.f32 %v2315, %v2315
    %v2398 = vmin.f32 16.0, %v2397
    %v2399 = vmul.f32 %v2398, 2.1237322e-06
    %v2400 = vadd.f32 %v2399, 0.00028619796
    %v2401 = vmul.f32 %v2398, %v2400
    %v2402 = vadd.f32 %v2401, 0.0036580483
    %v2403 = vmul.f32 %v2398, %v2402
    %v2404 = vadd.f32 %v2403, 0.05243302
    %v2405 = vmul.f32 %v2398, %v2404
    %v2406 = vadd.f32 %v2405, 0.18741608
    %v2407 = vmul.f32 %v2398, %v2406
    %v2408 = vadd.f32 %v2407, 1.1283791
    %v2409 = vmul.f32 %v2315, %v2408
    %v2410 = vmul.f32 %v2398, 3.8918573e-05
    %v2411 = vadd.f32 %v2410, 0.001143296
    %v2412 = vmul.f32 %v2398, %v2411
    %v2413 = vadd.f32 %v2412, 0.014752088
    %v2414 = vmul.f32 %v2398, %v2413
    %v2415 = vadd.f32 %v2414, 0.112945676
    %v2416 = vmul.f32 %v2398, %v2415
    %v2417 = vadd.f32 %v2416, 0.4994258
    %v2418 = vmul.f32 %v2398, %v2417
    %v2419 = vadd.f32 %v2418, 1.0
    %v2420 = vrcp.pop %v2419
    %v2421 = vmul.f32 %v2419, %v2420
    %v2422 = vsub.f32 1.0, %v2421
    %v2423 = vmul.f32 %v2420, %v2422
    %v2424 = vadd.f32 %v2420, %v2423
    %vm2425 = vweird.f32 %v2419
    %vm2426 = vweird.f32 %v2420
    %vm2427 = vmor %vm2425, %vm2426
    %v2428 = vsel %vm2427, %v2420, %v2424
    %v2429 = vand.u32 2147483647, %v2419
    %vm2430 = vcmp.eq.f32.partialorder %v2429, 8.507059e+37
    %v2431 = vand.u32 %v2419, 2147483648
    %v2432 = vor.u32 1.1754944e-38, %v2431
    %v2433 = vsel %vm2430, %v2432, %v2428
    %v2434 = vmul.f32 %v2409, %v2433
    %v2435 = vmin.f32 %v2434, 1.0
    %v2436 = vmax.f32 %v2435, -1.0
    %v2437 = vmul.f32 %v2316, %v2316
    %v2438 = vmin.f32 16.0, %v2437
    %v2439 = vmul.f32 %v2438, 2.1237322e-06
    %v2440 = vadd.f32 %v2439, 0.00028619796
    %v2441 = vmul.f32 %v2438, %v2440
    %v2442 = vadd.f32 %v2441, 0.0036580483
    %v2443 = vmul.f32 %v2438, %v2442
    %v2444 = vadd.f32 %v2443, 0.05243302
    %v2445 = vmul.f32 %v2438, %v2444
    %v2446 = vadd.f32 %v2445, 0.18741608
    %v2447 = vmul.f32 %v2438, %v2446
    %v2448 = vadd.f32 %v2447, 1.1283791
    %v2449 = vmul.f32 %v2316, %v2448
    %v2450 = vmul.f32 %v2438, 3.8918573e-05
    %v2451 = vadd.f32 %v2450, 0.001143296
    %v2452 = vmul.f32 %v2438, %v2451
    %v2453 = vadd.f32 %v2452, 0.014752088
    %v2454 = vmul.f32 %v2438, %v2453
    %v2455 = vadd.f32 %v2454, 0.112945676
    %v2456 = vmul.f32 %v2438, %v2455
    %v2457 = vadd.f32 %v2456, 0.4994258
    %v2458 = vmul.f32 %v2438, %v2457
    %v2459 = vadd.f32 %v2458, 1.0
    %v2460 = vrcp.pop %v2459
    %v2461 = vmul.f32 %v2459, %v2460
    %v2462 = vsub.f32 1.0, %v2461
    %v2463 = vmul.f32 %v2460, %v2462
    %v2464 = vadd.f32 %v2460, %v2463
    %vm2465 = vweird.f32 %v2459
    %vm2466 = vweird.f32 %v2460
    %vm2467 = vmor %vm2465, %vm2466
    %v2468 = vsel %vm2467, %v2460, %v2464
    %v2469 = vand.u32 2147483647, %v2459
    %vm2470 = vcmp.eq.f32.partialorder %v2469, 8.507059e+37
    %v2471 = vand.u32 %v2459, 2147483648
    %v2472 = vor.u32 1.1754944e-38, %v2471
    %v2473 = vsel %vm2470, %v2472, %v2468
    %v2474 = vmul.f32 %v2449, %v2473
    %v2475 = vmin.f32 %v2474, 1.0
    %v2476 = vmax.f32 %v2475, -1.0
    %v2477 = vadd.f32 %v2356, 1.0
    %v2478 = vadd.f32 %v2396, 1.0
    %v2479 = vadd.f32 %v2436, 1.0
    %v2480 = vadd.f32 %v2476, 1.0
    %v2481 = vmul.f32 %v2309, %v2477
    %v2482 = vmul.f32 %v2310, %v2478
    %v2483 = vmul.f32 %v2311, %v2479
    %v2484 = vmul.f32 %v2312, %v2480
    %v2485 = vld [vmem:[#allocation7] sm:$0xff]
    %v2486 = vld [vmem:[#allocation7 + $0x8] sm:$0xff]
    %v2487 = vld [vmem:[#allocation7 + $0x10] sm:$0xff]
    %v2488 = vld [vmem:[#allocation7 + $0x18] sm:$0xff]
    %v2489 = vld [vmem:[#allocation7 + $0x20] sm:$0xff]
    %v2490 = vld [vmem:[#allocation7 + $0x28] sm:$0xff]
    %v2491 = vld [vmem:[#allocation7 + $0x30] sm:$0xff]
    %v2492 = vld [vmem:[#allocation7 + $0x38] sm:$0xff]
    %v2493 = vld [vmem:[#allocation7 + $0x40] sm:$0xff]
    %v2494 = vld [vmem:[#allocation7 + $0x48] sm:$0xff]
    %v2495 = vld [vmem:[#allocation7 + $0x50] sm:$0xff]
    %v2496 = vld [vmem:[#allocation7 + $0x58] sm:$0xff]
    %v2497 = vld [vmem:[#allocation7 + $0x60] sm:$0xff]
    %v2498 = vld [vmem:[#allocation7 + $0x68] sm:$0xff]
    %v2499 = vld [vmem:[#allocation7 + $0x70] sm:$0xff]
    %v2500 = vld [vmem:[#allocation7 + $0x78] sm:$0xff]
    %v2501 = vld [vmem:[#allocation7 + $0x80] sm:$0xff]
    %v2502 = vld [vmem:[#allocation7 + $0x88] sm:$0xff]
    %v2503 = vld [vmem:[#allocation7 + $0x90] sm:$0xff]
    %v2504 = vld [vmem:[#allocation7 + $0x98] sm:$0xff]
    %v2505 = vld [vmem:[#allocation7 + $0xa0] sm:$0xff]
    %v2506 = vld [vmem:[#allocation7 + $0xa8] sm:$0xff]
    %v2507 = vld [vmem:[#allocation7 + $0xb0] sm:$0xff]
    %v2508 = vld [vmem:[#allocation7 + $0xb8] sm:$0xff]
    %v2509 = vld [vmem:[#allocation7 + $0xc0] sm:$0xff]
    %v2510 = vld [vmem:[#allocation7 + $0xc8] sm:$0xff]
    %v2511 = vld [vmem:[#allocation7 + $0xd0] sm:$0xff]
    %v2512 = vld [vmem:[#allocation7 + $0xd8] sm:$0xff]
    %v2513 = vld [vmem:[#allocation7 + $0xe0] sm:$0xff]
    %v2514 = vld [vmem:[#allocation7 + $0xe8] sm:$0xff]
    %v2515 = vld [vmem:[#allocation7 + $0xf0] sm:$0xff]
    %v2516 = vld [vmem:[#allocation7 + $0xf8] sm:$0xff]
    %v2517 = vld [vmem:[#allocation7 + $0x100] sm:$0xff]
    %v2518 = vld [vmem:[#allocation7 + $0x108] sm:$0xff]
    %v2519 = vld [vmem:[#allocation7 + $0x110] sm:$0xff]
    %v2520 = vld [vmem:[#allocation7 + $0x118] sm:$0xff]
    %v2521 = vld [vmem:[#allocation7 + $0x120] sm:$0xff]
    %v2522 = vld [vmem:[#allocation7 + $0x128] sm:$0xff]
    %v2523 = vld [vmem:[#allocation7 + $0x130] sm:$0xff]
    %v2524 = vld [vmem:[#allocation7 + $0x138] sm:$0xff]
    %v2525 = vld [vmem:[#allocation7 + $0x140] sm:$0xff]
    %v2526 = vld [vmem:[#allocation7 + $0x148] sm:$0xff]
    %v2527 = vld [vmem:[#allocation7 + $0x150] sm:$0xff]
    %v2528 = vld [vmem:[#allocation7 + $0x158] sm:$0xff]
    %v2529 = vld [vmem:[#allocation7 + $0x160] sm:$0xff]
    %v2530 = vld [vmem:[#allocation7 + $0x168] sm:$0xff]
    %v2531 = vld [vmem:[#allocation7 + $0x170] sm:$0xff]
    %v2532 = vld [vmem:[#allocation7 + $0x178] sm:$0xff]
    %v2533 = vld [vmem:[#allocation7 + $0x180] sm:$0xff]
    %v2534 = vld [vmem:[#allocation7 + $0x188] sm:$0xff]
    %v2535 = vld [vmem:[#allocation7 + $0x190] sm:$0xff]
    %v2536 = vld [vmem:[#allocation7 + $0x198] sm:$0xff]
    %v2537 = vld [vmem:[#allocation7 + $0x1a0] sm:$0xff]
    %v2538 = vld [vmem:[#allocation7 + $0x1a8] sm:$0xff]
    %v2539 = vld [vmem:[#allocation7 + $0x1b0] sm:$0xff]
    %v2540 = vld [vmem:[#allocation7 + $0x1b8] sm:$0xff]
    %v2541 = vld [vmem:[#allocation7 + $0x1c0] sm:$0xff]
    %v2542 = vld [vmem:[#allocation7 + $0x1c8] sm:$0xff]
    %v2543 = vld [vmem:[#allocation7 + $0x1d0] sm:$0xff]
    %v2544 = vld [vmem:[#allocation7 + $0x1d8] sm:$0xff]
    %v2545 = vld [vmem:[#allocation7 + $0x1e0] sm:$0xff]
    %v2546 = vld [vmem:[#allocation7 + $0x1e8] sm:$0xff]
    %v2547 = vld [vmem:[#allocation7 + $0x1f0] sm:$0xff]
    %v2548 = vld [vmem:[#allocation7 + $0x1f8] sm:$0xff]
    %v2549 = vld [vmem:[#allocation7 + $0x200] sm:$0xff]
    %v2550 = vld [vmem:[#allocation7 + $0x208] sm:$0xff]
    %v2551 = vld [vmem:[#allocation7 + $0x210] sm:$0xff]
    %v2552 = vld [vmem:[#allocation7 + $0x218] sm:$0xff]
    %v2553 = vld [vmem:[#allocation7 + $0x220] sm:$0xff]
    %v2554 = vld [vmem:[#allocation7 + $0x228] sm:$0xff]
    %v2555 = vld [vmem:[#allocation7 + $0x230] sm:$0xff]
    %v2556 = vld [vmem:[#allocation7 + $0x238] sm:$0xff]
    %v2557 = vld [vmem:[#allocation7 + $0x240] sm:$0xff]
    %v2558 = vld [vmem:[#allocation7 + $0x248] sm:$0xff]
    %v2559 = vld [vmem:[#allocation7 + $0x250] sm:$0xff]
    %v2560 = vld [vmem:[#allocation7 + $0x258] sm:$0xff]
    %v2561 = vld [vmem:[#allocation7 + $0x260] sm:$0xff]
    %v2562 = vld [vmem:[#allocation7 + $0x268] sm:$0xff]
    %v2563 = vld [vmem:[#allocation7 + $0x270] sm:$0xff]
    %v2564 = vld [vmem:[#allocation7 + $0x278] sm:$0xff]
    %v2565 = vld [vmem:[#allocation7 + $0x280] sm:$0xff]
    %v2566 = vld [vmem:[#allocation7 + $0x288] sm:$0xff]
    %v2567 = vld [vmem:[#allocation7 + $0x290] sm:$0xff]
    %v2568 = vld [vmem:[#allocation7 + $0x298] sm:$0xff]
    %v2569 = vld [vmem:[#allocation7 + $0x2a0] sm:$0xff]
    %v2570 = vld [vmem:[#allocation7 + $0x2a8] sm:$0xff]
    %v2571 = vld [vmem:[#allocation7 + $0x2b0] sm:$0xff]
    %v2572 = vld [vmem:[#allocation7 + $0x2b8] sm:$0xff]
    %v2573 = vld [vmem:[#allocation7 + $0x2c0] sm:$0xff]
    %v2574 = vld [vmem:[#allocation7 + $0x2c8] sm:$0xff]
    %v2575 = vld [vmem:[#allocation7 + $0x2d0] sm:$0xff]
    %v2576 = vld [vmem:[#allocation7 + $0x2d8] sm:$0xff]
    %v2577 = vld [vmem:[#allocation7 + $0x2e0] sm:$0xff]
    %v2578 = vld [vmem:[#allocation7 + $0x2e8] sm:$0xff]
    %v2579 = vld [vmem:[#allocation7 + $0x2f0] sm:$0xff]
    %v2580 = vld [vmem:[#allocation7 + $0x2f8] sm:$0xff]
    %v2581 = vld [vmem:[#allocation7 + $0x300] sm:$0xff]
    %v2582 = vld [vmem:[#allocation7 + $0x308] sm:$0xff]
    %v2583 = vld [vmem:[#allocation7 + $0x310] sm:$0xff]
    %v2584 = vld [vmem:[#allocation7 + $0x318] sm:$0xff]
    %v2585 = vld [vmem:[#allocation7 + $0x320] sm:$0xff]
    %v2586 = vld [vmem:[#allocation7 + $0x328] sm:$0xff]
    %v2587 = vld [vmem:[#allocation7 + $0x330] sm:$0xff]
    %v2588 = vld [vmem:[#allocation7 + $0x338] sm:$0xff]
    %v2589 = vld [vmem:[#allocation7 + $0x340] sm:$0xff]
    %v2590 = vld [vmem:[#allocation7 + $0x348] sm:$0xff]
    %v2591 = vld [vmem:[#allocation7 + $0x350] sm:$0xff]
    %v2592 = vld [vmem:[#allocation7 + $0x358] sm:$0xff]
    %v2593 = vld [vmem:[#allocation7 + $0x360] sm:$0xff]
    %v2594 = vld [vmem:[#allocation7 + $0x368] sm:$0xff]
    %v2595 = vld [vmem:[#allocation7 + $0x370] sm:$0xff]
    %v2596 = vld [vmem:[#allocation7 + $0x378] sm:$0xff]
    %v2597 = vld [vmem:[#allocation7 + $0x380] sm:$0xff]
    %v2598 = vld [vmem:[#allocation7 + $0x388] sm:$0xff]
    %v2599 = vld [vmem:[#allocation7 + $0x390] sm:$0xff]
    %v2600 = vld [vmem:[#allocation7 + $0x398] sm:$0xff]
    %v2601 = vld [vmem:[#allocation7 + $0x3a0] sm:$0xff]
    %v2602 = vld [vmem:[#allocation7 + $0x3a8] sm:$0xff]
    %v2603 = vld [vmem:[#allocation7 + $0x3b0] sm:$0xff]
    %v2604 = vld [vmem:[#allocation7 + $0x3b8] sm:$0xff]
    %v2605 = vld [vmem:[#allocation7 + $0x3c0] sm:$0xff]
    %v2606 = vld [vmem:[#allocation7 + $0x3c8] sm:$0xff]
    %v2607 = vld [vmem:[#allocation7 + $0x3d0] sm:$0xff]
    %v2608 = vld [vmem:[#allocation7 + $0x3d8] sm:$0xff]
    %v2609 = vld [vmem:[#allocation7 + $0x3e0] sm:$0xff]
    %v2610 = vld [vmem:[#allocation7 + $0x3e8] sm:$0xff]
    %v2611 = vld [vmem:[#allocation7 + $0x3f0] sm:$0xff]
    %v2612 = vld [vmem:[#allocation7 + $0x3f8] sm:$0xff]
    %v2613 = vld [vmem:[#allocation7 + $0x400] sm:$0xff]
    %v2614 = vld [vmem:[#allocation7 + $0x408] sm:$0xff]
    %v2615 = vld [vmem:[#allocation7 + $0x410] sm:$0xff]
    %v2616 = vld [vmem:[#allocation7 + $0x418] sm:$0xff]
    %v2617 = vld [vmem:[#allocation7 + $0x420] sm:$0xff]
    %v2618 = vld [vmem:[#allocation7 + $0x428] sm:$0xff]
    %v2619 = vld [vmem:[#allocation7 + $0x430] sm:$0xff]
    %v2620 = vld [vmem:[#allocation7 + $0x438] sm:$0xff]
    %v2621 = vld [vmem:[#allocation7 + $0x440] sm:$0xff]
    %v2622 = vld [vmem:[#allocation7 + $0x448] sm:$0xff]
    %v2623 = vld [vmem:[#allocation7 + $0x450] sm:$0xff]
    %v2624 = vld [vmem:[#allocation7 + $0x458] sm:$0xff]
    %v2625 = vld [vmem:[#allocation7 + $0x460] sm:$0xff]
    %v2626 = vld [vmem:[#allocation7 + $0x468] sm:$0xff]
    %v2627 = vld [vmem:[#allocation7 + $0x470] sm:$0xff]
    %v2628 = vld [vmem:[#allocation7 + $0x478] sm:$0xff]
    %v2629 = vld [vmem:[#allocation7 + $0x480] sm:$0xff]
    %v2630 = vld [vmem:[#allocation7 + $0x488] sm:$0xff]
    %v2631 = vld [vmem:[#allocation7 + $0x490] sm:$0xff]
    %v2632 = vld [vmem:[#allocation7 + $0x498] sm:$0xff]
    %v2633 = vld [vmem:[#allocation7 + $0x4a0] sm:$0xff]
    %v2634 = vld [vmem:[#allocation7 + $0x4a8] sm:$0xff]
    %v2635 = vld [vmem:[#allocation7 + $0x4b0] sm:$0xff]
    %v2636 = vld [vmem:[#allocation7 + $0x4b8] sm:$0xff]
    %v2637 = vld [vmem:[#allocation7 + $0x4c0] sm:$0xff]
    %v2638 = vld [vmem:[#allocation7 + $0x4c8] sm:$0xff]
    %v2639 = vld [vmem:[#allocation7 + $0x4d0] sm:$0xff]
    %v2640 = vld [vmem:[#allocation7 + $0x4d8] sm:$0xff]
    %v2641 = vld [vmem:[#allocation7 + $0x4e0] sm:$0xff]
    %v2642 = vld [vmem:[#allocation7 + $0x4e8] sm:$0xff]
    %v2643 = vld [vmem:[#allocation7 + $0x4f0] sm:$0xff]
    %v2644 = vld [vmem:[#allocation7 + $0x4f8] sm:$0xff]
    %v2645 = vld [vmem:[#allocation7 + $0x500] sm:$0xff]
    %v2646 = vld [vmem:[#allocation7 + $0x508] sm:$0xff]
    %v2647 = vld [vmem:[#allocation7 + $0x510] sm:$0xff]
    %v2648 = vld [vmem:[#allocation7 + $0x518] sm:$0xff]
    %v2649 = vld [vmem:[#allocation7 + $0x520] sm:$0xff]
    %v2650 = vld [vmem:[#allocation7 + $0x528] sm:$0xff]
    %v2651 = vld [vmem:[#allocation7 + $0x530] sm:$0xff]
    %v2652 = vld [vmem:[#allocation7 + $0x538] sm:$0xff]
    %v2653 = vld [vmem:[#allocation7 + $0x540] sm:$0xff]
    %v2654 = vld [vmem:[#allocation7 + $0x548] sm:$0xff]
    %v2655 = vld [vmem:[#allocation7 + $0x550] sm:$0xff]
    %v2656 = vld [vmem:[#allocation7 + $0x558] sm:$0xff]
    %v2657 = vld [vmem:[#allocation7 + $0x560] sm:$0xff]
    %v2658 = vld [vmem:[#allocation7 + $0x568] sm:$0xff]
    %v2659 = vld [vmem:[#allocation7 + $0x570] sm:$0xff]
    %v2660 = vld [vmem:[#allocation7 + $0x578] sm:$0xff]
    %v2661 = vld [vmem:[#allocation7 + $0x580] sm:$0xff]
    %v2662 = vld [vmem:[#allocation7 + $0x588] sm:$0xff]
    %v2663 = vld [vmem:[#allocation7 + $0x590] sm:$0xff]
    %v2664 = vld [vmem:[#allocation7 + $0x598] sm:$0xff]
    %v2665 = vld [vmem:[#allocation7 + $0x5a0] sm:$0xff]
    %v2666 = vld [vmem:[#allocation7 + $0x5a8] sm:$0xff]
    %v2667 = vld [vmem:[#allocation7 + $0x5b0] sm:$0xff]
    %v2668 = vld [vmem:[#allocation7 + $0x5b8] sm:$0xff]
    %v2669 = vld [vmem:[#allocation7 + $0x5c0] sm:$0xff]
    %v2670 = vld [vmem:[#allocation7 + $0x5c8] sm:$0xff]
    %v2671 = vld [vmem:[#allocation7 + $0x5d0] sm:$0xff]
    %v2672 = vld [vmem:[#allocation7 + $0x5d8] sm:$0xff]
    %v2673 = vld [vmem:[#allocation7 + $0x5e0] sm:$0xff]
    %v2674 = vld [vmem:[#allocation7 + $0x5e8] sm:$0xff]
    %v2675 = vld [vmem:[#allocation7 + $0x5f0] sm:$0xff]
    %v2676 = vld [vmem:[#allocation7 + $0x5f8] sm:$0xff]
    %v2677 = vld [vmem:[#allocation7 + $0x600] sm:$0xff]
    %v2678 = vld [vmem:[#allocation7 + $0x608] sm:$0xff]
    %v2679 = vld [vmem:[#allocation7 + $0x610] sm:$0xff]
    %v2680 = vld [vmem:[#allocation7 + $0x618] sm:$0xff]
    %v2681 = vld [vmem:[#allocation7 + $0x620] sm:$0xff]
    %v2682 = vld [vmem:[#allocation7 + $0x628] sm:$0xff]
    %v2683 = vld [vmem:[#allocation7 + $0x630] sm:$0xff]
    %v2684 = vld [vmem:[#allocation7 + $0x638] sm:$0xff]
    %v2685 = vld [vmem:[#allocation7 + $0x640] sm:$0xff]
    %v2686 = vld [vmem:[#allocation7 + $0x648] sm:$0xff]
    %v2687 = vld [vmem:[#allocation7 + $0x650] sm:$0xff]
    %v2688 = vld [vmem:[#allocation7 + $0x658] sm:$0xff]
    %v2689 = vld [vmem:[#allocation7 + $0x660] sm:$0xff]
    %v2690 = vld [vmem:[#allocation7 + $0x668] sm:$0xff]
    %v2691 = vld [vmem:[#allocation7 + $0x670] sm:$0xff]
    %v2692 = vld [vmem:[#allocation7 + $0x678] sm:$0xff]
    %v2693 = vld [vmem:[#allocation7 + $0x680] sm:$0xff]
    %v2694 = vld [vmem:[#allocation7 + $0x688] sm:$0xff]
    %v2695 = vld [vmem:[#allocation7 + $0x690] sm:$0xff]
    %v2696 = vld [vmem:[#allocation7 + $0x698] sm:$0xff]
    %v2697 = vld [vmem:[#allocation7 + $0x6a0] sm:$0xff]
    %v2698 = vld [vmem:[#allocation7 + $0x6a8] sm:$0xff]
    %v2699 = vld [vmem:[#allocation7 + $0x6b0] sm:$0xff]
    %v2700 = vld [vmem:[#allocation7 + $0x6b8] sm:$0xff]
    %v2701 = vld [vmem:[#allocation7 + $0x6c0] sm:$0xff]
    %v2702 = vld [vmem:[#allocation7 + $0x6c8] sm:$0xff]
    %v2703 = vld [vmem:[#allocation7 + $0x6d0] sm:$0xff]
    %v2704 = vld [vmem:[#allocation7 + $0x6d8] sm:$0xff]
    %v2705 = vld [vmem:[#allocation7 + $0x6e0] sm:$0xff]
    %v2706 = vld [vmem:[#allocation7 + $0x6e8] sm:$0xff]
    %v2707 = vld [vmem:[#allocation7 + $0x6f0] sm:$0xff]
    %v2708 = vld [vmem:[#allocation7 + $0x6f8] sm:$0xff]
    %v2709 = vld [vmem:[#allocation7 + $0x700] sm:$0xff]
    %v2710 = vld [vmem:[#allocation7 + $0x708] sm:$0xff]
    %v2711 = vld [vmem:[#allocation7 + $0x710] sm:$0xff]
    %v2712 = vld [vmem:[#allocation7 + $0x718] sm:$0xff]
    %v2713 = vld [vmem:[#allocation7 + $0x720] sm:$0xff]
    %v2714 = vld [vmem:[#allocation7 + $0x728] sm:$0xff]
    %v2715 = vld [vmem:[#allocation7 + $0x730] sm:$0xff]
    %v2716 = vld [vmem:[#allocation7 + $0x738] sm:$0xff]
    %v2717 = vld [vmem:[#allocation7 + $0x740] sm:$0xff]
    %v2718 = vld [vmem:[#allocation7 + $0x748] sm:$0xff]
    %v2719 = vld [vmem:[#allocation7 + $0x750] sm:$0xff]
    %v2720 = vld [vmem:[#allocation7 + $0x758] sm:$0xff]
    %v2721 = vld [vmem:[#allocation7 + $0x760] sm:$0xff]
    %v2722 = vld [vmem:[#allocation7 + $0x768] sm:$0xff]
    %v2723 = vld [vmem:[#allocation7 + $0x770] sm:$0xff]
    %v2724 = vld [vmem:[#allocation7 + $0x778] sm:$0xff]
    %v2725 = vld [vmem:[#allocation7 + $0x780] sm:$0xff]
    %v2726 = vld [vmem:[#allocation7 + $0x788] sm:$0xff]
    %v2727 = vld [vmem:[#allocation7 + $0x790] sm:$0xff]
    %v2728 = vld [vmem:[#allocation7 + $0x798] sm:$0xff]
    %v2729 = vld [vmem:[#allocation7 + $0x7a0] sm:$0xff]
    %v2730 = vld [vmem:[#allocation7 + $0x7a8] sm:$0xff]
    %v2731 = vld [vmem:[#allocation7 + $0x7b0] sm:$0xff]
    %v2732 = vld [vmem:[#allocation7 + $0x7b8] sm:$0xff]
    %v2733 = vld [vmem:[#allocation7 + $0x7c0] sm:$0xff]
    %v2734 = vld [vmem:[#allocation7 + $0x7c8] sm:$0xff]
    %v2735 = vld [vmem:[#allocation7 + $0x7d0] sm:$0xff]
    %v2736 = vld [vmem:[#allocation7 + $0x7d8] sm:$0xff]
    %v2737 = vld [vmem:[#allocation7 + $0x7e0] sm:$0xff]
    %v2738 = vld [vmem:[#allocation7 + $0x7e8] sm:$0xff]
    %v2739 = vld [vmem:[#allocation7 + $0x7f0] sm:$0xff]
    %v2740 = vld [vmem:[#allocation7 + $0x7f8] sm:$0xff]
    %v2741 = vld [vmem:[#allocation7 + $0x800] sm:$0xff]
    %v2742 = vld [vmem:[#allocation7 + $0x808] sm:$0xff]
    %v2743 = vld [vmem:[#allocation7 + $0x810] sm:$0xff]
    %v2744 = vld [vmem:[#allocation7 + $0x818] sm:$0xff]
    %v2745 = vld [vmem:[#allocation7 + $0x820] sm:$0xff]
    %v2746 = vld [vmem:[#allocation7 + $0x828] sm:$0xff]
    %v2747 = vld [vmem:[#allocation7 + $0x830] sm:$0xff]
    %v2748 = vld [vmem:[#allocation7 + $0x838] sm:$0xff]
    %v2749 = vld [vmem:[#allocation7 + $0x840] sm:$0xff]
    %v2750 = vld [vmem:[#allocation7 + $0x848] sm:$0xff]
    %v2751 = vld [vmem:[#allocation7 + $0x850] sm:$0xff]
    %v2752 = vld [vmem:[#allocation7 + $0x858] sm:$0xff]
    %v2753 = vld [vmem:[#allocation7 + $0x860] sm:$0xff]
    %v2754 = vld [vmem:[#allocation7 + $0x868] sm:$0xff]
    %v2755 = vld [vmem:[#allocation7 + $0x870] sm:$0xff]
    %v2756 = vld [vmem:[#allocation7 + $0x878] sm:$0xff]
    %v2757 = vld [vmem:[#allocation7 + $0x880] sm:$0xff]
    %v2758 = vld [vmem:[#allocation7 + $0x888] sm:$0xff]
    %v2759 = vld [vmem:[#allocation7 + $0x890] sm:$0xff]
    %v2760 = vld [vmem:[#allocation7 + $0x898] sm:$0xff]
    %v2761 = vld [vmem:[#allocation7 + $0x8a0] sm:$0xff]
    %v2762 = vld [vmem:[#allocation7 + $0x8a8] sm:$0xff]
    %v2763 = vld [vmem:[#allocation7 + $0x8b0] sm:$0xff]
    %v2764 = vld [vmem:[#allocation7 + $0x8b8] sm:$0xff]
    %v2765 = vld [vmem:[#allocation7 + $0x8c0] sm:$0xff]
    %v2766 = vld [vmem:[#allocation7 + $0x8c8] sm:$0xff]
    %v2767 = vld [vmem:[#allocation7 + $0x8d0] sm:$0xff]
    %v2768 = vld [vmem:[#allocation7 + $0x8d8] sm:$0xff]
    %v2769 = vld [vmem:[#allocation7 + $0x8e0] sm:$0xff]
    %v2770 = vld [vmem:[#allocation7 + $0x8e8] sm:$0xff]
    %v2771 = vld [vmem:[#allocation7 + $0x8f0] sm:$0xff]
    %v2772 = vld [vmem:[#allocation7 + $0x8f8] sm:$0xff]
    %v2773 = vld [vmem:[#allocation7 + $0x900] sm:$0xff]
    %v2774 = vld [vmem:[#allocation7 + $0x908] sm:$0xff]
    %v2775 = vld [vmem:[#allocation7 + $0x910] sm:$0xff]
    %v2776 = vld [vmem:[#allocation7 + $0x918] sm:$0xff]
    %v2777 = vld [vmem:[#allocation7 + $0x920] sm:$0xff]
    %v2778 = vld [vmem:[#allocation7 + $0x928] sm:$0xff]
    %v2779 = vld [vmem:[#allocation7 + $0x930] sm:$0xff]
    %v2780 = vld [vmem:[#allocation7 + $0x938] sm:$0xff]
    %v2781 = vld [vmem:[#allocation7 + $0x940] sm:$0xff]
    %v2782 = vld [vmem:[#allocation7 + $0x948] sm:$0xff]
    %v2783 = vld [vmem:[#allocation7 + $0x950] sm:$0xff]
    %v2784 = vld [vmem:[#allocation7 + $0x958] sm:$0xff]
    %v2785 = vld [vmem:[#allocation7 + $0x960] sm:$0xff]
    %v2786 = vld [vmem:[#allocation7 + $0x968] sm:$0xff]
    %v2787 = vld [vmem:[#allocation7 + $0x970] sm:$0xff]
    %v2788 = vld [vmem:[#allocation7 + $0x978] sm:$0xff]
    %v2789 = vld [vmem:[#allocation7 + $0x980] sm:$0xff]
    %v2790 = vld [vmem:[#allocation7 + $0x988] sm:$0xff]
    %v2791 = vld [vmem:[#allocation7 + $0x990] sm:$0xff]
    %v2792 = vld [vmem:[#allocation7 + $0x998] sm:$0xff]
    %v2793 = vld [vmem:[#allocation7 + $0x9a0] sm:$0xff]
    %v2794 = vld [vmem:[#allocation7 + $0x9a8] sm:$0xff]
    %v2795 = vld [vmem:[#allocation7 + $0x9b0] sm:$0xff]
    %v2796 = vld [vmem:[#allocation7 + $0x9b8] sm:$0xff]
    %v2797 = vld [vmem:[#allocation7 + $0x9c0] sm:$0xff]
    %v2798 = vld [vmem:[#allocation7 + $0x9c8] sm:$0xff]
    %v2799 = vld [vmem:[#allocation7 + $0x9d0] sm:$0xff]
    %v2800 = vld [vmem:[#allocation7 + $0x9d8] sm:$0xff]
    %v2801 = vld [vmem:[#allocation7 + $0x9e0] sm:$0xff]
    %v2802 = vld [vmem:[#allocation7 + $0x9e8] sm:$0xff]
    %v2803 = vld [vmem:[#allocation7 + $0x9f0] sm:$0xff]
    %v2804 = vld [vmem:[#allocation7 + $0x9f8] sm:$0xff]
    %v2805 = vld [vmem:[#allocation7 + $0xa00] sm:$0xff]
    %v2806 = vld [vmem:[#allocation7 + $0xa08] sm:$0xff]
    %v2807 = vld [vmem:[#allocation7 + $0xa10] sm:$0xff]
    %v2808 = vld [vmem:[#allocation7 + $0xa18] sm:$0xff]
    %v2809 = vld [vmem:[#allocation7 + $0xa20] sm:$0xff]
    %v2810 = vld [vmem:[#allocation7 + $0xa28] sm:$0xff]
    %v2811 = vld [vmem:[#allocation7 + $0xa30] sm:$0xff]
    %v2812 = vld [vmem:[#allocation7 + $0xa38] sm:$0xff]
    %v2813 = vld [vmem:[#allocation7 + $0xa40] sm:$0xff]
    %v2814 = vld [vmem:[#allocation7 + $0xa48] sm:$0xff]
    %v2815 = vld [vmem:[#allocation7 + $0xa50] sm:$0xff]
    %v2816 = vld [vmem:[#allocation7 + $0xa58] sm:$0xff]
    %v2817 = vld [vmem:[#allocation7 + $0xa60] sm:$0xff]
    %v2818 = vld [vmem:[#allocation7 + $0xa68] sm:$0xff]
    %v2819 = vld [vmem:[#allocation7 + $0xa70] sm:$0xff]
    %v2820 = vld [vmem:[#allocation7 + $0xa78] sm:$0xff]
    %v2821 = vld [vmem:[#allocation7 + $0xa80] sm:$0xff]
    %v2822 = vld [vmem:[#allocation7 + $0xa88] sm:$0xff]
    %v2823 = vld [vmem:[#allocation7 + $0xa90] sm:$0xff]
    %v2824 = vld [vmem:[#allocation7 + $0xa98] sm:$0xff]
    %v2825 = vld [vmem:[#allocation7 + $0xaa0] sm:$0xff]
    %v2826 = vld [vmem:[#allocation7 + $0xaa8] sm:$0xff]
    %v2827 = vld [vmem:[#allocation7 + $0xab0] sm:$0xff]
    %v2828 = vld [vmem:[#allocation7 + $0xab8] sm:$0xff]
    %v2829 = vld [vmem:[#allocation7 + $0xac0] sm:$0xff]
    %v2830 = vld [vmem:[#allocation7 + $0xac8] sm:$0xff]
    %v2831 = vld [vmem:[#allocation7 + $0xad0] sm:$0xff]
    %v2832 = vld [vmem:[#allocation7 + $0xad8] sm:$0xff]
    %v2833 = vld [vmem:[#allocation7 + $0xae0] sm:$0xff]
    %v2834 = vld [vmem:[#allocation7 + $0xae8] sm:$0xff]
    %v2835 = vld [vmem:[#allocation7 + $0xaf0] sm:$0xff]
    %v2836 = vld [vmem:[#allocation7 + $0xaf8] sm:$0xff]
    %v2837 = vld [vmem:[#allocation7 + $0xb00] sm:$0xff]
    %v2838 = vld [vmem:[#allocation7 + $0xb08] sm:$0xff]
    %v2839 = vld [vmem:[#allocation7 + $0xb10] sm:$0xff]
    %v2840 = vld [vmem:[#allocation7 + $0xb18] sm:$0xff]
    %v2841 = vld [vmem:[#allocation7 + $0xb20] sm:$0xff]
    %v2842 = vld [vmem:[#allocation7 + $0xb28] sm:$0xff]
    %v2843 = vld [vmem:[#allocation7 + $0xb30] sm:$0xff]
    %v2844 = vld [vmem:[#allocation7 + $0xb38] sm:$0xff]
    %v2845 = vld [vmem:[#allocation7 + $0xb40] sm:$0xff]
    %v2846 = vld [vmem:[#allocation7 + $0xb48] sm:$0xff]
    %v2847 = vld [vmem:[#allocation7 + $0xb50] sm:$0xff]
    %v2848 = vld [vmem:[#allocation7 + $0xb58] sm:$0xff]
    %v2849 = vld [vmem:[#allocation7 + $0xb60] sm:$0xff]
    %v2850 = vld [vmem:[#allocation7 + $0xb68] sm:$0xff]
    %v2851 = vld [vmem:[#allocation7 + $0xb70] sm:$0xff]
    %v2852 = vld [vmem:[#allocation7 + $0xb78] sm:$0xff]
    %v2853 = vld [vmem:[#allocation7 + $0xb80] sm:$0xff]
    %v2854 = vld [vmem:[#allocation7 + $0xb88] sm:$0xff]
    %v2855 = vld [vmem:[#allocation7 + $0xb90] sm:$0xff]
    %v2856 = vld [vmem:[#allocation7 + $0xb98] sm:$0xff]
    %v2857 = vld [vmem:[#allocation7 + $0xba0] sm:$0xff]
    %v2858 = vld [vmem:[#allocation7 + $0xba8] sm:$0xff]
    %v2859 = vld [vmem:[#allocation7 + $0xbb0] sm:$0xff]
    %v2860 = vld [vmem:[#allocation7 + $0xbb8] sm:$0xff]
    %v2861 = vld [vmem:[#allocation7 + $0xbc0] sm:$0xff]
    %v2862 = vld [vmem:[#allocation7 + $0xbc8] sm:$0xff]
    %v2863 = vld [vmem:[#allocation7 + $0xbd0] sm:$0xff]
    %v2864 = vld [vmem:[#allocation7 + $0xbd8] sm:$0xff]
    %v2865 = vld [vmem:[#allocation7 + $0xbe0] sm:$0xff]
    %v2866 = vld [vmem:[#allocation7 + $0xbe8] sm:$0xff]
    %v2867 = vld [vmem:[#allocation7 + $0xbf0] sm:$0xff]
    %v2868 = vld [vmem:[#allocation7 + $0xbf8] sm:$0xff]
    %v2869 = vld [vmem:[#allocation7 + $0xc00] sm:$0xff]
    %v2870 = vld [vmem:[#allocation7 + $0xc08] sm:$0xff]
    %v2871 = vld [vmem:[#allocation7 + $0xc10] sm:$0xff]
    %v2872 = vld [vmem:[#allocation7 + $0xc18] sm:$0xff]
    %v2873 = vld [vmem:[#allocation7 + $0xc20] sm:$0xff]
    %v2874 = vld [vmem:[#allocation7 + $0xc28] sm:$0xff]
    %v2875 = vld [vmem:[#allocation7 + $0xc30] sm:$0xff]
    %v2876 = vld [vmem:[#allocation7 + $0xc38] sm:$0xff]
    %v2877 = vld [vmem:[#allocation7 + $0xc40] sm:$0xff]
    %v2878 = vld [vmem:[#allocation7 + $0xc48] sm:$0xff]
    %v2879 = vld [vmem:[#allocation7 + $0xc50] sm:$0xff]
    %v2880 = vld [vmem:[#allocation7 + $0xc58] sm:$0xff]
    %v2881 = vld [vmem:[#allocation7 + $0xc60] sm:$0xff]
    %v2882 = vld [vmem:[#allocation7 + $0xc68] sm:$0xff]
    %v2883 = vld [vmem:[#allocation7 + $0xc70] sm:$0xff]
    %v2884 = vld [vmem:[#allocation7 + $0xc78] sm:$0xff]
    %v2885 = vld [vmem:[#allocation7 + $0xc80] sm:$0xff]
    %v2886 = vld [vmem:[#allocation7 + $0xc88] sm:$0xff]
    %v2887 = vld [vmem:[#allocation7 + $0xc90] sm:$0xff]
    %v2888 = vld [vmem:[#allocation7 + $0xc98] sm:$0xff]
    %v2889 = vld [vmem:[#allocation7 + $0xca0] sm:$0xff]
    %v2890 = vld [vmem:[#allocation7 + $0xca8] sm:$0xff]
    %v2891 = vld [vmem:[#allocation7 + $0xcb0] sm:$0xff]
    %v2892 = vld [vmem:[#allocation7 + $0xcb8] sm:$0xff]
    %v2893 = vld [vmem:[#allocation7 + $0xcc0] sm:$0xff]
    %v2894 = vld [vmem:[#allocation7 + $0xcc8] sm:$0xff]
    %v2895 = vld [vmem:[#allocation7 + $0xcd0] sm:$0xff]
    %v2896 = vld [vmem:[#allocation7 + $0xcd8] sm:$0xff]
    %v2897 = vld [vmem:[#allocation7 + $0xce0] sm:$0xff]
    %v2898 = vld [vmem:[#allocation7 + $0xce8] sm:$0xff]
    %v2899 = vld [vmem:[#allocation7 + $0xcf0] sm:$0xff]
    %v2900 = vld [vmem:[#allocation7 + $0xcf8] sm:$0xff]
    %v2901 = vld [vmem:[#allocation7 + $0xd00] sm:$0xff]
    %v2902 = vld [vmem:[#allocation7 + $0xd08] sm:$0xff]
    %v2903 = vld [vmem:[#allocation7 + $0xd10] sm:$0xff]
    %v2904 = vld [vmem:[#allocation7 + $0xd18] sm:$0xff]
    %v2905 = vld [vmem:[#allocation7 + $0xd20] sm:$0xff]
    %v2906 = vld [vmem:[#allocation7 + $0xd28] sm:$0xff]
    %v2907 = vld [vmem:[#allocation7 + $0xd30] sm:$0xff]
    %v2908 = vld [vmem:[#allocation7 + $0xd38] sm:$0xff]
    %v2909 = vld [vmem:[#allocation7 + $0xd40] sm:$0xff]
    %v2910 = vld [vmem:[#allocation7 + $0xd48] sm:$0xff]
    %v2911 = vld [vmem:[#allocation7 + $0xd50] sm:$0xff]
    %v2912 = vld [vmem:[#allocation7 + $0xd58] sm:$0xff]
    %v2913 = vld [vmem:[#allocation7 + $0xd60] sm:$0xff]
    %v2914 = vld [vmem:[#allocation7 + $0xd68] sm:$0xff]
    %v2915 = vld [vmem:[#allocation7 + $0xd70] sm:$0xff]
    %v2916 = vld [vmem:[#allocation7 + $0xd78] sm:$0xff]
    %v2917 = vld [vmem:[#allocation7 + $0xd80] sm:$0xff]
    %v2918 = vld [vmem:[#allocation7 + $0xd88] sm:$0xff]
    %v2919 = vld [vmem:[#allocation7 + $0xd90] sm:$0xff]
    %v2920 = vld [vmem:[#allocation7 + $0xd98] sm:$0xff]
    %v2921 = vld [vmem:[#allocation7 + $0xda0] sm:$0xff]
    %v2922 = vld [vmem:[#allocation7 + $0xda8] sm:$0xff]
    %v2923 = vld [vmem:[#allocation7 + $0xdb0] sm:$0xff]
    %v2924 = vld [vmem:[#allocation7 + $0xdb8] sm:$0xff]
    %v2925 = vld [vmem:[#allocation7 + $0xdc0] sm:$0xff]
    %v2926 = vld [vmem:[#allocation7 + $0xdc8] sm:$0xff]
    %v2927 = vld [vmem:[#allocation7 + $0xdd0] sm:$0xff]
    %v2928 = vld [vmem:[#allocation7 + $0xdd8] sm:$0xff]
    %v2929 = vld [vmem:[#allocation7 + $0xde0] sm:$0xff]
    %v2930 = vld [vmem:[#allocation7 + $0xde8] sm:$0xff]
    %v2931 = vld [vmem:[#allocation7 + $0xdf0] sm:$0xff]
    %v2932 = vld [vmem:[#allocation7 + $0xdf8] sm:$0xff]
    %v2933 = vld [vmem:[#allocation7 + $0xe00] sm:$0xff]
    %v2934 = vld [vmem:[#allocation7 + $0xe08] sm:$0xff]
    %v2935 = vld [vmem:[#allocation7 + $0xe10] sm:$0xff]
    %v2936 = vld [vmem:[#allocation7 + $0xe18] sm:$0xff]
    %v2937 = vld [vmem:[#allocation7 + $0xe20] sm:$0xff]
    %v2938 = vld [vmem:[#allocation7 + $0xe28] sm:$0xff]
    %v2939 = vld [vmem:[#allocation7 + $0xe30] sm:$0xff]
    %v2940 = vld [vmem:[#allocation7 + $0xe38] sm:$0xff]
    %v2941 = vld [vmem:[#allocation7 + $0xe40] sm:$0xff]
    %v2942 = vld [vmem:[#allocation7 + $0xe48] sm:$0xff]
    %v2943 = vld [vmem:[#allocation7 + $0xe50] sm:$0xff]
    %v2944 = vld [vmem:[#allocation7 + $0xe58] sm:$0xff]
    %v2945 = vld [vmem:[#allocation7 + $0xe60] sm:$0xff]
    %v2946 = vld [vmem:[#allocation7 + $0xe68] sm:$0xff]
    %v2947 = vld [vmem:[#allocation7 + $0xe70] sm:$0xff]
    %v2948 = vld [vmem:[#allocation7 + $0xe78] sm:$0xff]
    %v2949 = vld [vmem:[#allocation7 + $0xe80] sm:$0xff]
    %v2950 = vld [vmem:[#allocation7 + $0xe88] sm:$0xff]
    %v2951 = vld [vmem:[#allocation7 + $0xe90] sm:$0xff]
    %v2952 = vld [vmem:[#allocation7 + $0xe98] sm:$0xff]
    %v2953 = vld [vmem:[#allocation7 + $0xea0] sm:$0xff]
    %v2954 = vld [vmem:[#allocation7 + $0xea8] sm:$0xff]
    %v2955 = vld [vmem:[#allocation7 + $0xeb0] sm:$0xff]
    %v2956 = vld [vmem:[#allocation7 + $0xeb8] sm:$0xff]
    %v2957 = vld [vmem:[#allocation7 + $0xec0] sm:$0xff]
    %v2958 = vld [vmem:[#allocation7 + $0xec8] sm:$0xff]
    %v2959 = vld [vmem:[#allocation7 + $0xed0] sm:$0xff]
    %v2960 = vld [vmem:[#allocation7 + $0xed8] sm:$0xff]
    %v2961 = vld [vmem:[#allocation7 + $0xee0] sm:$0xff]
    %v2962 = vld [vmem:[#allocation7 + $0xee8] sm:$0xff]
    %v2963 = vld [vmem:[#allocation7 + $0xef0] sm:$0xff]
    %v2964 = vld [vmem:[#allocation7 + $0xef8] sm:$0xff]
    %v2965 = vld [vmem:[#allocation7 + $0xf00] sm:$0xff]
    %v2966 = vld [vmem:[#allocation7 + $0xf08] sm:$0xff]
    %v2967 = vld [vmem:[#allocation7 + $0xf10] sm:$0xff]
    %v2968 = vld [vmem:[#allocation7 + $0xf18] sm:$0xff]
    %v2969 = vld [vmem:[#allocation7 + $0xf20] sm:$0xff]
    %v2970 = vld [vmem:[#allocation7 + $0xf28] sm:$0xff]
    %v2971 = vld [vmem:[#allocation7 + $0xf30] sm:$0xff]
    %v2972 = vld [vmem:[#allocation7 + $0xf38] sm:$0xff]
    %v2973 = vld [vmem:[#allocation7 + $0xf40] sm:$0xff]
    %v2974 = vld [vmem:[#allocation7 + $0xf48] sm:$0xff]
    %v2975 = vld [vmem:[#allocation7 + $0xf50] sm:$0xff]
    %v2976 = vld [vmem:[#allocation7 + $0xf58] sm:$0xff]
    %v2977 = vld [vmem:[#allocation7 + $0xf60] sm:$0xff]
    %v2978 = vld [vmem:[#allocation7 + $0xf68] sm:$0xff]
    %v2979 = vld [vmem:[#allocation7 + $0xf70] sm:$0xff]
    %v2980 = vld [vmem:[#allocation7 + $0xf78] sm:$0xff]
    %v2981 = vld [vmem:[#allocation7 + $0xf80] sm:$0xff]
    %v2982 = vld [vmem:[#allocation7 + $0xf88] sm:$0xff]
    %v2983 = vld [vmem:[#allocation7 + $0xf90] sm:$0xff]
    %v2984 = vld [vmem:[#allocation7 + $0xf98] sm:$0xff]
    %v2985 = vld [vmem:[#allocation7 + $0xfa0] sm:$0xff]
    %v2986 = vld [vmem:[#allocation7 + $0xfa8] sm:$0xff]
    %v2987 = vld [vmem:[#allocation7 + $0xfb0] sm:$0xff]
    %v2988 = vld [vmem:[#allocation7 + $0xfb8] sm:$0xff]
    %v2989 = vld [vmem:[#allocation7 + $0xfc0] sm:$0xff]
    %v2990 = vld [vmem:[#allocation7 + $0xfc8] sm:$0xff]
    %v2991 = vld [vmem:[#allocation7 + $0xfd0] sm:$0xff]
    %v2992 = vld [vmem:[#allocation7 + $0xfd8] sm:$0xff]
    %v2993 = vld [vmem:[#allocation7 + $0xfe0] sm:$0xff]
    %v2994 = vld [vmem:[#allocation7 + $0xfe8] sm:$0xff]
    %v2995 = vld [vmem:[#allocation7 + $0xff0] sm:$0xff]
    %v2996 = vld [vmem:[#allocation7 + $0xff8] sm:$0xff]
    %v2997 = vld [vmem:[#allocation7 + $0x1000] sm:$0xff]
    %v2998 = vld [vmem:[#allocation7 + $0x1008] sm:$0xff]
    %v2999 = vld [vmem:[#allocation7 + $0x1010] sm:$0xff]
    %v3000 = vld [vmem:[#allocation7 + $0x1018] sm:$0xff]
    %v3001 = vld [vmem:[#allocation7 + $0x1020] sm:$0xff]
    %v3002 = vld [vmem:[#allocation7 + $0x1028] sm:$0xff]
    %v3003 = vld [vmem:[#allocation7 + $0x1030] sm:$0xff]
    %v3004 = vld [vmem:[#allocation7 + $0x1038] sm:$0xff]
    %v3005 = vld [vmem:[#allocation7 + $0x1040] sm:$0xff]
    %v3006 = vld [vmem:[#allocation7 + $0x1048] sm:$0xff]
    %v3007 = vld [vmem:[#allocation7 + $0x1050] sm:$0xff]
    %v3008 = vld [vmem:[#allocation7 + $0x1058] sm:$0xff]
    %v3009 = vld [vmem:[#allocation7 + $0x1060] sm:$0xff]
    %v3010 = vld [vmem:[#allocation7 + $0x1068] sm:$0xff]
    %v3011 = vld [vmem:[#allocation7 + $0x1070] sm:$0xff]
    %v3012 = vld [vmem:[#allocation7 + $0x1078] sm:$0xff]
    %v3013 = vld [vmem:[#allocation7 + $0x1080] sm:$0xff]
    %v3014 = vld [vmem:[#allocation7 + $0x1088] sm:$0xff]
    %v3015 = vld [vmem:[#allocation7 + $0x1090] sm:$0xff]
    %v3016 = vld [vmem:[#allocation7 + $0x1098] sm:$0xff]
    %v3017 = vld [vmem:[#allocation7 + $0x10a0] sm:$0xff]
    %v3018 = vld [vmem:[#allocation7 + $0x10a8] sm:$0xff]
    %v3019 = vld [vmem:[#allocation7 + $0x10b0] sm:$0xff]
    %v3020 = vld [vmem:[#allocation7 + $0x10b8] sm:$0xff]
    %v3021 = vld [vmem:[#allocation7 + $0x10c0] sm:$0xff]
    %v3022 = vld [vmem:[#allocation7 + $0x10c8] sm:$0xff]
    %v3023 = vld [vmem:[#allocation7 + $0x10d0] sm:$0xff]
    %v3024 = vld [vmem:[#allocation7 + $0x10d8] sm:$0xff]
    %v3025 = vld [vmem:[#allocation7 + $0x10e0] sm:$0xff]
    %v3026 = vld [vmem:[#allocation7 + $0x10e8] sm:$0xff]
    %v3027 = vld [vmem:[#allocation7 + $0x10f0] sm:$0xff]
    %v3028 = vld [vmem:[#allocation7 + $0x10f8] sm:$0xff]
    %v3029 = vld [vmem:[#allocation7 + $0x1100] sm:$0xff]
    %v3030 = vld [vmem:[#allocation7 + $0x1108] sm:$0xff]
    %v3031 = vld [vmem:[#allocation7 + $0x1110] sm:$0xff]
    %v3032 = vld [vmem:[#allocation7 + $0x1118] sm:$0xff]
    %v3033 = vld [vmem:[#allocation7 + $0x1120] sm:$0xff]
    %v3034 = vld [vmem:[#allocation7 + $0x1128] sm:$0xff]
    %v3035 = vld [vmem:[#allocation7 + $0x1130] sm:$0xff]
    %v3036 = vld [vmem:[#allocation7 + $0x1138] sm:$0xff]
    %v3037 = vld [vmem:[#allocation7 + $0x1140] sm:$0xff]
    %v3038 = vld [vmem:[#allocation7 + $0x1148] sm:$0xff]
    %v3039 = vld [vmem:[#allocation7 + $0x1150] sm:$0xff]
    %v3040 = vld [vmem:[#allocation7 + $0x1158] sm:$0xff]
    %v3041 = vld [vmem:[#allocation7 + $0x1160] sm:$0xff]
    %v3042 = vld [vmem:[#allocation7 + $0x1168] sm:$0xff]
    %v3043 = vld [vmem:[#allocation7 + $0x1170] sm:$0xff]
    %v3044 = vld [vmem:[#allocation7 + $0x1178] sm:$0xff]
    %v3045 = vld [vmem:[#allocation7 + $0x1180] sm:$0xff]
    %v3046 = vld [vmem:[#allocation7 + $0x1188] sm:$0xff]
    %v3047 = vld [vmem:[#allocation7 + $0x1190] sm:$0xff]
    %v3048 = vld [vmem:[#allocation7 + $0x1198] sm:$0xff]
    %v3049 = vld [vmem:[#allocation7 + $0x11a0] sm:$0xff]
    %v3050 = vld [vmem:[#allocation7 + $0x11a8] sm:$0xff]
    %v3051 = vld [vmem:[#allocation7 + $0x11b0] sm:$0xff]
    %v3052 = vld [vmem:[#allocation7 + $0x11b8] sm:$0xff]
    %v3053 = vld [vmem:[#allocation7 + $0x11c0] sm:$0xff]
    %v3054 = vld [vmem:[#allocation7 + $0x11c8] sm:$0xff]
    %v3055 = vld [vmem:[#allocation7 + $0x11d0] sm:$0xff]
    %v3056 = vld [vmem:[#allocation7 + $0x11d8] sm:$0xff]
    %v3057 = vld [vmem:[#allocation7 + $0x11e0] sm:$0xff]
    %v3058 = vld [vmem:[#allocation7 + $0x11e8] sm:$0xff]
    %v3059 = vld [vmem:[#allocation7 + $0x11f0] sm:$0xff]
    %v3060 = vld [vmem:[#allocation7 + $0x11f8] sm:$0xff]
    %v3061 = vld [vmem:[#allocation7 + $0x1200] sm:$0xff]
    %v3062 = vld [vmem:[#allocation7 + $0x1208] sm:$0xff]
    %v3063 = vld [vmem:[#allocation7 + $0x1210] sm:$0xff]
    %v3064 = vld [vmem:[#allocation7 + $0x1218] sm:$0xff]
    %v3065 = vld [vmem:[#allocation7 + $0x1220] sm:$0xff]
    %v3066 = vld [vmem:[#allocation7 + $0x1228] sm:$0xff]
    %v3067 = vld [vmem:[#allocation7 + $0x1230] sm:$0xff]
    %v3068 = vld [vmem:[#allocation7 + $0x1238] sm:$0xff]
    %v3069 = vld [vmem:[#allocation7 + $0x1240] sm:$0xff]
    %v3070 = vld [vmem:[#allocation7 + $0x1248] sm:$0xff]
    %v3071 = vld [vmem:[#allocation7 + $0x1250] sm:$0xff]
    %v3072 = vld [vmem:[#allocation7 + $0x1258] sm:$0xff]
    %v3073 = vld [vmem:[#allocation7 + $0x1260] sm:$0xff]
    %v3074 = vld [vmem:[#allocation7 + $0x1268] sm:$0xff]
    %v3075 = vld [vmem:[#allocation7 + $0x1270] sm:$0xff]
    %v3076 = vld [vmem:[#allocation7 + $0x1278] sm:$0xff]
    %v3077 = vld [vmem:[#allocation7 + $0x1280] sm:$0xff]
    %v3078 = vld [vmem:[#allocation7 + $0x1288] sm:$0xff]
    %v3079 = vld [vmem:[#allocation7 + $0x1290] sm:$0xff]
    %v3080 = vld [vmem:[#allocation7 + $0x1298] sm:$0xff]
    %v3081 = vld [vmem:[#allocation7 + $0x12a0] sm:$0xff]
    %v3082 = vld [vmem:[#allocation7 + $0x12a8] sm:$0xff]
    %v3083 = vld [vmem:[#allocation7 + $0x12b0] sm:$0xff]
    %v3084 = vld [vmem:[#allocation7 + $0x12b8] sm:$0xff]
    %v3085 = vld [vmem:[#allocation7 + $0x12c0] sm:$0xff]
    %v3086 = vld [vmem:[#allocation7 + $0x12c8] sm:$0xff]
    %v3087 = vld [vmem:[#allocation7 + $0x12d0] sm:$0xff]
    %v3088 = vld [vmem:[#allocation7 + $0x12d8] sm:$0xff]
    %v3089 = vld [vmem:[#allocation7 + $0x12e0] sm:$0xff]
    %v3090 = vld [vmem:[#allocation7 + $0x12e8] sm:$0xff]
    %v3091 = vld [vmem:[#allocation7 + $0x12f0] sm:$0xff]
    %v3092 = vld [vmem:[#allocation7 + $0x12f8] sm:$0xff]
    %v3093 = vld [vmem:[#allocation7 + $0x1300] sm:$0xff]
    %v3094 = vld [vmem:[#allocation7 + $0x1308] sm:$0xff]
    %v3095 = vld [vmem:[#allocation7 + $0x1310] sm:$0xff]
    %v3096 = vld [vmem:[#allocation7 + $0x1318] sm:$0xff]
    %v3097 = vld [vmem:[#allocation7 + $0x1320] sm:$0xff]
    %v3098 = vld [vmem:[#allocation7 + $0x1328] sm:$0xff]
    %v3099 = vld [vmem:[#allocation7 + $0x1330] sm:$0xff]
    %v3100 = vld [vmem:[#allocation7 + $0x1338] sm:$0xff]
    %v3101 = vld [vmem:[#allocation7 + $0x1340] sm:$0xff]
    %v3102 = vld [vmem:[#allocation7 + $0x1348] sm:$0xff]
    %v3103 = vld [vmem:[#allocation7 + $0x1350] sm:$0xff]
    %v3104 = vld [vmem:[#allocation7 + $0x1358] sm:$0xff]
    %v3105 = vld [vmem:[#allocation7 + $0x1360] sm:$0xff]
    %v3106 = vld [vmem:[#allocation7 + $0x1368] sm:$0xff]
    %v3107 = vld [vmem:[#allocation7 + $0x1370] sm:$0xff]
    %v3108 = vld [vmem:[#allocation7 + $0x1378] sm:$0xff]
    %v3109 = vld [vmem:[#allocation7 + $0x1380] sm:$0xff]
    %v3110 = vld [vmem:[#allocation7 + $0x1388] sm:$0xff]
    %v3111 = vld [vmem:[#allocation7 + $0x1390] sm:$0xff]
    %v3112 = vld [vmem:[#allocation7 + $0x1398] sm:$0xff]
    %v3113 = vld [vmem:[#allocation7 + $0x13a0] sm:$0xff]
    %v3114 = vld [vmem:[#allocation7 + $0x13a8] sm:$0xff]
    %v3115 = vld [vmem:[#allocation7 + $0x13b0] sm:$0xff]
    %v3116 = vld [vmem:[#allocation7 + $0x13b8] sm:$0xff]
    %v3117 = vld [vmem:[#allocation7 + $0x13c0] sm:$0xff]
    %v3118 = vld [vmem:[#allocation7 + $0x13c8] sm:$0xff]
    %v3119 = vld [vmem:[#allocation7 + $0x13d0] sm:$0xff]
    %v3120 = vld [vmem:[#allocation7 + $0x13d8] sm:$0xff]
    %v3121 = vld [vmem:[#allocation7 + $0x13e0] sm:$0xff]
    %v3122 = vld [vmem:[#allocation7 + $0x13e8] sm:$0xff]
    %v3123 = vld [vmem:[#allocation7 + $0x13f0] sm:$0xff]
    %v3124 = vld [vmem:[#allocation7 + $0x13f8] sm:$0xff]
    %v3125 = vld [vmem:[#allocation7 + $0x1400] sm:$0xff]
    %v3126 = vld [vmem:[#allocation7 + $0x1408] sm:$0xff]
    %v3127 = vld [vmem:[#allocation7 + $0x1410] sm:$0xff]
    %v3128 = vld [vmem:[#allocation7 + $0x1418] sm:$0xff]
    %v3129 = vld [vmem:[#allocation7 + $0x1420] sm:$0xff]
    %v3130 = vld [vmem:[#allocation7 + $0x1428] sm:$0xff]
    %v3131 = vld [vmem:[#allocation7 + $0x1430] sm:$0xff]
    %v3132 = vld [vmem:[#allocation7 + $0x1438] sm:$0xff]
    %v3133 = vld [vmem:[#allocation7 + $0x1440] sm:$0xff]
    %v3134 = vld [vmem:[#allocation7 + $0x1448] sm:$0xff]
    %v3135 = vld [vmem:[#allocation7 + $0x1450] sm:$0xff]
    %v3136 = vld [vmem:[#allocation7 + $0x1458] sm:$0xff]
    %v3137 = vld [vmem:[#allocation7 + $0x1460] sm:$0xff]
    %v3138 = vld [vmem:[#allocation7 + $0x1468] sm:$0xff]
    %v3139 = vld [vmem:[#allocation7 + $0x1470] sm:$0xff]
    %v3140 = vld [vmem:[#allocation7 + $0x1478] sm:$0xff]
    %v3141 = vld [vmem:[#allocation7 + $0x1480] sm:$0xff]
    %v3142 = vld [vmem:[#allocation7 + $0x1488] sm:$0xff]
    %v3143 = vld [vmem:[#allocation7 + $0x1490] sm:$0xff]
    %v3144 = vld [vmem:[#allocation7 + $0x1498] sm:$0xff]
    %v3145 = vld [vmem:[#allocation7 + $0x14a0] sm:$0xff]
    %v3146 = vld [vmem:[#allocation7 + $0x14a8] sm:$0xff]
    %v3147 = vld [vmem:[#allocation7 + $0x14b0] sm:$0xff]
    %v3148 = vld [vmem:[#allocation7 + $0x14b8] sm:$0xff]
    %v3149 = vld [vmem:[#allocation7 + $0x14c0] sm:$0xff]
    %v3150 = vld [vmem:[#allocation7 + $0x14c8] sm:$0xff]
    %v3151 = vld [vmem:[#allocation7 + $0x14d0] sm:$0xff]
    %v3152 = vld [vmem:[#allocation7 + $0x14d8] sm:$0xff]
    %v3153 = vld [vmem:[#allocation7 + $0x14e0] sm:$0xff]
    %v3154 = vld [vmem:[#allocation7 + $0x14e8] sm:$0xff]
    %v3155 = vld [vmem:[#allocation7 + $0x14f0] sm:$0xff]
    %v3156 = vld [vmem:[#allocation7 + $0x14f8] sm:$0xff]
    %v3157 = vld [vmem:[#allocation7 + $0x1500] sm:$0xff]
    %v3158 = vld [vmem:[#allocation7 + $0x1508] sm:$0xff]
    %v3159 = vld [vmem:[#allocation7 + $0x1510] sm:$0xff]
    %v3160 = vld [vmem:[#allocation7 + $0x1518] sm:$0xff]
    %v3161 = vld [vmem:[#allocation7 + $0x1520] sm:$0xff]
    %v3162 = vld [vmem:[#allocation7 + $0x1528] sm:$0xff]
    %v3163 = vld [vmem:[#allocation7 + $0x1530] sm:$0xff]
    %v3164 = vld [vmem:[#allocation7 + $0x1538] sm:$0xff]
    %v3165 = vld [vmem:[#allocation7 + $0x1540] sm:$0xff]
    %v3166 = vld [vmem:[#allocation7 + $0x1548] sm:$0xff]
    %v3167 = vld [vmem:[#allocation7 + $0x1550] sm:$0xff]
    %v3168 = vld [vmem:[#allocation7 + $0x1558] sm:$0xff]
    %v3169 = vld [vmem:[#allocation7 + $0x1560] sm:$0xff]
    %v3170 = vld [vmem:[#allocation7 + $0x1568] sm:$0xff]
    %v3171 = vld [vmem:[#allocation7 + $0x1570] sm:$0xff]
    %v3172 = vld [vmem:[#allocation7 + $0x1578] sm:$0xff]
    %v3173 = vld [vmem:[#allocation7 + $0x1580] sm:$0xff]
    %v3174 = vld [vmem:[#allocation7 + $0x1588] sm:$0xff]
    %v3175 = vld [vmem:[#allocation7 + $0x1590] sm:$0xff]
    %v3176 = vld [vmem:[#allocation7 + $0x1598] sm:$0xff]
    %v3177 = vld [vmem:[#allocation7 + $0x15a0] sm:$0xff]
    %v3178 = vld [vmem:[#allocation7 + $0x15a8] sm:$0xff]
    %v3179 = vld [vmem:[#allocation7 + $0x15b0] sm:$0xff]
    %v3180 = vld [vmem:[#allocation7 + $0x15b8] sm:$0xff]
    %v3181 = vld [vmem:[#allocation7 + $0x15c0] sm:$0xff]
    %v3182 = vld [vmem:[#allocation7 + $0x15c8] sm:$0xff]
    %v3183 = vld [vmem:[#allocation7 + $0x15d0] sm:$0xff]
    %v3184 = vld [vmem:[#allocation7 + $0x15d8] sm:$0xff]
    %v3185 = vld [vmem:[#allocation7 + $0x15e0] sm:$0xff]
    %v3186 = vld [vmem:[#allocation7 + $0x15e8] sm:$0xff]
    %v3187 = vld [vmem:[#allocation7 + $0x15f0] sm:$0xff]
    %v3188 = vld [vmem:[#allocation7 + $0x15f8] sm:$0xff]
    %v3189 = vld [vmem:[#allocation7 + $0x1600] sm:$0xff]
    %v3190 = vld [vmem:[#allocation7 + $0x1608] sm:$0xff]
    %v3191 = vld [vmem:[#allocation7 + $0x1610] sm:$0xff]
    %v3192 = vld [vmem:[#allocation7 + $0x1618] sm:$0xff]
    %v3193 = vld [vmem:[#allocation7 + $0x1620] sm:$0xff]
    %v3194 = vld [vmem:[#allocation7 + $0x1628] sm:$0xff]
    %v3195 = vld [vmem:[#allocation7 + $0x1630] sm:$0xff]
    %v3196 = vld [vmem:[#allocation7 + $0x1638] sm:$0xff]
    %v3197 = vld [vmem:[#allocation7 + $0x1640] sm:$0xff]
    %v3198 = vld [vmem:[#allocation7 + $0x1648] sm:$0xff]
    %v3199 = vld [vmem:[#allocation7 + $0x1650] sm:$0xff]
    %v3200 = vld [vmem:[#allocation7 + $0x1658] sm:$0xff]
    %v3201 = vld [vmem:[#allocation7 + $0x1660] sm:$0xff]
    %v3202 = vld [vmem:[#allocation7 + $0x1668] sm:$0xff]
    %v3203 = vld [vmem:[#allocation7 + $0x1670] sm:$0xff]
    %v3204 = vld [vmem:[#allocation7 + $0x1678] sm:$0xff]
    %v3205 = vld [vmem:[#allocation7 + $0x1680] sm:$0xff]
    %v3206 = vld [vmem:[#allocation7 + $0x1688] sm:$0xff]
    %v3207 = vld [vmem:[#allocation7 + $0x1690] sm:$0xff]
    %v3208 = vld [vmem:[#allocation7 + $0x1698] sm:$0xff]
    %v3209 = vld [vmem:[#allocation7 + $0x16a0] sm:$0xff]
    %v3210 = vld [vmem:[#allocation7 + $0x16a8] sm:$0xff]
    %v3211 = vld [vmem:[#allocation7 + $0x16b0] sm:$0xff]
    %v3212 = vld [vmem:[#allocation7 + $0x16b8] sm:$0xff]
    %v3213 = vld [vmem:[#allocation7 + $0x16c0] sm:$0xff]
    %v3214 = vld [vmem:[#allocation7 + $0x16c8] sm:$0xff]
    %v3215 = vld [vmem:[#allocation7 + $0x16d0] sm:$0xff]
    %v3216 = vld [vmem:[#allocation7 + $0x16d8] sm:$0xff]
    %v3217 = vld [vmem:[#allocation7 + $0x16e0] sm:$0xff]
    %v3218 = vld [vmem:[#allocation7 + $0x16e8] sm:$0xff]
    %v3219 = vld [vmem:[#allocation7 + $0x16f0] sm:$0xff]
    %v3220 = vld [vmem:[#allocation7 + $0x16f8] sm:$0xff]
    %v3221 = vld [vmem:[#allocation7 + $0x1700] sm:$0xff]
    %v3222 = vld [vmem:[#allocation7 + $0x1708] sm:$0xff]
    %v3223 = vld [vmem:[#allocation7 + $0x1710] sm:$0xff]
    %v3224 = vld [vmem:[#allocation7 + $0x1718] sm:$0xff]
    %v3225 = vld [vmem:[#allocation7 + $0x1720] sm:$0xff]
    %v3226 = vld [vmem:[#allocation7 + $0x1728] sm:$0xff]
    %v3227 = vld [vmem:[#allocation7 + $0x1730] sm:$0xff]
    %v3228 = vld [vmem:[#allocation7 + $0x1738] sm:$0xff]
    %v3229 = vld [vmem:[#allocation7 + $0x1740] sm:$0xff]
    %v3230 = vld [vmem:[#allocation7 + $0x1748] sm:$0xff]
    %v3231 = vld [vmem:[#allocation7 + $0x1750] sm:$0xff]
    %v3232 = vld [vmem:[#allocation7 + $0x1758] sm:$0xff]
    %v3233 = vld [vmem:[#allocation7 + $0x1760] sm:$0xff]
    %v3234 = vld [vmem:[#allocation7 + $0x1768] sm:$0xff]
    %v3235 = vld [vmem:[#allocation7 + $0x1770] sm:$0xff]
    %v3236 = vld [vmem:[#allocation7 + $0x1778] sm:$0xff]
    %v3237 = vld [vmem:[#allocation7 + $0x1780] sm:$0xff]
    %v3238 = vld [vmem:[#allocation7 + $0x1788] sm:$0xff]
    %v3239 = vld [vmem:[#allocation7 + $0x1790] sm:$0xff]
    %v3240 = vld [vmem:[#allocation7 + $0x1798] sm:$0xff]
    %v3241 = vld [vmem:[#allocation7 + $0x17a0] sm:$0xff]
    %v3242 = vld [vmem:[#allocation7 + $0x17a8] sm:$0xff]
    %v3243 = vld [vmem:[#allocation7 + $0x17b0] sm:$0xff]
    %v3244 = vld [vmem:[#allocation7 + $0x17b8] sm:$0xff]
    %v3245 = vld [vmem:[#allocation7 + $0x17c0] sm:$0xff]
    %v3246 = vld [vmem:[#allocation7 + $0x17c8] sm:$0xff]
    %v3247 = vld [vmem:[#allocation7 + $0x17d0] sm:$0xff]
    %v3248 = vld [vmem:[#allocation7 + $0x17d8] sm:$0xff]
    %v3249 = vld [vmem:[#allocation7 + $0x17e0] sm:$0xff]
    %v3250 = vld [vmem:[#allocation7 + $0x17e8] sm:$0xff]
    %v3251 = vld [vmem:[#allocation7 + $0x17f0] sm:$0xff]
    %v3252 = vld [vmem:[#allocation7 + $0x17f8] sm:$0xff]
    %v3253 = vld [vmem:[#allocation7 + $0x1800] sm:$0xff]
    %v3254 = vld [vmem:[#allocation7 + $0x1808] sm:$0xff]
    %v3255 = vld [vmem:[#allocation7 + $0x1810] sm:$0xff]
    %v3256 = vld [vmem:[#allocation7 + $0x1818] sm:$0xff]
    %v3257 = vld [vmem:[#allocation7 + $0x1820] sm:$0xff]
    %v3258 = vld [vmem:[#allocation7 + $0x1828] sm:$0xff]
    %v3259 = vld [vmem:[#allocation7 + $0x1830] sm:$0xff]
    %v3260 = vld [vmem:[#allocation7 + $0x1838] sm:$0xff]
    %v3261 = vld [vmem:[#allocation7 + $0x1840] sm:$0xff]
    %v3262 = vld [vmem:[#allocation7 + $0x1848] sm:$0xff]
    %v3263 = vld [vmem:[#allocation7 + $0x1850] sm:$0xff]
    %v3264 = vld [vmem:[#allocation7 + $0x1858] sm:$0xff]
    %v3265 = vld [vmem:[#allocation7 + $0x1860] sm:$0xff]
    %v3266 = vld [vmem:[#allocation7 + $0x1868] sm:$0xff]
    %v3267 = vld [vmem:[#allocation7 + $0x1870] sm:$0xff]
    %v3268 = vld [vmem:[#allocation7 + $0x1878] sm:$0xff]
    %v3269 = vld [vmem:[#allocation7 + $0x1880] sm:$0xff]
    %v3270 = vld [vmem:[#allocation7 + $0x1888] sm:$0xff]
    %v3271 = vld [vmem:[#allocation7 + $0x1890] sm:$0xff]
    %v3272 = vld [vmem:[#allocation7 + $0x1898] sm:$0xff]
    %v3273 = vld [vmem:[#allocation7 + $0x18a0] sm:$0xff]
    %v3274 = vld [vmem:[#allocation7 + $0x18a8] sm:$0xff]
    %v3275 = vld [vmem:[#allocation7 + $0x18b0] sm:$0xff]
    %v3276 = vld [vmem:[#allocation7 + $0x18b8] sm:$0xff]
    %v3277 = vld [vmem:[#allocation7 + $0x18c0] sm:$0xff]
    %v3278 = vld [vmem:[#allocation7 + $0x18c8] sm:$0xff]
    %v3279 = vld [vmem:[#allocation7 + $0x18d0] sm:$0xff]
    %v3280 = vld [vmem:[#allocation7 + $0x18d8] sm:$0xff]
    %v3281 = vld [vmem:[#allocation7 + $0x18e0] sm:$0xff]
    %v3282 = vld [vmem:[#allocation7 + $0x18e8] sm:$0xff]
    %v3283 = vld [vmem:[#allocation7 + $0x18f0] sm:$0xff]
    %v3284 = vld [vmem:[#allocation7 + $0x18f8] sm:$0xff]
    %v3285 = vld [vmem:[#allocation7 + $0x1900] sm:$0xff]
    %v3286 = vld [vmem:[#allocation7 + $0x1908] sm:$0xff]
    %v3287 = vld [vmem:[#allocation7 + $0x1910] sm:$0xff]
    %v3288 = vld [vmem:[#allocation7 + $0x1918] sm:$0xff]
    %v3289 = vld [vmem:[#allocation7 + $0x1920] sm:$0xff]
    %v3290 = vld [vmem:[#allocation7 + $0x1928] sm:$0xff]
    %v3291 = vld [vmem:[#allocation7 + $0x1930] sm:$0xff]
    %v3292 = vld [vmem:[#allocation7 + $0x1938] sm:$0xff]
    %v3293 = vld [vmem:[#allocation7 + $0x1940] sm:$0xff]
    %v3294 = vld [vmem:[#allocation7 + $0x1948] sm:$0xff]
    %v3295 = vld [vmem:[#allocation7 + $0x1950] sm:$0xff]
    %v3296 = vld [vmem:[#allocation7 + $0x1958] sm:$0xff]
    %v3297 = vld [vmem:[#allocation7 + $0x1960] sm:$0xff]
    %v3298 = vld [vmem:[#allocation7 + $0x1968] sm:$0xff]
    %v3299 = vld [vmem:[#allocation7 + $0x1970] sm:$0xff]
    %v3300 = vld [vmem:[#allocation7 + $0x1978] sm:$0xff]
    %v3301 = vld [vmem:[#allocation7 + $0x1980] sm:$0xff]
    %v3302 = vld [vmem:[#allocation7 + $0x1988] sm:$0xff]
    %v3303 = vld [vmem:[#allocation7 + $0x1990] sm:$0xff]
    %v3304 = vld [vmem:[#allocation7 + $0x1998] sm:$0xff]
    %v3305 = vld [vmem:[#allocation7 + $0x19a0] sm:$0xff]
    %v3306 = vld [vmem:[#allocation7 + $0x19a8] sm:$0xff]
    %v3307 = vld [vmem:[#allocation7 + $0x19b0] sm:$0xff]
    %v3308 = vld [vmem:[#allocation7 + $0x19b8] sm:$0xff]
    %v3309 = vld [vmem:[#allocation7 + $0x19c0] sm:$0xff]
    %v3310 = vld [vmem:[#allocation7 + $0x19c8] sm:$0xff]
    %v3311 = vld [vmem:[#allocation7 + $0x19d0] sm:$0xff]
    %v3312 = vld [vmem:[#allocation7 + $0x19d8] sm:$0xff]
    %v3313 = vld [vmem:[#allocation7 + $0x19e0] sm:$0xff]
    %v3314 = vld [vmem:[#allocation7 + $0x19e8] sm:$0xff]
    %v3315 = vld [vmem:[#allocation7 + $0x19f0] sm:$0xff]
    %v3316 = vld [vmem:[#allocation7 + $0x19f8] sm:$0xff]
    %v3317 = vld [vmem:[#allocation7 + $0x1a00] sm:$0xff]
    %v3318 = vld [vmem:[#allocation7 + $0x1a08] sm:$0xff]
    %v3319 = vld [vmem:[#allocation7 + $0x1a10] sm:$0xff]
    %v3320 = vld [vmem:[#allocation7 + $0x1a18] sm:$0xff]
    %v3321 = vld [vmem:[#allocation7 + $0x1a20] sm:$0xff]
    %v3322 = vld [vmem:[#allocation7 + $0x1a28] sm:$0xff]
    %v3323 = vld [vmem:[#allocation7 + $0x1a30] sm:$0xff]
    %v3324 = vld [vmem:[#allocation7 + $0x1a38] sm:$0xff]
    %v3325 = vld [vmem:[#allocation7 + $0x1a40] sm:$0xff]
    %v3326 = vld [vmem:[#allocation7 + $0x1a48] sm:$0xff]
    %v3327 = vld [vmem:[#allocation7 + $0x1a50] sm:$0xff]
    %v3328 = vld [vmem:[#allocation7 + $0x1a58] sm:$0xff]
    %v3329 = vld [vmem:[#allocation7 + $0x1a60] sm:$0xff]
    %v3330 = vld [vmem:[#allocation7 + $0x1a68] sm:$0xff]
    %v3331 = vld [vmem:[#allocation7 + $0x1a70] sm:$0xff]
    %v3332 = vld [vmem:[#allocation7 + $0x1a78] sm:$0xff]
    %v3333 = vld [vmem:[#allocation7 + $0x1a80] sm:$0xff]
    %v3334 = vld [vmem:[#allocation7 + $0x1a88] sm:$0xff]
    %v3335 = vld [vmem:[#allocation7 + $0x1a90] sm:$0xff]
    %v3336 = vld [vmem:[#allocation7 + $0x1a98] sm:$0xff]
    %v3337 = vld [vmem:[#allocation7 + $0x1aa0] sm:$0xff]
    %v3338 = vld [vmem:[#allocation7 + $0x1aa8] sm:$0xff]
    %v3339 = vld [vmem:[#allocation7 + $0x1ab0] sm:$0xff]
    %v3340 = vld [vmem:[#allocation7 + $0x1ab8] sm:$0xff]
    %v3341 = vld [vmem:[#allocation7 + $0x1ac0] sm:$0xff]
    %v3342 = vld [vmem:[#allocation7 + $0x1ac8] sm:$0xff]
    %v3343 = vld [vmem:[#allocation7 + $0x1ad0] sm:$0xff]
    %v3344 = vld [vmem:[#allocation7 + $0x1ad8] sm:$0xff]
    %v3345 = vld [vmem:[#allocation7 + $0x1ae0] sm:$0xff]
    %v3346 = vld [vmem:[#allocation7 + $0x1ae8] sm:$0xff]
    %v3347 = vld [vmem:[#allocation7 + $0x1af0] sm:$0xff]
    %v3348 = vld [vmem:[#allocation7 + $0x1af8] sm:$0xff]
    %v3349 = vld [vmem:[#allocation7 + $0x1b00] sm:$0xff]
    %v3350 = vld [vmem:[#allocation7 + $0x1b08] sm:$0xff]
    %v3351 = vld [vmem:[#allocation7 + $0x1b10] sm:$0xff]
    %v3352 = vld [vmem:[#allocation7 + $0x1b18] sm:$0xff]
    %v3353 = vld [vmem:[#allocation7 + $0x1b20] sm:$0xff]
    %v3354 = vld [vmem:[#allocation7 + $0x1b28] sm:$0xff]
    %v3355 = vld [vmem:[#allocation7 + $0x1b30] sm:$0xff]
    %v3356 = vld [vmem:[#allocation7 + $0x1b38] sm:$0xff]
    %v3357 = vld [vmem:[#allocation7 + $0x1b40] sm:$0xff]
    %v3358 = vld [vmem:[#allocation7 + $0x1b48] sm:$0xff]
    %v3359 = vld [vmem:[#allocation7 + $0x1b50] sm:$0xff]
    %v3360 = vld [vmem:[#allocation7 + $0x1b58] sm:$0xff]
    %v3361 = vld [vmem:[#allocation7 + $0x1b60] sm:$0xff]
    %v3362 = vld [vmem:[#allocation7 + $0x1b68] sm:$0xff]
    %v3363 = vld [vmem:[#allocation7 + $0x1b70] sm:$0xff]
    %v3364 = vld [vmem:[#allocation7 + $0x1b78] sm:$0xff]
    %v3365 = vld [vmem:[#allocation7 + $0x1b80] sm:$0xff]
    %v3366 = vld [vmem:[#allocation7 + $0x1b88] sm:$0xff]
    %v3367 = vld [vmem:[#allocation7 + $0x1b90] sm:$0xff]
    %v3368 = vld [vmem:[#allocation7 + $0x1b98] sm:$0xff]
    %v3369 = vld [vmem:[#allocation7 + $0x1ba0] sm:$0xff]
    %v3370 = vld [vmem:[#allocation7 + $0x1ba8] sm:$0xff]
    %v3371 = vld [vmem:[#allocation7 + $0x1bb0] sm:$0xff]
    %v3372 = vld [vmem:[#allocation7 + $0x1bb8] sm:$0xff]
    %v3373 = vld [vmem:[#allocation7 + $0x1bc0] sm:$0xff]
    %v3374 = vld [vmem:[#allocation7 + $0x1bc8] sm:$0xff]
    %v3375 = vld [vmem:[#allocation7 + $0x1bd0] sm:$0xff]
    %v3376 = vld [vmem:[#allocation7 + $0x1bd8] sm:$0xff]
    %v3377 = vld [vmem:[#allocation7 + $0x1be0] sm:$0xff]
    %v3378 = vld [vmem:[#allocation7 + $0x1be8] sm:$0xff]
    %v3379 = vld [vmem:[#allocation7 + $0x1bf0] sm:$0xff]
    %v3380 = vld [vmem:[#allocation7 + $0x1bf8] sm:$0xff]
    %v3381 = vld [vmem:[#allocation7 + $0x1c00] sm:$0xff]
    %v3382 = vld [vmem:[#allocation7 + $0x1c08] sm:$0xff]
    %v3383 = vld [vmem:[#allocation7 + $0x1c10] sm:$0xff]
    %v3384 = vld [vmem:[#allocation7 + $0x1c18] sm:$0xff]
    %v3385 = vld [vmem:[#allocation7 + $0x1c20] sm:$0xff]
    %v3386 = vld [vmem:[#allocation7 + $0x1c28] sm:$0xff]
    %v3387 = vld [vmem:[#allocation7 + $0x1c30] sm:$0xff]
    %v3388 = vld [vmem:[#allocation7 + $0x1c38] sm:$0xff]
    %v3389 = vld [vmem:[#allocation7 + $0x1c40] sm:$0xff]
    %v3390 = vld [vmem:[#allocation7 + $0x1c48] sm:$0xff]
    %v3391 = vld [vmem:[#allocation7 + $0x1c50] sm:$0xff]
    %v3392 = vld [vmem:[#allocation7 + $0x1c58] sm:$0xff]
    %v3393 = vld [vmem:[#allocation7 + $0x1c60] sm:$0xff]
    %v3394 = vld [vmem:[#allocation7 + $0x1c68] sm:$0xff]
    %v3395 = vld [vmem:[#allocation7 + $0x1c70] sm:$0xff]
    %v3396 = vld [vmem:[#allocation7 + $0x1c78] sm:$0xff]
    %v3397 = vld [vmem:[#allocation7 + $0x1c80] sm:$0xff]
    %v3398 = vld [vmem:[#allocation7 + $0x1c88] sm:$0xff]
    %v3399 = vld [vmem:[#allocation7 + $0x1c90] sm:$0xff]
    %v3400 = vld [vmem:[#allocation7 + $0x1c98] sm:$0xff]
    %v3401 = vld [vmem:[#allocation7 + $0x1ca0] sm:$0xff]
    %v3402 = vld [vmem:[#allocation7 + $0x1ca8] sm:$0xff]
    %v3403 = vld [vmem:[#allocation7 + $0x1cb0] sm:$0xff]
    %v3404 = vld [vmem:[#allocation7 + $0x1cb8] sm:$0xff]
    %v3405 = vld [vmem:[#allocation7 + $0x1cc0] sm:$0xff]
    %v3406 = vld [vmem:[#allocation7 + $0x1cc8] sm:$0xff]
    %v3407 = vld [vmem:[#allocation7 + $0x1cd0] sm:$0xff]
    %v3408 = vld [vmem:[#allocation7 + $0x1cd8] sm:$0xff]
    %v3409 = vld [vmem:[#allocation7 + $0x1ce0] sm:$0xff]
    %v3410 = vld [vmem:[#allocation7 + $0x1ce8] sm:$0xff]
    %v3411 = vld [vmem:[#allocation7 + $0x1cf0] sm:$0xff]
    %v3412 = vld [vmem:[#allocation7 + $0x1cf8] sm:$0xff]
    %v3413 = vld [vmem:[#allocation7 + $0x1d00] sm:$0xff]
    %v3414 = vld [vmem:[#allocation7 + $0x1d08] sm:$0xff]
    %v3415 = vld [vmem:[#allocation7 + $0x1d10] sm:$0xff]
    %v3416 = vld [vmem:[#allocation7 + $0x1d18] sm:$0xff]
    %v3417 = vld [vmem:[#allocation7 + $0x1d20] sm:$0xff]
    %v3418 = vld [vmem:[#allocation7 + $0x1d28] sm:$0xff]
    %v3419 = vld [vmem:[#allocation7 + $0x1d30] sm:$0xff]
    %v3420 = vld [vmem:[#allocation7 + $0x1d38] sm:$0xff]
    %v3421 = vld [vmem:[#allocation7 + $0x1d40] sm:$0xff]
    %v3422 = vld [vmem:[#allocation7 + $0x1d48] sm:$0xff]
    %v3423 = vld [vmem:[#allocation7 + $0x1d50] sm:$0xff]
    %v3424 = vld [vmem:[#allocation7 + $0x1d58] sm:$0xff]
    %v3425 = vld [vmem:[#allocation7 + $0x1d60] sm:$0xff]
    %v3426 = vld [vmem:[#allocation7 + $0x1d68] sm:$0xff]
    %v3427 = vld [vmem:[#allocation7 + $0x1d70] sm:$0xff]
    %v3428 = vld [vmem:[#allocation7 + $0x1d78] sm:$0xff]
    %v3429 = vld [vmem:[#allocation7 + $0x1d80] sm:$0xff]
    %v3430 = vld [vmem:[#allocation7 + $0x1d88] sm:$0xff]
    %v3431 = vld [vmem:[#allocation7 + $0x1d90] sm:$0xff]
    %v3432 = vld [vmem:[#allocation7 + $0x1d98] sm:$0xff]
    %v3433 = vld [vmem:[#allocation7 + $0x1da0] sm:$0xff]
    %v3434 = vld [vmem:[#allocation7 + $0x1da8] sm:$0xff]
    %v3435 = vld [vmem:[#allocation7 + $0x1db0] sm:$0xff]
    %v3436 = vld [vmem:[#allocation7 + $0x1db8] sm:$0xff]
    %v3437 = vld [vmem:[#allocation7 + $0x1dc0] sm:$0xff]
    %v3438 = vld [vmem:[#allocation7 + $0x1dc8] sm:$0xff]
    %v3439 = vld [vmem:[#allocation7 + $0x1dd0] sm:$0xff]
    %v3440 = vld [vmem:[#allocation7 + $0x1dd8] sm:$0xff]
    %v3441 = vld [vmem:[#allocation7 + $0x1de0] sm:$0xff]
    %v3442 = vld [vmem:[#allocation7 + $0x1de8] sm:$0xff]
    %v3443 = vld [vmem:[#allocation7 + $0x1df0] sm:$0xff]
    %v3444 = vld [vmem:[#allocation7 + $0x1df8] sm:$0xff]
    %v3445 = vld [vmem:[#allocation7 + $0x1e00] sm:$0xff]
    %v3446 = vld [vmem:[#allocation7 + $0x1e08] sm:$0xff]
    %v3447 = vld [vmem:[#allocation7 + $0x1e10] sm:$0xff]
    %v3448 = vld [vmem:[#allocation7 + $0x1e18] sm:$0xff]
    %v3449 = vld [vmem:[#allocation7 + $0x1e20] sm:$0xff]
    %v3450 = vld [vmem:[#allocation7 + $0x1e28] sm:$0xff]
    %v3451 = vld [vmem:[#allocation7 + $0x1e30] sm:$0xff]
    %v3452 = vld [vmem:[#allocation7 + $0x1e38] sm:$0xff]
    %v3453 = vld [vmem:[#allocation7 + $0x1e40] sm:$0xff]
    %v3454 = vld [vmem:[#allocation7 + $0x1e48] sm:$0xff]
    %v3455 = vld [vmem:[#allocation7 + $0x1e50] sm:$0xff]
    %v3456 = vld [vmem:[#allocation7 + $0x1e58] sm:$0xff]
    %v3457 = vld [vmem:[#allocation7 + $0x1e60] sm:$0xff]
    %v3458 = vld [vmem:[#allocation7 + $0x1e68] sm:$0xff]
    %v3459 = vld [vmem:[#allocation7 + $0x1e70] sm:$0xff]
    %v3460 = vld [vmem:[#allocation7 + $0x1e78] sm:$0xff]
    %v3461 = vld [vmem:[#allocation7 + $0x1e80] sm:$0xff]
    %v3462 = vld [vmem:[#allocation7 + $0x1e88] sm:$0xff]
    %v3463 = vld [vmem:[#allocation7 + $0x1e90] sm:$0xff]
    %v3464 = vld [vmem:[#allocation7 + $0x1e98] sm:$0xff]
    %v3465 = vld [vmem:[#allocation7 + $0x1ea0] sm:$0xff]
    %v3466 = vld [vmem:[#allocation7 + $0x1ea8] sm:$0xff]
    %v3467 = vld [vmem:[#allocation7 + $0x1eb0] sm:$0xff]
    %v3468 = vld [vmem:[#allocation7 + $0x1eb8] sm:$0xff]
    %v3469 = vld [vmem:[#allocation7 + $0x1ec0] sm:$0xff]
    %v3470 = vld [vmem:[#allocation7 + $0x1ec8] sm:$0xff]
    %v3471 = vld [vmem:[#allocation7 + $0x1ed0] sm:$0xff]
    %v3472 = vld [vmem:[#allocation7 + $0x1ed8] sm:$0xff]
    %v3473 = vld [vmem:[#allocation7 + $0x1ee0] sm:$0xff]
    %v3474 = vld [vmem:[#allocation7 + $0x1ee8] sm:$0xff]
    %v3475 = vld [vmem:[#allocation7 + $0x1ef0] sm:$0xff]
    %v3476 = vld [vmem:[#allocation7 + $0x1ef8] sm:$0xff]
    %v3477 = vld [vmem:[#allocation7 + $0x1f00] sm:$0xff]
    %v3478 = vld [vmem:[#allocation7 + $0x1f08] sm:$0xff]
    %v3479 = vld [vmem:[#allocation7 + $0x1f10] sm:$0xff]
    %v3480 = vld [vmem:[#allocation7 + $0x1f18] sm:$0xff]
    %v3481 = vld [vmem:[#allocation7 + $0x1f20] sm:$0xff]
    %v3482 = vld [vmem:[#allocation7 + $0x1f28] sm:$0xff]
    %v3483 = vld [vmem:[#allocation7 + $0x1f30] sm:$0xff]
    %v3484 = vld [vmem:[#allocation7 + $0x1f38] sm:$0xff]
    %v3485 = vld [vmem:[#allocation7 + $0x1f40] sm:$0xff]
    %v3486 = vld [vmem:[#allocation7 + $0x1f48] sm:$0xff]
    %v3487 = vld [vmem:[#allocation7 + $0x1f50] sm:$0xff]
    %v3488 = vld [vmem:[#allocation7 + $0x1f58] sm:$0xff]
    %v3489 = vld [vmem:[#allocation7 + $0x1f60] sm:$0xff]
    %v3490 = vld [vmem:[#allocation7 + $0x1f68] sm:$0xff]
    %v3491 = vld [vmem:[#allocation7 + $0x1f70] sm:$0xff]
    %v3492 = vld [vmem:[#allocation7 + $0x1f78] sm:$0xff]
    %v3493 = vld [vmem:[#allocation7 + $0x1f80] sm:$0xff]
    %v3494 = vld [vmem:[#allocation7 + $0x1f88] sm:$0xff]
    %v3495 = vld [vmem:[#allocation7 + $0x1f90] sm:$0xff]
    %v3496 = vld [vmem:[#allocation7 + $0x1f98] sm:$0xff]
    %v3497 = vld [vmem:[#allocation7 + $0x1fa0] sm:$0xff]
    %v3498 = vld [vmem:[#allocation7 + $0x1fa8] sm:$0xff]
    %v3499 = vld [vmem:[#allocation7 + $0x1fb0] sm:$0xff]
    %v3500 = vld [vmem:[#allocation7 + $0x1fb8] sm:$0xff]
    %v3501 = vld [vmem:[#allocation7 + $0x1fc0] sm:$0xff]
    %v3502 = vld [vmem:[#allocation7 + $0x1fc8] sm:$0xff]
    %v3503 = vld [vmem:[#allocation7 + $0x1fd0] sm:$0xff]
    %v3504 = vld [vmem:[#allocation7 + $0x1fd8] sm:$0xff]
    %v3505 = vld [vmem:[#allocation7 + $0x1fe0] sm:$0xff]
    %v3506 = vld [vmem:[#allocation7 + $0x1fe8] sm:$0xff]
    %v3507 = vld [vmem:[#allocation7 + $0x1ff0] sm:$0xff]
    %v3508 = vld [vmem:[#allocation7 + $0x1ff8] sm:$0xff]
    %s3509 = scalar_lea.vmem [#allocation7], 8192
    %v3510 = vld [vmem:[%s3509] ss:$8 sm:$0xf]
    %v3511 = vld [vmem:[%s3509] ss:$8 sm:$0xf0]
    %v3512 = vor.u32 %v3510, %v3511
    %s3513 = scalar_lea.vmem [#allocation7], 8256
    %v3514 = vld [vmem:[%s3513] ss:$8 sm:$0xf]
    %v3515 = vld [vmem:[%s3513] ss:$8 sm:$0xf0]
    %v3516 = vor.u32 %v3514, %v3515
    %v3519 = vperm.slane %v3512, 0
    %v3520 = vperm.slane %v3512, 1
    %v3521 = vperm.slane %v3512, 2
    %v3522 = vperm.slane %v3512, 3
    %v3523 = vperm.slane %v3512, 4
    %v3524 = vperm.slane %v3512, 5
    %v3525 = vperm.slane %v3512, 6
    %v3526 = vperm.slane %v3512, 7
    %v3527 = vperm.slane %v3516, 0
    %v3528 = vperm.slane %v3516, 1
    %v3529 = vperm.slane %v3516, 2
    %v3530 = vperm.slane %v3516, 3
    %v3531 = vperm.slane %v3516, 4
    %v3532 = vperm.slane %v3516, 5
    %v3533 = vperm.slane %v3516, 6
    %v3534 = vperm.slane %v3516, 7
    %3551 = vmatpush.msra.mxu0 %v2725
    %3552 = vmatpush.msra.mxu0 %v2709
    %3553 = vmatpush.msra.mxu0 %v2693
    %3554 = vmatpush.msra.mxu0 %v2677
    %3555 = vmatpush.msra.mxu0 %v2661
    %3556 = vmatpush.msra.mxu0 %v2645
    %3557 = vmatpush.msra.mxu0 %v2629
    %3558 = vmatpush.msra.mxu0 %v2613
    %3559 = vmatpush.msra.mxu0 %v2597
    %3560 = vmatpush.msra.mxu0 %v2581
    %3561 = vmatpush.msra.mxu0 %v2565
    %3562 = vmatpush.msra.mxu0 %v2549
    %3563 = vmatpush.msra.mxu0 %v2533
    %3564 = vmatpush.msra.mxu0 %v2517
    %3565 = vmatpush.msra.mxu0 %v2501
    %3566 = vmatpush.msra.mxu0 %v2485
    %3567 = vmatmul.f32.gmra.mxu0 %v2481
    %v3568 = vpop.f32.mrf.mxu0
    %v3569 = vadd.f32 %v3519, %v3568
    %3570 = vdwg.mxu0
    %3571 = vmatpush.msra.mxu0 %v2981
    %3572 = vmatpush.msra.mxu0 %v2965
    %3573 = vmatpush.msra.mxu0 %v2949
    %3574 = vmatpush.msra.mxu0 %v2933
    %3575 = vmatpush.msra.mxu0 %v2917
    %3576 = vmatpush.msra.mxu0 %v2901
    %3577 = vmatpush.msra.mxu0 %v2885
    %3578 = vmatpush.msra.mxu0 %v2869
    %3579 = vmatpush.msra.mxu0 %v2853
    %3580 = vmatpush.msra.mxu0 %v2837
    %3581 = vmatpush.msra.mxu0 %v2821
    %3582 = vmatpush.msra.mxu0 %v2805
    %3583 = vmatpush.msra.mxu0 %v2789
    %3584 = vmatpush.msra.mxu0 %v2773
    %3585 = vmatpush.msra.mxu0 %v2757
    %3586 = vmatpush.msra.mxu0 %v2741
    %3587 = vmatmul.f32.gmra.mxu0 %v2482
    %v3588 = vpop.f32.mrf.mxu0
    %v3589 = vadd.f32 %v3569, %v3588
    %3590 = vdwg.mxu0
    %3591 = vmatpush.msra.mxu0 %v3237
    %3592 = vmatpush.msra.mxu0 %v3221
    %3593 = vmatpush.msra.mxu0 %v3205
    %3594 = vmatpush.msra.mxu0 %v3189
    %3595 = vmatpush.msra.mxu0 %v3173
    %3596 = vmatpush.msra.mxu0 %v3157
    %3597 = vmatpush.msra.mxu0 %v3141
    %3598 = vmatpush.msra.mxu0 %v3125
    %3599 = vmatpush.msra.mxu0 %v3109
    %3600 = vmatpush.msra.mxu0 %v3093
    %3601 = vmatpush.msra.mxu0 %v3077
    %3602 = vmatpush.msra.mxu0 %v3061
    %3603 = vmatpush.msra.mxu0 %v3045
    %3604 = vmatpush.msra.mxu0 %v3029
    %3605 = vmatpush.msra.mxu0 %v3013
    %3606 = vmatpush.msra.mxu0 %v2997
    %3607 = vmatmul.f32.gmra.mxu0 %v2483
    %v3608 = vpop.f32.mrf.mxu0
    %v3609 = vadd.f32 %v3589, %v3608
    %3610 = vdwg.mxu0
    %3611 = vmatpush.msra.mxu0 %v3493
    %3612 = vmatpush.msra.mxu0 %v3477
    %3613 = vmatpush.msra.mxu0 %v3461
    %3614 = vmatpush.msra.mxu0 %v3445
    %3615 = vmatpush.msra.mxu0 %v3429
    %3616 = vmatpush.msra.mxu0 %v3413
    %3617 = vmatpush.msra.mxu0 %v3397
    %3618 = vmatpush.msra.mxu0 %v3381
    %3619 = vmatpush.msra.mxu0 %v3365
    %3620 = vmatpush.msra.mxu0 %v3349
    %3621 = vmatpush.msra.mxu0 %v3333
    %3622 = vmatpush.msra.mxu0 %v3317
    %3623 = vmatpush.msra.mxu0 %v3301
    %3624 = vmatpush.msra.mxu0 %v3285
    %3625 = vmatpush.msra.mxu0 %v3269
    %3626 = vmatpush.msra.mxu0 %v3253
    %3627 = vmatmul.f32.gmra.mxu0 %v2484
    %v3628 = vpop.f32.mrf.mxu0
    %v3629 = vadd.f32 %v3609, %v3628
    %3630 = vdwg.mxu0
    %3631 = vmatpush.msra.mxu0 %v2726
    %3632 = vmatpush.msra.mxu0 %v2710
    %3633 = vmatpush.msra.mxu0 %v2694
    %3634 = vmatpush.msra.mxu0 %v2678
    %3635 = vmatpush.msra.mxu0 %v2662
    %3636 = vmatpush.msra.mxu0 %v2646
    %3637 = vmatpush.msra.mxu0 %v2630
    %3638 = vmatpush.msra.mxu0 %v2614
    %3639 = vmatpush.msra.mxu0 %v2598
    %3640 = vmatpush.msra.mxu0 %v2582
    %3641 = vmatpush.msra.mxu0 %v2566
    %3642 = vmatpush.msra.mxu0 %v2550
    %3643 = vmatpush.msra.mxu0 %v2534
    %3644 = vmatpush.msra.mxu0 %v2518
    %3645 = vmatpush.msra.mxu0 %v2502
    %3646 = vmatpush.msra.mxu0 %v2486
    %3647 = vmatmul.f32.gmra.mxu0 %v2481
    %v3648 = vpop.f32.mrf.mxu0
    %v3649 = vadd.f32 %v3520, %v3648
    %3650 = vdwg.mxu0
    %3651 = vmatpush.msra.mxu0 %v2982
    %3652 = vmatpush.msra.mxu0 %v2966
    %3653 = vmatpush.msra.mxu0 %v2950
    %3654 = vmatpush.msra.mxu0 %v2934
    %3655 = vmatpush.msra.mxu0 %v2918
    %3656 = vmatpush.msra.mxu0 %v2902
    %3657 = vmatpush.msra.mxu0 %v2886
    %3658 = vmatpush.msra.mxu0 %v2870
    %3659 = vmatpush.msra.mxu0 %v2854
    %3660 = vmatpush.msra.mxu0 %v2838
    %3661 = vmatpush.msra.mxu0 %v2822
    %3662 = vmatpush.msra.mxu0 %v2806
    %3663 = vmatpush.msra.mxu0 %v2790
    %3664 = vmatpush.msra.mxu0 %v2774
    %3665 = vmatpush.msra.mxu0 %v2758
    %3666 = vmatpush.msra.mxu0 %v2742
    %3667 = vmatmul.f32.gmra.mxu0 %v2482
    %v3668 = vpop.f32.mrf.mxu0
    %v3669 = vadd.f32 %v3649, %v3668
    %3670 = vdwg.mxu0
    %3671 = vmatpush.msra.mxu0 %v3238
    %3672 = vmatpush.msra.mxu0 %v3222
    %3673 = vmatpush.msra.mxu0 %v3206
    %3674 = vmatpush.msra.mxu0 %v3190
    %3675 = vmatpush.msra.mxu0 %v3174
    %3676 = vmatpush.msra.mxu0 %v3158
    %3677 = vmatpush.msra.mxu0 %v3142
    %3678 = vmatpush.msra.mxu0 %v3126
    %3679 = vmatpush.msra.mxu0 %v3110
    %3680 = vmatpush.msra.mxu0 %v3094
    %3681 = vmatpush.msra.mxu0 %v3078
    %3682 = vmatpush.msra.mxu0 %v3062
    %3683 = vmatpush.msra.mxu0 %v3046
    %3684 = vmatpush.msra.mxu0 %v3030
    %3685 = vmatpush.msra.mxu0 %v3014
    %3686 = vmatpush.msra.mxu0 %v2998
    %3687 = vmatmul.f32.gmra.mxu0 %v2483
    %v3688 = vpop.f32.mrf.mxu0
    %v3689 = vadd.f32 %v3669, %v3688
    %3690 = vdwg.mxu0
    %3691 = vmatpush.msra.mxu0 %v3494
    %3692 = vmatpush.msra.mxu0 %v3478
    %3693 = vmatpush.msra.mxu0 %v3462
    %3694 = vmatpush.msra.mxu0 %v3446
    %3695 = vmatpush.msra.mxu0 %v3430
    %3696 = vmatpush.msra.mxu0 %v3414
    %3697 = vmatpush.msra.mxu0 %v3398
    %3698 = vmatpush.msra.mxu0 %v3382
    %3699 = vmatpush.msra.mxu0 %v3366
    %3700 = vmatpush.msra.mxu0 %v3350
    %3701 = vmatpush.msra.mxu0 %v3334
    %3702 = vmatpush.msra.mxu0 %v3318
    %3703 = vmatpush.msra.mxu0 %v3302
    %3704 = vmatpush.msra.mxu0 %v3286
    %3705 = vmatpush.msra.mxu0 %v3270
    %3706 = vmatpush.msra.mxu0 %v3254
    %3707 = vmatmul.f32.gmra.mxu0 %v2484
    %v3708 = vpop.f32.mrf.mxu0
    %v3709 = vadd.f32 %v3689, %v3708
    %3710 = vdwg.mxu0
    %3711 = vmatpush.msra.mxu0 %v2727
    %3712 = vmatpush.msra.mxu0 %v2711
    %3713 = vmatpush.msra.mxu0 %v2695
    %3714 = vmatpush.msra.mxu0 %v2679
    %3715 = vmatpush.msra.mxu0 %v2663
    %3716 = vmatpush.msra.mxu0 %v2647
    %3717 = vmatpush.msra.mxu0 %v2631
    %3718 = vmatpush.msra.mxu0 %v2615
    %3719 = vmatpush.msra.mxu0 %v2599
    %3720 = vmatpush.msra.mxu0 %v2583
    %3721 = vmatpush.msra.mxu0 %v2567
    %3722 = vmatpush.msra.mxu0 %v2551
    %3723 = vmatpush.msra.mxu0 %v2535
    %3724 = vmatpush.msra.mxu0 %v2519
    %3725 = vmatpush.msra.mxu0 %v2503
    %3726 = vmatpush.msra.mxu0 %v2487
    %3727 = vmatmul.f32.gmra.mxu0 %v2481
    %v3728 = vpop.f32.mrf.mxu0
    %v3729 = vadd.f32 %v3521, %v3728
    %3730 = vdwg.mxu0
    %3731 = vmatpush.msra.mxu0 %v2983
    %3732 = vmatpush.msra.mxu0 %v2967
    %3733 = vmatpush.msra.mxu0 %v2951
    %3734 = vmatpush.msra.mxu0 %v2935
    %3735 = vmatpush.msra.mxu0 %v2919
    %3736 = vmatpush.msra.mxu0 %v2903
    %3737 = vmatpush.msra.mxu0 %v2887
    %3738 = vmatpush.msra.mxu0 %v2871
    %3739 = vmatpush.msra.mxu0 %v2855
    %3740 = vmatpush.msra.mxu0 %v2839
    %3741 = vmatpush.msra.mxu0 %v2823
    %3742 = vmatpush.msra.mxu0 %v2807
    %3743 = vmatpush.msra.mxu0 %v2791
    %3744 = vmatpush.msra.mxu0 %v2775
    %3745 = vmatpush.msra.mxu0 %v2759
    %3746 = vmatpush.msra.mxu0 %v2743
    %3747 = vmatmul.f32.gmra.mxu0 %v2482
    %v3748 = vpop.f32.mrf.mxu0
    %v3749 = vadd.f32 %v3729, %v3748
    %3750 = vdwg.mxu0
    %3751 = vmatpush.msra.mxu0 %v3239
    %3752 = vmatpush.msra.mxu0 %v3223
    %3753 = vmatpush.msra.mxu0 %v3207
    %3754 = vmatpush.msra.mxu0 %v3191
    %3755 = vmatpush.msra.mxu0 %v3175
    %3756 = vmatpush.msra.mxu0 %v3159
    %3757 = vmatpush.msra.mxu0 %v3143
    %3758 = vmatpush.msra.mxu0 %v3127
    %3759 = vmatpush.msra.mxu0 %v3111
    %3760 = vmatpush.msra.mxu0 %v3095
    %3761 = vmatpush.msra.mxu0 %v3079
    %3762 = vmatpush.msra.mxu0 %v3063
    %3763 = vmatpush.msra.mxu0 %v3047
    %3764 = vmatpush.msra.mxu0 %v3031
    %3765 = vmatpush.msra.mxu0 %v3015
    %3766 = vmatpush.msra.mxu0 %v2999
    %3767 = vmatmul.f32.gmra.mxu0 %v2483
    %v3768 = vpop.f32.mrf.mxu0
    %v3769 = vadd.f32 %v3749, %v3768
    %3770 = vdwg.mxu0
    %3771 = vmatpush.msra.mxu0 %v3495
    %3772 = vmatpush.msra.mxu0 %v3479
    %3773 = vmatpush.msra.mxu0 %v3463
    %3774 = vmatpush.msra.mxu0 %v3447
    %3775 = vmatpush.msra.mxu0 %v3431
    %3776 = vmatpush.msra.mxu0 %v3415
    %3777 = vmatpush.msra.mxu0 %v3399
    %3778 = vmatpush.msra.mxu0 %v3383
    %3779 = vmatpush.msra.mxu0 %v3367
    %3780 = vmatpush.msra.mxu0 %v3351
    %3781 = vmatpush.msra.mxu0 %v3335
    %3782 = vmatpush.msra.mxu0 %v3319
    %3783 = vmatpush.msra.mxu0 %v3303
    %3784 = vmatpush.msra.mxu0 %v3287
    %3785 = vmatpush.msra.mxu0 %v3271
    %3786 = vmatpush.msra.mxu0 %v3255
    %3787 = vmatmul.f32.gmra.mxu0 %v2484
    %v3788 = vpop.f32.mrf.mxu0
    %v3789 = vadd.f32 %v3769, %v3788
    %3790 = vdwg.mxu0
    %3791 = vmatpush.msra.mxu0 %v2728
    %3792 = vmatpush.msra.mxu0 %v2712
    %3793 = vmatpush.msra.mxu0 %v2696
    %3794 = vmatpush.msra.mxu0 %v2680
    %3795 = vmatpush.msra.mxu0 %v2664
    %3796 = vmatpush.msra.mxu0 %v2648
    %3797 = vmatpush.msra.mxu0 %v2632
    %3798 = vmatpush.msra.mxu0 %v2616
    %3799 = vmatpush.msra.mxu0 %v2600
    %3800 = vmatpush.msra.mxu0 %v2584
    %3801 = vmatpush.msra.mxu0 %v2568
    %3802 = vmatpush.msra.mxu0 %v2552
    %3803 = vmatpush.msra.mxu0 %v2536
    %3804 = vmatpush.msra.mxu0 %v2520
    %3805 = vmatpush.msra.mxu0 %v2504
    %3806 = vmatpush.msra.mxu0 %v2488
    %3807 = vmatmul.f32.gmra.mxu0 %v2481
    %v3808 = vpop.f32.mrf.mxu0
    %v3809 = vadd.f32 %v3522, %v3808
    %3810 = vdwg.mxu0
    %3811 = vmatpush.msra.mxu0 %v2984
    %3812 = vmatpush.msra.mxu0 %v2968
    %3813 = vmatpush.msra.mxu0 %v2952
    %3814 = vmatpush.msra.mxu0 %v2936
    %3815 = vmatpush.msra.mxu0 %v2920
    %3816 = vmatpush.msra.mxu0 %v2904
    %3817 = vmatpush.msra.mxu0 %v2888
    %3818 = vmatpush.msra.mxu0 %v2872
    %3819 = vmatpush.msra.mxu0 %v2856
    %3820 = vmatpush.msra.mxu0 %v2840
    %3821 = vmatpush.msra.mxu0 %v2824
    %3822 = vmatpush.msra.mxu0 %v2808
    %3823 = vmatpush.msra.mxu0 %v2792
    %3824 = vmatpush.msra.mxu0 %v2776
    %3825 = vmatpush.msra.mxu0 %v2760
    %3826 = vmatpush.msra.mxu0 %v2744
    %3827 = vmatmul.f32.gmra.mxu0 %v2482
    %v3828 = vpop.f32.mrf.mxu0
    %v3829 = vadd.f32 %v3809, %v3828
    %3830 = vdwg.mxu0
    %3831 = vmatpush.msra.mxu0 %v3240
    %3832 = vmatpush.msra.mxu0 %v3224
    %3833 = vmatpush.msra.mxu0 %v3208
    %3834 = vmatpush.msra.mxu0 %v3192
    %3835 = vmatpush.msra.mxu0 %v3176
    %3836 = vmatpush.msra.mxu0 %v3160
    %3837 = vmatpush.msra.mxu0 %v3144
    %3838 = vmatpush.msra.mxu0 %v3128
    %3839 = vmatpush.msra.mxu0 %v3112
    %3840 = vmatpush.msra.mxu0 %v3096
    %3841 = vmatpush.msra.mxu0 %v3080
    %3842 = vmatpush.msra.mxu0 %v3064
    %3843 = vmatpush.msra.mxu0 %v3048
    %3844 = vmatpush.msra.mxu0 %v3032
    %3845 = vmatpush.msra.mxu0 %v3016
    %3846 = vmatpush.msra.mxu0 %v3000
    %3847 = vmatmul.f32.gmra.mxu0 %v2483
    %v3848 = vpop.f32.mrf.mxu0
    %v3849 = vadd.f32 %v3829, %v3848
    %3850 = vdwg.mxu0
    %3851 = vmatpush.msra.mxu0 %v3496
    %3852 = vmatpush.msra.mxu0 %v3480
    %3853 = vmatpush.msra.mxu0 %v3464
    %3854 = vmatpush.msra.mxu0 %v3448
    %3855 = vmatpush.msra.mxu0 %v3432
    %3856 = vmatpush.msra.mxu0 %v3416
    %3857 = vmatpush.msra.mxu0 %v3400
    %3858 = vmatpush.msra.mxu0 %v3384
    %3859 = vmatpush.msra.mxu0 %v3368
    %3860 = vmatpush.msra.mxu0 %v3352
    %3861 = vmatpush.msra.mxu0 %v3336
    %3862 = vmatpush.msra.mxu0 %v3320
    %3863 = vmatpush.msra.mxu0 %v3304
    %3864 = vmatpush.msra.mxu0 %v3288
    %3865 = vmatpush.msra.mxu0 %v3272
    %3866 = vmatpush.msra.mxu0 %v3256
    %3867 = vmatmul.f32.gmra.mxu0 %v2484
    %v3868 = vpop.f32.mrf.mxu0
    %v3869 = vadd.f32 %v3849, %v3868
    %3870 = vdwg.mxu0
    %3871 = vmatpush.msra.mxu0 %v2729
    %3872 = vmatpush.msra.mxu0 %v2713
    %3873 = vmatpush.msra.mxu0 %v2697
    %3874 = vmatpush.msra.mxu0 %v2681
    %3875 = vmatpush.msra.mxu0 %v2665
    %3876 = vmatpush.msra.mxu0 %v2649
    %3877 = vmatpush.msra.mxu0 %v2633
    %3878 = vmatpush.msra.mxu0 %v2617
    %3879 = vmatpush.msra.mxu0 %v2601
    %3880 = vmatpush.msra.mxu0 %v2585
    %3881 = vmatpush.msra.mxu0 %v2569
    %3882 = vmatpush.msra.mxu0 %v2553
    %3883 = vmatpush.msra.mxu0 %v2537
    %3884 = vmatpush.msra.mxu0 %v2521
    %3885 = vmatpush.msra.mxu0 %v2505
    %3886 = vmatpush.msra.mxu0 %v2489
    %3887 = vmatmul.f32.gmra.mxu0 %v2481
    %v3888 = vpop.f32.mrf.mxu0
    %v3889 = vadd.f32 %v3523, %v3888
    %3890 = vdwg.mxu0
    %3891 = vmatpush.msra.mxu0 %v2985
    %3892 = vmatpush.msra.mxu0 %v2969
    %3893 = vmatpush.msra.mxu0 %v2953
    %3894 = vmatpush.msra.mxu0 %v2937
    %3895 = vmatpush.msra.mxu0 %v2921
    %3896 = vmatpush.msra.mxu0 %v2905
    %3897 = vmatpush.msra.mxu0 %v2889
    %3898 = vmatpush.msra.mxu0 %v2873
    %3899 = vmatpush.msra.mxu0 %v2857
    %3900 = vmatpush.msra.mxu0 %v2841
    %3901 = vmatpush.msra.mxu0 %v2825
    %3902 = vmatpush.msra.mxu0 %v2809
    %3903 = vmatpush.msra.mxu0 %v2793
    %3904 = vmatpush.msra.mxu0 %v2777
    %3905 = vmatpush.msra.mxu0 %v2761
    %3906 = vmatpush.msra.mxu0 %v2745
    %3907 = vmatmul.f32.gmra.mxu0 %v2482
    %v3908 = vpop.f32.mrf.mxu0
    %v3909 = vadd.f32 %v3889, %v3908
    %3910 = vdwg.mxu0
    %3911 = vmatpush.msra.mxu0 %v3241
    %3912 = vmatpush.msra.mxu0 %v3225
    %3913 = vmatpush.msra.mxu0 %v3209
    %3914 = vmatpush.msra.mxu0 %v3193
    %3915 = vmatpush.msra.mxu0 %v3177
    %3916 = vmatpush.msra.mxu0 %v3161
    %3917 = vmatpush.msra.mxu0 %v3145
    %3918 = vmatpush.msra.mxu0 %v3129
    %3919 = vmatpush.msra.mxu0 %v3113
    %3920 = vmatpush.msra.mxu0 %v3097
    %3921 = vmatpush.msra.mxu0 %v3081
    %3922 = vmatpush.msra.mxu0 %v3065
    %3923 = vmatpush.msra.mxu0 %v3049
    %3924 = vmatpush.msra.mxu0 %v3033
    %3925 = vmatpush.msra.mxu0 %v3017
    %3926 = vmatpush.msra.mxu0 %v3001
    %3927 = vmatmul.f32.gmra.mxu0 %v2483
    %v3928 = vpop.f32.mrf.mxu0
    %v3929 = vadd.f32 %v3909, %v3928
    %3930 = vdwg.mxu0
    %3931 = vmatpush.msra.mxu0 %v3497
    %3932 = vmatpush.msra.mxu0 %v3481
    %3933 = vmatpush.msra.mxu0 %v3465
    %3934 = vmatpush.msra.mxu0 %v3449
    %3935 = vmatpush.msra.mxu0 %v3433
    %3936 = vmatpush.msra.mxu0 %v3417
    %3937 = vmatpush.msra.mxu0 %v3401
    %3938 = vmatpush.msra.mxu0 %v3385
    %3939 = vmatpush.msra.mxu0 %v3369
    %3940 = vmatpush.msra.mxu0 %v3353
    %3941 = vmatpush.msra.mxu0 %v3337
    %3942 = vmatpush.msra.mxu0 %v3321
    %3943 = vmatpush.msra.mxu0 %v3305
    %3944 = vmatpush.msra.mxu0 %v3289
    %3945 = vmatpush.msra.mxu0 %v3273
    %3946 = vmatpush.msra.mxu0 %v3257
    %3947 = vmatmul.f32.gmra.mxu0 %v2484
    %v3948 = vpop.f32.mrf.mxu0
    %v3949 = vadd.f32 %v3929, %v3948
    %3950 = vdwg.mxu0
    %3951 = vmatpush.msra.mxu0 %v2730
    %3952 = vmatpush.msra.mxu0 %v2714
    %3953 = vmatpush.msra.mxu0 %v2698
    %3954 = vmatpush.msra.mxu0 %v2682
    %3955 = vmatpush.msra.mxu0 %v2666
    %3956 = vmatpush.msra.mxu0 %v2650
    %3957 = vmatpush.msra.mxu0 %v2634
    %3958 = vmatpush.msra.mxu0 %v2618
    %3959 = vmatpush.msra.mxu0 %v2602
    %3960 = vmatpush.msra.mxu0 %v2586
    %3961 = vmatpush.msra.mxu0 %v2570
    %3962 = vmatpush.msra.mxu0 %v2554
    %3963 = vmatpush.msra.mxu0 %v2538
    %3964 = vmatpush.msra.mxu0 %v2522
    %3965 = vmatpush.msra.mxu0 %v2506
    %3966 = vmatpush.msra.mxu0 %v2490
    %3967 = vmatmul.f32.gmra.mxu0 %v2481
    %v3968 = vpop.f32.mrf.mxu0
    %v3969 = vadd.f32 %v3524, %v3968
    %3970 = vdwg.mxu0
    %3971 = vmatpush.msra.mxu0 %v2986
    %3972 = vmatpush.msra.mxu0 %v2970
    %3973 = vmatpush.msra.mxu0 %v2954
    %3974 = vmatpush.msra.mxu0 %v2938
    %3975 = vmatpush.msra.mxu0 %v2922
    %3976 = vmatpush.msra.mxu0 %v2906
    %3977 = vmatpush.msra.mxu0 %v2890
    %3978 = vmatpush.msra.mxu0 %v2874
    %3979 = vmatpush.msra.mxu0 %v2858
    %3980 = vmatpush.msra.mxu0 %v2842
    %3981 = vmatpush.msra.mxu0 %v2826
    %3982 = vmatpush.msra.mxu0 %v2810
    %3983 = vmatpush.msra.mxu0 %v2794
    %3984 = vmatpush.msra.mxu0 %v2778
    %3985 = vmatpush.msra.mxu0 %v2762
    %3986 = vmatpush.msra.mxu0 %v2746
    %3987 = vmatmul.f32.gmra.mxu0 %v2482
    %v3988 = vpop.f32.mrf.mxu0
    %v3989 = vadd.f32 %v3969, %v3988
    %3990 = vdwg.mxu0
    %3991 = vmatpush.msra.mxu0 %v3242
    %3992 = vmatpush.msra.mxu0 %v3226
    %3993 = vmatpush.msra.mxu0 %v3210
    %3994 = vmatpush.msra.mxu0 %v3194
    %3995 = vmatpush.msra.mxu0 %v3178
    %3996 = vmatpush.msra.mxu0 %v3162
    %3997 = vmatpush.msra.mxu0 %v3146
    %3998 = vmatpush.msra.mxu0 %v3130
    %3999 = vmatpush.msra.mxu0 %v3114
    %4000 = vmatpush.msra.mxu0 %v3098
    %4001 = vmatpush.msra.mxu0 %v3082
    %4002 = vmatpush.msra.mxu0 %v3066
    %4003 = vmatpush.msra.mxu0 %v3050
    %4004 = vmatpush.msra.mxu0 %v3034
    %4005 = vmatpush.msra.mxu0 %v3018
    %4006 = vmatpush.msra.mxu0 %v3002
    %4007 = vmatmul.f32.gmra.mxu0 %v2483
    %v4008 = vpop.f32.mrf.mxu0
    %v4009 = vadd.f32 %v3989, %v4008
    %4010 = vdwg.mxu0
    %4011 = vmatpush.msra.mxu0 %v3498
    %4012 = vmatpush.msra.mxu0 %v3482
    %4013 = vmatpush.msra.mxu0 %v3466
    %4014 = vmatpush.msra.mxu0 %v3450
    %4015 = vmatpush.msra.mxu0 %v3434
    %4016 = vmatpush.msra.mxu0 %v3418
    %4017 = vmatpush.msra.mxu0 %v3402
    %4018 = vmatpush.msra.mxu0 %v3386
    %4019 = vmatpush.msra.mxu0 %v3370
    %4020 = vmatpush.msra.mxu0 %v3354
    %4021 = vmatpush.msra.mxu0 %v3338
    %4022 = vmatpush.msra.mxu0 %v3322
    %4023 = vmatpush.msra.mxu0 %v3306
    %4024 = vmatpush.msra.mxu0 %v3290
    %4025 = vmatpush.msra.mxu0 %v3274
    %4026 = vmatpush.msra.mxu0 %v3258
    %4027 = vmatmul.f32.gmra.mxu0 %v2484
    %v4028 = vpop.f32.mrf.mxu0
    %v4029 = vadd.f32 %v4009, %v4028
    %4030 = vdwg.mxu0
    %4031 = vmatpush.msra.mxu0 %v2731
    %4032 = vmatpush.msra.mxu0 %v2715
    %4033 = vmatpush.msra.mxu0 %v2699
    %4034 = vmatpush.msra.mxu0 %v2683
    %4035 = vmatpush.msra.mxu0 %v2667
    %4036 = vmatpush.msra.mxu0 %v2651
    %4037 = vmatpush.msra.mxu0 %v2635
    %4038 = vmatpush.msra.mxu0 %v2619
    %4039 = vmatpush.msra.mxu0 %v2603
    %4040 = vmatpush.msra.mxu0 %v2587
    %4041 = vmatpush.msra.mxu0 %v2571
    %4042 = vmatpush.msra.mxu0 %v2555
    %4043 = vmatpush.msra.mxu0 %v2539
    %4044 = vmatpush.msra.mxu0 %v2523
    %4045 = vmatpush.msra.mxu0 %v2507
    %4046 = vmatpush.msra.mxu0 %v2491
    %4047 = vmatmul.f32.gmra.mxu0 %v2481
    %v4048 = vpop.f32.mrf.mxu0
    %v4049 = vadd.f32 %v3525, %v4048
    %4050 = vdwg.mxu0
    %4051 = vmatpush.msra.mxu0 %v2987
    %4052 = vmatpush.msra.mxu0 %v2971
    %4053 = vmatpush.msra.mxu0 %v2955
    %4054 = vmatpush.msra.mxu0 %v2939
    %4055 = vmatpush.msra.mxu0 %v2923
    %4056 = vmatpush.msra.mxu0 %v2907
    %4057 = vmatpush.msra.mxu0 %v2891
    %4058 = vmatpush.msra.mxu0 %v2875
    %4059 = vmatpush.msra.mxu0 %v2859
    %4060 = vmatpush.msra.mxu0 %v2843
    %4061 = vmatpush.msra.mxu0 %v2827
    %4062 = vmatpush.msra.mxu0 %v2811
    %4063 = vmatpush.msra.mxu0 %v2795
    %4064 = vmatpush.msra.mxu0 %v2779
    %4065 = vmatpush.msra.mxu0 %v2763
    %4066 = vmatpush.msra.mxu0 %v2747
    %4067 = vmatmul.f32.gmra.mxu0 %v2482
    %v4068 = vpop.f32.mrf.mxu0
    %v4069 = vadd.f32 %v4049, %v4068
    %4070 = vdwg.mxu0
    %4071 = vmatpush.msra.mxu0 %v3243
    %4072 = vmatpush.msra.mxu0 %v3227
    %4073 = vmatpush.msra.mxu0 %v3211
    %4074 = vmatpush.msra.mxu0 %v3195
    %4075 = vmatpush.msra.mxu0 %v3179
    %4076 = vmatpush.msra.mxu0 %v3163
    %4077 = vmatpush.msra.mxu0 %v3147
    %4078 = vmatpush.msra.mxu0 %v3131
    %4079 = vmatpush.msra.mxu0 %v3115
    %4080 = vmatpush.msra.mxu0 %v3099
    %4081 = vmatpush.msra.mxu0 %v3083
    %4082 = vmatpush.msra.mxu0 %v3067
    %4083 = vmatpush.msra.mxu0 %v3051
    %4084 = vmatpush.msra.mxu0 %v3035
    %4085 = vmatpush.msra.mxu0 %v3019
    %4086 = vmatpush.msra.mxu0 %v3003
    %4087 = vmatmul.f32.gmra.mxu0 %v2483
    %v4088 = vpop.f32.mrf.mxu0
    %v4089 = vadd.f32 %v4069, %v4088
    %4090 = vdwg.mxu0
    %4091 = vmatpush.msra.mxu0 %v3499
    %4092 = vmatpush.msra.mxu0 %v3483
    %4093 = vmatpush.msra.mxu0 %v3467
    %4094 = vmatpush.msra.mxu0 %v3451
    %4095 = vmatpush.msra.mxu0 %v3435
    %4096 = vmatpush.msra.mxu0 %v3419
    %4097 = vmatpush.msra.mxu0 %v3403
    %4098 = vmatpush.msra.mxu0 %v3387
    %4099 = vmatpush.msra.mxu0 %v3371
    %4100 = vmatpush.msra.mxu0 %v3355
    %4101 = vmatpush.msra.mxu0 %v3339
    %4102 = vmatpush.msra.mxu0 %v3323
    %4103 = vmatpush.msra.mxu0 %v3307
    %4104 = vmatpush.msra.mxu0 %v3291
    %4105 = vmatpush.msra.mxu0 %v3275
    %4106 = vmatpush.msra.mxu0 %v3259
    %4107 = vmatmul.f32.gmra.mxu0 %v2484
    %v4108 = vpop.f32.mrf.mxu0
    %v4109 = vadd.f32 %v4089, %v4108
    %4110 = vdwg.mxu0
    %4111 = vmatpush.msra.mxu0 %v2732
    %4112 = vmatpush.msra.mxu0 %v2716
    %4113 = vmatpush.msra.mxu0 %v2700
    %4114 = vmatpush.msra.mxu0 %v2684
    %4115 = vmatpush.msra.mxu0 %v2668
    %4116 = vmatpush.msra.mxu0 %v2652
    %4117 = vmatpush.msra.mxu0 %v2636
    %4118 = vmatpush.msra.mxu0 %v2620
    %4119 = vmatpush.msra.mxu0 %v2604
    %4120 = vmatpush.msra.mxu0 %v2588
    %4121 = vmatpush.msra.mxu0 %v2572
    %4122 = vmatpush.msra.mxu0 %v2556
    %4123 = vmatpush.msra.mxu0 %v2540
    %4124 = vmatpush.msra.mxu0 %v2524
    %4125 = vmatpush.msra.mxu0 %v2508
    %4126 = vmatpush.msra.mxu0 %v2492
    %4127 = vmatmul.f32.gmra.mxu0 %v2481
    %v4128 = vpop.f32.mrf.mxu0
    %v4129 = vadd.f32 %v3526, %v4128
    %4130 = vdwg.mxu0
    %4131 = vmatpush.msra.mxu0 %v2988
    %4132 = vmatpush.msra.mxu0 %v2972
    %4133 = vmatpush.msra.mxu0 %v2956
    %4134 = vmatpush.msra.mxu0 %v2940
    %4135 = vmatpush.msra.mxu0 %v2924
    %4136 = vmatpush.msra.mxu0 %v2908
    %4137 = vmatpush.msra.mxu0 %v2892
    %4138 = vmatpush.msra.mxu0 %v2876
    %4139 = vmatpush.msra.mxu0 %v2860
    %4140 = vmatpush.msra.mxu0 %v2844
    %4141 = vmatpush.msra.mxu0 %v2828
    %4142 = vmatpush.msra.mxu0 %v2812
    %4143 = vmatpush.msra.mxu0 %v2796
    %4144 = vmatpush.msra.mxu0 %v2780
    %4145 = vmatpush.msra.mxu0 %v2764
    %4146 = vmatpush.msra.mxu0 %v2748
    %4147 = vmatmul.f32.gmra.mxu0 %v2482
    %v4148 = vpop.f32.mrf.mxu0
    %v4149 = vadd.f32 %v4129, %v4148
    %4150 = vdwg.mxu0
    %4151 = vmatpush.msra.mxu0 %v3244
    %4152 = vmatpush.msra.mxu0 %v3228
    %4153 = vmatpush.msra.mxu0 %v3212
    %4154 = vmatpush.msra.mxu0 %v3196
    %4155 = vmatpush.msra.mxu0 %v3180
    %4156 = vmatpush.msra.mxu0 %v3164
    %4157 = vmatpush.msra.mxu0 %v3148
    %4158 = vmatpush.msra.mxu0 %v3132
    %4159 = vmatpush.msra.mxu0 %v3116
    %4160 = vmatpush.msra.mxu0 %v3100
    %4161 = vmatpush.msra.mxu0 %v3084
    %4162 = vmatpush.msra.mxu0 %v3068
    %4163 = vmatpush.msra.mxu0 %v3052
    %4164 = vmatpush.msra.mxu0 %v3036
    %4165 = vmatpush.msra.mxu0 %v3020
    %4166 = vmatpush.msra.mxu0 %v3004
    %4167 = vmatmul.f32.gmra.mxu0 %v2483
    %v4168 = vpop.f32.mrf.mxu0
    %v4169 = vadd.f32 %v4149, %v4168
    %4170 = vdwg.mxu0
    %4171 = vmatpush.msra.mxu0 %v3500
    %4172 = vmatpush.msra.mxu0 %v3484
    %4173 = vmatpush.msra.mxu0 %v3468
    %4174 = vmatpush.msra.mxu0 %v3452
    %4175 = vmatpush.msra.mxu0 %v3436
    %4176 = vmatpush.msra.mxu0 %v3420
    %4177 = vmatpush.msra.mxu0 %v3404
    %4178 = vmatpush.msra.mxu0 %v3388
    %4179 = vmatpush.msra.mxu0 %v3372
    %4180 = vmatpush.msra.mxu0 %v3356
    %4181 = vmatpush.msra.mxu0 %v3340
    %4182 = vmatpush.msra.mxu0 %v3324
    %4183 = vmatpush.msra.mxu0 %v3308
    %4184 = vmatpush.msra.mxu0 %v3292
    %4185 = vmatpush.msra.mxu0 %v3276
    %4186 = vmatpush.msra.mxu0 %v3260
    %4187 = vmatmul.f32.gmra.mxu0 %v2484
    %v4188 = vpop.f32.mrf.mxu0
    %v4189 = vadd.f32 %v4169, %v4188
    %4190 = vdwg.mxu0
    %4191 = vmatpush.msra.mxu0 %v2733
    %4192 = vmatpush.msra.mxu0 %v2717
    %4193 = vmatpush.msra.mxu0 %v2701
    %4194 = vmatpush.msra.mxu0 %v2685
    %4195 = vmatpush.msra.mxu0 %v2669
    %4196 = vmatpush.msra.mxu0 %v2653
    %4197 = vmatpush.msra.mxu0 %v2637
    %4198 = vmatpush.msra.mxu0 %v2621
    %4199 = vmatpush.msra.mxu0 %v2605
    %4200 = vmatpush.msra.mxu0 %v2589
    %4201 = vmatpush.msra.mxu0 %v2573
    %4202 = vmatpush.msra.mxu0 %v2557
    %4203 = vmatpush.msra.mxu0 %v2541
    %4204 = vmatpush.msra.mxu0 %v2525
    %4205 = vmatpush.msra.mxu0 %v2509
    %4206 = vmatpush.msra.mxu0 %v2493
    %4207 = vmatmul.f32.gmra.mxu0 %v2481
    %v4208 = vpop.f32.mrf.mxu0
    %v4209 = vadd.f32 %v3527, %v4208
    %4210 = vdwg.mxu0
    %4211 = vmatpush.msra.mxu0 %v2989
    %4212 = vmatpush.msra.mxu0 %v2973
    %4213 = vmatpush.msra.mxu0 %v2957
    %4214 = vmatpush.msra.mxu0 %v2941
    %4215 = vmatpush.msra.mxu0 %v2925
    %4216 = vmatpush.msra.mxu0 %v2909
    %4217 = vmatpush.msra.mxu0 %v2893
    %4218 = vmatpush.msra.mxu0 %v2877
    %4219 = vmatpush.msra.mxu0 %v2861
    %4220 = vmatpush.msra.mxu0 %v2845
    %4221 = vmatpush.msra.mxu0 %v2829
    %4222 = vmatpush.msra.mxu0 %v2813
    %4223 = vmatpush.msra.mxu0 %v2797
    %4224 = vmatpush.msra.mxu0 %v2781
    %4225 = vmatpush.msra.mxu0 %v2765
    %4226 = vmatpush.msra.mxu0 %v2749
    %4227 = vmatmul.f32.gmra.mxu0 %v2482
    %v4228 = vpop.f32.mrf.mxu0
    %v4229 = vadd.f32 %v4209, %v4228
    %4230 = vdwg.mxu0
    %4231 = vmatpush.msra.mxu0 %v3245
    %4232 = vmatpush.msra.mxu0 %v3229
    %4233 = vmatpush.msra.mxu0 %v3213
    %4234 = vmatpush.msra.mxu0 %v3197
    %4235 = vmatpush.msra.mxu0 %v3181
    %4236 = vmatpush.msra.mxu0 %v3165
    %4237 = vmatpush.msra.mxu0 %v3149
    %4238 = vmatpush.msra.mxu0 %v3133
    %4239 = vmatpush.msra.mxu0 %v3117
    %4240 = vmatpush.msra.mxu0 %v3101
    %4241 = vmatpush.msra.mxu0 %v3085
    %4242 = vmatpush.msra.mxu0 %v3069
    %4243 = vmatpush.msra.mxu0 %v3053
    %4244 = vmatpush.msra.mxu0 %v3037
    %4245 = vmatpush.msra.mxu0 %v3021
    %4246 = vmatpush.msra.mxu0 %v3005
    %4247 = vmatmul.f32.gmra.mxu0 %v2483
    %v4248 = vpop.f32.mrf.mxu0
    %v4249 = vadd.f32 %v4229, %v4248
    %4250 = vdwg.mxu0
    %4251 = vmatpush.msra.mxu0 %v3501
    %4252 = vmatpush.msra.mxu0 %v3485
    %4253 = vmatpush.msra.mxu0 %v3469
    %4254 = vmatpush.msra.mxu0 %v3453
    %4255 = vmatpush.msra.mxu0 %v3437
    %4256 = vmatpush.msra.mxu0 %v3421
    %4257 = vmatpush.msra.mxu0 %v3405
    %4258 = vmatpush.msra.mxu0 %v3389
    %4259 = vmatpush.msra.mxu0 %v3373
    %4260 = vmatpush.msra.mxu0 %v3357
    %4261 = vmatpush.msra.mxu0 %v3341
    %4262 = vmatpush.msra.mxu0 %v3325
    %4263 = vmatpush.msra.mxu0 %v3309
    %4264 = vmatpush.msra.mxu0 %v3293
    %4265 = vmatpush.msra.mxu0 %v3277
    %4266 = vmatpush.msra.mxu0 %v3261
    %4267 = vmatmul.f32.gmra.mxu0 %v2484
    %v4268 = vpop.f32.mrf.mxu0
    %v4269 = vadd.f32 %v4249, %v4268
    %4270 = vdwg.mxu0
    %4271 = vmatpush.msra.mxu0 %v2734
    %4272 = vmatpush.msra.mxu0 %v2718
    %4273 = vmatpush.msra.mxu0 %v2702
    %4274 = vmatpush.msra.mxu0 %v2686
    %4275 = vmatpush.msra.mxu0 %v2670
    %4276 = vmatpush.msra.mxu0 %v2654
    %4277 = vmatpush.msra.mxu0 %v2638
    %4278 = vmatpush.msra.mxu0 %v2622
    %4279 = vmatpush.msra.mxu0 %v2606
    %4280 = vmatpush.msra.mxu0 %v2590
    %4281 = vmatpush.msra.mxu0 %v2574
    %4282 = vmatpush.msra.mxu0 %v2558
    %4283 = vmatpush.msra.mxu0 %v2542
    %4284 = vmatpush.msra.mxu0 %v2526
    %4285 = vmatpush.msra.mxu0 %v2510
    %4286 = vmatpush.msra.mxu0 %v2494
    %4287 = vmatmul.f32.gmra.mxu0 %v2481
    %v4288 = vpop.f32.mrf.mxu0
    %v4289 = vadd.f32 %v3528, %v4288
    %4290 = vdwg.mxu0
    %4291 = vmatpush.msra.mxu0 %v2990
    %4292 = vmatpush.msra.mxu0 %v2974
    %4293 = vmatpush.msra.mxu0 %v2958
    %4294 = vmatpush.msra.mxu0 %v2942
    %4295 = vmatpush.msra.mxu0 %v2926
    %4296 = vmatpush.msra.mxu0 %v2910
    %4297 = vmatpush.msra.mxu0 %v2894
    %4298 = vmatpush.msra.mxu0 %v2878
    %4299 = vmatpush.msra.mxu0 %v2862
    %4300 = vmatpush.msra.mxu0 %v2846
    %4301 = vmatpush.msra.mxu0 %v2830
    %4302 = vmatpush.msra.mxu0 %v2814
    %4303 = vmatpush.msra.mxu0 %v2798
    %4304 = vmatpush.msra.mxu0 %v2782
    %4305 = vmatpush.msra.mxu0 %v2766
    %4306 = vmatpush.msra.mxu0 %v2750
    %4307 = vmatmul.f32.gmra.mxu0 %v2482
    %v4308 = vpop.f32.mrf.mxu0
    %v4309 = vadd.f32 %v4289, %v4308
    %4310 = vdwg.mxu0
    %4311 = vmatpush.msra.mxu0 %v3246
    %4312 = vmatpush.msra.mxu0 %v3230
    %4313 = vmatpush.msra.mxu0 %v3214
    %4314 = vmatpush.msra.mxu0 %v3198
    %4315 = vmatpush.msra.mxu0 %v3182
    %4316 = vmatpush.msra.mxu0 %v3166
    %4317 = vmatpush.msra.mxu0 %v3150
    %4318 = vmatpush.msra.mxu0 %v3134
    %4319 = vmatpush.msra.mxu0 %v3118
    %4320 = vmatpush.msra.mxu0 %v3102
    %4321 = vmatpush.msra.mxu0 %v3086
    %4322 = vmatpush.msra.mxu0 %v3070
    %4323 = vmatpush.msra.mxu0 %v3054
    %4324 = vmatpush.msra.mxu0 %v3038
    %4325 = vmatpush.msra.mxu0 %v3022
    %4326 = vmatpush.msra.mxu0 %v3006
    %4327 = vmatmul.f32.gmra.mxu0 %v2483
    %v4328 = vpop.f32.mrf.mxu0
    %v4329 = vadd.f32 %v4309, %v4328
    %4330 = vdwg.mxu0
    %4331 = vmatpush.msra.mxu0 %v3502
    %4332 = vmatpush.msra.mxu0 %v3486
    %4333 = vmatpush.msra.mxu0 %v3470
    %4334 = vmatpush.msra.mxu0 %v3454
    %4335 = vmatpush.msra.mxu0 %v3438
    %4336 = vmatpush.msra.mxu0 %v3422
    %4337 = vmatpush.msra.mxu0 %v3406
    %4338 = vmatpush.msra.mxu0 %v3390
    %4339 = vmatpush.msra.mxu0 %v3374
    %4340 = vmatpush.msra.mxu0 %v3358
    %4341 = vmatpush.msra.mxu0 %v3342
    %4342 = vmatpush.msra.mxu0 %v3326
    %4343 = vmatpush.msra.mxu0 %v3310
    %4344 = vmatpush.msra.mxu0 %v3294
    %4345 = vmatpush.msra.mxu0 %v3278
    %4346 = vmatpush.msra.mxu0 %v3262
    %4347 = vmatmul.f32.gmra.mxu0 %v2484
    %v4348 = vpop.f32.mrf.mxu0
    %v4349 = vadd.f32 %v4329, %v4348
    %4350 = vdwg.mxu0
    %4351 = vmatpush.msra.mxu0 %v2735
    %4352 = vmatpush.msra.mxu0 %v2719
    %4353 = vmatpush.msra.mxu0 %v2703
    %4354 = vmatpush.msra.mxu0 %v2687
    %4355 = vmatpush.msra.mxu0 %v2671
    %4356 = vmatpush.msra.mxu0 %v2655
    %4357 = vmatpush.msra.mxu0 %v2639
    %4358 = vmatpush.msra.mxu0 %v2623
    %4359 = vmatpush.msra.mxu0 %v2607
    %4360 = vmatpush.msra.mxu0 %v2591
    %4361 = vmatpush.msra.mxu0 %v2575
    %4362 = vmatpush.msra.mxu0 %v2559
    %4363 = vmatpush.msra.mxu0 %v2543
    %4364 = vmatpush.msra.mxu0 %v2527
    %4365 = vmatpush.msra.mxu0 %v2511
    %4366 = vmatpush.msra.mxu0 %v2495
    %4367 = vmatmul.f32.gmra.mxu0 %v2481
    %v4368 = vpop.f32.mrf.mxu0
    %v4369 = vadd.f32 %v3529, %v4368
    %4370 = vdwg.mxu0
    %4371 = vmatpush.msra.mxu0 %v2991
    %4372 = vmatpush.msra.mxu0 %v2975
    %4373 = vmatpush.msra.mxu0 %v2959
    %4374 = vmatpush.msra.mxu0 %v2943
    %4375 = vmatpush.msra.mxu0 %v2927
    %4376 = vmatpush.msra.mxu0 %v2911
    %4377 = vmatpush.msra.mxu0 %v2895
    %4378 = vmatpush.msra.mxu0 %v2879
    %4379 = vmatpush.msra.mxu0 %v2863
    %4380 = vmatpush.msra.mxu0 %v2847
    %4381 = vmatpush.msra.mxu0 %v2831
    %4382 = vmatpush.msra.mxu0 %v2815
    %4383 = vmatpush.msra.mxu0 %v2799
    %4384 = vmatpush.msra.mxu0 %v2783
    %4385 = vmatpush.msra.mxu0 %v2767
    %4386 = vmatpush.msra.mxu0 %v2751
    %4387 = vmatmul.f32.gmra.mxu0 %v2482
    %v4388 = vpop.f32.mrf.mxu0
    %v4389 = vadd.f32 %v4369, %v4388
    %4390 = vdwg.mxu0
    %4391 = vmatpush.msra.mxu0 %v3247
    %4392 = vmatpush.msra.mxu0 %v3231
    %4393 = vmatpush.msra.mxu0 %v3215
    %4394 = vmatpush.msra.mxu0 %v3199
    %4395 = vmatpush.msra.mxu0 %v3183
    %4396 = vmatpush.msra.mxu0 %v3167
    %4397 = vmatpush.msra.mxu0 %v3151
    %4398 = vmatpush.msra.mxu0 %v3135
    %4399 = vmatpush.msra.mxu0 %v3119
    %4400 = vmatpush.msra.mxu0 %v3103
    %4401 = vmatpush.msra.mxu0 %v3087
    %4402 = vmatpush.msra.mxu0 %v3071
    %4403 = vmatpush.msra.mxu0 %v3055
    %4404 = vmatpush.msra.mxu0 %v3039
    %4405 = vmatpush.msra.mxu0 %v3023
    %4406 = vmatpush.msra.mxu0 %v3007
    %4407 = vmatmul.f32.gmra.mxu0 %v2483
    %v4408 = vpop.f32.mrf.mxu0
    %v4409 = vadd.f32 %v4389, %v4408
    %4410 = vdwg.mxu0
    %4411 = vmatpush.msra.mxu0 %v3503
    %4412 = vmatpush.msra.mxu0 %v3487
    %4413 = vmatpush.msra.mxu0 %v3471
    %4414 = vmatpush.msra.mxu0 %v3455
    %4415 = vmatpush.msra.mxu0 %v3439
    %4416 = vmatpush.msra.mxu0 %v3423
    %4417 = vmatpush.msra.mxu0 %v3407
    %4418 = vmatpush.msra.mxu0 %v3391
    %4419 = vmatpush.msra.mxu0 %v3375
    %4420 = vmatpush.msra.mxu0 %v3359
    %4421 = vmatpush.msra.mxu0 %v3343
    %4422 = vmatpush.msra.mxu0 %v3327
    %4423 = vmatpush.msra.mxu0 %v3311
    %4424 = vmatpush.msra.mxu0 %v3295
    %4425 = vmatpush.msra.mxu0 %v3279
    %4426 = vmatpush.msra.mxu0 %v3263
    %4427 = vmatmul.f32.gmra.mxu0 %v2484
    %v4428 = vpop.f32.mrf.mxu0
    %v4429 = vadd.f32 %v4409, %v4428
    %4430 = vdwg.mxu0
    %4431 = vmatpush.msra.mxu0 %v2736
    %4432 = vmatpush.msra.mxu0 %v2720
    %4433 = vmatpush.msra.mxu0 %v2704
    %4434 = vmatpush.msra.mxu0 %v2688
    %4435 = vmatpush.msra.mxu0 %v2672
    %4436 = vmatpush.msra.mxu0 %v2656
    %4437 = vmatpush.msra.mxu0 %v2640
    %4438 = vmatpush.msra.mxu0 %v2624
    %4439 = vmatpush.msra.mxu0 %v2608
    %4440 = vmatpush.msra.mxu0 %v2592
    %4441 = vmatpush.msra.mxu0 %v2576
    %4442 = vmatpush.msra.mxu0 %v2560
    %4443 = vmatpush.msra.mxu0 %v2544
    %4444 = vmatpush.msra.mxu0 %v2528
    %4445 = vmatpush.msra.mxu0 %v2512
    %4446 = vmatpush.msra.mxu0 %v2496
    %4447 = vmatmul.f32.gmra.mxu0 %v2481
    %v4448 = vpop.f32.mrf.mxu0
    %v4449 = vadd.f32 %v3530, %v4448
    %4450 = vdwg.mxu0
    %4451 = vmatpush.msra.mxu0 %v2992
    %4452 = vmatpush.msra.mxu0 %v2976
    %4453 = vmatpush.msra.mxu0 %v2960
    %4454 = vmatpush.msra.mxu0 %v2944
    %4455 = vmatpush.msra.mxu0 %v2928
    %4456 = vmatpush.msra.mxu0 %v2912
    %4457 = vmatpush.msra.mxu0 %v2896
    %4458 = vmatpush.msra.mxu0 %v2880
    %4459 = vmatpush.msra.mxu0 %v2864
    %4460 = vmatpush.msra.mxu0 %v2848
    %4461 = vmatpush.msra.mxu0 %v2832
    %4462 = vmatpush.msra.mxu0 %v2816
    %4463 = vmatpush.msra.mxu0 %v2800
    %4464 = vmatpush.msra.mxu0 %v2784
    %4465 = vmatpush.msra.mxu0 %v2768
    %4466 = vmatpush.msra.mxu0 %v2752
    %4467 = vmatmul.f32.gmra.mxu0 %v2482
    %v4468 = vpop.f32.mrf.mxu0
    %v4469 = vadd.f32 %v4449, %v4468
    %4470 = vdwg.mxu0
    %4471 = vmatpush.msra.mxu0 %v3248
    %4472 = vmatpush.msra.mxu0 %v3232
    %4473 = vmatpush.msra.mxu0 %v3216
    %4474 = vmatpush.msra.mxu0 %v3200
    %4475 = vmatpush.msra.mxu0 %v3184
    %4476 = vmatpush.msra.mxu0 %v3168
    %4477 = vmatpush.msra.mxu0 %v3152
    %4478 = vmatpush.msra.mxu0 %v3136
    %4479 = vmatpush.msra.mxu0 %v3120
    %4480 = vmatpush.msra.mxu0 %v3104
    %4481 = vmatpush.msra.mxu0 %v3088
    %4482 = vmatpush.msra.mxu0 %v3072
    %4483 = vmatpush.msra.mxu0 %v3056
    %4484 = vmatpush.msra.mxu0 %v3040
    %4485 = vmatpush.msra.mxu0 %v3024
    %4486 = vmatpush.msra.mxu0 %v3008
    %4487 = vmatmul.f32.gmra.mxu0 %v2483
    %v4488 = vpop.f32.mrf.mxu0
    %v4489 = vadd.f32 %v4469, %v4488
    %4490 = vdwg.mxu0
    %4491 = vmatpush.msra.mxu0 %v3504
    %4492 = vmatpush.msra.mxu0 %v3488
    %4493 = vmatpush.msra.mxu0 %v3472
    %4494 = vmatpush.msra.mxu0 %v3456
    %4495 = vmatpush.msra.mxu0 %v3440
    %4496 = vmatpush.msra.mxu0 %v3424
    %4497 = vmatpush.msra.mxu0 %v3408
    %4498 = vmatpush.msra.mxu0 %v3392
    %4499 = vmatpush.msra.mxu0 %v3376
    %4500 = vmatpush.msra.mxu0 %v3360
    %4501 = vmatpush.msra.mxu0 %v3344
    %4502 = vmatpush.msra.mxu0 %v3328
    %4503 = vmatpush.msra.mxu0 %v3312
    %4504 = vmatpush.msra.mxu0 %v3296
    %4505 = vmatpush.msra.mxu0 %v3280
    %4506 = vmatpush.msra.mxu0 %v3264
    %4507 = vmatmul.f32.gmra.mxu0 %v2484
    %v4508 = vpop.f32.mrf.mxu0
    %v4509 = vadd.f32 %v4489, %v4508
    %4510 = vdwg.mxu0
    %4511 = vmatpush.msra.mxu0 %v2737
    %4512 = vmatpush.msra.mxu0 %v2721
    %4513 = vmatpush.msra.mxu0 %v2705
    %4514 = vmatpush.msra.mxu0 %v2689
    %4515 = vmatpush.msra.mxu0 %v2673
    %4516 = vmatpush.msra.mxu0 %v2657
    %4517 = vmatpush.msra.mxu0 %v2641
    %4518 = vmatpush.msra.mxu0 %v2625
    %4519 = vmatpush.msra.mxu0 %v2609
    %4520 = vmatpush.msra.mxu0 %v2593
    %4521 = vmatpush.msra.mxu0 %v2577
    %4522 = vmatpush.msra.mxu0 %v2561
    %4523 = vmatpush.msra.mxu0 %v2545
    %4524 = vmatpush.msra.mxu0 %v2529
    %4525 = vmatpush.msra.mxu0 %v2513
    %4526 = vmatpush.msra.mxu0 %v2497
    %4527 = vmatmul.f32.gmra.mxu0 %v2481
    %v4528 = vpop.f32.mrf.mxu0
    %v4529 = vadd.f32 %v3531, %v4528
    %4530 = vdwg.mxu0
    %4531 = vmatpush.msra.mxu0 %v2993
    %4532 = vmatpush.msra.mxu0 %v2977
    %4533 = vmatpush.msra.mxu0 %v2961
    %4534 = vmatpush.msra.mxu0 %v2945
    %4535 = vmatpush.msra.mxu0 %v2929
    %4536 = vmatpush.msra.mxu0 %v2913
    %4537 = vmatpush.msra.mxu0 %v2897
    %4538 = vmatpush.msra.mxu0 %v2881
    %4539 = vmatpush.msra.mxu0 %v2865
    %4540 = vmatpush.msra.mxu0 %v2849
    %4541 = vmatpush.msra.mxu0 %v2833
    %4542 = vmatpush.msra.mxu0 %v2817
    %4543 = vmatpush.msra.mxu0 %v2801
    %4544 = vmatpush.msra.mxu0 %v2785
    %4545 = vmatpush.msra.mxu0 %v2769
    %4546 = vmatpush.msra.mxu0 %v2753
    %4547 = vmatmul.f32.gmra.mxu0 %v2482
    %v4548 = vpop.f32.mrf.mxu0
    %v4549 = vadd.f32 %v4529, %v4548
    %4550 = vdwg.mxu0
    %4551 = vmatpush.msra.mxu0 %v3249
    %4552 = vmatpush.msra.mxu0 %v3233
    %4553 = vmatpush.msra.mxu0 %v3217
    %4554 = vmatpush.msra.mxu0 %v3201
    %4555 = vmatpush.msra.mxu0 %v3185
    %4556 = vmatpush.msra.mxu0 %v3169
    %4557 = vmatpush.msra.mxu0 %v3153
    %4558 = vmatpush.msra.mxu0 %v3137
    %4559 = vmatpush.msra.mxu0 %v3121
    %4560 = vmatpush.msra.mxu0 %v3105
    %4561 = vmatpush.msra.mxu0 %v3089
    %4562 = vmatpush.msra.mxu0 %v3073
    %4563 = vmatpush.msra.mxu0 %v3057
    %4564 = vmatpush.msra.mxu0 %v3041
    %4565 = vmatpush.msra.mxu0 %v3025
    %4566 = vmatpush.msra.mxu0 %v3009
    %4567 = vmatmul.f32.gmra.mxu0 %v2483
    %v4568 = vpop.f32.mrf.mxu0
    %v4569 = vadd.f32 %v4549, %v4568
    %4570 = vdwg.mxu0
    %4571 = vmatpush.msra.mxu0 %v3505
    %4572 = vmatpush.msra.mxu0 %v3489
    %4573 = vmatpush.msra.mxu0 %v3473
    %4574 = vmatpush.msra.mxu0 %v3457
    %4575 = vmatpush.msra.mxu0 %v3441
    %4576 = vmatpush.msra.mxu0 %v3425
    %4577 = vmatpush.msra.mxu0 %v3409
    %4578 = vmatpush.msra.mxu0 %v3393
    %4579 = vmatpush.msra.mxu0 %v3377
    %4580 = vmatpush.msra.mxu0 %v3361
    %4581 = vmatpush.msra.mxu0 %v3345
    %4582 = vmatpush.msra.mxu0 %v3329
    %4583 = vmatpush.msra.mxu0 %v3313
    %4584 = vmatpush.msra.mxu0 %v3297
    %4585 = vmatpush.msra.mxu0 %v3281
    %4586 = vmatpush.msra.mxu0 %v3265
    %4587 = vmatmul.f32.gmra.mxu0 %v2484
    %v4588 = vpop.f32.mrf.mxu0
    %v4589 = vadd.f32 %v4569, %v4588
    %4590 = vdwg.mxu0
    %4591 = vmatpush.msra.mxu0 %v2738
    %4592 = vmatpush.msra.mxu0 %v2722
    %4593 = vmatpush.msra.mxu0 %v2706
    %4594 = vmatpush.msra.mxu0 %v2690
    %4595 = vmatpush.msra.mxu0 %v2674
    %4596 = vmatpush.msra.mxu0 %v2658
    %4597 = vmatpush.msra.mxu0 %v2642
    %4598 = vmatpush.msra.mxu0 %v2626
    %4599 = vmatpush.msra.mxu0 %v2610
    %4600 = vmatpush.msra.mxu0 %v2594
    %4601 = vmatpush.msra.mxu0 %v2578
    %4602 = vmatpush.msra.mxu0 %v2562
    %4603 = vmatpush.msra.mxu0 %v2546
    %4604 = vmatpush.msra.mxu0 %v2530
    %4605 = vmatpush.msra.mxu0 %v2514
    %4606 = vmatpush.msra.mxu0 %v2498
    %4607 = vmatmul.f32.gmra.mxu0 %v2481
    %v4608 = vpop.f32.mrf.mxu0
    %v4609 = vadd.f32 %v3532, %v4608
    %4610 = vdwg.mxu0
    %4611 = vmatpush.msra.mxu0 %v2994
    %4612 = vmatpush.msra.mxu0 %v2978
    %4613 = vmatpush.msra.mxu0 %v2962
    %4614 = vmatpush.msra.mxu0 %v2946
    %4615 = vmatpush.msra.mxu0 %v2930
    %4616 = vmatpush.msra.mxu0 %v2914
    %4617 = vmatpush.msra.mxu0 %v2898
    %4618 = vmatpush.msra.mxu0 %v2882
    %4619 = vmatpush.msra.mxu0 %v2866
    %4620 = vmatpush.msra.mxu0 %v2850
    %4621 = vmatpush.msra.mxu0 %v2834
    %4622 = vmatpush.msra.mxu0 %v2818
    %4623 = vmatpush.msra.mxu0 %v2802
    %4624 = vmatpush.msra.mxu0 %v2786
    %4625 = vmatpush.msra.mxu0 %v2770
    %4626 = vmatpush.msra.mxu0 %v2754
    %4627 = vmatmul.f32.gmra.mxu0 %v2482
    %v4628 = vpop.f32.mrf.mxu0
    %v4629 = vadd.f32 %v4609, %v4628
    %4630 = vdwg.mxu0
    %4631 = vmatpush.msra.mxu0 %v3250
    %4632 = vmatpush.msra.mxu0 %v3234
    %4633 = vmatpush.msra.mxu0 %v3218
    %4634 = vmatpush.msra.mxu0 %v3202
    %4635 = vmatpush.msra.mxu0 %v3186
    %4636 = vmatpush.msra.mxu0 %v3170
    %4637 = vmatpush.msra.mxu0 %v3154
    %4638 = vmatpush.msra.mxu0 %v3138
    %4639 = vmatpush.msra.mxu0 %v3122
    %4640 = vmatpush.msra.mxu0 %v3106
    %4641 = vmatpush.msra.mxu0 %v3090
    %4642 = vmatpush.msra.mxu0 %v3074
    %4643 = vmatpush.msra.mxu0 %v3058
    %4644 = vmatpush.msra.mxu0 %v3042
    %4645 = vmatpush.msra.mxu0 %v3026
    %4646 = vmatpush.msra.mxu0 %v3010
    %4647 = vmatmul.f32.gmra.mxu0 %v2483
    %v4648 = vpop.f32.mrf.mxu0
    %v4649 = vadd.f32 %v4629, %v4648
    %4650 = vdwg.mxu0
    %4651 = vmatpush.msra.mxu0 %v3506
    %4652 = vmatpush.msra.mxu0 %v3490
    %4653 = vmatpush.msra.mxu0 %v3474
    %4654 = vmatpush.msra.mxu0 %v3458
    %4655 = vmatpush.msra.mxu0 %v3442
    %4656 = vmatpush.msra.mxu0 %v3426
    %4657 = vmatpush.msra.mxu0 %v3410
    %4658 = vmatpush.msra.mxu0 %v3394
    %4659 = vmatpush.msra.mxu0 %v3378
    %4660 = vmatpush.msra.mxu0 %v3362
    %4661 = vmatpush.msra.mxu0 %v3346
    %4662 = vmatpush.msra.mxu0 %v3330
    %4663 = vmatpush.msra.mxu0 %v3314
    %4664 = vmatpush.msra.mxu0 %v3298
    %4665 = vmatpush.msra.mxu0 %v3282
    %4666 = vmatpush.msra.mxu0 %v3266
    %4667 = vmatmul.f32.gmra.mxu0 %v2484
    %v4668 = vpop.f32.mrf.mxu0
    %v4669 = vadd.f32 %v4649, %v4668
    %4670 = vdwg.mxu0
    %4671 = vmatpush.msra.mxu0 %v2739
    %4672 = vmatpush.msra.mxu0 %v2723
    %4673 = vmatpush.msra.mxu0 %v2707
    %4674 = vmatpush.msra.mxu0 %v2691
    %4675 = vmatpush.msra.mxu0 %v2675
    %4676 = vmatpush.msra.mxu0 %v2659
    %4677 = vmatpush.msra.mxu0 %v2643
    %4678 = vmatpush.msra.mxu0 %v2627
    %4679 = vmatpush.msra.mxu0 %v2611
    %4680 = vmatpush.msra.mxu0 %v2595
    %4681 = vmatpush.msra.mxu0 %v2579
    %4682 = vmatpush.msra.mxu0 %v2563
    %4683 = vmatpush.msra.mxu0 %v2547
    %4684 = vmatpush.msra.mxu0 %v2531
    %4685 = vmatpush.msra.mxu0 %v2515
    %4686 = vmatpush.msra.mxu0 %v2499
    %4687 = vmatmul.f32.gmra.mxu0 %v2481
    %v4688 = vpop.f32.mrf.mxu0
    %v4689 = vadd.f32 %v3533, %v4688
    %4690 = vdwg.mxu0
    %4691 = vmatpush.msra.mxu0 %v2995
    %4692 = vmatpush.msra.mxu0 %v2979
    %4693 = vmatpush.msra.mxu0 %v2963
    %4694 = vmatpush.msra.mxu0 %v2947
    %4695 = vmatpush.msra.mxu0 %v2931
    %4696 = vmatpush.msra.mxu0 %v2915
    %4697 = vmatpush.msra.mxu0 %v2899
    %4698 = vmatpush.msra.mxu0 %v2883
    %4699 = vmatpush.msra.mxu0 %v2867
    %4700 = vmatpush.msra.mxu0 %v2851
    %4701 = vmatpush.msra.mxu0 %v2835
    %4702 = vmatpush.msra.mxu0 %v2819
    %4703 = vmatpush.msra.mxu0 %v2803
    %4704 = vmatpush.msra.mxu0 %v2787
    %4705 = vmatpush.msra.mxu0 %v2771
    %4706 = vmatpush.msra.mxu0 %v2755
    %4707 = vmatmul.f32.gmra.mxu0 %v2482
    %v4708 = vpop.f32.mrf.mxu0
    %v4709 = vadd.f32 %v4689, %v4708
    %4710 = vdwg.mxu0
    %4711 = vmatpush.msra.mxu0 %v3251
    %4712 = vmatpush.msra.mxu0 %v3235
    %4713 = vmatpush.msra.mxu0 %v3219
    %4714 = vmatpush.msra.mxu0 %v3203
    %4715 = vmatpush.msra.mxu0 %v3187
    %4716 = vmatpush.msra.mxu0 %v3171
    %4717 = vmatpush.msra.mxu0 %v3155
    %4718 = vmatpush.msra.mxu0 %v3139
    %4719 = vmatpush.msra.mxu0 %v3123
    %4720 = vmatpush.msra.mxu0 %v3107
    %4721 = vmatpush.msra.mxu0 %v3091
    %4722 = vmatpush.msra.mxu0 %v3075
    %4723 = vmatpush.msra.mxu0 %v3059
    %4724 = vmatpush.msra.mxu0 %v3043
    %4725 = vmatpush.msra.mxu0 %v3027
    %4726 = vmatpush.msra.mxu0 %v3011
    %4727 = vmatmul.f32.gmra.mxu0 %v2483
    %v4728 = vpop.f32.mrf.mxu0
    %v4729 = vadd.f32 %v4709, %v4728
    %4730 = vdwg.mxu0
    %4731 = vmatpush.msra.mxu0 %v3507
    %4732 = vmatpush.msra.mxu0 %v3491
    %4733 = vmatpush.msra.mxu0 %v3475
    %4734 = vmatpush.msra.mxu0 %v3459
    %4735 = vmatpush.msra.mxu0 %v3443
    %4736 = vmatpush.msra.mxu0 %v3427
    %4737 = vmatpush.msra.mxu0 %v3411
    %4738 = vmatpush.msra.mxu0 %v3395
    %4739 = vmatpush.msra.mxu0 %v3379
    %4740 = vmatpush.msra.mxu0 %v3363
    %4741 = vmatpush.msra.mxu0 %v3347
    %4742 = vmatpush.msra.mxu0 %v3331
    %4743 = vmatpush.msra.mxu0 %v3315
    %4744 = vmatpush.msra.mxu0 %v3299
    %4745 = vmatpush.msra.mxu0 %v3283
    %4746 = vmatpush.msra.mxu0 %v3267
    %4747 = vmatmul.f32.gmra.mxu0 %v2484
    %v4748 = vpop.f32.mrf.mxu0
    %v4749 = vadd.f32 %v4729, %v4748
    %4750 = vdwg.mxu0
    %4751 = vmatpush.msra.mxu0 %v2740
    %4752 = vmatpush.msra.mxu0 %v2724
    %4753 = vmatpush.msra.mxu0 %v2708
    %4754 = vmatpush.msra.mxu0 %v2692
    %4755 = vmatpush.msra.mxu0 %v2676
    %4756 = vmatpush.msra.mxu0 %v2660
    %4757 = vmatpush.msra.mxu0 %v2644
    %4758 = vmatpush.msra.mxu0 %v2628
    %4759 = vmatpush.msra.mxu0 %v2612
    %4760 = vmatpush.msra.mxu0 %v2596
    %4761 = vmatpush.msra.mxu0 %v2580
    %4762 = vmatpush.msra.mxu0 %v2564
    %4763 = vmatpush.msra.mxu0 %v2548
    %4764 = vmatpush.msra.mxu0 %v2532
    %4765 = vmatpush.msra.mxu0 %v2516
    %4766 = vmatpush.msra.mxu0 %v2500
    %4767 = vmatmul.f32.gmra.mxu0 %v2481
    %v4768 = vpop.f32.mrf.mxu0
    %v4769 = vadd.f32 %v3534, %v4768
    %4770 = vdwg.mxu0
    %4771 = vmatpush.msra.mxu0 %v2996
    %4772 = vmatpush.msra.mxu0 %v2980
    %4773 = vmatpush.msra.mxu0 %v2964
    %4774 = vmatpush.msra.mxu0 %v2948
    %4775 = vmatpush.msra.mxu0 %v2932
    %4776 = vmatpush.msra.mxu0 %v2916
    %4777 = vmatpush.msra.mxu0 %v2900
    %4778 = vmatpush.msra.mxu0 %v2884
    %4779 = vmatpush.msra.mxu0 %v2868
    %4780 = vmatpush.msra.mxu0 %v2852
    %4781 = vmatpush.msra.mxu0 %v2836
    %4782 = vmatpush.msra.mxu0 %v2820
    %4783 = vmatpush.msra.mxu0 %v2804
    %4784 = vmatpush.msra.mxu0 %v2788
    %4785 = vmatpush.msra.mxu0 %v2772
    %4786 = vmatpush.msra.mxu0 %v2756
    %4787 = vmatmul.f32.gmra.mxu0 %v2482
    %v4788 = vpop.f32.mrf.mxu0
    %v4789 = vadd.f32 %v4769, %v4788
    %4790 = vdwg.mxu0
    %4791 = vmatpush.msra.mxu0 %v3252
    %4792 = vmatpush.msra.mxu0 %v3236
    %4793 = vmatpush.msra.mxu0 %v3220
    %4794 = vmatpush.msra.mxu0 %v3204
    %4795 = vmatpush.msra.mxu0 %v3188
    %4796 = vmatpush.msra.mxu0 %v3172
    %4797 = vmatpush.msra.mxu0 %v3156
    %4798 = vmatpush.msra.mxu0 %v3140
    %4799 = vmatpush.msra.mxu0 %v3124
    %4800 = vmatpush.msra.mxu0 %v3108
    %4801 = vmatpush.msra.mxu0 %v3092
    %4802 = vmatpush.msra.mxu0 %v3076
    %4803 = vmatpush.msra.mxu0 %v3060
    %4804 = vmatpush.msra.mxu0 %v3044
    %4805 = vmatpush.msra.mxu0 %v3028
    %4806 = vmatpush.msra.mxu0 %v3012
    %4807 = vmatmul.f32.gmra.mxu0 %v2483
    %v4808 = vpop.f32.mrf.mxu0
    %v4809 = vadd.f32 %v4789, %v4808
    %4810 = vdwg.mxu0
    %4811 = vmatpush.msra.mxu0 %v3508
    %4812 = vmatpush.msra.mxu0 %v3492
    %4813 = vmatpush.msra.mxu0 %v3476
    %4814 = vmatpush.msra.mxu0 %v3460
    %4815 = vmatpush.msra.mxu0 %v3444
    %4816 = vmatpush.msra.mxu0 %v3428
    %4817 = vmatpush.msra.mxu0 %v3412
    %4818 = vmatpush.msra.mxu0 %v3396
    %4819 = vmatpush.msra.mxu0 %v3380
    %4820 = vmatpush.msra.mxu0 %v3364
    %4821 = vmatpush.msra.mxu0 %v3348
    %4822 = vmatpush.msra.mxu0 %v3332
    %4823 = vmatpush.msra.mxu0 %v3316
    %4824 = vmatpush.msra.mxu0 %v3300
    %4825 = vmatpush.msra.mxu0 %v3284
    %4826 = vmatpush.msra.mxu0 %v3268
    %4827 = vmatmul.f32.gmra.mxu0 %v2484
    %v4828 = vpop.f32.mrf.mxu0
    %v4829 = vadd.f32 %v4809, %v4828
    %4830 = vdwg.mxu0
    %v4831 = vmul.f32 %v3629, 0.5
    %v4832 = vmul.f32 %v3709, 0.5
    %v4833 = vmul.f32 %v3789, 0.5
    %v4834 = vmul.f32 %v3869, 0.5
    %v4835 = vmul.f32 %v3949, 0.5
    %v4836 = vmul.f32 %v4029, 0.5
    %v4837 = vmul.f32 %v4109, 0.5
    %v4838 = vmul.f32 %v4189, 0.5
    %v4839 = vmul.f32 %v4269, 0.5
    %v4840 = vmul.f32 %v4349, 0.5
    %v4841 = vmul.f32 %v4429, 0.5
    %v4842 = vmul.f32 %v4509, 0.5
    %v4843 = vmul.f32 %v4589, 0.5
    %v4844 = vmul.f32 %v4669, 0.5
    %v4845 = vmul.f32 %v4749, 0.5
    %v4846 = vmul.f32 %v4829, 0.5
    %v4847 = vmul.f32 %v3629, 0.70710677
    %v4848 = vmul.f32 %v3709, 0.70710677
    %v4849 = vmul.f32 %v3789, 0.70710677
    %v4850 = vmul.f32 %v3869, 0.70710677
    %v4851 = vmul.f32 %v3949, 0.70710677
    %v4852 = vmul.f32 %v4029, 0.70710677
    %v4853 = vmul.f32 %v4109, 0.70710677
    %v4854 = vmul.f32 %v4189, 0.70710677
    %v4855 = vmul.f32 %v4269, 0.70710677
    %v4856 = vmul.f32 %v4349, 0.70710677
    %v4857 = vmul.f32 %v4429, 0.70710677
    %v4858 = vmul.f32 %v4509, 0.70710677
    %v4859 = vmul.f32 %v4589, 0.70710677
    %v4860 = vmul.f32 %v4669, 0.70710677
    %v4861 = vmul.f32 %v4749, 0.70710677
    %v4862 = vmul.f32 %v4829, 0.70710677
    %v4863 = vmul.f32 %v4847, %v4847
    %v4864 = vmin.f32 16.0, %v4863
    %v4865 = vmul.f32 %v4864, 2.1237322e-06
    %v4866 = vadd.f32 %v4865, 0.00028619796
    %v4867 = vmul.f32 %v4864, %v4866
    %v4868 = vadd.f32 %v4867, 0.0036580483
    %v4869 = vmul.f32 %v4864, %v4868
    %v4870 = vadd.f32 %v4869, 0.05243302
    %v4871 = vmul.f32 %v4864, %v4870
    %v4872 = vadd.f32 %v4871, 0.18741608
    %v4873 = vmul.f32 %v4864, %v4872
    %v4874 = vadd.f32 %v4873, 1.1283791
    %v4875 = vmul.f32 %v4847, %v4874
    %v4876 = vmul.f32 %v4864, 3.8918573e-05
    %v4877 = vadd.f32 %v4876, 0.001143296
    %v4878 = vmul.f32 %v4864, %v4877
    %v4879 = vadd.f32 %v4878, 0.014752088
    %v4880 = vmul.f32 %v4864, %v4879
    %v4881 = vadd.f32 %v4880, 0.112945676
    %v4882 = vmul.f32 %v4864, %v4881
    %v4883 = vadd.f32 %v4882, 0.4994258
    %v4884 = vmul.f32 %v4864, %v4883
    %v4885 = vadd.f32 %v4884, 1.0
    %v4886 = vrcp.pop %v4885
    %v4887 = vmul.f32 %v4885, %v4886
    %v4888 = vsub.f32 1.0, %v4887
    %v4889 = vmul.f32 %v4886, %v4888
    %v4890 = vadd.f32 %v4886, %v4889
    %vm4891 = vweird.f32 %v4885
    %vm4892 = vweird.f32 %v4886
    %vm4893 = vmor %vm4891, %vm4892
    %v4894 = vsel %vm4893, %v4886, %v4890
    %v4895 = vand.u32 2147483647, %v4885
    %vm4896 = vcmp.eq.f32.partialorder %v4895, 8.507059e+37
    %v4897 = vand.u32 %v4885, 2147483648
    %v4898 = vor.u32 1.1754944e-38, %v4897
    %v4899 = vsel %vm4896, %v4898, %v4894
    %v4900 = vmul.f32 %v4875, %v4899
    %v4901 = vmin.f32 %v4900, 1.0
    %v4902 = vmax.f32 %v4901, -1.0
    %v4903 = vmul.f32 %v4848, %v4848
    %v4904 = vmin.f32 16.0, %v4903
    %v4905 = vmul.f32 %v4904, 2.1237322e-06
    %v4906 = vadd.f32 %v4905, 0.00028619796
    %v4907 = vmul.f32 %v4904, %v4906
    %v4908 = vadd.f32 %v4907, 0.0036580483
    %v4909 = vmul.f32 %v4904, %v4908
    %v4910 = vadd.f32 %v4909, 0.05243302
    %v4911 = vmul.f32 %v4904, %v4910
    %v4912 = vadd.f32 %v4911, 0.18741608
    %v4913 = vmul.f32 %v4904, %v4912
    %v4914 = vadd.f32 %v4913, 1.1283791
    %v4915 = vmul.f32 %v4848, %v4914
    %v4916 = vmul.f32 %v4904, 3.8918573e-05
    %v4917 = vadd.f32 %v4916, 0.001143296
    %v4918 = vmul.f32 %v4904, %v4917
    %v4919 = vadd.f32 %v4918, 0.014752088
    %v4920 = vmul.f32 %v4904, %v4919
    %v4921 = vadd.f32 %v4920, 0.112945676
    %v4922 = vmul.f32 %v4904, %v4921
    %v4923 = vadd.f32 %v4922, 0.4994258
    %v4924 = vmul.f32 %v4904, %v4923
    %v4925 = vadd.f32 %v4924, 1.0
    %v4926 = vrcp.pop %v4925
    %v4927 = vmul.f32 %v4925, %v4926
    %v4928 = vsub.f32 1.0, %v4927
    %v4929 = vmul.f32 %v4926, %v4928
    %v4930 = vadd.f32 %v4926, %v4929
    %vm4931 = vweird.f32 %v4925
    %vm4932 = vweird.f32 %v4926
    %vm4933 = vmor %vm4931, %vm4932
    %v4934 = vsel %vm4933, %v4926, %v4930
    %v4935 = vand.u32 2147483647, %v4925
    %vm4936 = vcmp.eq.f32.partialorder %v4935, 8.507059e+37
    %v4937 = vand.u32 %v4925, 2147483648
    %v4938 = vor.u32 1.1754944e-38, %v4937
    %v4939 = vsel %vm4936, %v4938, %v4934
    %v4940 = vmul.f32 %v4915, %v4939
    %v4941 = vmin.f32 %v4940, 1.0
    %v4942 = vmax.f32 %v4941, -1.0
    %v4943 = vmul.f32 %v4849, %v4849
    %v4944 = vmin.f32 16.0, %v4943
    %v4945 = vmul.f32 %v4944, 2.1237322e-06
    %v4946 = vadd.f32 %v4945, 0.00028619796
    %v4947 = vmul.f32 %v4944, %v4946
    %v4948 = vadd.f32 %v4947, 0.0036580483
    %v4949 = vmul.f32 %v4944, %v4948
    %v4950 = vadd.f32 %v4949, 0.05243302
    %v4951 = vmul.f32 %v4944, %v4950
    %v4952 = vadd.f32 %v4951, 0.18741608
    %v4953 = vmul.f32 %v4944, %v4952
    %v4954 = vadd.f32 %v4953, 1.1283791
    %v4955 = vmul.f32 %v4849, %v4954
    %v4956 = vmul.f32 %v4944, 3.8918573e-05
    %v4957 = vadd.f32 %v4956, 0.001143296
    %v4958 = vmul.f32 %v4944, %v4957
    %v4959 = vadd.f32 %v4958, 0.014752088
    %v4960 = vmul.f32 %v4944, %v4959
    %v4961 = vadd.f32 %v4960, 0.112945676
    %v4962 = vmul.f32 %v4944, %v4961
    %v4963 = vadd.f32 %v4962, 0.4994258
    %v4964 = vmul.f32 %v4944, %v4963
    %v4965 = vadd.f32 %v4964, 1.0
    %v4966 = vrcp.pop %v4965
    %v4967 = vmul.f32 %v4965, %v4966
    %v4968 = vsub.f32 1.0, %v4967
    %v4969 = vmul.f32 %v4966, %v4968
    %v4970 = vadd.f32 %v4966, %v4969
    %vm4971 = vweird.f32 %v4965
    %vm4972 = vweird.f32 %v4966
    %vm4973 = vmor %vm4971, %vm4972
    %v4974 = vsel %vm4973, %v4966, %v4970
    %v4975 = vand.u32 2147483647, %v4965
    %vm4976 = vcmp.eq.f32.partialorder %v4975, 8.507059e+37
    %v4977 = vand.u32 %v4965, 2147483648
    %v4978 = vor.u32 1.1754944e-38, %v4977
    %v4979 = vsel %vm4976, %v4978, %v4974
    %v4980 = vmul.f32 %v4955, %v4979
    %v4981 = vmin.f32 %v4980, 1.0
    %v4982 = vmax.f32 %v4981, -1.0
    %v4983 = vmul.f32 %v4850, %v4850
    %v4984 = vmin.f32 16.0, %v4983
    %v4985 = vmul.f32 %v4984, 2.1237322e-06
    %v4986 = vadd.f32 %v4985, 0.00028619796
    %v4987 = vmul.f32 %v4984, %v4986
    %v4988 = vadd.f32 %v4987, 0.0036580483
    %v4989 = vmul.f32 %v4984, %v4988
    %v4990 = vadd.f32 %v4989, 0.05243302
    %v4991 = vmul.f32 %v4984, %v4990
    %v4992 = vadd.f32 %v4991, 0.18741608
    %v4993 = vmul.f32 %v4984, %v4992
    %v4994 = vadd.f32 %v4993, 1.1283791
    %v4995 = vmul.f32 %v4850, %v4994
    %v4996 = vmul.f32 %v4984, 3.8918573e-05
    %v4997 = vadd.f32 %v4996, 0.001143296
    %v4998 = vmul.f32 %v4984, %v4997
    %v4999 = vadd.f32 %v4998, 0.014752088
    %v5000 = vmul.f32 %v4984, %v4999
    %v5001 = vadd.f32 %v5000, 0.112945676
    %v5002 = vmul.f32 %v4984, %v5001
    %v5003 = vadd.f32 %v5002, 0.4994258
    %v5004 = vmul.f32 %v4984, %v5003
    %v5005 = vadd.f32 %v5004, 1.0
    %v5006 = vrcp.pop %v5005
    %v5007 = vmul.f32 %v5005, %v5006
    %v5008 = vsub.f32 1.0, %v5007
    %v5009 = vmul.f32 %v5006, %v5008
    %v5010 = vadd.f32 %v5006, %v5009
    %vm5011 = vweird.f32 %v5005
    %vm5012 = vweird.f32 %v5006
    %vm5013 = vmor %vm5011, %vm5012
    %v5014 = vsel %vm5013, %v5006, %v5010
    %v5015 = vand.u32 2147483647, %v5005
    %vm5016 = vcmp.eq.f32.partialorder %v5015, 8.507059e+37
    %v5017 = vand.u32 %v5005, 2147483648
    %v5018 = vor.u32 1.1754944e-38, %v5017
    %v5019 = vsel %vm5016, %v5018, %v5014
    %v5020 = vmul.f32 %v4995, %v5019
    %v5021 = vmin.f32 %v5020, 1.0
    %v5022 = vmax.f32 %v5021, -1.0
    %v5023 = vmul.f32 %v4851, %v4851
    %v5024 = vmin.f32 16.0, %v5023
    %v5025 = vmul.f32 %v5024, 2.1237322e-06
    %v5026 = vadd.f32 %v5025, 0.00028619796
    %v5027 = vmul.f32 %v5024, %v5026
    %v5028 = vadd.f32 %v5027, 0.0036580483
    %v5029 = vmul.f32 %v5024, %v5028
    %v5030 = vadd.f32 %v5029, 0.05243302
    %v5031 = vmul.f32 %v5024, %v5030
    %v5032 = vadd.f32 %v5031, 0.18741608
    %v5033 = vmul.f32 %v5024, %v5032
    %v5034 = vadd.f32 %v5033, 1.1283791
    %v5035 = vmul.f32 %v4851, %v5034
    %v5036 = vmul.f32 %v5024, 3.8918573e-05
    %v5037 = vadd.f32 %v5036, 0.001143296
    %v5038 = vmul.f32 %v5024, %v5037
    %v5039 = vadd.f32 %v5038, 0.014752088
    %v5040 = vmul.f32 %v5024, %v5039
    %v5041 = vadd.f32 %v5040, 0.112945676
    %v5042 = vmul.f32 %v5024, %v5041
    %v5043 = vadd.f32 %v5042, 0.4994258
    %v5044 = vmul.f32 %v5024, %v5043
    %v5045 = vadd.f32 %v5044, 1.0
    %v5046 = vrcp.pop %v5045
    %v5047 = vmul.f32 %v5045, %v5046
    %v5048 = vsub.f32 1.0, %v5047
    %v5049 = vmul.f32 %v5046, %v5048
    %v5050 = vadd.f32 %v5046, %v5049
    %vm5051 = vweird.f32 %v5045
    %vm5052 = vweird.f32 %v5046
    %vm5053 = vmor %vm5051, %vm5052
    %v5054 = vsel %vm5053, %v5046, %v5050
    %v5055 = vand.u32 2147483647, %v5045
    %vm5056 = vcmp.eq.f32.partialorder %v5055, 8.507059e+37
    %v5057 = vand.u32 %v5045, 2147483648
    %v5058 = vor.u32 1.1754944e-38, %v5057
    %v5059 = vsel %vm5056, %v5058, %v5054
    %v5060 = vmul.f32 %v5035, %v5059
    %v5061 = vmin.f32 %v5060, 1.0
    %v5062 = vmax.f32 %v5061, -1.0
    %v5063 = vmul.f32 %v4852, %v4852
    %v5064 = vmin.f32 16.0, %v5063
    %v5065 = vmul.f32 %v5064, 2.1237322e-06
    %v5066 = vadd.f32 %v5065, 0.00028619796
    %v5067 = vmul.f32 %v5064, %v5066
    %v5068 = vadd.f32 %v5067, 0.0036580483
    %v5069 = vmul.f32 %v5064, %v5068
    %v5070 = vadd.f32 %v5069, 0.05243302
    %v5071 = vmul.f32 %v5064, %v5070
    %v5072 = vadd.f32 %v5071, 0.18741608
    %v5073 = vmul.f32 %v5064, %v5072
    %v5074 = vadd.f32 %v5073, 1.1283791
    %v5075 = vmul.f32 %v4852, %v5074
    %v5076 = vmul.f32 %v5064, 3.8918573e-05
    %v5077 = vadd.f32 %v5076, 0.001143296
    %v5078 = vmul.f32 %v5064, %v5077
    %v5079 = vadd.f32 %v5078, 0.014752088
    %v5080 = vmul.f32 %v5064, %v5079
    %v5081 = vadd.f32 %v5080, 0.112945676
    %v5082 = vmul.f32 %v5064, %v5081
    %v5083 = vadd.f32 %v5082, 0.4994258
    %v5084 = vmul.f32 %v5064, %v5083
    %v5085 = vadd.f32 %v5084, 1.0
    %v5086 = vrcp.pop %v5085
    %v5087 = vmul.f32 %v5085, %v5086
    %v5088 = vsub.f32 1.0, %v5087
    %v5089 = vmul.f32 %v5086, %v5088
    %v5090 = vadd.f32 %v5086, %v5089
    %vm5091 = vweird.f32 %v5085
    %vm5092 = vweird.f32 %v5086
    %vm5093 = vmor %vm5091, %vm5092
    %v5094 = vsel %vm5093, %v5086, %v5090
    %v5095 = vand.u32 2147483647, %v5085
    %vm5096 = vcmp.eq.f32.partialorder %v5095, 8.507059e+37
    %v5097 = vand.u32 %v5085, 2147483648
    %v5098 = vor.u32 1.1754944e-38, %v5097
    %v5099 = vsel %vm5096, %v5098, %v5094
    %v5100 = vmul.f32 %v5075, %v5099
    %v5101 = vmin.f32 %v5100, 1.0
    %v5102 = vmax.f32 %v5101, -1.0
    %v5103 = vmul.f32 %v4853, %v4853
    %v5104 = vmin.f32 16.0, %v5103
    %v5105 = vmul.f32 %v5104, 2.1237322e-06
    %v5106 = vadd.f32 %v5105, 0.00028619796
    %v5107 = vmul.f32 %v5104, %v5106
    %v5108 = vadd.f32 %v5107, 0.0036580483
    %v5109 = vmul.f32 %v5104, %v5108
    %v5110 = vadd.f32 %v5109, 0.05243302
    %v5111 = vmul.f32 %v5104, %v5110
    %v5112 = vadd.f32 %v5111, 0.18741608
    %v5113 = vmul.f32 %v5104, %v5112
    %v5114 = vadd.f32 %v5113, 1.1283791
    %v5115 = vmul.f32 %v4853, %v5114
    %v5116 = vmul.f32 %v5104, 3.8918573e-05
    %v5117 = vadd.f32 %v5116, 0.001143296
    %v5118 = vmul.f32 %v5104, %v5117
    %v5119 = vadd.f32 %v5118, 0.014752088
    %v5120 = vmul.f32 %v5104, %v5119
    %v5121 = vadd.f32 %v5120, 0.112945676
    %v5122 = vmul.f32 %v5104, %v5121
    %v5123 = vadd.f32 %v5122, 0.4994258
    %v5124 = vmul.f32 %v5104, %v5123
    %v5125 = vadd.f32 %v5124, 1.0
    %v5126 = vrcp.pop %v5125
    %v5127 = vmul.f32 %v5125, %v5126
    %v5128 = vsub.f32 1.0, %v5127
    %v5129 = vmul.f32 %v5126, %v5128
    %v5130 = vadd.f32 %v5126, %v5129
    %vm5131 = vweird.f32 %v5125
    %vm5132 = vweird.f32 %v5126
    %vm5133 = vmor %vm5131, %vm5132
    %v5134 = vsel %vm5133, %v5126, %v5130
    %v5135 = vand.u32 2147483647, %v5125
    %vm5136 = vcmp.eq.f32.partialorder %v5135, 8.507059e+37
    %v5137 = vand.u32 %v5125, 2147483648
    %v5138 = vor.u32 1.1754944e-38, %v5137
    %v5139 = vsel %vm5136, %v5138, %v5134
    %v5140 = vmul.f32 %v5115, %v5139
    %v5141 = vmin.f32 %v5140, 1.0
    %v5142 = vmax.f32 %v5141, -1.0
    %v5143 = vmul.f32 %v4854, %v4854
    %v5144 = vmin.f32 16.0, %v5143
    %v5145 = vmul.f32 %v5144, 2.1237322e-06
    %v5146 = vadd.f32 %v5145, 0.00028619796
    %v5147 = vmul.f32 %v5144, %v5146
    %v5148 = vadd.f32 %v5147, 0.0036580483
    %v5149 = vmul.f32 %v5144, %v5148
    %v5150 = vadd.f32 %v5149, 0.05243302
    %v5151 = vmul.f32 %v5144, %v5150
    %v5152 = vadd.f32 %v5151, 0.18741608
    %v5153 = vmul.f32 %v5144, %v5152
    %v5154 = vadd.f32 %v5153, 1.1283791
    %v5155 = vmul.f32 %v4854, %v5154
    %v5156 = vmul.f32 %v5144, 3.8918573e-05
    %v5157 = vadd.f32 %v5156, 0.001143296
    %v5158 = vmul.f32 %v5144, %v5157
    %v5159 = vadd.f32 %v5158, 0.014752088
    %v5160 = vmul.f32 %v5144, %v5159
    %v5161 = vadd.f32 %v5160, 0.112945676
    %v5162 = vmul.f32 %v5144, %v5161
    %v5163 = vadd.f32 %v5162, 0.4994258
    %v5164 = vmul.f32 %v5144, %v5163
    %v5165 = vadd.f32 %v5164, 1.0
    %v5166 = vrcp.pop %v5165
    %v5167 = vmul.f32 %v5165, %v5166
    %v5168 = vsub.f32 1.0, %v5167
    %v5169 = vmul.f32 %v5166, %v5168
    %v5170 = vadd.f32 %v5166, %v5169
    %vm5171 = vweird.f32 %v5165
    %vm5172 = vweird.f32 %v5166
    %vm5173 = vmor %vm5171, %vm5172
    %v5174 = vsel %vm5173, %v5166, %v5170
    %v5175 = vand.u32 2147483647, %v5165
    %vm5176 = vcmp.eq.f32.partialorder %v5175, 8.507059e+37
    %v5177 = vand.u32 %v5165, 2147483648
    %v5178 = vor.u32 1.1754944e-38, %v5177
    %v5179 = vsel %vm5176, %v5178, %v5174
    %v5180 = vmul.f32 %v5155, %v5179
    %v5181 = vmin.f32 %v5180, 1.0
    %v5182 = vmax.f32 %v5181, -1.0
    %v5183 = vmul.f32 %v4855, %v4855
    %v5184 = vmin.f32 16.0, %v5183
    %v5185 = vmul.f32 %v5184, 2.1237322e-06
    %v5186 = vadd.f32 %v5185, 0.00028619796
    %v5187 = vmul.f32 %v5184, %v5186
    %v5188 = vadd.f32 %v5187, 0.0036580483
    %v5189 = vmul.f32 %v5184, %v5188
    %v5190 = vadd.f32 %v5189, 0.05243302
    %v5191 = vmul.f32 %v5184, %v5190
    %v5192 = vadd.f32 %v5191, 0.18741608
    %v5193 = vmul.f32 %v5184, %v5192
    %v5194 = vadd.f32 %v5193, 1.1283791
    %v5195 = vmul.f32 %v4855, %v5194
    %v5196 = vmul.f32 %v5184, 3.8918573e-05
    %v5197 = vadd.f32 %v5196, 0.001143296
    %v5198 = vmul.f32 %v5184, %v5197
    %v5199 = vadd.f32 %v5198, 0.014752088
    %v5200 = vmul.f32 %v5184, %v5199
    %v5201 = vadd.f32 %v5200, 0.112945676
    %v5202 = vmul.f32 %v5184, %v5201
    %v5203 = vadd.f32 %v5202, 0.4994258
    %v5204 = vmul.f32 %v5184, %v5203
    %v5205 = vadd.f32 %v5204, 1.0
    %v5206 = vrcp.pop %v5205
    %v5207 = vmul.f32 %v5205, %v5206
    %v5208 = vsub.f32 1.0, %v5207
    %v5209 = vmul.f32 %v5206, %v5208
    %v5210 = vadd.f32 %v5206, %v5209
    %vm5211 = vweird.f32 %v5205
    %vm5212 = vweird.f32 %v5206
    %vm5213 = vmor %vm5211, %vm5212
    %v5214 = vsel %vm5213, %v5206, %v5210
    %v5215 = vand.u32 2147483647, %v5205
    %vm5216 = vcmp.eq.f32.partialorder %v5215, 8.507059e+37
    %v5217 = vand.u32 %v5205, 2147483648
    %v5218 = vor.u32 1.1754944e-38, %v5217
    %v5219 = vsel %vm5216, %v5218, %v5214
    %v5220 = vmul.f32 %v5195, %v5219
    %v5221 = vmin.f32 %v5220, 1.0
    %v5222 = vmax.f32 %v5221, -1.0
    %v5223 = vmul.f32 %v4856, %v4856
    %v5224 = vmin.f32 16.0, %v5223
    %v5225 = vmul.f32 %v5224, 2.1237322e-06
    %v5226 = vadd.f32 %v5225, 0.00028619796
    %v5227 = vmul.f32 %v5224, %v5226
    %v5228 = vadd.f32 %v5227, 0.0036580483
    %v5229 = vmul.f32 %v5224, %v5228
    %v5230 = vadd.f32 %v5229, 0.05243302
    %v5231 = vmul.f32 %v5224, %v5230
    %v5232 = vadd.f32 %v5231, 0.18741608
    %v5233 = vmul.f32 %v5224, %v5232
    %v5234 = vadd.f32 %v5233, 1.1283791
    %v5235 = vmul.f32 %v4856, %v5234
    %v5236 = vmul.f32 %v5224, 3.8918573e-05
    %v5237 = vadd.f32 %v5236, 0.001143296
    %v5238 = vmul.f32 %v5224, %v5237
    %v5239 = vadd.f32 %v5238, 0.014752088
    %v5240 = vmul.f32 %v5224, %v5239
    %v5241 = vadd.f32 %v5240, 0.112945676
    %v5242 = vmul.f32 %v5224, %v5241
    %v5243 = vadd.f32 %v5242, 0.4994258
    %v5244 = vmul.f32 %v5224, %v5243
    %v5245 = vadd.f32 %v5244, 1.0
    %v5246 = vrcp.pop %v5245
    %v5247 = vmul.f32 %v5245, %v5246
    %v5248 = vsub.f32 1.0, %v5247
    %v5249 = vmul.f32 %v5246, %v5248
    %v5250 = vadd.f32 %v5246, %v5249
    %vm5251 = vweird.f32 %v5245
    %vm5252 = vweird.f32 %v5246
    %vm5253 = vmor %vm5251, %vm5252
    %v5254 = vsel %vm5253, %v5246, %v5250
    %v5255 = vand.u32 2147483647, %v5245
    %vm5256 = vcmp.eq.f32.partialorder %v5255, 8.507059e+37
    %v5257 = vand.u32 %v5245, 2147483648
    %v5258 = vor.u32 1.1754944e-38, %v5257
    %v5259 = vsel %vm5256, %v5258, %v5254
    %v5260 = vmul.f32 %v5235, %v5259
    %v5261 = vmin.f32 %v5260, 1.0
    %v5262 = vmax.f32 %v5261, -1.0
    %v5263 = vmul.f32 %v4857, %v4857
    %v5264 = vmin.f32 16.0, %v5263
    %v5265 = vmul.f32 %v5264, 2.1237322e-06
    %v5266 = vadd.f32 %v5265, 0.00028619796
    %v5267 = vmul.f32 %v5264, %v5266
    %v5268 = vadd.f32 %v5267, 0.0036580483
    %v5269 = vmul.f32 %v5264, %v5268
    %v5270 = vadd.f32 %v5269, 0.05243302
    %v5271 = vmul.f32 %v5264, %v5270
    %v5272 = vadd.f32 %v5271, 0.18741608
    %v5273 = vmul.f32 %v5264, %v5272
    %v5274 = vadd.f32 %v5273, 1.1283791
    %v5275 = vmul.f32 %v4857, %v5274
    %v5276 = vmul.f32 %v5264, 3.8918573e-05
    %v5277 = vadd.f32 %v5276, 0.001143296
    %v5278 = vmul.f32 %v5264, %v5277
    %v5279 = vadd.f32 %v5278, 0.014752088
    %v5280 = vmul.f32 %v5264, %v5279
    %v5281 = vadd.f32 %v5280, 0.112945676
    %v5282 = vmul.f32 %v5264, %v5281
    %v5283 = vadd.f32 %v5282, 0.4994258
    %v5284 = vmul.f32 %v5264, %v5283
    %v5285 = vadd.f32 %v5284, 1.0
    %v5286 = vrcp.pop %v5285
    %v5287 = vmul.f32 %v5285, %v5286
    %v5288 = vsub.f32 1.0, %v5287
    %v5289 = vmul.f32 %v5286, %v5288
    %v5290 = vadd.f32 %v5286, %v5289
    %vm5291 = vweird.f32 %v5285
    %vm5292 = vweird.f32 %v5286
    %vm5293 = vmor %vm5291, %vm5292
    %v5294 = vsel %vm5293, %v5286, %v5290
    %v5295 = vand.u32 2147483647, %v5285
    %vm5296 = vcmp.eq.f32.partialorder %v5295, 8.507059e+37
    %v5297 = vand.u32 %v5285, 2147483648
    %v5298 = vor.u32 1.1754944e-38, %v5297
    %v5299 = vsel %vm5296, %v5298, %v5294
    %v5300 = vmul.f32 %v5275, %v5299
    %v5301 = vmin.f32 %v5300, 1.0
    %v5302 = vmax.f32 %v5301, -1.0
    %v5303 = vmul.f32 %v4858, %v4858
    %v5304 = vmin.f32 16.0, %v5303
    %v5305 = vmul.f32 %v5304, 2.1237322e-06
    %v5306 = vadd.f32 %v5305, 0.00028619796
    %v5307 = vmul.f32 %v5304, %v5306
    %v5308 = vadd.f32 %v5307, 0.0036580483
    %v5309 = vmul.f32 %v5304, %v5308
    %v5310 = vadd.f32 %v5309, 0.05243302
    %v5311 = vmul.f32 %v5304, %v5310
    %v5312 = vadd.f32 %v5311, 0.18741608
    %v5313 = vmul.f32 %v5304, %v5312
    %v5314 = vadd.f32 %v5313, 1.1283791
    %v5315 = vmul.f32 %v4858, %v5314
    %v5316 = vmul.f32 %v5304, 3.8918573e-05
    %v5317 = vadd.f32 %v5316, 0.001143296
    %v5318 = vmul.f32 %v5304, %v5317
    %v5319 = vadd.f32 %v5318, 0.014752088
    %v5320 = vmul.f32 %v5304, %v5319
    %v5321 = vadd.f32 %v5320, 0.112945676
    %v5322 = vmul.f32 %v5304, %v5321
    %v5323 = vadd.f32 %v5322, 0.4994258
    %v5324 = vmul.f32 %v5304, %v5323
    %v5325 = vadd.f32 %v5324, 1.0
    %v5326 = vrcp.pop %v5325
    %v5327 = vmul.f32 %v5325, %v5326
    %v5328 = vsub.f32 1.0, %v5327
    %v5329 = vmul.f32 %v5326, %v5328
    %v5330 = vadd.f32 %v5326, %v5329
    %vm5331 = vweird.f32 %v5325
    %vm5332 = vweird.f32 %v5326
    %vm5333 = vmor %vm5331, %vm5332
    %v5334 = vsel %vm5333, %v5326, %v5330
    %v5335 = vand.u32 2147483647, %v5325
    %vm5336 = vcmp.eq.f32.partialorder %v5335, 8.507059e+37
    %v5337 = vand.u32 %v5325, 2147483648
    %v5338 = vor.u32 1.1754944e-38, %v5337
    %v5339 = vsel %vm5336, %v5338, %v5334
    %v5340 = vmul.f32 %v5315, %v5339
    %v5341 = vmin.f32 %v5340, 1.0
    %v5342 = vmax.f32 %v5341, -1.0
    %v5343 = vmul.f32 %v4859, %v4859
    %v5344 = vmin.f32 16.0, %v5343
    %v5345 = vmul.f32 %v5344, 2.1237322e-06
    %v5346 = vadd.f32 %v5345, 0.00028619796
    %v5347 = vmul.f32 %v5344, %v5346
    %v5348 = vadd.f32 %v5347, 0.0036580483
    %v5349 = vmul.f32 %v5344, %v5348
    %v5350 = vadd.f32 %v5349, 0.05243302
    %v5351 = vmul.f32 %v5344, %v5350
    %v5352 = vadd.f32 %v5351, 0.18741608
    %v5353 = vmul.f32 %v5344, %v5352
    %v5354 = vadd.f32 %v5353, 1.1283791
    %v5355 = vmul.f32 %v4859, %v5354
    %v5356 = vmul.f32 %v5344, 3.8918573e-05
    %v5357 = vadd.f32 %v5356, 0.001143296
    %v5358 = vmul.f32 %v5344, %v5357
    %v5359 = vadd.f32 %v5358, 0.014752088
    %v5360 = vmul.f32 %v5344, %v5359
    %v5361 = vadd.f32 %v5360, 0.112945676
    %v5362 = vmul.f32 %v5344, %v5361
    %v5363 = vadd.f32 %v5362, 0.4994258
    %v5364 = vmul.f32 %v5344, %v5363
    %v5365 = vadd.f32 %v5364, 1.0
    %v5366 = vrcp.pop %v5365
    %v5367 = vmul.f32 %v5365, %v5366
    %v5368 = vsub.f32 1.0, %v5367
    %v5369 = vmul.f32 %v5366, %v5368
    %v5370 = vadd.f32 %v5366, %v5369
    %vm5371 = vweird.f32 %v5365
    %vm5372 = vweird.f32 %v5366
    %vm5373 = vmor %vm5371, %vm5372
    %v5374 = vsel %vm5373, %v5366, %v5370
    %v5375 = vand.u32 2147483647, %v5365
    %vm5376 = vcmp.eq.f32.partialorder %v5375, 8.507059e+37
    %v5377 = vand.u32 %v5365, 2147483648
    %v5378 = vor.u32 1.1754944e-38, %v5377
    %v5379 = vsel %vm5376, %v5378, %v5374
    %v5380 = vmul.f32 %v5355, %v5379
    %v5381 = vmin.f32 %v5380, 1.0
    %v5382 = vmax.f32 %v5381, -1.0
    %v5383 = vmul.f32 %v4860, %v4860
    %v5384 = vmin.f32 16.0, %v5383
    %v5385 = vmul.f32 %v5384, 2.1237322e-06
    %v5386 = vadd.f32 %v5385, 0.00028619796
    %v5387 = vmul.f32 %v5384, %v5386
    %v5388 = vadd.f32 %v5387, 0.0036580483
    %v5389 = vmul.f32 %v5384, %v5388
    %v5390 = vadd.f32 %v5389, 0.05243302
    %v5391 = vmul.f32 %v5384, %v5390
    %v5392 = vadd.f32 %v5391, 0.18741608
    %v5393 = vmul.f32 %v5384, %v5392
    %v5394 = vadd.f32 %v5393, 1.1283791
    %v5395 = vmul.f32 %v4860, %v5394
    %v5396 = vmul.f32 %v5384, 3.8918573e-05
    %v5397 = vadd.f32 %v5396, 0.001143296
    %v5398 = vmul.f32 %v5384, %v5397
    %v5399 = vadd.f32 %v5398, 0.014752088
    %v5400 = vmul.f32 %v5384, %v5399
    %v5401 = vadd.f32 %v5400, 0.112945676
    %v5402 = vmul.f32 %v5384, %v5401
    %v5403 = vadd.f32 %v5402, 0.4994258
    %v5404 = vmul.f32 %v5384, %v5403
    %v5405 = vadd.f32 %v5404, 1.0
    %v5406 = vrcp.pop %v5405
    %v5407 = vmul.f32 %v5405, %v5406
    %v5408 = vsub.f32 1.0, %v5407
    %v5409 = vmul.f32 %v5406, %v5408
    %v5410 = vadd.f32 %v5406, %v5409
    %vm5411 = vweird.f32 %v5405
    %vm5412 = vweird.f32 %v5406
    %vm5413 = vmor %vm5411, %vm5412
    %v5414 = vsel %vm5413, %v5406, %v5410
    %v5415 = vand.u32 2147483647, %v5405
    %vm5416 = vcmp.eq.f32.partialorder %v5415, 8.507059e+37
    %v5417 = vand.u32 %v5405, 2147483648
    %v5418 = vor.u32 1.1754944e-38, %v5417
    %v5419 = vsel %vm5416, %v5418, %v5414
    %v5420 = vmul.f32 %v5395, %v5419
    %v5421 = vmin.f32 %v5420, 1.0
    %v5422 = vmax.f32 %v5421, -1.0
    %v5423 = vmul.f32 %v4861, %v4861
    %v5424 = vmin.f32 16.0, %v5423
    %v5425 = vmul.f32 %v5424, 2.1237322e-06
    %v5426 = vadd.f32 %v5425, 0.00028619796
    %v5427 = vmul.f32 %v5424, %v5426
    %v5428 = vadd.f32 %v5427, 0.0036580483
    %v5429 = vmul.f32 %v5424, %v5428
    %v5430 = vadd.f32 %v5429, 0.05243302
    %v5431 = vmul.f32 %v5424, %v5430
    %v5432 = vadd.f32 %v5431, 0.18741608
    %v5433 = vmul.f32 %v5424, %v5432
    %v5434 = vadd.f32 %v5433, 1.1283791
    %v5435 = vmul.f32 %v4861, %v5434
    %v5436 = vmul.f32 %v5424, 3.8918573e-05
    %v5437 = vadd.f32 %v5436, 0.001143296
    %v5438 = vmul.f32 %v5424, %v5437
    %v5439 = vadd.f32 %v5438, 0.014752088
    %v5440 = vmul.f32 %v5424, %v5439
    %v5441 = vadd.f32 %v5440, 0.112945676
    %v5442 = vmul.f32 %v5424, %v5441
    %v5443 = vadd.f32 %v5442, 0.4994258
    %v5444 = vmul.f32 %v5424, %v5443
    %v5445 = vadd.f32 %v5444, 1.0
    %v5446 = vrcp.pop %v5445
    %v5447 = vmul.f32 %v5445, %v5446
    %v5448 = vsub.f32 1.0, %v5447
    %v5449 = vmul.f32 %v5446, %v5448
    %v5450 = vadd.f32 %v5446, %v5449
    %vm5451 = vweird.f32 %v5445
    %vm5452 = vweird.f32 %v5446
    %vm5453 = vmor %vm5451, %vm5452
    %v5454 = vsel %vm5453, %v5446, %v5450
    %v5455 = vand.u32 2147483647, %v5445
    %vm5456 = vcmp.eq.f32.partialorder %v5455, 8.507059e+37
    %v5457 = vand.u32 %v5445, 2147483648
    %v5458 = vor.u32 1.1754944e-38, %v5457
    %v5459 = vsel %vm5456, %v5458, %v5454
    %v5460 = vmul.f32 %v5435, %v5459
    %v5461 = vmin.f32 %v5460, 1.0
    %v5462 = vmax.f32 %v5461, -1.0
    %v5463 = vmul.f32 %v4862, %v4862
    %v5464 = vmin.f32 16.0, %v5463
    %v5465 = vmul.f32 %v5464, 2.1237322e-06
    %v5466 = vadd.f32 %v5465, 0.00028619796
    %v5467 = vmul.f32 %v5464, %v5466
    %v5468 = vadd.f32 %v5467, 0.0036580483
    %v5469 = vmul.f32 %v5464, %v5468
    %v5470 = vadd.f32 %v5469, 0.05243302
    %v5471 = vmul.f32 %v5464, %v5470
    %v5472 = vadd.f32 %v5471, 0.18741608
    %v5473 = vmul.f32 %v5464, %v5472
    %v5474 = vadd.f32 %v5473, 1.1283791
    %v5475 = vmul.f32 %v4862, %v5474
    %v5476 = vmul.f32 %v5464, 3.8918573e-05
    %v5477 = vadd.f32 %v5476, 0.001143296
    %v5478 = vmul.f32 %v5464, %v5477
    %v5479 = vadd.f32 %v5478, 0.014752088
    %v5480 = vmul.f32 %v5464, %v5479
    %v5481 = vadd.f32 %v5480, 0.112945676
    %v5482 = vmul.f32 %v5464, %v5481
    %v5483 = vadd.f32 %v5482, 0.4994258
    %v5484 = vmul.f32 %v5464, %v5483
    %v5485 = vadd.f32 %v5484, 1.0
    %v5486 = vrcp.pop %v5485
    %v5487 = vmul.f32 %v5485, %v5486
    %v5488 = vsub.f32 1.0, %v5487
    %v5489 = vmul.f32 %v5486, %v5488
    %v5490 = vadd.f32 %v5486, %v5489
    %vm5491 = vweird.f32 %v5485
    %vm5492 = vweird.f32 %v5486
    %vm5493 = vmor %vm5491, %vm5492
    %v5494 = vsel %vm5493, %v5486, %v5490
    %v5495 = vand.u32 2147483647, %v5485
    %vm5496 = vcmp.eq.f32.partialorder %v5495, 8.507059e+37
    %v5497 = vand.u32 %v5485, 2147483648
    %v5498 = vor.u32 1.1754944e-38, %v5497
    %v5499 = vsel %vm5496, %v5498, %v5494
    %v5500 = vmul.f32 %v5475, %v5499
    %v5501 = vmin.f32 %v5500, 1.0
    %v5502 = vmax.f32 %v5501, -1.0
    %v5503 = vadd.f32 %v4902, 1.0
    %v5504 = vadd.f32 %v4942, 1.0
    %v5505 = vadd.f32 %v4982, 1.0
    %v5506 = vadd.f32 %v5022, 1.0
    %v5507 = vadd.f32 %v5062, 1.0
    %v5508 = vadd.f32 %v5102, 1.0
    %v5509 = vadd.f32 %v5142, 1.0
    %v5510 = vadd.f32 %v5182, 1.0
    %v5511 = vadd.f32 %v5222, 1.0
    %v5512 = vadd.f32 %v5262, 1.0
    %v5513 = vadd.f32 %v5302, 1.0
    %v5514 = vadd.f32 %v5342, 1.0
    %v5515 = vadd.f32 %v5382, 1.0
    %v5516 = vadd.f32 %v5422, 1.0
    %v5517 = vadd.f32 %v5462, 1.0
    %v5518 = vadd.f32 %v5502, 1.0
    %v5519 = vmul.f32 %v4831, %v5503
    %v5520 = vmul.f32 %v4832, %v5504
    %v5521 = vmul.f32 %v4833, %v5505
    %v5522 = vmul.f32 %v4834, %v5506
    %v5523 = vmul.f32 %v4835, %v5507
    %v5524 = vmul.f32 %v4836, %v5508
    %v5525 = vmul.f32 %v4837, %v5509
    %v5526 = vmul.f32 %v4838, %v5510
    %v5527 = vmul.f32 %v4839, %v5511
    %v5528 = vmul.f32 %v4840, %v5512
    %v5529 = vmul.f32 %v4841, %v5513
    %v5530 = vmul.f32 %v4842, %v5514
    %v5531 = vmul.f32 %v4843, %v5515
    %v5532 = vmul.f32 %v4844, %v5516
    %v5533 = vmul.f32 %v4845, %v5517
    %v5534 = vmul.f32 %v4846, %v5518
    %v5535 = vld [vmem:[%s3] sm:$0xff]
    %v5536 = vld [vmem:[%s3 + $0x8] sm:$0xff]
    %v5537 = vld [vmem:[%s3 + $0x10] sm:$0xff]
    %v5538 = vld [vmem:[%s3 + $0x18] sm:$0xff]
    %v5539 = vld [vmem:[%s3 + $0x20] sm:$0xff]
    %v5540 = vld [vmem:[%s3 + $0x28] sm:$0xff]
    %v5541 = vld [vmem:[%s3 + $0x30] sm:$0xff]
    %v5542 = vld [vmem:[%s3 + $0x38] sm:$0xff]
    %v5543 = vld [vmem:[%s3 + $0x40] sm:$0xff]
    %v5544 = vld [vmem:[%s3 + $0x48] sm:$0xff]
    %v5545 = vld [vmem:[%s3 + $0x50] sm:$0xff]
    %v5546 = vld [vmem:[%s3 + $0x58] sm:$0xff]
    %v5547 = vld [vmem:[%s3 + $0x60] sm:$0xff]
    %v5548 = vld [vmem:[%s3 + $0x68] sm:$0xff]
    %v5549 = vld [vmem:[%s3 + $0x70] sm:$0xff]
    %v5550 = vld [vmem:[%s3 + $0x78] sm:$0xff]
    %v5551 = vld [vmem:[%s3 + $0x80] sm:$0xff]
    %v5552 = vld [vmem:[%s3 + $0x88] sm:$0xff]
    %v5553 = vld [vmem:[%s3 + $0x90] sm:$0xff]
    %v5554 = vld [vmem:[%s3 + $0x98] sm:$0xff]
    %v5555 = vld [vmem:[%s3 + $0xa0] sm:$0xff]
    %v5556 = vld [vmem:[%s3 + $0xa8] sm:$0xff]
    %v5557 = vld [vmem:[%s3 + $0xb0] sm:$0xff]
    %v5558 = vld [vmem:[%s3 + $0xb8] sm:$0xff]
    %v5559 = vld [vmem:[%s3 + $0xc0] sm:$0xff]
    %v5560 = vld [vmem:[%s3 + $0xc8] sm:$0xff]
    %v5561 = vld [vmem:[%s3 + $0xd0] sm:$0xff]
    %v5562 = vld [vmem:[%s3 + $0xd8] sm:$0xff]
    %v5563 = vld [vmem:[%s3 + $0xe0] sm:$0xff]
    %v5564 = vld [vmem:[%s3 + $0xe8] sm:$0xff]
    %v5565 = vld [vmem:[%s3 + $0xf0] sm:$0xff]
    %v5566 = vld [vmem:[%s3 + $0xf8] sm:$0xff]
    %v5567 = vld [vmem:[%s3 + $0x100] sm:$0xff]
    %v5568 = vld [vmem:[%s3 + $0x108] sm:$0xff]
    %v5569 = vld [vmem:[%s3 + $0x110] sm:$0xff]
    %v5570 = vld [vmem:[%s3 + $0x118] sm:$0xff]
    %v5571 = vld [vmem:[%s3 + $0x120] sm:$0xff]
    %v5572 = vld [vmem:[%s3 + $0x128] sm:$0xff]
    %v5573 = vld [vmem:[%s3 + $0x130] sm:$0xff]
    %v5574 = vld [vmem:[%s3 + $0x138] sm:$0xff]
    %v5575 = vld [vmem:[%s3 + $0x140] sm:$0xff]
    %v5576 = vld [vmem:[%s3 + $0x148] sm:$0xff]
    %v5577 = vld [vmem:[%s3 + $0x150] sm:$0xff]
    %v5578 = vld [vmem:[%s3 + $0x158] sm:$0xff]
    %v5579 = vld [vmem:[%s3 + $0x160] sm:$0xff]
    %v5580 = vld [vmem:[%s3 + $0x168] sm:$0xff]
    %v5581 = vld [vmem:[%s3 + $0x170] sm:$0xff]
    %v5582 = vld [vmem:[%s3 + $0x178] sm:$0xff]
    %v5583 = vld [vmem:[%s3 + $0x180] sm:$0xff]
    %v5584 = vld [vmem:[%s3 + $0x188] sm:$0xff]
    %v5585 = vld [vmem:[%s3 + $0x190] sm:$0xff]
    %v5586 = vld [vmem:[%s3 + $0x198] sm:$0xff]
    %v5587 = vld [vmem:[%s3 + $0x1a0] sm:$0xff]
    %v5588 = vld [vmem:[%s3 + $0x1a8] sm:$0xff]
    %v5589 = vld [vmem:[%s3 + $0x1b0] sm:$0xff]
    %v5590 = vld [vmem:[%s3 + $0x1b8] sm:$0xff]
    %v5591 = vld [vmem:[%s3 + $0x1c0] sm:$0xff]
    %v5592 = vld [vmem:[%s3 + $0x1c8] sm:$0xff]
    %v5593 = vld [vmem:[%s3 + $0x1d0] sm:$0xff]
    %v5594 = vld [vmem:[%s3 + $0x1d8] sm:$0xff]
    %v5595 = vld [vmem:[%s3 + $0x1e0] sm:$0xff]
    %v5596 = vld [vmem:[%s3 + $0x1e8] sm:$0xff]
    %v5597 = vld [vmem:[%s3 + $0x1f0] sm:$0xff]
    %v5598 = vld [vmem:[%s3 + $0x1f8] sm:$0xff]
    %v5599 = vld [vmem:[%s3 + $0x200] sm:$0xff]
    %v5600 = vld [vmem:[%s3 + $0x208] sm:$0xff]
    %v5601 = vld [vmem:[%s3 + $0x210] sm:$0xff]
    %v5602 = vld [vmem:[%s3 + $0x218] sm:$0xff]
    %v5603 = vld [vmem:[%s3 + $0x220] sm:$0xff]
    %v5604 = vld [vmem:[%s3 + $0x228] sm:$0xff]
    %v5605 = vld [vmem:[%s3 + $0x230] sm:$0xff]
    %v5606 = vld [vmem:[%s3 + $0x238] sm:$0xff]
    %v5607 = vld [vmem:[%s3 + $0x240] sm:$0xff]
    %v5608 = vld [vmem:[%s3 + $0x248] sm:$0xff]
    %v5609 = vld [vmem:[%s3 + $0x250] sm:$0xff]
    %v5610 = vld [vmem:[%s3 + $0x258] sm:$0xff]
    %v5611 = vld [vmem:[%s3 + $0x260] sm:$0xff]
    %v5612 = vld [vmem:[%s3 + $0x268] sm:$0xff]
    %v5613 = vld [vmem:[%s3 + $0x270] sm:$0xff]
    %v5614 = vld [vmem:[%s3 + $0x278] sm:$0xff]
    %v5615 = vld [vmem:[%s3 + $0x280] sm:$0xff]
    %v5616 = vld [vmem:[%s3 + $0x288] sm:$0xff]
    %v5617 = vld [vmem:[%s3 + $0x290] sm:$0xff]
    %v5618 = vld [vmem:[%s3 + $0x298] sm:$0xff]
    %v5619 = vld [vmem:[%s3 + $0x2a0] sm:$0xff]
    %v5620 = vld [vmem:[%s3 + $0x2a8] sm:$0xff]
    %v5621 = vld [vmem:[%s3 + $0x2b0] sm:$0xff]
    %v5622 = vld [vmem:[%s3 + $0x2b8] sm:$0xff]
    %v5623 = vld [vmem:[%s3 + $0x2c0] sm:$0xff]
    %v5624 = vld [vmem:[%s3 + $0x2c8] sm:$0xff]
    %v5625 = vld [vmem:[%s3 + $0x2d0] sm:$0xff]
    %v5626 = vld [vmem:[%s3 + $0x2d8] sm:$0xff]
    %v5627 = vld [vmem:[%s3 + $0x2e0] sm:$0xff]
    %v5628 = vld [vmem:[%s3 + $0x2e8] sm:$0xff]
    %v5629 = vld [vmem:[%s3 + $0x2f0] sm:$0xff]
    %v5630 = vld [vmem:[%s3 + $0x2f8] sm:$0xff]
    %v5631 = vld [vmem:[%s3 + $0x300] sm:$0xff]
    %v5632 = vld [vmem:[%s3 + $0x308] sm:$0xff]
    %v5633 = vld [vmem:[%s3 + $0x310] sm:$0xff]
    %v5634 = vld [vmem:[%s3 + $0x318] sm:$0xff]
    %v5635 = vld [vmem:[%s3 + $0x320] sm:$0xff]
    %v5636 = vld [vmem:[%s3 + $0x328] sm:$0xff]
    %v5637 = vld [vmem:[%s3 + $0x330] sm:$0xff]
    %v5638 = vld [vmem:[%s3 + $0x338] sm:$0xff]
    %v5639 = vld [vmem:[%s3 + $0x340] sm:$0xff]
    %v5640 = vld [vmem:[%s3 + $0x348] sm:$0xff]
    %v5641 = vld [vmem:[%s3 + $0x350] sm:$0xff]
    %v5642 = vld [vmem:[%s3 + $0x358] sm:$0xff]
    %v5643 = vld [vmem:[%s3 + $0x360] sm:$0xff]
    %v5644 = vld [vmem:[%s3 + $0x368] sm:$0xff]
    %v5645 = vld [vmem:[%s3 + $0x370] sm:$0xff]
    %v5646 = vld [vmem:[%s3 + $0x378] sm:$0xff]
    %v5647 = vld [vmem:[%s3 + $0x380] sm:$0xff]
    %v5648 = vld [vmem:[%s3 + $0x388] sm:$0xff]
    %v5649 = vld [vmem:[%s3 + $0x390] sm:$0xff]
    %v5650 = vld [vmem:[%s3 + $0x398] sm:$0xff]
    %v5651 = vld [vmem:[%s3 + $0x3a0] sm:$0xff]
    %v5652 = vld [vmem:[%s3 + $0x3a8] sm:$0xff]
    %v5653 = vld [vmem:[%s3 + $0x3b0] sm:$0xff]
    %v5654 = vld [vmem:[%s3 + $0x3b8] sm:$0xff]
    %v5655 = vld [vmem:[%s3 + $0x3c0] sm:$0xff]
    %v5656 = vld [vmem:[%s3 + $0x3c8] sm:$0xff]
    %v5657 = vld [vmem:[%s3 + $0x3d0] sm:$0xff]
    %v5658 = vld [vmem:[%s3 + $0x3d8] sm:$0xff]
    %v5659 = vld [vmem:[%s3 + $0x3e0] sm:$0xff]
    %v5660 = vld [vmem:[%s3 + $0x3e8] sm:$0xff]
    %v5661 = vld [vmem:[%s3 + $0x3f0] sm:$0xff]
    %v5662 = vld [vmem:[%s3 + $0x3f8] sm:$0xff]
    %v5663 = vld [vmem:[%s3 + $0x400] sm:$0xff]
    %v5664 = vld [vmem:[%s3 + $0x408] sm:$0xff]
    %v5665 = vld [vmem:[%s3 + $0x410] sm:$0xff]
    %v5666 = vld [vmem:[%s3 + $0x418] sm:$0xff]
    %v5667 = vld [vmem:[%s3 + $0x420] sm:$0xff]
    %v5668 = vld [vmem:[%s3 + $0x428] sm:$0xff]
    %v5669 = vld [vmem:[%s3 + $0x430] sm:$0xff]
    %v5670 = vld [vmem:[%s3 + $0x438] sm:$0xff]
    %v5671 = vld [vmem:[%s3 + $0x440] sm:$0xff]
    %v5672 = vld [vmem:[%s3 + $0x448] sm:$0xff]
    %v5673 = vld [vmem:[%s3 + $0x450] sm:$0xff]
    %v5674 = vld [vmem:[%s3 + $0x458] sm:$0xff]
    %v5675 = vld [vmem:[%s3 + $0x460] sm:$0xff]
    %v5676 = vld [vmem:[%s3 + $0x468] sm:$0xff]
    %v5677 = vld [vmem:[%s3 + $0x470] sm:$0xff]
    %v5678 = vld [vmem:[%s3 + $0x478] sm:$0xff]
    %v5679 = vld [vmem:[%s3 + $0x480] sm:$0xff]
    %v5680 = vld [vmem:[%s3 + $0x488] sm:$0xff]
    %v5681 = vld [vmem:[%s3 + $0x490] sm:$0xff]
    %v5682 = vld [vmem:[%s3 + $0x498] sm:$0xff]
    %v5683 = vld [vmem:[%s3 + $0x4a0] sm:$0xff]
    %v5684 = vld [vmem:[%s3 + $0x4a8] sm:$0xff]
    %v5685 = vld [vmem:[%s3 + $0x4b0] sm:$0xff]
    %v5686 = vld [vmem:[%s3 + $0x4b8] sm:$0xff]
    %v5687 = vld [vmem:[%s3 + $0x4c0] sm:$0xff]
    %v5688 = vld [vmem:[%s3 + $0x4c8] sm:$0xff]
    %v5689 = vld [vmem:[%s3 + $0x4d0] sm:$0xff]
    %v5690 = vld [vmem:[%s3 + $0x4d8] sm:$0xff]
    %v5691 = vld [vmem:[%s3 + $0x4e0] sm:$0xff]
    %v5692 = vld [vmem:[%s3 + $0x4e8] sm:$0xff]
    %v5693 = vld [vmem:[%s3 + $0x4f0] sm:$0xff]
    %v5694 = vld [vmem:[%s3 + $0x4f8] sm:$0xff]
    %v5695 = vld [vmem:[%s3 + $0x500] sm:$0xff]
    %v5696 = vld [vmem:[%s3 + $0x508] sm:$0xff]
    %v5697 = vld [vmem:[%s3 + $0x510] sm:$0xff]
    %v5698 = vld [vmem:[%s3 + $0x518] sm:$0xff]
    %v5699 = vld [vmem:[%s3 + $0x520] sm:$0xff]
    %v5700 = vld [vmem:[%s3 + $0x528] sm:$0xff]
    %v5701 = vld [vmem:[%s3 + $0x530] sm:$0xff]
    %v5702 = vld [vmem:[%s3 + $0x538] sm:$0xff]
    %v5703 = vld [vmem:[%s3 + $0x540] sm:$0xff]
    %v5704 = vld [vmem:[%s3 + $0x548] sm:$0xff]
    %v5705 = vld [vmem:[%s3 + $0x550] sm:$0xff]
    %v5706 = vld [vmem:[%s3 + $0x558] sm:$0xff]
    %v5707 = vld [vmem:[%s3 + $0x560] sm:$0xff]
    %v5708 = vld [vmem:[%s3 + $0x568] sm:$0xff]
    %v5709 = vld [vmem:[%s3 + $0x570] sm:$0xff]
    %v5710 = vld [vmem:[%s3 + $0x578] sm:$0xff]
    %v5711 = vld [vmem:[%s3 + $0x580] sm:$0xff]
    %v5712 = vld [vmem:[%s3 + $0x588] sm:$0xff]
    %v5713 = vld [vmem:[%s3 + $0x590] sm:$0xff]
    %v5714 = vld [vmem:[%s3 + $0x598] sm:$0xff]
    %v5715 = vld [vmem:[%s3 + $0x5a0] sm:$0xff]
    %v5716 = vld [vmem:[%s3 + $0x5a8] sm:$0xff]
    %v5717 = vld [vmem:[%s3 + $0x5b0] sm:$0xff]
    %v5718 = vld [vmem:[%s3 + $0x5b8] sm:$0xff]
    %v5719 = vld [vmem:[%s3 + $0x5c0] sm:$0xff]
    %v5720 = vld [vmem:[%s3 + $0x5c8] sm:$0xff]
    %v5721 = vld [vmem:[%s3 + $0x5d0] sm:$0xff]
    %v5722 = vld [vmem:[%s3 + $0x5d8] sm:$0xff]
    %v5723 = vld [vmem:[%s3 + $0x5e0] sm:$0xff]
    %v5724 = vld [vmem:[%s3 + $0x5e8] sm:$0xff]
    %v5725 = vld [vmem:[%s3 + $0x5f0] sm:$0xff]
    %v5726 = vld [vmem:[%s3 + $0x5f8] sm:$0xff]
    %v5727 = vld [vmem:[%s3 + $0x600] sm:$0xff]
    %v5728 = vld [vmem:[%s3 + $0x608] sm:$0xff]
    %v5729 = vld [vmem:[%s3 + $0x610] sm:$0xff]
    %v5730 = vld [vmem:[%s3 + $0x618] sm:$0xff]
    %v5731 = vld [vmem:[%s3 + $0x620] sm:$0xff]
    %v5732 = vld [vmem:[%s3 + $0x628] sm:$0xff]
    %v5733 = vld [vmem:[%s3 + $0x630] sm:$0xff]
    %v5734 = vld [vmem:[%s3 + $0x638] sm:$0xff]
    %v5735 = vld [vmem:[%s3 + $0x640] sm:$0xff]
    %v5736 = vld [vmem:[%s3 + $0x648] sm:$0xff]
    %v5737 = vld [vmem:[%s3 + $0x650] sm:$0xff]
    %v5738 = vld [vmem:[%s3 + $0x658] sm:$0xff]
    %v5739 = vld [vmem:[%s3 + $0x660] sm:$0xff]
    %v5740 = vld [vmem:[%s3 + $0x668] sm:$0xff]
    %v5741 = vld [vmem:[%s3 + $0x670] sm:$0xff]
    %v5742 = vld [vmem:[%s3 + $0x678] sm:$0xff]
    %v5743 = vld [vmem:[%s3 + $0x680] sm:$0xff]
    %v5744 = vld [vmem:[%s3 + $0x688] sm:$0xff]
    %v5745 = vld [vmem:[%s3 + $0x690] sm:$0xff]
    %v5746 = vld [vmem:[%s3 + $0x698] sm:$0xff]
    %v5747 = vld [vmem:[%s3 + $0x6a0] sm:$0xff]
    %v5748 = vld [vmem:[%s3 + $0x6a8] sm:$0xff]
    %v5749 = vld [vmem:[%s3 + $0x6b0] sm:$0xff]
    %v5750 = vld [vmem:[%s3 + $0x6b8] sm:$0xff]
    %v5751 = vld [vmem:[%s3 + $0x6c0] sm:$0xff]
    %v5752 = vld [vmem:[%s3 + $0x6c8] sm:$0xff]
    %v5753 = vld [vmem:[%s3 + $0x6d0] sm:$0xff]
    %v5754 = vld [vmem:[%s3 + $0x6d8] sm:$0xff]
    %v5755 = vld [vmem:[%s3 + $0x6e0] sm:$0xff]
    %v5756 = vld [vmem:[%s3 + $0x6e8] sm:$0xff]
    %v5757 = vld [vmem:[%s3 + $0x6f0] sm:$0xff]
    %v5758 = vld [vmem:[%s3 + $0x6f8] sm:$0xff]
    %v5759 = vld [vmem:[%s3 + $0x700] sm:$0xff]
    %v5760 = vld [vmem:[%s3 + $0x708] sm:$0xff]
    %v5761 = vld [vmem:[%s3 + $0x710] sm:$0xff]
    %v5762 = vld [vmem:[%s3 + $0x718] sm:$0xff]
    %v5763 = vld [vmem:[%s3 + $0x720] sm:$0xff]
    %v5764 = vld [vmem:[%s3 + $0x728] sm:$0xff]
    %v5765 = vld [vmem:[%s3 + $0x730] sm:$0xff]
    %v5766 = vld [vmem:[%s3 + $0x738] sm:$0xff]
    %v5767 = vld [vmem:[%s3 + $0x740] sm:$0xff]
    %v5768 = vld [vmem:[%s3 + $0x748] sm:$0xff]
    %v5769 = vld [vmem:[%s3 + $0x750] sm:$0xff]
    %v5770 = vld [vmem:[%s3 + $0x758] sm:$0xff]
    %v5771 = vld [vmem:[%s3 + $0x760] sm:$0xff]
    %v5772 = vld [vmem:[%s3 + $0x768] sm:$0xff]
    %v5773 = vld [vmem:[%s3 + $0x770] sm:$0xff]
    %v5774 = vld [vmem:[%s3 + $0x778] sm:$0xff]
    %v5775 = vld [vmem:[%s3 + $0x780] sm:$0xff]
    %v5776 = vld [vmem:[%s3 + $0x788] sm:$0xff]
    %v5777 = vld [vmem:[%s3 + $0x790] sm:$0xff]
    %v5778 = vld [vmem:[%s3 + $0x798] sm:$0xff]
    %v5779 = vld [vmem:[%s3 + $0x7a0] sm:$0xff]
    %v5780 = vld [vmem:[%s3 + $0x7a8] sm:$0xff]
    %v5781 = vld [vmem:[%s3 + $0x7b0] sm:$0xff]
    %v5782 = vld [vmem:[%s3 + $0x7b8] sm:$0xff]
    %v5783 = vld [vmem:[%s3 + $0x7c0] sm:$0xff]
    %v5784 = vld [vmem:[%s3 + $0x7c8] sm:$0xff]
    %v5785 = vld [vmem:[%s3 + $0x7d0] sm:$0xff]
    %v5786 = vld [vmem:[%s3 + $0x7d8] sm:$0xff]
    %v5787 = vld [vmem:[%s3 + $0x7e0] sm:$0xff]
    %v5788 = vld [vmem:[%s3 + $0x7e8] sm:$0xff]
    %v5789 = vld [vmem:[%s3 + $0x7f0] sm:$0xff]
    %v5790 = vld [vmem:[%s3 + $0x7f8] sm:$0xff]
    %v5791 = vld [vmem:[#allocation8 + $0x84] ss:$0 sm:$0xff]
    %5792 = vmatpush.msra.mxu0 %v5550
    %5793 = vmatpush.msra.mxu0 %v5549
    %5794 = vmatpush.msra.mxu0 %v5548
    %5795 = vmatpush.msra.mxu0 %v5547
    %5796 = vmatpush.msra.mxu0 %v5546
    %5797 = vmatpush.msra.mxu0 %v5545
    %5798 = vmatpush.msra.mxu0 %v5544
    %5799 = vmatpush.msra.mxu0 %v5543
    %5800 = vmatpush.msra.mxu0 %v5542
    %5801 = vmatpush.msra.mxu0 %v5541
    %5802 = vmatpush.msra.mxu0 %v5540
    %5803 = vmatpush.msra.mxu0 %v5539
    %5804 = vmatpush.msra.mxu0 %v5538
    %5805 = vmatpush.msra.mxu0 %v5537
    %5806 = vmatpush.msra.mxu0 %v5536
    %5807 = vmatpush.msra.mxu0 %v5535
    %5808 = vmatmul.f32.gmra.mxu0 %v5519
    %v5809 = vpop.f32.mrf.mxu0
    %v5810 = vadd.f32 %v5791, %v5809
    %5811 = vdwg.mxu0
    %5812 = vmatpush.msra.mxu0 %v5566
    %5813 = vmatpush.msra.mxu0 %v5565
    %5814 = vmatpush.msra.mxu0 %v5564
    %5815 = vmatpush.msra.mxu0 %v5563
    %5816 = vmatpush.msra.mxu0 %v5562
    %5817 = vmatpush.msra.mxu0 %v5561
    %5818 = vmatpush.msra.mxu0 %v5560
    %5819 = vmatpush.msra.mxu0 %v5559
    %5820 = vmatpush.msra.mxu0 %v5558
    %5821 = vmatpush.msra.mxu0 %v5557
    %5822 = vmatpush.msra.mxu0 %v5556
    %5823 = vmatpush.msra.mxu0 %v5555
    %5824 = vmatpush.msra.mxu0 %v5554
    %5825 = vmatpush.msra.mxu0 %v5553
    %5826 = vmatpush.msra.mxu0 %v5552
    %5827 = vmatpush.msra.mxu0 %v5551
    %5828 = vmatmul.f32.gmra.mxu0 %v5520
    %v5829 = vpop.f32.mrf.mxu0
    %v5830 = vadd.f32 %v5810, %v5829
    %5831 = vdwg.mxu0
    %5832 = vmatpush.msra.mxu0 %v5582
    %5833 = vmatpush.msra.mxu0 %v5581
    %5834 = vmatpush.msra.mxu0 %v5580
    %5835 = vmatpush.msra.mxu0 %v5579
    %5836 = vmatpush.msra.mxu0 %v5578
    %5837 = vmatpush.msra.mxu0 %v5577
    %5838 = vmatpush.msra.mxu0 %v5576
    %5839 = vmatpush.msra.mxu0 %v5575
    %5840 = vmatpush.msra.mxu0 %v5574
    %5841 = vmatpush.msra.mxu0 %v5573
    %5842 = vmatpush.msra.mxu0 %v5572
    %5843 = vmatpush.msra.mxu0 %v5571
    %5844 = vmatpush.msra.mxu0 %v5570
    %5845 = vmatpush.msra.mxu0 %v5569
    %5846 = vmatpush.msra.mxu0 %v5568
    %5847 = vmatpush.msra.mxu0 %v5567
    %5848 = vmatmul.f32.gmra.mxu0 %v5521
    %v5849 = vpop.f32.mrf.mxu0
    %v5850 = vadd.f32 %v5830, %v5849
    %5851 = vdwg.mxu0
    %5852 = vmatpush.msra.mxu0 %v5598
    %5853 = vmatpush.msra.mxu0 %v5597
    %5854 = vmatpush.msra.mxu0 %v5596
    %5855 = vmatpush.msra.mxu0 %v5595
    %5856 = vmatpush.msra.mxu0 %v5594
    %5857 = vmatpush.msra.mxu0 %v5593
    %5858 = vmatpush.msra.mxu0 %v5592
    %5859 = vmatpush.msra.mxu0 %v5591
    %5860 = vmatpush.msra.mxu0 %v5590
    %5861 = vmatpush.msra.mxu0 %v5589
    %5862 = vmatpush.msra.mxu0 %v5588
    %5863 = vmatpush.msra.mxu0 %v5587
    %5864 = vmatpush.msra.mxu0 %v5586
    %5865 = vmatpush.msra.mxu0 %v5585
    %5866 = vmatpush.msra.mxu0 %v5584
    %5867 = vmatpush.msra.mxu0 %v5583
    %5868 = vmatmul.f32.gmra.mxu0 %v5522
    %v5869 = vpop.f32.mrf.mxu0
    %v5870 = vadd.f32 %v5850, %v5869
    %5871 = vdwg.mxu0
    %5872 = vmatpush.msra.mxu0 %v5614
    %5873 = vmatpush.msra.mxu0 %v5613
    %5874 = vmatpush.msra.mxu0 %v5612
    %5875 = vmatpush.msra.mxu0 %v5611
    %5876 = vmatpush.msra.mxu0 %v5610
    %5877 = vmatpush.msra.mxu0 %v5609
    %5878 = vmatpush.msra.mxu0 %v5608
    %5879 = vmatpush.msra.mxu0 %v5607
    %5880 = vmatpush.msra.mxu0 %v5606
    %5881 = vmatpush.msra.mxu0 %v5605
    %5882 = vmatpush.msra.mxu0 %v5604
    %5883 = vmatpush.msra.mxu0 %v5603
    %5884 = vmatpush.msra.mxu0 %v5602
    %5885 = vmatpush.msra.mxu0 %v5601
    %5886 = vmatpush.msra.mxu0 %v5600
    %5887 = vmatpush.msra.mxu0 %v5599
    %5888 = vmatmul.f32.gmra.mxu0 %v5523
    %v5889 = vpop.f32.mrf.mxu0
    %v5890 = vadd.f32 %v5870, %v5889
    %5891 = vdwg.mxu0
    %5892 = vmatpush.msra.mxu0 %v5630
    %5893 = vmatpush.msra.mxu0 %v5629
    %5894 = vmatpush.msra.mxu0 %v5628
    %5895 = vmatpush.msra.mxu0 %v5627
    %5896 = vmatpush.msra.mxu0 %v5626
    %5897 = vmatpush.msra.mxu0 %v5625
    %5898 = vmatpush.msra.mxu0 %v5624
    %5899 = vmatpush.msra.mxu0 %v5623
    %5900 = vmatpush.msra.mxu0 %v5622
    %5901 = vmatpush.msra.mxu0 %v5621
    %5902 = vmatpush.msra.mxu0 %v5620
    %5903 = vmatpush.msra.mxu0 %v5619
    %5904 = vmatpush.msra.mxu0 %v5618
    %5905 = vmatpush.msra.mxu0 %v5617
    %5906 = vmatpush.msra.mxu0 %v5616
    %5907 = vmatpush.msra.mxu0 %v5615
    %5908 = vmatmul.f32.gmra.mxu0 %v5524
    %v5909 = vpop.f32.mrf.mxu0
    %v5910 = vadd.f32 %v5890, %v5909
    %5911 = vdwg.mxu0
    %5912 = vmatpush.msra.mxu0 %v5646
    %5913 = vmatpush.msra.mxu0 %v5645
    %5914 = vmatpush.msra.mxu0 %v5644
    %5915 = vmatpush.msra.mxu0 %v5643
    %5916 = vmatpush.msra.mxu0 %v5642
    %5917 = vmatpush.msra.mxu0 %v5641
    %5918 = vmatpush.msra.mxu0 %v5640
    %5919 = vmatpush.msra.mxu0 %v5639
    %5920 = vmatpush.msra.mxu0 %v5638
    %5921 = vmatpush.msra.mxu0 %v5637
    %5922 = vmatpush.msra.mxu0 %v5636
    %5923 = vmatpush.msra.mxu0 %v5635
    %5924 = vmatpush.msra.mxu0 %v5634
    %5925 = vmatpush.msra.mxu0 %v5633
    %5926 = vmatpush.msra.mxu0 %v5632
    %5927 = vmatpush.msra.mxu0 %v5631
    %5928 = vmatmul.f32.gmra.mxu0 %v5525
    %v5929 = vpop.f32.mrf.mxu0
    %v5930 = vadd.f32 %v5910, %v5929
    %5931 = vdwg.mxu0
    %5932 = vmatpush.msra.mxu0 %v5662
    %5933 = vmatpush.msra.mxu0 %v5661
    %5934 = vmatpush.msra.mxu0 %v5660
    %5935 = vmatpush.msra.mxu0 %v5659
    %5936 = vmatpush.msra.mxu0 %v5658
    %5937 = vmatpush.msra.mxu0 %v5657
    %5938 = vmatpush.msra.mxu0 %v5656
    %5939 = vmatpush.msra.mxu0 %v5655
    %5940 = vmatpush.msra.mxu0 %v5654
    %5941 = vmatpush.msra.mxu0 %v5653
    %5942 = vmatpush.msra.mxu0 %v5652
    %5943 = vmatpush.msra.mxu0 %v5651
    %5944 = vmatpush.msra.mxu0 %v5650
    %5945 = vmatpush.msra.mxu0 %v5649
    %5946 = vmatpush.msra.mxu0 %v5648
    %5947 = vmatpush.msra.mxu0 %v5647
    %5948 = vmatmul.f32.gmra.mxu0 %v5526
    %v5949 = vpop.f32.mrf.mxu0
    %v5950 = vadd.f32 %v5930, %v5949
    %5951 = vdwg.mxu0
    %5952 = vmatpush.msra.mxu0 %v5678
    %5953 = vmatpush.msra.mxu0 %v5677
    %5954 = vmatpush.msra.mxu0 %v5676
    %5955 = vmatpush.msra.mxu0 %v5675
    %5956 = vmatpush.msra.mxu0 %v5674
    %5957 = vmatpush.msra.mxu0 %v5673
    %5958 = vmatpush.msra.mxu0 %v5672
    %5959 = vmatpush.msra.mxu0 %v5671
    %5960 = vmatpush.msra.mxu0 %v5670
    %5961 = vmatpush.msra.mxu0 %v5669
    %5962 = vmatpush.msra.mxu0 %v5668
    %5963 = vmatpush.msra.mxu0 %v5667
    %5964 = vmatpush.msra.mxu0 %v5666
    %5965 = vmatpush.msra.mxu0 %v5665
    %5966 = vmatpush.msra.mxu0 %v5664
    %5967 = vmatpush.msra.mxu0 %v5663
    %5968 = vmatmul.f32.gmra.mxu0 %v5527
    %v5969 = vpop.f32.mrf.mxu0
    %v5970 = vadd.f32 %v5950, %v5969
    %5971 = vdwg.mxu0
    %5972 = vmatpush.msra.mxu0 %v5694
    %5973 = vmatpush.msra.mxu0 %v5693
    %5974 = vmatpush.msra.mxu0 %v5692
    %5975 = vmatpush.msra.mxu0 %v5691
    %5976 = vmatpush.msra.mxu0 %v5690
    %5977 = vmatpush.msra.mxu0 %v5689
    %5978 = vmatpush.msra.mxu0 %v5688
    %5979 = vmatpush.msra.mxu0 %v5687
    %5980 = vmatpush.msra.mxu0 %v5686
    %5981 = vmatpush.msra.mxu0 %v5685
    %5982 = vmatpush.msra.mxu0 %v5684
    %5983 = vmatpush.msra.mxu0 %v5683
    %5984 = vmatpush.msra.mxu0 %v5682
    %5985 = vmatpush.msra.mxu0 %v5681
    %5986 = vmatpush.msra.mxu0 %v5680
    %5987 = vmatpush.msra.mxu0 %v5679
    %5988 = vmatmul.f32.gmra.mxu0 %v5528
    %v5989 = vpop.f32.mrf.mxu0
    %v5990 = vadd.f32 %v5970, %v5989
    %5991 = vdwg.mxu0
    %5992 = vmatpush.msra.mxu0 %v5710
    %5993 = vmatpush.msra.mxu0 %v5709
    %5994 = vmatpush.msra.mxu0 %v5708
    %5995 = vmatpush.msra.mxu0 %v5707
    %5996 = vmatpush.msra.mxu0 %v5706
    %5997 = vmatpush.msra.mxu0 %v5705
    %5998 = vmatpush.msra.mxu0 %v5704
    %5999 = vmatpush.msra.mxu0 %v5703
    %6000 = vmatpush.msra.mxu0 %v5702
    %6001 = vmatpush.msra.mxu0 %v5701
    %6002 = vmatpush.msra.mxu0 %v5700
    %6003 = vmatpush.msra.mxu0 %v5699
    %6004 = vmatpush.msra.mxu0 %v5698
    %6005 = vmatpush.msra.mxu0 %v5697
    %6006 = vmatpush.msra.mxu0 %v5696
    %6007 = vmatpush.msra.mxu0 %v5695
    %6008 = vmatmul.f32.gmra.mxu0 %v5529
    %v6009 = vpop.f32.mrf.mxu0
    %v6010 = vadd.f32 %v5990, %v6009
    %6011 = vdwg.mxu0
    %6012 = vmatpush.msra.mxu0 %v5726
    %6013 = vmatpush.msra.mxu0 %v5725
    %6014 = vmatpush.msra.mxu0 %v5724
    %6015 = vmatpush.msra.mxu0 %v5723
    %6016 = vmatpush.msra.mxu0 %v5722
    %6017 = vmatpush.msra.mxu0 %v5721
    %6018 = vmatpush.msra.mxu0 %v5720
    %6019 = vmatpush.msra.mxu0 %v5719
    %6020 = vmatpush.msra.mxu0 %v5718
    %6021 = vmatpush.msra.mxu0 %v5717
    %6022 = vmatpush.msra.mxu0 %v5716
    %6023 = vmatpush.msra.mxu0 %v5715
    %6024 = vmatpush.msra.mxu0 %v5714
    %6025 = vmatpush.msra.mxu0 %v5713
    %6026 = vmatpush.msra.mxu0 %v5712
    %6027 = vmatpush.msra.mxu0 %v5711
    %6028 = vmatmul.f32.gmra.mxu0 %v5530
    %v6029 = vpop.f32.mrf.mxu0
    %v6030 = vadd.f32 %v6010, %v6029
    %6031 = vdwg.mxu0
    %6032 = vmatpush.msra.mxu0 %v5742
    %6033 = vmatpush.msra.mxu0 %v5741
    %6034 = vmatpush.msra.mxu0 %v5740
    %6035 = vmatpush.msra.mxu0 %v5739
    %6036 = vmatpush.msra.mxu0 %v5738
    %6037 = vmatpush.msra.mxu0 %v5737
    %6038 = vmatpush.msra.mxu0 %v5736
    %6039 = vmatpush.msra.mxu0 %v5735
    %6040 = vmatpush.msra.mxu0 %v5734
    %6041 = vmatpush.msra.mxu0 %v5733
    %6042 = vmatpush.msra.mxu0 %v5732
    %6043 = vmatpush.msra.mxu0 %v5731
    %6044 = vmatpush.msra.mxu0 %v5730
    %6045 = vmatpush.msra.mxu0 %v5729
    %6046 = vmatpush.msra.mxu0 %v5728
    %6047 = vmatpush.msra.mxu0 %v5727
    %6048 = vmatmul.f32.gmra.mxu0 %v5531
    %v6049 = vpop.f32.mrf.mxu0
    %v6050 = vadd.f32 %v6030, %v6049
    %6051 = vdwg.mxu0
    %6052 = vmatpush.msra.mxu0 %v5758
    %6053 = vmatpush.msra.mxu0 %v5757
    %6054 = vmatpush.msra.mxu0 %v5756
    %6055 = vmatpush.msra.mxu0 %v5755
    %6056 = vmatpush.msra.mxu0 %v5754
    %6057 = vmatpush.msra.mxu0 %v5753
    %6058 = vmatpush.msra.mxu0 %v5752
    %6059 = vmatpush.msra.mxu0 %v5751
    %6060 = vmatpush.msra.mxu0 %v5750
    %6061 = vmatpush.msra.mxu0 %v5749
    %6062 = vmatpush.msra.mxu0 %v5748
    %6063 = vmatpush.msra.mxu0 %v5747
    %6064 = vmatpush.msra.mxu0 %v5746
    %6065 = vmatpush.msra.mxu0 %v5745
    %6066 = vmatpush.msra.mxu0 %v5744
    %6067 = vmatpush.msra.mxu0 %v5743
    %6068 = vmatmul.f32.gmra.mxu0 %v5532
    %v6069 = vpop.f32.mrf.mxu0
    %v6070 = vadd.f32 %v6050, %v6069
    %6071 = vdwg.mxu0
    %6072 = vmatpush.msra.mxu0 %v5774
    %6073 = vmatpush.msra.mxu0 %v5773
    %6074 = vmatpush.msra.mxu0 %v5772
    %6075 = vmatpush.msra.mxu0 %v5771
    %6076 = vmatpush.msra.mxu0 %v5770
    %6077 = vmatpush.msra.mxu0 %v5769
    %6078 = vmatpush.msra.mxu0 %v5768
    %6079 = vmatpush.msra.mxu0 %v5767
    %6080 = vmatpush.msra.mxu0 %v5766
    %6081 = vmatpush.msra.mxu0 %v5765
    %6082 = vmatpush.msra.mxu0 %v5764
    %6083 = vmatpush.msra.mxu0 %v5763
    %6084 = vmatpush.msra.mxu0 %v5762
    %6085 = vmatpush.msra.mxu0 %v5761
    %6086 = vmatpush.msra.mxu0 %v5760
    %6087 = vmatpush.msra.mxu0 %v5759
    %6088 = vmatmul.f32.gmra.mxu0 %v5533
    %v6089 = vpop.f32.mrf.mxu0
    %v6090 = vadd.f32 %v6070, %v6089
    %6091 = vdwg.mxu0
    %6092 = vmatpush.msra.mxu0 %v5790
    %6093 = vmatpush.msra.mxu0 %v5789
    %6094 = vmatpush.msra.mxu0 %v5788
    %6095 = vmatpush.msra.mxu0 %v5787
    %6096 = vmatpush.msra.mxu0 %v5786
    %6097 = vmatpush.msra.mxu0 %v5785
    %6098 = vmatpush.msra.mxu0 %v5784
    %6099 = vmatpush.msra.mxu0 %v5783
    %6100 = vmatpush.msra.mxu0 %v5782
    %6101 = vmatpush.msra.mxu0 %v5781
    %6102 = vmatpush.msra.mxu0 %v5780
    %6103 = vmatpush.msra.mxu0 %v5779
    %6104 = vmatpush.msra.mxu0 %v5778
    %6105 = vmatpush.msra.mxu0 %v5777
    %6106 = vmatpush.msra.mxu0 %v5776
    %6107 = vmatpush.msra.mxu0 %v5775
    %6108 = vmatmul.f32.gmra.mxu0 %v5534
    %v6109 = vpop.f32.mrf.mxu0
    %v6110 = vadd.f32 %v6090, %v6109
    %6111 = vdwg.mxu0
    %vm6112 = vcmask 123904
    %6113 = vst.msk [vmem:[#allocation10] sm:$0x3] %vm6112, %v6110
    // Predicated region
    $region38: #{tpu_custom_call.1} parent=1 // pred_check
      _
    $region39: #{tpu_custom_call.1} parent=1 // pred_check_branch
      %6115 = sbr.rel (0) target = $region41
    $region40: #{tpu_custom_call.1} parent=1 // pred_region
      %6117 = vsyncadd [#allocation4], 0
      %s6119 = sshll.u32 [#allocation10], 4
      %s6120 = int_to_ptr.vmem [resolvable:$true] %s6119
      %s6121 = sshll.u32 %s5, 4
      %s6122 = int_to_ptr.hbm [resolvable:$true] %s6121
      %6124 = dma.vmem_to_hbm [thread:$0]  %s6120, 32, %s6122, [#allocation4]
    $region41: #{tpu_custom_call.1} parent=1 // pred_fallthru
      _
    // Predicated region
    $region42: #{tpu_custom_call.1} parent=1 // pred_check
      _
    $region43: #{tpu_custom_call.1} parent=1 // pred_check_branch
      %6126 = sbr.rel (0) target = $region45
    $region44: #{tpu_custom_call.1} parent=1 // pred_region
      %6128 = dma.done [#allocation4], 32
    $region45: #{tpu_custom_call.1} parent=1 // pred_fallthru
      _
    %6129 = vsyncpa [#allocation3], 1
    %6130 = vsyncpa [#allocation6], 1
    %6131 = vsyncpa [#allocation9], 1
    %6132 = vsyncpa [#allocation4], 1

</llo_original>
